<compile_context>
chip_gen: v7x
topology: tpu7x:2x2x1
jax: 0.10.0
libtpu: 0.0.40
codegen_flags: <defaults>
</compile_context>

<pallas_src>
import functools

import jax
import jax.numpy as jnp
from jax.experimental import pallas as pl
from jax.experimental.pallas import tpu as pltpu

KERNEL_SIZE = 3
PADDING = 1
C_MAX = 128  # lane-dense channel slab


def _fused_layer_kernel(x_ref, w_ref, b_ref, o_ref, buf_ref, acc_ref, *,
                        H, W, C, n_layers):
    """One conv layer of one image per grid step; state lives in buf_ref.

    x_ref  : (1, H, W, C)      channel-padded network input, bf16
    w_ref  : (1, 9, C, C)      this layer's weights, tap-major (kh*3+kw), bf16
    b_ref  : (1, 1, C)         this layer's bias (zero-padded), f32
    o_ref  : (1, H, W, C)      final activations, f32 (written at last layer)
    buf_ref: (1, H+2, W+2, C)  padded activation state, bf16 (persists over layers)
    acc_ref: (H*W, C)          f32 matmul accumulator
    """
    layer = pl.program_id(1)
    Hp = H + 2 * PADDING
    Wp = W + 2 * PADDING
    M = H * W

    # First layer of each image: zero only the halo strips (interior is fully
    # overwritten every layer and the halo is never written again), then load x.
    @pl.when(layer == 0)
    def _init():
        buf_ref[:, 0:1, :, :] = jnp.zeros((1, 1, Wp, C), buf_ref.dtype)
        buf_ref[:, Hp - 1:Hp, :, :] = jnp.zeros((1, 1, Wp, C), buf_ref.dtype)
        buf_ref[:, :, 0:1, :] = jnp.zeros((1, Hp, 1, C), buf_ref.dtype)
        buf_ref[:, :, Wp - 1:Wp, :] = jnp.zeros((1, Hp, 1, C), buf_ref.dtype)
        buf_ref[:, PADDING:H + PADDING, PADDING:W + PADDING, :] = (
            x_ref[...].astype(buf_ref.dtype))

    # Accumulator initialised with the broadcast bias (folds the bias add).
    acc_ref[...] = jnp.broadcast_to(b_ref[0], (M, C))

    # 9 direct tap matmuls, bf16 x bf16 -> f32, accumulated in VMEM scratch.
    for kh in range(KERNEL_SIZE):
        for kw in range(KERNEL_SIZE):
            tap = buf_ref[:, kh:kh + H, kw:kw + W, :].reshape(M, C)
            acc_ref[...] += jnp.dot(tap, w_ref[0, kh * KERNEL_SIZE + kw],
                                    preferred_element_type=jnp.float32)

    # Epilogue: ReLU -> bf16 state for hidden layers, f32 Sigmoid output last.
    @pl.when(layer < n_layers - 1)
    def _relu_store():
        buf_ref[:, PADDING:H + PADDING, PADDING:W + PADDING, :] = (
            jnp.maximum(acc_ref[...], 0.0).reshape(1, H, W, C)
            .astype(buf_ref.dtype))

    @pl.when(layer == n_layers - 1)
    def _final_store():
        o_ref[...] = jax.nn.sigmoid(acc_ref[...]).reshape(1, H, W, C)


def init_params(key, in_channels, num_classes, hidden_size, c_max=C_MAX):
    """Deterministic synthetic init matching the PyTorch module's conv shapes."""
    half = hidden_size // 2
    layer_defs = [
        (in_channels, half), (half, hidden_size),                  # block 1 (start)
        (hidden_size, hidden_size), (hidden_size, hidden_size),    # block 2
        (hidden_size, hidden_size), (hidden_size, hidden_size),    # block 3
        (hidden_size, hidden_size), (hidden_size, hidden_size),    # block 4
        (hidden_size, half), (half, num_classes),                  # block 5 (end)
    ]
    assert c_max >= max(in_channels, hidden_size, num_classes)
    w_list, b_list, raw = [], [], []
    for i, (cin, cout) in enumerate(layer_defs):
        kw_, kb_ = jax.random.split(jax.random.fold_in(key, i))
        fan_in = cin * KERNEL_SIZE * KERNEL_SIZE
        scale = 1.0 / jnp.sqrt(jnp.float32(fan_in))
        w = jax.random.uniform(kw_, (KERNEL_SIZE, KERNEL_SIZE, cin, cout),
                               jnp.float32, -scale, scale)
        b = jax.random.uniform(kb_, (cout,), jnp.float32, -scale, scale)
        raw.append((w, b))
        # Zero-pad cin/cout to the lane-dense slab: padded input channels are
        # zero, padded weight rows/cols contribute nothing, padded outputs get
        # bias 0 and stay zero through ReLU -> semantics unchanged.
        wp = jnp.pad(w, ((0, 0), (0, 0), (0, c_max - cin), (0, c_max - cout)))
        bp = jnp.pad(b, ((0, c_max - cout),))
        # (3, 3, C, C) -> (9, C, C): tap-major layout for in-kernel indexing.
        w_list.append(wp.reshape(KERNEL_SIZE * KERNEL_SIZE, c_max, c_max)
                        .astype(jnp.bfloat16))
        b_list.append(bp.reshape(1, c_max))
    w_all = jnp.stack(w_list)        # (L, 9, C, C) bf16
    b_all = jnp.stack(b_list)        # (L, 1, C)    f32
    return (w_all, b_all, c_max, num_classes), raw


def simple_net_forward(x_nchw, params):
    w_all, b_all, c_max, num_classes = params
    N, cin, H, W = x_nchw.shape
    n_layers = w_all.shape[0]
    n_taps = KERNEL_SIZE * KERNEL_SIZE

    # NCHW -> NHWC once, pad channels once to the lane-dense slab, cast bf16.
    x = jnp.transpose(x_nchw, (0, 2, 3, 1))
    x = jnp.pad(x, ((0, 0), (0, 0), (0, 0), (0, c_max - cin))).astype(jnp.bfloat16)

    kernel = functools.partial(_fused_layer_kernel,
                               H=H, W=W, C=c_max, n_layers=n_layers)
    out_nhwc = pl.pallas_call(
        kernel,
        out_shape=jax.ShapeDtypeStruct((N, H, W, c_max), jnp.float32),
        grid_spec=pltpu.PrefetchScalarGridSpec(
            num_scalar_prefetch=0,
            grid=(N, n_layers),
            in_specs=[
                pl.BlockSpec((1, H, W, c_max), lambda b, l: (b, 0, 0, 0)),
                pl.BlockSpec((1, n_taps, c_max, c_max), lambda b, l: (l, 0, 0, 0)),
                pl.BlockSpec((1, 1, c_max), lambda b, l: (l, 0, 0)),
            ],
            out_specs=pl.BlockSpec((1, H, W, c_max), lambda b, l: (b, 0, 0, 0)),
            scratch_shapes=[
                pltpu.VMEM((1, H + 2 * PADDING, W + 2 * PADDING, c_max),
                           jnp.bfloat16),
                pltpu.VMEM((H * W, c_max), jnp.float32),
            ],
        ),
        compiler_params=pltpu.CompilerParams(
            dimension_semantics=("parallel", "arbitrary")),
    )(x, w_all, b_all)

    # Drop zero-padded channels, return NCHW to match the PyTorch convention.
    return jnp.transpose(out_nhwc[..., :num_classes], (0, 3, 1, 2))


def reference_forward(x_nchw, raw_params):
    """Pure-JAX reference with the same bf16 rounding points as the kernel."""
    x = jnp.transpose(x_nchw, (0, 2, 3, 1)).astype(jnp.bfloat16)
    n = len(raw_params)
    out = None
    for i, (w, b) in enumerate(raw_params):
        y = jax.lax.conv_general_dilated(
            x, w.astype(jnp.bfloat16),
            window_strides=(1, 1),
            padding=((PADDING, PADDING), (PADDING, PADDING)),
            dimension_numbers=("NHWC", "HWIO", "NHWC"),
            preferred_element_type=jnp.float32)
        y = y + b
        if i < n - 1:
            x = jnp.maximum(y, 0.0).astype(jnp.bfloat16)
        else:
            out = jax.nn.sigmoid(y)
    return jnp.transpose(out, (0, 3, 1, 2))


if __name__ == "__main__":
    IN_CHANNELS = 4
    NUM_CLASSES = 3
    HIDDEN_SIZE = 32
    N, H, W = 2, 16, 16

    key = jax.random.PRNGKey(0)
    k_x, k_p = jax.random.split(key)
    x = jax.random.normal(k_x, (N, IN_CHANNELS, H, W), jnp.float32)  # NCHW like PyTorch
    params, raw_params = init_params(k_p, IN_CHANNELS, NUM_CLASSES, HIDDEN_SIZE)

    fwd = jax.jit(lambda xx: simple_net_forward(xx, params))
    out = jax.block_until_ready(fwd(x))

    # Sanity: shape (N, num_classes, H, W); sigmoid output in [0, 1].
    assert out.shape == (N, NUM_CLASSES, H, W), out.shape
    assert bool(jnp.all(jnp.isfinite(out)))
    assert bool(jnp.all((out >= 0.0) & (out <= 1.0)))

    # Numerical check against a pure-JAX reference with matching precision.
    ref = reference_forward(x, raw_params)
    err = float(jnp.max(jnp.abs(out - ref.astype(out.dtype))))
    assert err < 2e-3, f"max abs error vs reference: {err}"

    print("KERNEL_OK")
</pallas_src>

<mosaic_0001>
module attributes {stable_mosaic.version = 11 : i64} {
  func.func @_fused_layer_kernel(%arg0: i32, %arg1: i32, %arg2: memref<1x16x16x128xbf16, #tpu.memory_space<vmem>>, %arg3: memref<1x9x128x128xbf16, #tpu.memory_space<vmem>>, %arg4: memref<1x1x128xf32, #tpu.memory_space<vmem>>, %arg5: memref<1x16x16x128xf32, #tpu.memory_space<vmem>>, %arg6: memref<1x18x18x128xbf16, #tpu.memory_space<vmem>>, %arg7: memref<256x128xf32, #tpu.memory_space<vmem>>) attributes {dimension_semantics = [#tpu.dimension_semantics<parallel>, #tpu.dimension_semantics<arbitrary>], iteration_bounds = array<i64: 2, 10>, scalar_prefetch = 0 : i64, scratch_operands = 2 : i64, tpu.core_type = #tpu.core_type<tc>, window_params = [{transform_indices = @transform_0, window_bounds = array<i64: 1, 16, 16, 128>}, {transform_indices = @transform_1, window_bounds = array<i64: 1, 9, 128, 128>}, {transform_indices = @transform_2, window_bounds = array<i64: 1, 1, 128>}, {transform_indices = @transform_3, window_bounds = array<i64: 1, 16, 16, 128>}]} {
    %c0_i32 = arith.constant 0 : i32
    %0 = arith.cmpi eq, %arg1, %c0_i32 : i32
    %1 = arith.extui %0 : i1 to i32
    %c0_i32_0 = arith.constant 0 : i32
    %2 = arith.cmpi ne, %1, %c0_i32_0 : i32
    scf.if %2 {
      %cst_116 = arith.constant 0.000000e+00 : bf16
      %86 = vector.broadcast %cst_116 : bf16 to vector<1x1x18x128xbf16>
      %c0_117 = arith.constant 0 : index
      %c0_118 = arith.constant 0 : index
      %c0_119 = arith.constant 0 : index
      %c0_120 = arith.constant 0 : index
      %87 = vector.load %arg6[%c0_117, %c0_118, %c0_119, %c0_120] : memref<1x18x18x128xbf16, #tpu.memory_space<vmem>>, vector<1x1x18x128xbf16>
      tpu.vector_store %arg6[%c0_117, %c0_118, %c0_119, %c0_120], %86 {strides = array<i32>} : memref<1x18x18x128xbf16, #tpu.memory_space<vmem>>, vector<1x1x18x128xbf16>,
      %cst_121 = arith.constant 0.000000e+00 : bf16
      %88 = vector.broadcast %cst_121 : bf16 to vector<1x1x18x128xbf16>
      %c0_122 = arith.constant 0 : index
      %c17 = arith.constant 17 : index
      %c0_123 = arith.constant 0 : index
      %c0_124 = arith.constant 0 : index
      %89 = vector.load %arg6[%c0_122, %c17, %c0_123, %c0_124] : memref<1x18x18x128xbf16, #tpu.memory_space<vmem>>, vector<1x1x18x128xbf16>
      tpu.vector_store %arg6[%c0_122, %c17, %c0_123, %c0_124], %88 {strides = array<i32>} : memref<1x18x18x128xbf16, #tpu.memory_space<vmem>>, vector<1x1x18x128xbf16>,
      %cst_125 = arith.constant 0.000000e+00 : bf16
      %90 = vector.broadcast %cst_125 : bf16 to vector<1x18x1x128xbf16>
      %c0_126 = arith.constant 0 : index
      %c0_127 = arith.constant 0 : index
      %c0_128 = arith.constant 0 : index
      %c0_129 = arith.constant 0 : index
      %91 = vector.load %arg6[%c0_126, %c0_127, %c0_128, %c0_129] : memref<1x18x18x128xbf16, #tpu.memory_space<vmem>>, vector<1x18x1x128xbf16>
      tpu.vector_store %arg6[%c0_126, %c0_127, %c0_128, %c0_129], %90 {strides = array<i32>} : memref<1x18x18x128xbf16, #tpu.memory_space<vmem>>, vector<1x18x1x128xbf16>,
      %cst_130 = arith.constant 0.000000e+00 : bf16
      %92 = vector.broadcast %cst_130 : bf16 to vector<1x18x1x128xbf16>
      %c0_131 = arith.constant 0 : index
      %c0_132 = arith.constant 0 : index
      %c17_133 = arith.constant 17 : index
      %c0_134 = arith.constant 0 : index
      %93 = vector.load %arg6[%c0_131, %c0_132, %c17_133, %c0_134] : memref<1x18x18x128xbf16, #tpu.memory_space<vmem>>, vector<1x18x1x128xbf16>
      tpu.vector_store %arg6[%c0_131, %c0_132, %c17_133, %c0_134], %92 {strides = array<i32>} : memref<1x18x18x128xbf16, #tpu.memory_space<vmem>>, vector<1x18x1x128xbf16>,
      %c0_135 = arith.constant 0 : index
      %c0_136 = arith.constant 0 : index
      %c0_137 = arith.constant 0 : index
      %c0_138 = arith.constant 0 : index
      %94 = vector.load %arg2[%c0_135, %c0_136, %c0_137, %c0_138] : memref<1x16x16x128xbf16, #tpu.memory_space<vmem>>, vector<1x16x16x128xbf16>
      %c0_139 = arith.constant 0 : index
      %c1_140 = arith.constant 1 : index
      %c1_141 = arith.constant 1 : index
      %c0_142 = arith.constant 0 : index
      %95 = vector.load %arg6[%c0_139, %c1_140, %c1_141, %c0_142] : memref<1x18x18x128xbf16, #tpu.memory_space<vmem>>, vector<1x16x16x128xbf16>
      tpu.vector_store %arg6[%c0_139, %c1_140, %c1_141, %c0_142], %94 {strides = array<i32>} : memref<1x18x18x128xbf16, #tpu.memory_space<vmem>>, vector<1x16x16x128xbf16>,
    } else {
    }
    %c0 = arith.constant 0 : index
    %c0_1 = arith.constant 0 : index
    %c0_2 = arith.constant 0 : index
    %3 = vector.load %arg4[%c0, %c0_1, %c0_2] : memref<1x1x128xf32, #tpu.memory_space<vmem>>, vector<1x1x128xf32>
    %4 = vector.shape_cast %3 : vector<1x1x128xf32> to vector<1x128xf32>
    %5 = vector.shape_cast %4 : vector<1x128xf32> to vector<1x128xf32>
    %6 = vector.broadcast %5 : vector<1x128xf32> to vector<256x128xf32>
    %c0_3 = arith.constant 0 : index
    %c0_4 = arith.constant 0 : index
    %7 = vector.load %arg7[%c0_3, %c0_4] : memref<256x128xf32, #tpu.memory_space<vmem>>, vector<256x128xf32>
    tpu.vector_store %arg7[%c0_3, %c0_4], %6 {strides = array<i32>} : memref<256x128xf32, #tpu.memory_space<vmem>>, vector<256x128xf32>,
    %c0_5 = arith.constant 0 : index
    %c0_6 = arith.constant 0 : index
    %c0_7 = arith.constant 0 : index
    %c0_8 = arith.constant 0 : index
    %8 = vector.load %arg6[%c0_5, %c0_6, %c0_7, %c0_8] : memref<1x18x18x128xbf16, #tpu.memory_space<vmem>>, vector<1x16x16x128xbf16>
    %9 = vector.shape_cast %8 : vector<1x16x16x128xbf16> to vector<256x128xbf16>
    %c0_9 = arith.constant 0 : index
    %c0_10 = arith.constant 0 : index
    %10 = vector.load %arg7[%c0_9, %c0_10] : memref<256x128xf32, #tpu.memory_space<vmem>>, vector<256x128xf32>
    %c0_11 = arith.constant 0 : index
    %c0_12 = arith.constant 0 : index
    %c0_13 = arith.constant 0 : index
    %c0_14 = arith.constant 0 : index
    %11 = vector.load %arg3[%c0_11, %c0_12, %c0_13, %c0_14] : memref<1x9x128x128xbf16, #tpu.memory_space<vmem>>, vector<1x1x128x128xbf16>
    %12 = vector.shape_cast %11 : vector<1x1x128x128xbf16> to vector<128x128xbf16>
    %cst = arith.constant dense<0.000000e+00> : vector<256x128xf32>
    %13 = tpu.matmul %9, %12, %cst {dimension_numbers = #tpu.dot_dimension_numbers<[1], [0], [0], [1], [0, 0, 1, 1], [], []>} : vector<256x128xbf16>, vector<128x128xbf16>, vector<256x128xf32> -> vector<256x128xf32>
    %14 = arith.addf %10, %13 : vector<256x128xf32>
    %c0_15 = arith.constant 0 : index
    %c0_16 = arith.constant 0 : index
    %15 = vector.load %arg7[%c0_15, %c0_16] : memref<256x128xf32, #tpu.memory_space<vmem>>, vector<256x128xf32>
    tpu.vector_store %arg7[%c0_15, %c0_16], %14 {strides = array<i32>} : memref<256x128xf32, #tpu.memory_space<vmem>>, vector<256x128xf32>,
    %c0_17 = arith.constant 0 : index
    %c0_18 = arith.constant 0 : index
    %c1 = arith.constant 1 : index
    %c0_19 = arith.constant 0 : index
    %16 = vector.load %arg6[%c0_17, %c0_18, %c1, %c0_19] : memref<1x18x18x128xbf16, #tpu.memory_space<vmem>>, vector<1x16x16x128xbf16>
    %17 = vector.shape_cast %16 : vector<1x16x16x128xbf16> to vector<256x128xbf16>
    %c0_20 = arith.constant 0 : index
    %c0_21 = arith.constant 0 : index
    %18 = vector.load %arg7[%c0_20, %c0_21] : memref<256x128xf32, #tpu.memory_space<vmem>>, vector<256x128xf32>
    %c0_22 = arith.constant 0 : index
    %c1_23 = arith.constant 1 : index
    %c0_24 = arith.constant 0 : index
    %c0_25 = arith.constant 0 : index
    %19 = vector.load %arg3[%c0_22, %c1_23, %c0_24, %c0_25] : memref<1x9x128x128xbf16, #tpu.memory_space<vmem>>, vector<1x1x128x128xbf16>
    %20 = vector.shape_cast %19 : vector<1x1x128x128xbf16> to vector<128x128xbf16>
    %cst_26 = arith.constant dense<0.000000e+00> : vector<256x128xf32>
    %21 = tpu.matmul %17, %20, %cst_26 {dimension_numbers = #tpu.dot_dimension_numbers<[1], [0], [0], [1], [0, 0, 1, 1], [], []>} : vector<256x128xbf16>, vector<128x128xbf16>, vector<256x128xf32> -> vector<256x128xf32>
    %22 = arith.addf %18, %21 : vector<256x128xf32>
    %c0_27 = arith.constant 0 : index
    %c0_28 = arith.constant 0 : index
    %23 = vector.load %arg7[%c0_27, %c0_28] : memref<256x128xf32, #tpu.memory_space<vmem>>, vector<256x128xf32>
    tpu.vector_store %arg7[%c0_27, %c0_28], %22 {strides = array<i32>} : memref<256x128xf32, #tpu.memory_space<vmem>>, vector<256x128xf32>,
    %c0_29 = arith.constant 0 : index
    %c0_30 = arith.constant 0 : index
    %c2 = arith.constant 2 : index
    %c0_31 = arith.constant 0 : index
    %24 = vector.load %arg6[%c0_29, %c0_30, %c2, %c0_31] : memref<1x18x18x128xbf16, #tpu.memory_space<vmem>>, vector<1x16x16x128xbf16>
    %25 = vector.shape_cast %24 : vector<1x16x16x128xbf16> to vector<256x128xbf16>
    %c0_32 = arith.constant 0 : index
    %c0_33 = arith.constant 0 : index
    %26 = vector.load %arg7[%c0_32, %c0_33] : memref<256x128xf32, #tpu.memory_space<vmem>>, vector<256x128xf32>
    %c0_34 = arith.constant 0 : index
    %c2_35 = arith.constant 2 : index
    %c0_36 = arith.constant 0 : index
    %c0_37 = arith.constant 0 : index
    %27 = vector.load %arg3[%c0_34, %c2_35, %c0_36, %c0_37] : memref<1x9x128x128xbf16, #tpu.memory_space<vmem>>, vector<1x1x128x128xbf16>
    %28 = vector.shape_cast %27 : vector<1x1x128x128xbf16> to vector<128x128xbf16>
    %cst_38 = arith.constant dense<0.000000e+00> : vector<256x128xf32>
    %29 = tpu.matmul %25, %28, %cst_38 {dimension_numbers = #tpu.dot_dimension_numbers<[1], [0], [0], [1], [0, 0, 1, 1], [], []>} : vector<256x128xbf16>, vector<128x128xbf16>, vector<256x128xf32> -> vector<256x128xf32>
    %30 = arith.addf %26, %29 : vector<256x128xf32>
    %c0_39 = arith.constant 0 : index
    %c0_40 = arith.constant 0 : index
    %31 = vector.load %arg7[%c0_39, %c0_40] : memref<256x128xf32, #tpu.memory_space<vmem>>, vector<256x128xf32>
    tpu.vector_store %arg7[%c0_39, %c0_40], %30 {strides = array<i32>} : memref<256x128xf32, #tpu.memory_space<vmem>>, vector<256x128xf32>,
    %c0_41 = arith.constant 0 : index
    %c1_42 = arith.constant 1 : index
    %c0_43 = arith.constant 0 : index
    %c0_44 = arith.constant 0 : index
    %32 = vector.load %arg6[%c0_41, %c1_42, %c0_43, %c0_44] : memref<1x18x18x128xbf16, #tpu.memory_space<vmem>>, vector<1x16x16x128xbf16>
    %33 = vector.shape_cast %32 : vector<1x16x16x128xbf16> to vector<256x128xbf16>
    %c0_45 = arith.constant 0 : index
    %c0_46 = arith.constant 0 : index
    %34 = vector.load %arg7[%c0_45, %c0_46] : memref<256x128xf32, #tpu.memory_space<vmem>>, vector<256x128xf32>
    %c0_47 = arith.constant 0 : index
    %c3 = arith.constant 3 : index
    %c0_48 = arith.constant 0 : index
    %c0_49 = arith.constant 0 : index
    %35 = vector.load %arg3[%c0_47, %c3, %c0_48, %c0_49] : memref<1x9x128x128xbf16, #tpu.memory_space<vmem>>, vector<1x1x128x128xbf16>
    %36 = vector.shape_cast %35 : vector<1x1x128x128xbf16> to vector<128x128xbf16>
    %cst_50 = arith.constant dense<0.000000e+00> : vector<256x128xf32>
    %37 = tpu.matmul %33, %36, %cst_50 {dimension_numbers = #tpu.dot_dimension_numbers<[1], [0], [0], [1], [0, 0, 1, 1], [], []>} : vector<256x128xbf16>, vector<128x128xbf16>, vector<256x128xf32> -> vector<256x128xf32>
    %38 = arith.addf %34, %37 : vector<256x128xf32>
    %c0_51 = arith.constant 0 : index
    %c0_52 = arith.constant 0 : index
    %39 = vector.load %arg7[%c0_51, %c0_52] : memref<256x128xf32, #tpu.memory_space<vmem>>, vector<256x128xf32>
    tpu.vector_store %arg7[%c0_51, %c0_52], %38 {strides = array<i32>} : memref<256x128xf32, #tpu.memory_space<vmem>>, vector<256x128xf32>,
    %c0_53 = arith.constant 0 : index
    %c1_54 = arith.constant 1 : index
    %c1_55 = arith.constant 1 : index
    %c0_56 = arith.constant 0 : index
    %40 = vector.load %arg6[%c0_53, %c1_54, %c1_55, %c0_56] : memref<1x18x18x128xbf16, #tpu.memory_space<vmem>>, vector<1x16x16x128xbf16>
    %41 = vector.shape_cast %40 : vector<1x16x16x128xbf16> to vector<256x128xbf16>
    %c0_57 = arith.constant 0 : index
    %c0_58 = arith.constant 0 : index
    %42 = vector.load %arg7[%c0_57, %c0_58] : memref<256x128xf32, #tpu.memory_space<vmem>>, vector<256x128xf32>
    %c0_59 = arith.constant 0 : index
    %c4 = arith.constant 4 : index
    %c0_60 = arith.constant 0 : index
    %c0_61 = arith.constant 0 : index
    %43 = vector.load %arg3[%c0_59, %c4, %c0_60, %c0_61] : memref<1x9x128x128xbf16, #tpu.memory_space<vmem>>, vector<1x1x128x128xbf16>
    %44 = vector.shape_cast %43 : vector<1x1x128x128xbf16> to vector<128x128xbf16>
    %cst_62 = arith.constant dense<0.000000e+00> : vector<256x128xf32>
    %45 = tpu.matmul %41, %44, %cst_62 {dimension_numbers = #tpu.dot_dimension_numbers<[1], [0], [0], [1], [0, 0, 1, 1], [], []>} : vector<256x128xbf16>, vector<128x128xbf16>, vector<256x128xf32> -> vector<256x128xf32>
    %46 = arith.addf %42, %45 : vector<256x128xf32>
    %c0_63 = arith.constant 0 : index
    %c0_64 = arith.constant 0 : index
    %47 = vector.load %arg7[%c0_63, %c0_64] : memref<256x128xf32, #tpu.memory_space<vmem>>, vector<256x128xf32>
    tpu.vector_store %arg7[%c0_63, %c0_64], %46 {strides = array<i32>} : memref<256x128xf32, #tpu.memory_space<vmem>>, vector<256x128xf32>,
    %c0_65 = arith.constant 0 : index
    %c1_66 = arith.constant 1 : index
    %c2_67 = arith.constant 2 : index
    %c0_68 = arith.constant 0 : index
    %48 = vector.load %arg6[%c0_65, %c1_66, %c2_67, %c0_68] : memref<1x18x18x128xbf16, #tpu.memory_space<vmem>>, vector<1x16x16x128xbf16>
    %49 = vector.shape_cast %48 : vector<1x16x16x128xbf16> to vector<256x128xbf16>
    %c0_69 = arith.constant 0 : index
    %c0_70 = arith.constant 0 : index
    %50 = vector.load %arg7[%c0_69, %c0_70] : memref<256x128xf32, #tpu.memory_space<vmem>>, vector<256x128xf32>
    %c0_71 = arith.constant 0 : index
    %c5 = arith.constant 5 : index
    %c0_72 = arith.constant 0 : index
    %c0_73 = arith.constant 0 : index
    %51 = vector.load %arg3[%c0_71, %c5, %c0_72, %c0_73] : memref<1x9x128x128xbf16, #tpu.memory_space<vmem>>, vector<1x1x128x128xbf16>
    %52 = vector.shape_cast %51 : vector<1x1x128x128xbf16> to vector<128x128xbf16>
    %cst_74 = arith.constant dense<0.000000e+00> : vector<256x128xf32>
    %53 = tpu.matmul %49, %52, %cst_74 {dimension_numbers = #tpu.dot_dimension_numbers<[1], [0], [0], [1], [0, 0, 1, 1], [], []>} : vector<256x128xbf16>, vector<128x128xbf16>, vector<256x128xf32> -> vector<256x128xf32>
    %54 = arith.addf %50, %53 : vector<256x128xf32>
    %c0_75 = arith.constant 0 : index
    %c0_76 = arith.constant 0 : index
    %55 = vector.load %arg7[%c0_75, %c0_76] : memref<256x128xf32, #tpu.memory_space<vmem>>, vector<256x128xf32>
    tpu.vector_store %arg7[%c0_75, %c0_76], %54 {strides = array<i32>} : memref<256x128xf32, #tpu.memory_space<vmem>>, vector<256x128xf32>,
    %c0_77 = arith.constant 0 : index
    %c2_78 = arith.constant 2 : index
    %c0_79 = arith.constant 0 : index
    %c0_80 = arith.constant 0 : index
    %56 = vector.load %arg6[%c0_77, %c2_78, %c0_79, %c0_80] : memref<1x18x18x128xbf16, #tpu.memory_space<vmem>>, vector<1x16x16x128xbf16>
    %57 = vector.shape_cast %56 : vector<1x16x16x128xbf16> to vector<256x128xbf16>
    %c0_81 = arith.constant 0 : index
    %c0_82 = arith.constant 0 : index
    %58 = vector.load %arg7[%c0_81, %c0_82] : memref<256x128xf32, #tpu.memory_space<vmem>>, vector<256x128xf32>
    %c0_83 = arith.constant 0 : index
    %c6 = arith.constant 6 : index
    %c0_84 = arith.constant 0 : index
    %c0_85 = arith.constant 0 : index
    %59 = vector.load %arg3[%c0_83, %c6, %c0_84, %c0_85] : memref<1x9x128x128xbf16, #tpu.memory_space<vmem>>, vector<1x1x128x128xbf16>
    %60 = vector.shape_cast %59 : vector<1x1x128x128xbf16> to vector<128x128xbf16>
    %cst_86 = arith.constant dense<0.000000e+00> : vector<256x128xf32>
    %61 = tpu.matmul %57, %60, %cst_86 {dimension_numbers = #tpu.dot_dimension_numbers<[1], [0], [0], [1], [0, 0, 1, 1], [], []>} : vector<256x128xbf16>, vector<128x128xbf16>, vector<256x128xf32> -> vector<256x128xf32>
    %62 = arith.addf %58, %61 : vector<256x128xf32>
    %c0_87 = arith.constant 0 : index
    %c0_88 = arith.constant 0 : index
    %63 = vector.load %arg7[%c0_87, %c0_88] : memref<256x128xf32, #tpu.memory_space<vmem>>, vector<256x128xf32>
    tpu.vector_store %arg7[%c0_87, %c0_88], %62 {strides = array<i32>} : memref<256x128xf32, #tpu.memory_space<vmem>>, vector<256x128xf32>,
    %c0_89 = arith.constant 0 : index
    %c2_90 = arith.constant 2 : index
    %c1_91 = arith.constant 1 : index
    %c0_92 = arith.constant 0 : index
    %64 = vector.load %arg6[%c0_89, %c2_90, %c1_91, %c0_92] : memref<1x18x18x128xbf16, #tpu.memory_space<vmem>>, vector<1x16x16x128xbf16>
    %65 = vector.shape_cast %64 : vector<1x16x16x128xbf16> to vector<256x128xbf16>
    %c0_93 = arith.constant 0 : index
    %c0_94 = arith.constant 0 : index
    %66 = vector.load %arg7[%c0_93, %c0_94] : memref<256x128xf32, #tpu.memory_space<vmem>>, vector<256x128xf32>
    %c0_95 = arith.constant 0 : index
    %c7 = arith.constant 7 : index
    %c0_96 = arith.constant 0 : index
    %c0_97 = arith.constant 0 : index
    %67 = vector.load %arg3[%c0_95, %c7, %c0_96, %c0_97] : memref<1x9x128x128xbf16, #tpu.memory_space<vmem>>, vector<1x1x128x128xbf16>
    %68 = vector.shape_cast %67 : vector<1x1x128x128xbf16> to vector<128x128xbf16>
    %cst_98 = arith.constant dense<0.000000e+00> : vector<256x128xf32>
    %69 = tpu.matmul %65, %68, %cst_98 {dimension_numbers = #tpu.dot_dimension_numbers<[1], [0], [0], [1], [0, 0, 1, 1], [], []>} : vector<256x128xbf16>, vector<128x128xbf16>, vector<256x128xf32> -> vector<256x128xf32>
    %70 = arith.addf %66, %69 : vector<256x128xf32>
    %c0_99 = arith.constant 0 : index
    %c0_100 = arith.constant 0 : index
    %71 = vector.load %arg7[%c0_99, %c0_100] : memref<256x128xf32, #tpu.memory_space<vmem>>, vector<256x128xf32>
    tpu.vector_store %arg7[%c0_99, %c0_100], %70 {strides = array<i32>} : memref<256x128xf32, #tpu.memory_space<vmem>>, vector<256x128xf32>,
    %c0_101 = arith.constant 0 : index
    %c2_102 = arith.constant 2 : index
    %c2_103 = arith.constant 2 : index
    %c0_104 = arith.constant 0 : index
    %72 = vector.load %arg6[%c0_101, %c2_102, %c2_103, %c0_104] : memref<1x18x18x128xbf16, #tpu.memory_space<vmem>>, vector<1x16x16x128xbf16>
    %73 = vector.shape_cast %72 : vector<1x16x16x128xbf16> to vector<256x128xbf16>
    %c0_105 = arith.constant 0 : index
    %c0_106 = arith.constant 0 : index
    %74 = vector.load %arg7[%c0_105, %c0_106] : memref<256x128xf32, #tpu.memory_space<vmem>>, vector<256x128xf32>
    %c0_107 = arith.constant 0 : index
    %c8 = arith.constant 8 : index
    %c0_108 = arith.constant 0 : index
    %c0_109 = arith.constant 0 : index
    %75 = vector.load %arg3[%c0_107, %c8, %c0_108, %c0_109] : memref<1x9x128x128xbf16, #tpu.memory_space<vmem>>, vector<1x1x128x128xbf16>
    %76 = vector.shape_cast %75 : vector<1x1x128x128xbf16> to vector<128x128xbf16>
    %cst_110 = arith.constant dense<0.000000e+00> : vector<256x128xf32>
    %77 = tpu.matmul %73, %76, %cst_110 {dimension_numbers = #tpu.dot_dimension_numbers<[1], [0], [0], [1], [0, 0, 1, 1], [], []>} : vector<256x128xbf16>, vector<128x128xbf16>, vector<256x128xf32> -> vector<256x128xf32>
    %78 = arith.addf %74, %77 : vector<256x128xf32>
    %c0_111 = arith.constant 0 : index
    %c0_112 = arith.constant 0 : index
    %79 = vector.load %arg7[%c0_111, %c0_112] : memref<256x128xf32, #tpu.memory_space<vmem>>, vector<256x128xf32>
    tpu.vector_store %arg7[%c0_111, %c0_112], %78 {strides = array<i32>} : memref<256x128xf32, #tpu.memory_space<vmem>>, vector<256x128xf32>,
    %c9_i32 = arith.constant 9 : i32
    %80 = arith.cmpi slt, %arg1, %c9_i32 : i32
    %81 = arith.extui %80 : i1 to i32
    %c0_i32_113 = arith.constant 0 : i32
    %82 = arith.cmpi ne, %81, %c0_i32_113 : i32
    scf.if %82 {
      %c0_116 = arith.constant 0 : index
      %c0_117 = arith.constant 0 : index
      %86 = vector.load %arg7[%c0_116, %c0_117] : memref<256x128xf32, #tpu.memory_space<vmem>>, vector<256x128xf32>
      %cst_118 = arith.constant 0.000000e+00 : f32
      %87 = vector.broadcast %cst_118 : f32 to vector<256x128xf32>
      %88 = arith.maximumf %86, %87 : vector<256x128xf32>
      %89 = vector.shape_cast %88 : vector<256x128xf32> to vector<1x16x16x128xf32>
      %90 = arith.truncf %89 : vector<1x16x16x128xf32> to vector<1x16x16x128xbf16>
      %c0_119 = arith.constant 0 : index
      %c1_120 = arith.constant 1 : index
      %c1_121 = arith.constant 1 : index
      %c0_122 = arith.constant 0 : index
      %91 = vector.load %arg6[%c0_119, %c1_120, %c1_121, %c0_122] : memref<1x18x18x128xbf16, #tpu.memory_space<vmem>>, vector<1x16x16x128xbf16>
      tpu.vector_store %arg6[%c0_119, %c1_120, %c1_121, %c0_122], %90 {strides = array<i32>} : memref<1x18x18x128xbf16, #tpu.memory_space<vmem>>, vector<1x16x16x128xbf16>,
    } else {
    }
    %c9_i32_114 = arith.constant 9 : i32
    %83 = arith.cmpi eq, %arg1, %c9_i32_114 : i32
    %84 = arith.extui %83 : i1 to i32
    %c0_i32_115 = arith.constant 0 : i32
    %85 = arith.cmpi ne, %84, %c0_i32_115 : i32
    scf.if %85 {
      %c0_116 = arith.constant 0 : index
      %c0_117 = arith.constant 0 : index
      %86 = vector.load %arg7[%c0_116, %c0_117] : memref<256x128xf32, #tpu.memory_space<vmem>>, vector<256x128xf32>
      %87 = arith.negf %86 : vector<256x128xf32>
      %88 = math.exp %87 : vector<256x128xf32>
      %cst_118 = arith.constant 1.000000e+00 : f32
      %89 = vector.broadcast %cst_118 : f32 to vector<256x128xf32>
      %90 = arith.addf %89, %88 : vector<256x128xf32>
      %91 = arith.divf %89, %90 : vector<256x128xf32>
      %92 = vector.shape_cast %91 : vector<256x128xf32> to vector<1x16x16x128xf32>
      %c0_119 = arith.constant 0 : index
      %c0_120 = arith.constant 0 : index
      %c0_121 = arith.constant 0 : index
      %c0_122 = arith.constant 0 : index
      %93 = vector.load %arg5[%c0_119, %c0_120, %c0_121, %c0_122] : memref<1x16x16x128xf32, #tpu.memory_space<vmem>>, vector<1x16x16x128xf32>
      tpu.vector_store %arg5[%c0_119, %c0_120, %c0_121, %c0_122], %92 {strides = array<i32>} : memref<1x16x16x128xf32, #tpu.memory_space<vmem>>, vector<1x16x16x128xf32>,
    } else {
    }
    return
  }
  func.func @transform_0(%arg0: i32, %arg1: i32) -> (i32, i32, i32, i32) {
    %c0_i32 = arith.constant 0 : i32
    %c0_i32_0 = arith.constant 0 : i32
    %c0_i32_1 = arith.constant 0 : i32
    %c0_i32_2 = arith.constant 0 : i32
    return %arg0, %c0_i32, %c0_i32_0, %c0_i32_1 : i32, i32, i32, i32
  }
  func.func @transform_1(%arg0: i32, %arg1: i32) -> (i32, i32, i32, i32) {
    %c0_i32 = arith.constant 0 : i32
    %c0_i32_0 = arith.constant 0 : i32
    %c0_i32_1 = arith.constant 0 : i32
    %c0_i32_2 = arith.constant 0 : i32
    return %arg1, %c0_i32, %c0_i32_0, %c0_i32_1 : i32, i32, i32, i32
  }
  func.func @transform_2(%arg0: i32, %arg1: i32) -> (i32, i32, i32) {
    %c0_i32 = arith.constant 0 : i32
    %c0_i32_0 = arith.constant 0 : i32
    %c0_i32_1 = arith.constant 0 : i32
    return %arg1, %c0_i32, %c0_i32_0 : i32, i32, i32
  }
  func.func @transform_3(%arg0: i32, %arg1: i32) -> (i32, i32, i32, i32) {
    %c0_i32 = arith.constant 0 : i32
    %c0_i32_0 = arith.constant 0 : i32
    %c0_i32_1 = arith.constant 0 : i32
    %c0_i32_2 = arith.constant 0 : i32
    return %arg0, %c0_i32, %c0_i32_0, %c0_i32_1 : i32, i32, i32, i32
  }
}

</mosaic_0001>

<llo_original>
// kernel: _lambda_.1
$region0: #{_lambda_.1}
  #allocation0 [shape = 'u32[]', space=smem, size = 0x4, offset = 0x4, fixed_abs, tag = 'smem constant byte address 0x4 - core index']
  #allocation1 [shape = 'u32[144,128]{1,0:T(1,128)}', space=vmem, size = 0x12000, scoped, tag = 'internal scratch']
  #allocation2 [shape = 'bf16[1,18,18,128]{3,2,1,0:T(8,128)(2,1)}', space=vmem, size = 0x1b000, scoped, tag = 'scratch operand']
  #allocation3 [shape = 'f32[256,128]{1,0:T(8,128)}', space=vmem, size = 0x20000, scoped, tag = 'scratch operand']
  %s0 = inlined_call_operand.vmem [shape: bf16[2,16,16,128], index: 0, kind: input, shape index: {}]
  %s1 = inlined_call_operand.hbm [shape: bf16[10,9,128,128], index: 1, kind: input, shape index: {}]
  %s2 = inlined_call_operand.hbm [shape: f32[10,1,128], index: 2, kind: input, shape index: {}]
  %s3 = inlined_call_operand.vmem [shape: f32[2,16,16,128], index: 3, kind: output, shape index: {}]
  %s4 = sld [smem:[#allocation0]]
  $region65: #{_lambda_.1} parent=0
    _
  %s6 = ssub.s32 1, %s4
  %s7 = scalar_select 0, %s6, %s4
  $region1: #{_lambda_.1} parent=0
    #allocation4 [shape = 'u8[589824]{0}', space=vmem, size = 0x90000, scoped, tag = 'input window, operand 1']
    #allocation5 [shape = 's32[2]{0}', space=sflag, size = 0x8, scoped, tag = 'scoped memory for _lambda_.1']
    #allocation6 [shape = 'u8[1024]{0}', space=vmem, size = 0x400, scoped, tag = 'input window, operand 2']
    #allocation7 [shape = 's32[2]{0}', space=sflag, size = 0x8, scoped, tag = 'scoped memory for _lambda_.1']
    %8 = vsyncpa [#allocation5], 0
    %s9 = scalar_lea.sflag [#allocation5], 1
    %10 = vsyncpa %s9, 0
    %11 = vsyncpa [#allocation7], 0
    %s12 = scalar_lea.sflag [#allocation7], 1
    %13 = vsyncpa %s12, 0
    loop: start=0, step=1, limit=22
    $region2: #{_lambda_.1} parent=1 // loop_pre_header
      _
    $region3: #{_lambda_.1} parent=1 // loop_header
      %s15 = sphi 0, %s19
      %p16 = scmp.ge.s32.totalorder %s15, 22
      %s22 = sphi 0, %s34
      %s23 = sphi 0, %s30
      %s24 = sphi 0, %s22
      %s25 = sphi 0, %s23
      %s26 = sphi 0, %s24
      %s27 = sphi 0, %s25
      %s37 = sphi 0, %s39
      %s40 = sphi 0, %s37
      %s41 = sphi 0, %s40
      %s57 = sphi 0, %s41
      %s63 = sphi 0, %s65
      %s66 = sphi 0, %s63
      %s67 = sphi 0, %s66
      %s83 = sphi 0, %s67
      %s89 = sphi 0, %s91
      %s92 = sphi 0, %s89
      %s93 = sphi 0, %s92
      %s109 = sphi 0, %s93
      %s115 = sphi 0, %s117
      %s118 = sphi 0, %s115
      %s119 = sphi 0, %s118
      %s135 = sphi 0, %s119
    $region4: #{_lambda_.1} parent=1 // loop_header_branch
      %18 = sbr.rel (%p16) target = $region8
    $region5: #{_lambda_.1} parent=1 // loop_body
      %s20 = ssub.s32 %s15, 1
      %s21 = ssub.s32 %s15, 2
      %s28 = sadd.s32 1, %s23
      %p29 = scmp.ge.s32.totalorder %s28, 10
      %s30 = scalar_select %p29, 0, %s28
      %s31 = sadd.s32 1, %s22
      %s32 = scalar_select %p29, %s31, %s22
      %p33 = scmp.ge.s32.totalorder %s32, 2
      %s34 = scalar_select %p33, 0, %s32
      %s35 = ssub.s32 %s22, %s34
      %p36 = scmp.eq.s32.totalorder %s35, 0
      %s38 = sadd.s32 %s37, 1
      %s39 = scalar_select %p36, %s37, %s38
      %p42 = pneg %p36
      %p43 = scmp.eq.s32.totalorder %s15, 19
      %p44 = por %p42, %p43
      %p45 = scmp.ne.s32.totalorder %s37, %s40
      %p46 = scmp.eq.s32.totalorder %s15, 0
      %p47 = por %p45, %p46
      %p48 = scmp.ne.s32.totalorder %s37, %s40
      %p49 = scmp.eq.s32.totalorder %s20, 19
      %p50 = por %p48, %p49
      %p51 = scmp.ne.s32.totalorder %s40, %s41
      %p52 = scmp.eq.s32.totalorder %s20, 0
      %p53 = por %p51, %p52
      %p54 = scmp.ne.s32.totalorder %s40, %s41
      %p55 = scmp.eq.s32.totalorder %s21, 19
      %p56 = por %p54, %p55
      %p58 = scmp.ne.s32.totalorder %s41, %s57
      %p59 = scmp.eq.s32.totalorder %s21, 0
      %p60 = por %p58, %p59
      %s61 = ssub.s32 %s23, %s30
      %p62 = scmp.eq.s32.totalorder %s61, 0
      %s64 = sadd.s32 %s63, 1
      %s65 = scalar_select %p62, %s63, %s64
      %p68 = pneg %p62
      %p69 = scmp.eq.s32.totalorder %s15, 19
      %p70 = por %p68, %p69
      %p71 = scmp.ne.s32.totalorder %s63, %s66
      %p72 = scmp.eq.s32.totalorder %s15, 0
      %p73 = por %p71, %p72
      %p74 = scmp.ne.s32.totalorder %s63, %s66
      %p75 = scmp.eq.s32.totalorder %s20, 19
      %p76 = por %p74, %p75
      %p77 = scmp.ne.s32.totalorder %s66, %s67
      %p78 = scmp.eq.s32.totalorder %s20, 0
      %p79 = por %p77, %p78
      %p80 = scmp.ne.s32.totalorder %s66, %s67
      %p81 = scmp.eq.s32.totalorder %s21, 19
      %p82 = por %p80, %p81
      %p84 = scmp.ne.s32.totalorder %s67, %s83
      %p85 = scmp.eq.s32.totalorder %s21, 0
      %p86 = por %p84, %p85
      %s87 = ssub.s32 %s23, %s30
      %p88 = scmp.eq.s32.totalorder %s87, 0
      %s90 = sadd.s32 %s89, 1
      %s91 = scalar_select %p88, %s89, %s90
      %p94 = pneg %p88
      %p95 = scmp.eq.s32.totalorder %s15, 19
      %p96 = por %p94, %p95
      %p97 = scmp.ne.s32.totalorder %s89, %s92
      %p98 = scmp.eq.s32.totalorder %s15, 0
      %p99 = por %p97, %p98
      %p100 = scmp.ne.s32.totalorder %s89, %s92
      %p101 = scmp.eq.s32.totalorder %s20, 19
      %p102 = por %p100, %p101
      %p103 = scmp.ne.s32.totalorder %s92, %s93
      %p104 = scmp.eq.s32.totalorder %s20, 0
      %p105 = por %p103, %p104
      %p106 = scmp.ne.s32.totalorder %s92, %s93
      %p107 = scmp.eq.s32.totalorder %s21, 19
      %p108 = por %p106, %p107
      %p110 = scmp.ne.s32.totalorder %s93, %s109
      %p111 = scmp.eq.s32.totalorder %s21, 0
      %p112 = por %p110, %p111
      %s113 = ssub.s32 %s22, %s34
      %p114 = scmp.eq.s32.totalorder %s113, 0
      %s116 = sadd.s32 %s115, 1
      %s117 = scalar_select %p114, %s115, %s116
      %p120 = pneg %p114
      %p121 = scmp.eq.s32.totalorder %s15, 19
      %p122 = por %p120, %p121
      %p123 = scmp.ne.s32.totalorder %s115, %s118
      %p124 = scmp.eq.s32.totalorder %s15, 0
      %p125 = por %p123, %p124
      %p126 = scmp.ne.s32.totalorder %s115, %s118
      %p127 = scmp.eq.s32.totalorder %s20, 19
      %p128 = por %p126, %p127
      %p129 = scmp.ne.s32.totalorder %s118, %s119
      %p130 = scmp.eq.s32.totalorder %s20, 0
      %p131 = por %p129, %p130
      %p132 = scmp.ne.s32.totalorder %s118, %s119
      %p133 = scmp.eq.s32.totalorder %s21, 19
      %p134 = por %p132, %p133
      %p136 = scmp.ne.s32.totalorder %s119, %s135
      %p137 = scmp.eq.s32.totalorder %s21, 0
      %p138 = por %p136, %p137
      %p139 = scmp.le.s32.totalorder 1, %s15
      %p140 = scmp.lt.s32.totalorder %s15, 21
      %p141 = pnand %p139, %p140
      %p142 = pneg %p141
      // Predicated region
      $region9: #{_lambda_.1} parent=5 // pred_check
        _
      $region10: #{_lambda_.1} parent=5 // pred_check_branch
        %144 = sbr.rel (%p141) target = $region12
      $region11: #{_lambda_.1} parent=5 // pred_region
        %s145 = ssub.s32 %s15, 1
      $region12: #{_lambda_.1} parent=5 // pred_fallthru
        _
      %p146 = scmp.lt.s32.totalorder %s15, 20
      // Predicated region
      $region13: #{_lambda_.1} parent=5 // pred_check
        %p147 = pneg %p146
      $region14: #{_lambda_.1} parent=5 // pred_check_branch
        %149 = sbr.rel (%p147) target = $region16
      $region15: #{_lambda_.1} parent=5 // pred_region
        // Predicated region
        $region17: #{_lambda_.1} parent=15 // pred_check
          %p150 = pneg %p47
        $region18: #{_lambda_.1} parent=15 // pred_check_branch
          %152 = sbr.rel (%p150) target = $region20
        $region19: #{_lambda_.1} parent=15 // pred_region
          %p153 = scmp.lt.s32.totalorder %s22, 1
          %s154 = scalar_select %p153, %s22, 1
          %s155 = smul.addr %s154, 32
          %s156 = smul.addr %s155, 4
          %s157 = scalar_lea.vmem %s0, %s156
        $region20: #{_lambda_.1} parent=15 // pred_fallthru
          _
        // Predicated region
        $region21: #{_lambda_.1} parent=15 // pred_check
          %p158 = pneg %p73
        $region22: #{_lambda_.1} parent=15 // pred_check_branch
          %160 = sbr.rel (%p158) target = $region24
        $region23: #{_lambda_.1} parent=15 // pred_region
          %s161 = sand.u32 %s63, 1
          %s162 = scalar_lea.sflag [#allocation5], %s161
          %s163 = sand.u32 %s63, 1
          %s164 = smul.addr %s163, 576
          %s165 = scalar_lea.vmem [#allocation4], %s164
          %s167 = ssub.s32 9216, 9216
          %168 = vsyncadd %s162, %s167
          %s169 = smul.addr %s23, 144
          %s170 = smul.addr %s169, 64
          %s171 = scalar_lea.hbm %s1, %s170
          %s172 = sshll.u32 %s165, 4
          %s173 = int_to_ptr.vmem [resolvable:$true] %s172
          %178 = dma.hbm_to_vmem [thread:$0]  %s171, 9216, %s173, %s162, 64, 64, 4
        $region24: #{_lambda_.1} parent=15 // pred_fallthru
          _
        // Predicated region
        $region25: #{_lambda_.1} parent=15 // pred_check
          %p179 = pneg %p99
        $region26: #{_lambda_.1} parent=15 // pred_check_branch
          %181 = sbr.rel (%p179) target = $region28
        $region27: #{_lambda_.1} parent=15 // pred_region
          %s182 = sand.u32 %s89, 1
          %s183 = scalar_lea.sflag [#allocation7], %s182
          %s184 = sand.u32 %s89, 1
          %s185 = scalar_lea.vmem [#allocation6], %s184
          %s187 = ssub.s32 16, 16
          %188 = vsyncadd %s183, %s187
          %s189 = smul.addr %s23, 16
          %s190 = scalar_lea.hbm %s2, %s189
          %s192 = sshll.u32 %s185, 4
          %s193 = int_to_ptr.vmem [resolvable:$true] %s192
          %195 = dma.hbm_to_vmem [thread:$0]  %s190, 16, %s193, %s183
        $region28: #{_lambda_.1} parent=15 // pred_fallthru
          _
      $region16: #{_lambda_.1} parent=5 // pred_fallthru
        _
      %p196 = scmp.le.s32.totalorder 1, %s15
      %p197 = scmp.lt.s32.totalorder %s15, 21
      %p198 = pnand %p196, %p197
      %p199 = pneg %p198
      // Predicated region
      $region29: #{_lambda_.1} parent=5 // pred_check
        _
      $region30: #{_lambda_.1} parent=5 // pred_check_branch
        %201 = sbr.rel (%p198) target = $region32
      $region31: #{_lambda_.1} parent=5 // pred_region
        %s202 = ssub.s32 %s15, 1
        %s203 = sand.u32 %s66, 1
        %s204 = scalar_lea.sflag [#allocation5], %s203
        %s205 = sand.u32 %s66, 1
        %s206 = smul.addr %s205, 576
        %s207 = scalar_lea.vmem [#allocation4], %s206
        // Predicated region
        $region33: #{_lambda_.1} parent=31 // pred_check
          %p208 = pneg %p79
        $region34: #{_lambda_.1} parent=31 // pred_check_branch
          %210 = sbr.rel (%p208) target = $region36
        $region35: #{_lambda_.1} parent=31 // pred_region
          %211 = dma.done %s204, 9216
        $region36: #{_lambda_.1} parent=31 // pred_fallthru
          _
        %s212 = sand.u32 %s92, 1
        %s213 = scalar_lea.sflag [#allocation7], %s212
        %s214 = sand.u32 %s92, 1
        %s215 = scalar_lea.vmem [#allocation6], %s214
        // Predicated region
        $region37: #{_lambda_.1} parent=31 // pred_check
          %p216 = pneg %p105
        $region38: #{_lambda_.1} parent=31 // pred_check_branch
          %218 = sbr.rel (%p216) target = $region40
        $region39: #{_lambda_.1} parent=31 // pred_region
          %219 = dma.done %s213, 16
        $region40: #{_lambda_.1} parent=31 // pred_fallthru
          _
        %p220 = scmp.lt.s32.totalorder %s24, 1
        %s221 = scalar_select %p220, %s24, 1
        %s222 = smul.addr %s221, 32
        %s223 = smul.addr %s222, 4
        %s224 = scalar_lea.vmem %s0, %s223
        %p225 = pneg %p53
        %p226 = pneg %p50
        %s227 = sand.u32 %s66, 1
        %s228 = scalar_lea.sflag [#allocation5], %s227
        %s229 = sand.u32 %s66, 1
        %s230 = smul.addr %s229, 576
        %s231 = scalar_lea.vmem [#allocation4], %s230
        %p232 = pneg %p79
        %p233 = pneg %p76
        %s234 = sand.u32 %s92, 1
        %s235 = scalar_lea.sflag [#allocation7], %s234
        %s236 = sand.u32 %s92, 1
        %s237 = scalar_lea.vmem [#allocation6], %s236
        %p238 = pneg %p105
        %p239 = pneg %p102
        %p240 = pneg %p131
        %p241 = pneg %p128
        %p242 = scmp.lt.s32.totalorder %s24, 1
        %s243 = scalar_select %p242, %s24, 1
        %s244 = smul.addr %s243, 32
        %s245 = smul.addr %s244, 8
        %s246 = scalar_lea.vmem %s3, %s245
        %p247 = scmp.lt.s32.totalorder %s24, 1
        %s248 = scalar_select %p247, %s24, 1
        %s249 = smul.addr %s248, 32
        %s250 = smul.addr %s249, 4
        %s251 = scalar_lea.vmem %s0, %s250
        %p252 = scmp.lt.s32.totalorder %s24, 1
        %s253 = scalar_select %p252, %s24, 1
        %s254 = smul.addr %s253, 32
        %s255 = smul.addr %s254, 8
        %s256 = scalar_lea.vmem %s3, %s255
        %p258 = scmp.eq.s32.totalorder %s25, 0
        // Predicated region
        $region41: #{_lambda_.1} parent=31 // pred_check
          %p259 = pneg %p258
        $region42: #{_lambda_.1} parent=31 // pred_check_branch
          %261 = sbr.rel (%p259) target = $region44
        $region43: #{_lambda_.1} parent=31 // pred_region
          %262 = vst [vmem:[#allocation2] sm:$0xf] 0
          %263 = vst [vmem:[#allocation2 + $0x4] sm:$0xf] 0
          %264 = vst [vmem:[#allocation2 + $0x8] sm:$0x1] 0
          %s265 = scalar_lea.vmem [#allocation2], 204
          %266 = vst [vmem:[%s265] sm:$0xf] 0
          %267 = vst [vmem:[%s265 + $0x4] sm:$0xf] 0
          %268 = vst [vmem:[%s265 + $0x8] sm:$0x1] 0
          %vm269 = vcmask 1040384
          %vm270 = vsmask.f32 256
          %vm271 = vmand %vm269, %vm270
          %v272 = vld [vmem:[#allocation2] sm:$0x1]
          %v273 = vsel %vm271, 0, %v272
          %274 = vst [vmem:[#allocation2] sm:$0x1] %v273
          %v275 = vld [vmem:[#allocation2 + $0xc] sm:$0x1]
          %v276 = vsel %vm271, 0, %v275
          %277 = vst [vmem:[#allocation2 + $0xc] sm:$0x1] %v276
          %v278 = vld [vmem:[#allocation2 + $0x18] sm:$0x1]
          %v279 = vsel %vm271, 0, %v278
          %280 = vst [vmem:[#allocation2 + $0x18] sm:$0x1] %v279
          %v281 = vld [vmem:[#allocation2 + $0x24] sm:$0x1]
          %v282 = vsel %vm271, 0, %v281
          %283 = vst [vmem:[#allocation2 + $0x24] sm:$0x1] %v282
          %v284 = vld [vmem:[#allocation2 + $0x30] sm:$0x1]
          %v285 = vsel %vm271, 0, %v284
          %286 = vst [vmem:[#allocation2 + $0x30] sm:$0x1] %v285
          %v287 = vld [vmem:[#allocation2 + $0x3c] sm:$0x1]
          %v288 = vsel %vm271, 0, %v287
          %289 = vst [vmem:[#allocation2 + $0x3c] sm:$0x1] %v288
          %v290 = vld [vmem:[#allocation2 + $0x48] sm:$0x1]
          %v291 = vsel %vm271, 0, %v290
          %292 = vst [vmem:[#allocation2 + $0x48] sm:$0x1] %v291
          %v293 = vld [vmem:[#allocation2 + $0x54] sm:$0x1]
          %v294 = vsel %vm271, 0, %v293
          %295 = vst [vmem:[#allocation2 + $0x54] sm:$0x1] %v294
          %v296 = vld [vmem:[#allocation2 + $0x60] sm:$0x1]
          %v297 = vsel %vm271, 0, %v296
          %298 = vst [vmem:[#allocation2 + $0x60] sm:$0x1] %v297
          %v299 = vld [vmem:[#allocation2 + $0x6c] sm:$0x1]
          %v300 = vsel %vm271, 0, %v299
          %301 = vst [vmem:[#allocation2 + $0x6c] sm:$0x1] %v300
          %v302 = vld [vmem:[#allocation2 + $0x78] sm:$0x1]
          %v303 = vsel %vm271, 0, %v302
          %304 = vst [vmem:[#allocation2 + $0x78] sm:$0x1] %v303
          %v305 = vld [vmem:[#allocation2 + $0x84] sm:$0x1]
          %v306 = vsel %vm271, 0, %v305
          %307 = vst [vmem:[#allocation2 + $0x84] sm:$0x1] %v306
          %v308 = vld [vmem:[#allocation2 + $0x90] sm:$0x1]
          %v309 = vsel %vm271, 0, %v308
          %310 = vst [vmem:[#allocation2 + $0x90] sm:$0x1] %v309
          %v311 = vld [vmem:[#allocation2 + $0x9c] sm:$0x1]
          %v312 = vsel %vm271, 0, %v311
          %313 = vst [vmem:[#allocation2 + $0x9c] sm:$0x1] %v312
          %v314 = vld [vmem:[#allocation2 + $0xa8] sm:$0x1]
          %v315 = vsel %vm271, 0, %v314
          %316 = vst [vmem:[#allocation2 + $0xa8] sm:$0x1] %v315
          %v317 = vld [vmem:[#allocation2 + $0xb4] sm:$0x1]
          %v318 = vsel %vm271, 0, %v317
          %319 = vst [vmem:[#allocation2 + $0xb4] sm:$0x1] %v318
          %v320 = vld [vmem:[#allocation2 + $0xc0] sm:$0x1]
          %v321 = vsel %vm271, 0, %v320
          %322 = vst [vmem:[#allocation2 + $0xc0] sm:$0x1] %v321
          %v323 = vld [vmem:[#allocation2 + $0xcc] sm:$0x1]
          %v324 = vsel %vm271, 0, %v323
          %325 = vst [vmem:[#allocation2 + $0xcc] sm:$0x1] %v324
          %vm326 = vsmask.f32 7938
          %vm327 = vmand %vm269, %vm326
          %v328 = vld [vmem:[#allocation2 + $0x8] sm:$0x1]
          %v329 = vsel %vm327, 0, %v328
          %330 = vst [vmem:[#allocation2 + $0x8] sm:$0x1] %v329
          %v331 = vld [vmem:[#allocation2 + $0x14] sm:$0x1]
          %v332 = vsel %vm327, 0, %v331
          %333 = vst [vmem:[#allocation2 + $0x14] sm:$0x1] %v332
          %v334 = vld [vmem:[#allocation2 + $0x20] sm:$0x1]
          %v335 = vsel %vm327, 0, %v334
          %336 = vst [vmem:[#allocation2 + $0x20] sm:$0x1] %v335
          %v337 = vld [vmem:[#allocation2 + $0x2c] sm:$0x1]
          %v338 = vsel %vm327, 0, %v337
          %339 = vst [vmem:[#allocation2 + $0x2c] sm:$0x1] %v338
          %v340 = vld [vmem:[#allocation2 + $0x38] sm:$0x1]
          %v341 = vsel %vm327, 0, %v340
          %342 = vst [vmem:[#allocation2 + $0x38] sm:$0x1] %v341
          %v343 = vld [vmem:[#allocation2 + $0x44] sm:$0x1]
          %v344 = vsel %vm327, 0, %v343
          %345 = vst [vmem:[#allocation2 + $0x44] sm:$0x1] %v344
          %v346 = vld [vmem:[#allocation2 + $0x50] sm:$0x1]
          %v347 = vsel %vm327, 0, %v346
          %348 = vst [vmem:[#allocation2 + $0x50] sm:$0x1] %v347
          %v349 = vld [vmem:[#allocation2 + $0x5c] sm:$0x1]
          %v350 = vsel %vm327, 0, %v349
          %351 = vst [vmem:[#allocation2 + $0x5c] sm:$0x1] %v350
          %v352 = vld [vmem:[#allocation2 + $0x68] sm:$0x1]
          %v353 = vsel %vm327, 0, %v352
          %354 = vst [vmem:[#allocation2 + $0x68] sm:$0x1] %v353
          %v355 = vld [vmem:[#allocation2 + $0x74] sm:$0x1]
          %v356 = vsel %vm327, 0, %v355
          %357 = vst [vmem:[#allocation2 + $0x74] sm:$0x1] %v356
          %v358 = vld [vmem:[#allocation2 + $0x80] sm:$0x1]
          %v359 = vsel %vm327, 0, %v358
          %360 = vst [vmem:[#allocation2 + $0x80] sm:$0x1] %v359
          %v361 = vld [vmem:[#allocation2 + $0x8c] sm:$0x1]
          %v362 = vsel %vm327, 0, %v361
          %363 = vst [vmem:[#allocation2 + $0x8c] sm:$0x1] %v362
          %v364 = vld [vmem:[#allocation2 + $0x98] sm:$0x1]
          %v365 = vsel %vm327, 0, %v364
          %366 = vst [vmem:[#allocation2 + $0x98] sm:$0x1] %v365
          %v367 = vld [vmem:[#allocation2 + $0xa4] sm:$0x1]
          %v368 = vsel %vm327, 0, %v367
          %369 = vst [vmem:[#allocation2 + $0xa4] sm:$0x1] %v368
          %v370 = vld [vmem:[#allocation2 + $0xb0] sm:$0x1]
          %v371 = vsel %vm327, 0, %v370
          %372 = vst [vmem:[#allocation2 + $0xb0] sm:$0x1] %v371
          %v373 = vld [vmem:[#allocation2 + $0xbc] sm:$0x1]
          %v374 = vsel %vm327, 0, %v373
          %375 = vst [vmem:[#allocation2 + $0xbc] sm:$0x1] %v374
          %v376 = vld [vmem:[#allocation2 + $0xc8] sm:$0x1]
          %v377 = vsel %vm327, 0, %v376
          %378 = vst [vmem:[#allocation2 + $0xc8] sm:$0x1] %v377
          %v379 = vld [vmem:[#allocation2 + $0xd4] sm:$0x1]
          %v380 = vsel %vm327, 0, %v379
          %381 = vst [vmem:[#allocation2 + $0xd4] sm:$0x1] %v380
          %v382 = vld [vmem:[%s251] sm:$0xf]
          %v383 = vld [vmem:[%s251 + $0x4] sm:$0xf]
          %v384 = vld [vmem:[%s251 + $0x8] sm:$0xf]
          %v385 = vld [vmem:[%s251 + $0xc] sm:$0xf]
          %v386 = vld [vmem:[%s251 + $0x10] sm:$0xf]
          %v387 = vld [vmem:[%s251 + $0x14] sm:$0xf]
          %v388 = vld [vmem:[%s251 + $0x18] sm:$0xf]
          %v389 = vld [vmem:[%s251 + $0x1c] sm:$0xf]
          %v390 = vld [vmem:[%s251 + $0x20] sm:$0xf]
          %v391 = vld [vmem:[%s251 + $0x24] sm:$0xf]
          %v392 = vld [vmem:[%s251 + $0x28] sm:$0xf]
          %v393 = vld [vmem:[%s251 + $0x2c] sm:$0xf]
          %v394 = vld [vmem:[%s251 + $0x30] sm:$0xf]
          %v395 = vld [vmem:[%s251 + $0x34] sm:$0xf]
          %v396 = vld [vmem:[%s251 + $0x38] sm:$0xf]
          %v397 = vld [vmem:[%s251 + $0x3c] sm:$0xf]
          %v398 = vld [vmem:[%s251 + $0x40] sm:$0xf]
          %v399 = vld [vmem:[%s251 + $0x44] sm:$0xf]
          %v400 = vld [vmem:[%s251 + $0x48] sm:$0xf]
          %v401 = vld [vmem:[%s251 + $0x4c] sm:$0xf]
          %v402 = vld [vmem:[%s251 + $0x50] sm:$0xf]
          %v403 = vld [vmem:[%s251 + $0x54] sm:$0xf]
          %v404 = vld [vmem:[%s251 + $0x58] sm:$0xf]
          %v405 = vld [vmem:[%s251 + $0x5c] sm:$0xf]
          %v406 = vld [vmem:[%s251 + $0x60] sm:$0xf]
          %v407 = vld [vmem:[%s251 + $0x64] sm:$0xf]
          %v408 = vld [vmem:[%s251 + $0x68] sm:$0xf]
          %v409 = vld [vmem:[%s251 + $0x6c] sm:$0xf]
          %v410 = vld [vmem:[%s251 + $0x70] sm:$0xf]
          %v411 = vld [vmem:[%s251 + $0x74] sm:$0xf]
          %v412 = vld [vmem:[%s251 + $0x78] sm:$0xf]
          %v413 = vld [vmem:[%s251 + $0x7c] sm:$0xf]
          %vm414 = vsmask.f32 4368
          %vm415 = vmor %vm270, %vm414
          %v417 = vshrl.u32 %v382, 16
          %v419 = vrot.slane %v417, 7
          %v420 = vshll.u32 %v382, 16
          %v422 = vor.u32 %v419, %v420
          %v423 = vrot.slane %v419, 4
          %v425 = vshrl.u32 %v383, 16
          %v427 = vrot.slane %v425, 7
          %v428 = vshll.u32 %v383, 16
          %v430 = vor.u32 %v427, %v428
          %v431 = vsel %vm415, %v423, %v430
          %v432 = vrot.slane %v427, 4
          %v434 = vshrl.u32 %v384, 16
          %v436 = vrot.slane %v434, 7
          %v437 = vshll.u32 %v384, 16
          %v439 = vor.u32 %v436, %v437
          %v440 = vrot.slane %v436, 4
          %v442 = vshrl.u32 %v385, 16
          %v444 = vrot.slane %v442, 7
          %v445 = vshll.u32 %v385, 16
          %v447 = vor.u32 %v444, %v445
          %v448 = vsel %vm415, %v440, %v447
          %v449 = vrot.slane %v444, 4
          %v451 = vshrl.u32 %v386, 16
          %v453 = vrot.slane %v451, 7
          %v454 = vshll.u32 %v386, 16
          %v456 = vor.u32 %v453, %v454
          %v457 = vrot.slane %v453, 4
          %v459 = vshrl.u32 %v387, 16
          %v461 = vrot.slane %v459, 7
          %v462 = vshll.u32 %v387, 16
          %v464 = vor.u32 %v461, %v462
          %v465 = vsel %vm415, %v457, %v464
          %v466 = vrot.slane %v461, 4
          %v468 = vshrl.u32 %v388, 16
          %v470 = vrot.slane %v468, 7
          %v471 = vshll.u32 %v388, 16
          %v473 = vor.u32 %v470, %v471
          %v474 = vrot.slane %v470, 4
          %v476 = vshrl.u32 %v389, 16
          %v478 = vrot.slane %v476, 7
          %v479 = vshll.u32 %v389, 16
          %v481 = vor.u32 %v478, %v479
          %v482 = vsel %vm415, %v474, %v481
          %v483 = vrot.slane %v478, 4
          %v485 = vshrl.u32 %v390, 16
          %v487 = vrot.slane %v485, 7
          %v488 = vshll.u32 %v390, 16
          %v490 = vor.u32 %v487, %v488
          %v491 = vrot.slane %v487, 4
          %v493 = vshrl.u32 %v391, 16
          %v495 = vrot.slane %v493, 7
          %v496 = vshll.u32 %v391, 16
          %v498 = vor.u32 %v495, %v496
          %v499 = vsel %vm415, %v491, %v498
          %v500 = vrot.slane %v495, 4
          %v502 = vshrl.u32 %v392, 16
          %v504 = vrot.slane %v502, 7
          %v505 = vshll.u32 %v392, 16
          %v507 = vor.u32 %v504, %v505
          %v508 = vrot.slane %v504, 4
          %v510 = vshrl.u32 %v393, 16
          %v512 = vrot.slane %v510, 7
          %v513 = vshll.u32 %v393, 16
          %v515 = vor.u32 %v512, %v513
          %v516 = vsel %vm415, %v508, %v515
          %v517 = vrot.slane %v512, 4
          %v519 = vshrl.u32 %v394, 16
          %v521 = vrot.slane %v519, 7
          %v522 = vshll.u32 %v394, 16
          %v524 = vor.u32 %v521, %v522
          %v525 = vrot.slane %v521, 4
          %v527 = vshrl.u32 %v395, 16
          %v529 = vrot.slane %v527, 7
          %v530 = vshll.u32 %v395, 16
          %v532 = vor.u32 %v529, %v530
          %v533 = vsel %vm415, %v525, %v532
          %v534 = vrot.slane %v529, 4
          %v536 = vshrl.u32 %v396, 16
          %v538 = vrot.slane %v536, 7
          %v539 = vshll.u32 %v396, 16
          %v541 = vor.u32 %v538, %v539
          %v542 = vrot.slane %v538, 4
          %v544 = vshrl.u32 %v397, 16
          %v546 = vrot.slane %v544, 7
          %v547 = vshll.u32 %v397, 16
          %v549 = vor.u32 %v546, %v547
          %v550 = vsel %vm415, %v542, %v549
          %v551 = vrot.slane %v546, 4
          %v553 = vshrl.u32 %v398, 16
          %v555 = vrot.slane %v553, 7
          %v556 = vshll.u32 %v398, 16
          %v558 = vor.u32 %v555, %v556
          %v559 = vrot.slane %v555, 4
          %v561 = vshrl.u32 %v399, 16
          %v563 = vrot.slane %v561, 7
          %v564 = vshll.u32 %v399, 16
          %v566 = vor.u32 %v563, %v564
          %v567 = vsel %vm415, %v559, %v566
          %v568 = vrot.slane %v563, 4
          %v570 = vshrl.u32 %v400, 16
          %v572 = vrot.slane %v570, 7
          %v573 = vshll.u32 %v400, 16
          %v575 = vor.u32 %v572, %v573
          %v576 = vrot.slane %v572, 4
          %v578 = vshrl.u32 %v401, 16
          %v580 = vrot.slane %v578, 7
          %v581 = vshll.u32 %v401, 16
          %v583 = vor.u32 %v580, %v581
          %v584 = vsel %vm415, %v576, %v583
          %v585 = vrot.slane %v580, 4
          %v587 = vshrl.u32 %v402, 16
          %v589 = vrot.slane %v587, 7
          %v590 = vshll.u32 %v402, 16
          %v592 = vor.u32 %v589, %v590
          %v593 = vrot.slane %v589, 4
          %v595 = vshrl.u32 %v403, 16
          %v597 = vrot.slane %v595, 7
          %v598 = vshll.u32 %v403, 16
          %v600 = vor.u32 %v597, %v598
          %v601 = vsel %vm415, %v593, %v600
          %v602 = vrot.slane %v597, 4
          %v604 = vshrl.u32 %v404, 16
          %v606 = vrot.slane %v604, 7
          %v607 = vshll.u32 %v404, 16
          %v609 = vor.u32 %v606, %v607
          %v610 = vrot.slane %v606, 4
          %v612 = vshrl.u32 %v405, 16
          %v614 = vrot.slane %v612, 7
          %v615 = vshll.u32 %v405, 16
          %v617 = vor.u32 %v614, %v615
          %v618 = vsel %vm415, %v610, %v617
          %v619 = vrot.slane %v614, 4
          %v621 = vshrl.u32 %v406, 16
          %v623 = vrot.slane %v621, 7
          %v624 = vshll.u32 %v406, 16
          %v626 = vor.u32 %v623, %v624
          %v627 = vrot.slane %v623, 4
          %v629 = vshrl.u32 %v407, 16
          %v631 = vrot.slane %v629, 7
          %v632 = vshll.u32 %v407, 16
          %v634 = vor.u32 %v631, %v632
          %v635 = vsel %vm415, %v627, %v634
          %v636 = vrot.slane %v631, 4
          %v638 = vshrl.u32 %v408, 16
          %v640 = vrot.slane %v638, 7
          %v641 = vshll.u32 %v408, 16
          %v643 = vor.u32 %v640, %v641
          %v644 = vrot.slane %v640, 4
          %v646 = vshrl.u32 %v409, 16
          %v648 = vrot.slane %v646, 7
          %v649 = vshll.u32 %v409, 16
          %v651 = vor.u32 %v648, %v649
          %v652 = vsel %vm415, %v644, %v651
          %v653 = vrot.slane %v648, 4
          %v655 = vshrl.u32 %v410, 16
          %v657 = vrot.slane %v655, 7
          %v658 = vshll.u32 %v410, 16
          %v660 = vor.u32 %v657, %v658
          %v661 = vrot.slane %v657, 4
          %v663 = vshrl.u32 %v411, 16
          %v665 = vrot.slane %v663, 7
          %v666 = vshll.u32 %v411, 16
          %v668 = vor.u32 %v665, %v666
          %v669 = vsel %vm415, %v661, %v668
          %v670 = vrot.slane %v665, 4
          %v672 = vshrl.u32 %v412, 16
          %v674 = vrot.slane %v672, 7
          %v675 = vshll.u32 %v412, 16
          %v677 = vor.u32 %v674, %v675
          %v678 = vrot.slane %v674, 4
          %v680 = vshrl.u32 %v413, 16
          %v682 = vrot.slane %v680, 7
          %v683 = vshll.u32 %v413, 16
          %v685 = vor.u32 %v682, %v683
          %v686 = vsel %vm415, %v678, %v685
          %v687 = vrot.slane %v682, 4
          %s736 = scalar_lea.vmem [#allocation2], 12
          %vm737 = vcmask 1043456
          %vm738 = vmand %vm737, %vm326
          %v739 = vld [vmem:[%s736] sm:$0xf]
          %v740 = vsel %vm738, %v422, %v739
          %741 = vst [vmem:[%s736] sm:$0xf] %v740
          %742 = vst [vmem:[%s736 + $0x4] sm:$0xf] %v431
          %v743 = vld [vmem:[%s736 + $0x8] sm:$0x1]
          %v744 = vsel %vm271, %v432, %v743
          %745 = vst [vmem:[%s736 + $0x8] sm:$0x1] %v744
          %v746 = vld [vmem:[%s736 + $0xc] sm:$0xf]
          %v747 = vsel %vm738, %v439, %v746
          %748 = vst [vmem:[%s736 + $0xc] sm:$0xf] %v747
          %749 = vst [vmem:[%s736 + $0x10] sm:$0xf] %v448
          %v750 = vld [vmem:[%s736 + $0x14] sm:$0x1]
          %v751 = vsel %vm271, %v449, %v750
          %752 = vst [vmem:[%s736 + $0x14] sm:$0x1] %v751
          %v753 = vld [vmem:[%s736 + $0x18] sm:$0xf]
          %v754 = vsel %vm738, %v456, %v753
          %755 = vst [vmem:[%s736 + $0x18] sm:$0xf] %v754
          %756 = vst [vmem:[%s736 + $0x1c] sm:$0xf] %v465
          %v757 = vld [vmem:[%s736 + $0x20] sm:$0x1]
          %v758 = vsel %vm271, %v466, %v757
          %759 = vst [vmem:[%s736 + $0x20] sm:$0x1] %v758
          %v760 = vld [vmem:[%s736 + $0x24] sm:$0xf]
          %v761 = vsel %vm738, %v473, %v760
          %762 = vst [vmem:[%s736 + $0x24] sm:$0xf] %v761
          %763 = vst [vmem:[%s736 + $0x28] sm:$0xf] %v482
          %v764 = vld [vmem:[%s736 + $0x2c] sm:$0x1]
          %v765 = vsel %vm271, %v483, %v764
          %766 = vst [vmem:[%s736 + $0x2c] sm:$0x1] %v765
          %v767 = vld [vmem:[%s736 + $0x30] sm:$0xf]
          %v768 = vsel %vm738, %v490, %v767
          %769 = vst [vmem:[%s736 + $0x30] sm:$0xf] %v768
          %770 = vst [vmem:[%s736 + $0x34] sm:$0xf] %v499
          %v771 = vld [vmem:[%s736 + $0x38] sm:$0x1]
          %v772 = vsel %vm271, %v500, %v771
          %773 = vst [vmem:[%s736 + $0x38] sm:$0x1] %v772
          %v774 = vld [vmem:[%s736 + $0x3c] sm:$0xf]
          %v775 = vsel %vm738, %v507, %v774
          %776 = vst [vmem:[%s736 + $0x3c] sm:$0xf] %v775
          %777 = vst [vmem:[%s736 + $0x40] sm:$0xf] %v516
          %v778 = vld [vmem:[%s736 + $0x44] sm:$0x1]
          %v779 = vsel %vm271, %v517, %v778
          %780 = vst [vmem:[%s736 + $0x44] sm:$0x1] %v779
          %v781 = vld [vmem:[%s736 + $0x48] sm:$0xf]
          %v782 = vsel %vm738, %v524, %v781
          %783 = vst [vmem:[%s736 + $0x48] sm:$0xf] %v782
          %784 = vst [vmem:[%s736 + $0x4c] sm:$0xf] %v533
          %v785 = vld [vmem:[%s736 + $0x50] sm:$0x1]
          %v786 = vsel %vm271, %v534, %v785
          %787 = vst [vmem:[%s736 + $0x50] sm:$0x1] %v786
          %v788 = vld [vmem:[%s736 + $0x54] sm:$0xf]
          %v789 = vsel %vm738, %v541, %v788
          %790 = vst [vmem:[%s736 + $0x54] sm:$0xf] %v789
          %791 = vst [vmem:[%s736 + $0x58] sm:$0xf] %v550
          %v792 = vld [vmem:[%s736 + $0x5c] sm:$0x1]
          %v793 = vsel %vm271, %v551, %v792
          %794 = vst [vmem:[%s736 + $0x5c] sm:$0x1] %v793
          %v795 = vld [vmem:[%s736 + $0x60] sm:$0xf]
          %v796 = vsel %vm738, %v558, %v795
          %797 = vst [vmem:[%s736 + $0x60] sm:$0xf] %v796
          %798 = vst [vmem:[%s736 + $0x64] sm:$0xf] %v567
          %v799 = vld [vmem:[%s736 + $0x68] sm:$0x1]
          %v800 = vsel %vm271, %v568, %v799
          %801 = vst [vmem:[%s736 + $0x68] sm:$0x1] %v800
          %v802 = vld [vmem:[%s736 + $0x6c] sm:$0xf]
          %v803 = vsel %vm738, %v575, %v802
          %804 = vst [vmem:[%s736 + $0x6c] sm:$0xf] %v803
          %805 = vst [vmem:[%s736 + $0x70] sm:$0xf] %v584
          %v806 = vld [vmem:[%s736 + $0x74] sm:$0x1]
          %v807 = vsel %vm271, %v585, %v806
          %808 = vst [vmem:[%s736 + $0x74] sm:$0x1] %v807
          %v809 = vld [vmem:[%s736 + $0x78] sm:$0xf]
          %v810 = vsel %vm738, %v592, %v809
          %811 = vst [vmem:[%s736 + $0x78] sm:$0xf] %v810
          %812 = vst [vmem:[%s736 + $0x7c] sm:$0xf] %v601
          %v813 = vld [vmem:[%s736 + $0x80] sm:$0x1]
          %v814 = vsel %vm271, %v602, %v813
          %815 = vst [vmem:[%s736 + $0x80] sm:$0x1] %v814
          %v816 = vld [vmem:[%s736 + $0x84] sm:$0xf]
          %v817 = vsel %vm738, %v609, %v816
          %818 = vst [vmem:[%s736 + $0x84] sm:$0xf] %v817
          %819 = vst [vmem:[%s736 + $0x88] sm:$0xf] %v618
          %v820 = vld [vmem:[%s736 + $0x8c] sm:$0x1]
          %v821 = vsel %vm271, %v619, %v820
          %822 = vst [vmem:[%s736 + $0x8c] sm:$0x1] %v821
          %v823 = vld [vmem:[%s736 + $0x90] sm:$0xf]
          %v824 = vsel %vm738, %v626, %v823
          %825 = vst [vmem:[%s736 + $0x90] sm:$0xf] %v824
          %826 = vst [vmem:[%s736 + $0x94] sm:$0xf] %v635
          %v827 = vld [vmem:[%s736 + $0x98] sm:$0x1]
          %v828 = vsel %vm271, %v636, %v827
          %829 = vst [vmem:[%s736 + $0x98] sm:$0x1] %v828
          %v830 = vld [vmem:[%s736 + $0x9c] sm:$0xf]
          %v831 = vsel %vm738, %v643, %v830
          %832 = vst [vmem:[%s736 + $0x9c] sm:$0xf] %v831
          %833 = vst [vmem:[%s736 + $0xa0] sm:$0xf] %v652
          %v834 = vld [vmem:[%s736 + $0xa4] sm:$0x1]
          %v835 = vsel %vm271, %v653, %v834
          %836 = vst [vmem:[%s736 + $0xa4] sm:$0x1] %v835
          %v837 = vld [vmem:[%s736 + $0xa8] sm:$0xf]
          %v838 = vsel %vm738, %v660, %v837
          %839 = vst [vmem:[%s736 + $0xa8] sm:$0xf] %v838
          %840 = vst [vmem:[%s736 + $0xac] sm:$0xf] %v669
          %v841 = vld [vmem:[%s736 + $0xb0] sm:$0x1]
          %v842 = vsel %vm271, %v670, %v841
          %843 = vst [vmem:[%s736 + $0xb0] sm:$0x1] %v842
          %v844 = vld [vmem:[%s736 + $0xb4] sm:$0xf]
          %v845 = vsel %vm738, %v677, %v844
          %846 = vst [vmem:[%s736 + $0xb4] sm:$0xf] %v845
          %847 = vst [vmem:[%s736 + $0xb8] sm:$0xf] %v686
          %v848 = vld [vmem:[%s736 + $0xbc] sm:$0x1]
          %v849 = vsel %vm271, %v687, %v848
          %850 = vst [vmem:[%s736 + $0xbc] sm:$0x1] %v849
        $region44: #{_lambda_.1} parent=31 // pred_fallthru
          _
        %v851 = vld [vmem:[%s215] sm:$0x1]
        %v853 = vlaneseq
        %v854 = vshrl.u32 %v853, 7
        %v855 = vsub.s32 0, %v854
        %v856 = vrot.slane %v851, %v855
        %858 = vst [vmem:[#allocation3] sm:$0xff] %v856
        %859 = vst [vmem:[#allocation3 + $0x8] sm:$0xff] %v856
        %860 = vst [vmem:[#allocation3 + $0x10] sm:$0xff] %v856
        %861 = vst [vmem:[#allocation3 + $0x18] sm:$0xff] %v856
        %862 = vst [vmem:[#allocation3 + $0x20] sm:$0xff] %v856
        %863 = vst [vmem:[#allocation3 + $0x28] sm:$0xff] %v856
        %864 = vst [vmem:[#allocation3 + $0x30] sm:$0xff] %v856
        %865 = vst [vmem:[#allocation3 + $0x38] sm:$0xff] %v856
        %866 = vst [vmem:[#allocation3 + $0x40] sm:$0xff] %v856
        %867 = vst [vmem:[#allocation3 + $0x48] sm:$0xff] %v856
        %868 = vst [vmem:[#allocation3 + $0x50] sm:$0xff] %v856
        %869 = vst [vmem:[#allocation3 + $0x58] sm:$0xff] %v856
        %870 = vst [vmem:[#allocation3 + $0x60] sm:$0xff] %v856
        %871 = vst [vmem:[#allocation3 + $0x68] sm:$0xff] %v856
        %872 = vst [vmem:[#allocation3 + $0x70] sm:$0xff] %v856
        %873 = vst [vmem:[#allocation3 + $0x78] sm:$0xff] %v856
        %874 = vst [vmem:[#allocation3 + $0x80] sm:$0xff] %v856
        %875 = vst [vmem:[#allocation3 + $0x88] sm:$0xff] %v856
        %876 = vst [vmem:[#allocation3 + $0x90] sm:$0xff] %v856
        %877 = vst [vmem:[#allocation3 + $0x98] sm:$0xff] %v856
        %878 = vst [vmem:[#allocation3 + $0xa0] sm:$0xff] %v856
        %879 = vst [vmem:[#allocation3 + $0xa8] sm:$0xff] %v856
        %880 = vst [vmem:[#allocation3 + $0xb0] sm:$0xff] %v856
        %881 = vst [vmem:[#allocation3 + $0xb8] sm:$0xff] %v856
        %882 = vst [vmem:[#allocation3 + $0xc0] sm:$0xff] %v856
        %883 = vst [vmem:[#allocation3 + $0xc8] sm:$0xff] %v856
        %884 = vst [vmem:[#allocation3 + $0xd0] sm:$0xff] %v856
        %885 = vst [vmem:[#allocation3 + $0xd8] sm:$0xff] %v856
        %886 = vst [vmem:[#allocation3 + $0xe0] sm:$0xff] %v856
        %887 = vst [vmem:[#allocation3 + $0xe8] sm:$0xff] %v856
        %888 = vst [vmem:[#allocation3 + $0xf0] sm:$0xff] %v856
        %889 = vst [vmem:[#allocation3 + $0xf8] sm:$0xff] %v856
        %v890 = vld [vmem:[#allocation2] sm:$0xf]
        %v891 = vld [vmem:[#allocation2 + $0x4] sm:$0xf]
        %v892 = vld [vmem:[#allocation2 + $0xc] sm:$0xf]
        %v893 = vld [vmem:[#allocation2 + $0x10] sm:$0xf]
        %v894 = vld [vmem:[#allocation2 + $0x18] sm:$0xf]
        %v895 = vld [vmem:[#allocation2 + $0x1c] sm:$0xf]
        %v896 = vld [vmem:[#allocation2 + $0x24] sm:$0xf]
        %v897 = vld [vmem:[#allocation2 + $0x28] sm:$0xf]
        %v898 = vld [vmem:[#allocation2 + $0x30] sm:$0xf]
        %v899 = vld [vmem:[#allocation2 + $0x34] sm:$0xf]
        %v900 = vld [vmem:[#allocation2 + $0x3c] sm:$0xf]
        %v901 = vld [vmem:[#allocation2 + $0x40] sm:$0xf]
        %v902 = vld [vmem:[#allocation2 + $0x48] sm:$0xf]
        %v903 = vld [vmem:[#allocation2 + $0x4c] sm:$0xf]
        %v904 = vld [vmem:[#allocation2 + $0x54] sm:$0xf]
        %v905 = vld [vmem:[#allocation2 + $0x58] sm:$0xf]
        %v906 = vld [vmem:[#allocation2 + $0x60] sm:$0xf]
        %v907 = vld [vmem:[#allocation2 + $0x64] sm:$0xf]
        %v908 = vld [vmem:[#allocation2 + $0x6c] sm:$0xf]
        %v909 = vld [vmem:[#allocation2 + $0x70] sm:$0xf]
        %v910 = vld [vmem:[#allocation2 + $0x78] sm:$0xf]
        %v911 = vld [vmem:[#allocation2 + $0x7c] sm:$0xf]
        %v912 = vld [vmem:[#allocation2 + $0x84] sm:$0xf]
        %v913 = vld [vmem:[#allocation2 + $0x88] sm:$0xf]
        %v914 = vld [vmem:[#allocation2 + $0x90] sm:$0xf]
        %v915 = vld [vmem:[#allocation2 + $0x94] sm:$0xf]
        %v916 = vld [vmem:[#allocation2 + $0x9c] sm:$0xf]
        %v917 = vld [vmem:[#allocation2 + $0xa0] sm:$0xf]
        %v918 = vld [vmem:[#allocation2 + $0xa8] sm:$0xf]
        %v919 = vld [vmem:[#allocation2 + $0xac] sm:$0xf]
        %v920 = vld [vmem:[#allocation2 + $0xb4] sm:$0xf]
        %v921 = vld [vmem:[#allocation2 + $0xb8] sm:$0xf]
        %v922 = vld [vmem:[#allocation3] sm:$0xff]
        %v923 = vld [vmem:[#allocation3 + $0x8] sm:$0xff]
        %v924 = vld [vmem:[#allocation3 + $0x10] sm:$0xff]
        %v925 = vld [vmem:[#allocation3 + $0x18] sm:$0xff]
        %v926 = vld [vmem:[#allocation3 + $0x20] sm:$0xff]
        %v927 = vld [vmem:[#allocation3 + $0x28] sm:$0xff]
        %v928 = vld [vmem:[#allocation3 + $0x30] sm:$0xff]
        %v929 = vld [vmem:[#allocation3 + $0x38] sm:$0xff]
        %v930 = vld [vmem:[#allocation3 + $0x40] sm:$0xff]
        %v931 = vld [vmem:[#allocation3 + $0x48] sm:$0xff]
        %v932 = vld [vmem:[#allocation3 + $0x50] sm:$0xff]
        %v933 = vld [vmem:[#allocation3 + $0x58] sm:$0xff]
        %v934 = vld [vmem:[#allocation3 + $0x60] sm:$0xff]
        %v935 = vld [vmem:[#allocation3 + $0x68] sm:$0xff]
        %v936 = vld [vmem:[#allocation3 + $0x70] sm:$0xff]
        %v937 = vld [vmem:[#allocation3 + $0x78] sm:$0xff]
        %v938 = vld [vmem:[#allocation3 + $0x80] sm:$0xff]
        %v939 = vld [vmem:[#allocation3 + $0x88] sm:$0xff]
        %v940 = vld [vmem:[#allocation3 + $0x90] sm:$0xff]
        %v941 = vld [vmem:[#allocation3 + $0x98] sm:$0xff]
        %v942 = vld [vmem:[#allocation3 + $0xa0] sm:$0xff]
        %v943 = vld [vmem:[#allocation3 + $0xa8] sm:$0xff]
        %v944 = vld [vmem:[#allocation3 + $0xb0] sm:$0xff]
        %v945 = vld [vmem:[#allocation3 + $0xb8] sm:$0xff]
        %v946 = vld [vmem:[#allocation3 + $0xc0] sm:$0xff]
        %v947 = vld [vmem:[#allocation3 + $0xc8] sm:$0xff]
        %v948 = vld [vmem:[#allocation3 + $0xd0] sm:$0xff]
        %v949 = vld [vmem:[#allocation3 + $0xd8] sm:$0xff]
        %v950 = vld [vmem:[#allocation3 + $0xe0] sm:$0xff]
        %v951 = vld [vmem:[#allocation3 + $0xe8] sm:$0xff]
        %v952 = vld [vmem:[#allocation3 + $0xf0] sm:$0xff]
        %v953 = vld [vmem:[#allocation3 + $0xf8] sm:$0xff]
        %v954 = vld [vmem:[%s207] sm:$0xf]
        %v955 = vld [vmem:[%s207 + $0x4] sm:$0xf]
        %v956 = vld [vmem:[%s207 + $0x8] sm:$0xf]
        %v957 = vld [vmem:[%s207 + $0xc] sm:$0xf]
        %v958 = vld [vmem:[%s207 + $0x10] sm:$0xf]
        %v959 = vld [vmem:[%s207 + $0x14] sm:$0xf]
        %v960 = vld [vmem:[%s207 + $0x18] sm:$0xf]
        %v961 = vld [vmem:[%s207 + $0x1c] sm:$0xf]
        %v962 = vld [vmem:[%s207 + $0x20] sm:$0xf]
        %v963 = vld [vmem:[%s207 + $0x24] sm:$0xf]
        %v964 = vld [vmem:[%s207 + $0x28] sm:$0xf]
        %v965 = vld [vmem:[%s207 + $0x2c] sm:$0xf]
        %v966 = vld [vmem:[%s207 + $0x30] sm:$0xf]
        %v967 = vld [vmem:[%s207 + $0x34] sm:$0xf]
        %v968 = vld [vmem:[%s207 + $0x38] sm:$0xf]
        %v969 = vld [vmem:[%s207 + $0x3c] sm:$0xf]
        %v1002 = vunpack.c.l.b16 %v890
        %v1003 = vunpack.c.l.b16 %v891
        %v1004 = vunpack.c.l.b16 %v892
        %v1005 = vunpack.c.l.b16 %v893
        %v1006 = vunpack.c.l.b16 %v894
        %v1007 = vunpack.c.l.b16 %v895
        %v1008 = vunpack.c.l.b16 %v896
        %v1009 = vunpack.c.l.b16 %v897
        %v1010 = vunpack.c.l.b16 %v898
        %v1011 = vunpack.c.l.b16 %v899
        %v1012 = vunpack.c.l.b16 %v900
        %v1013 = vunpack.c.l.b16 %v901
        %v1014 = vunpack.c.l.b16 %v902
        %v1015 = vunpack.c.l.b16 %v903
        %v1016 = vunpack.c.l.b16 %v904
        %v1017 = vunpack.c.l.b16 %v905
        %v1018 = vunpack.c.l.b16 %v906
        %v1019 = vunpack.c.l.b16 %v907
        %v1020 = vunpack.c.l.b16 %v908
        %v1021 = vunpack.c.l.b16 %v909
        %v1022 = vunpack.c.l.b16 %v910
        %v1023 = vunpack.c.l.b16 %v911
        %v1024 = vunpack.c.l.b16 %v912
        %v1025 = vunpack.c.l.b16 %v913
        %v1026 = vunpack.c.l.b16 %v914
        %v1027 = vunpack.c.l.b16 %v915
        %v1028 = vunpack.c.l.b16 %v916
        %v1029 = vunpack.c.l.b16 %v917
        %v1030 = vunpack.c.l.b16 %v918
        %v1031 = vunpack.c.l.b16 %v919
        %v1032 = vunpack.c.l.b16 %v920
        %v1033 = vunpack.c.l.b16 %v921
        %v1034 = vpack.c.b16 %v1003, %v1002
        %v1035 = vpack.c.b16 %v1005, %v1004
        %v1036 = vpack.c.b16 %v1007, %v1006
        %v1037 = vpack.c.b16 %v1009, %v1008
        %v1038 = vpack.c.b16 %v1011, %v1010
        %v1039 = vpack.c.b16 %v1013, %v1012
        %v1040 = vpack.c.b16 %v1015, %v1014
        %v1041 = vpack.c.b16 %v1017, %v1016
        %v1042 = vpack.c.b16 %v1019, %v1018
        %v1043 = vpack.c.b16 %v1021, %v1020
        %v1044 = vpack.c.b16 %v1023, %v1022
        %v1045 = vpack.c.b16 %v1025, %v1024
        %v1046 = vpack.c.b16 %v1027, %v1026
        %v1047 = vpack.c.b16 %v1029, %v1028
        %v1048 = vpack.c.b16 %v1031, %v1030
        %v1049 = vpack.c.b16 %v1033, %v1032
        %v1082 = vunpack.c.l.b16 %v954
        %v1083 = vunpack.c.l.b16 %v955
        %v1084 = vunpack.c.l.b16 %v956
        %v1085 = vunpack.c.l.b16 %v957
        %v1086 = vunpack.c.l.b16 %v958
        %v1087 = vunpack.c.l.b16 %v959
        %v1088 = vunpack.c.l.b16 %v960
        %v1089 = vunpack.c.l.b16 %v961
        %v1090 = vunpack.c.l.b16 %v962
        %v1091 = vunpack.c.l.b16 %v963
        %v1092 = vunpack.c.l.b16 %v964
        %v1093 = vunpack.c.l.b16 %v965
        %v1094 = vunpack.c.l.b16 %v966
        %v1095 = vunpack.c.l.b16 %v967
        %v1096 = vunpack.c.l.b16 %v968
        %v1097 = vunpack.c.l.b16 %v969
        %v1098 = vpack.c.b16 %v1083, %v1082
        %v1099 = vpack.c.b16 %v1085, %v1084
        %v1100 = vpack.c.b16 %v1087, %v1086
        %v1101 = vpack.c.b16 %v1089, %v1088
        %v1102 = vpack.c.b16 %v1091, %v1090
        %v1103 = vpack.c.b16 %v1093, %v1092
        %v1104 = vpack.c.b16 %v1095, %v1094
        %v1105 = vpack.c.b16 %v1097, %v1096
        %1114 = vmatprep.subr.bf16.mxu0 0
        %1115 = vmatpush1.bf16.msra.mxu0 %v1098
        %1116 = vmatprep.subr.bf16.mxu0 0
        %1117 = vmatpush1.bf16.msra.mxu0 %v1099
        %1118 = vmatprep.subr.bf16.mxu0 0
        %1119 = vmatpush1.bf16.msra.mxu0 %v1100
        %1120 = vmatprep.subr.bf16.mxu0 0
        %1121 = vmatpush1.bf16.msra.mxu0 %v1101
        %1122 = vmatprep.subr.bf16.mxu0 0
        %1123 = vmatpush1.bf16.msra.mxu0 %v1102
        %1124 = vmatprep.subr.bf16.mxu0 0
        %1125 = vmatpush1.bf16.msra.mxu0 %v1103
        %1126 = vmatprep.subr.bf16.mxu0 0
        %1127 = vmatpush1.bf16.msra.mxu0 %v1104
        %1128 = vmatprep.subr.bf16.mxu0 0
        %1129 = vmatpush1.bf16.msra.mxu0 %v1105
        %1130 = vmatprep.subr.bf16.mxu0 0
        %1131 = vmatpush1.bf16.msra.mxu0 0
        %1132 = vmatprep.subr.bf16.mxu0 0
        %1133 = vmatpush1.bf16.msra.mxu0 0
        %1134 = vmatprep.subr.bf16.mxu0 0
        %1135 = vmatpush1.bf16.msra.mxu0 0
        %1136 = vmatprep.subr.bf16.mxu0 0
        %1137 = vmatpush1.bf16.msra.mxu0 0
        %1138 = vmatprep.subr.bf16.mxu0 0
        %1139 = vmatpush1.bf16.msra.mxu0 0
        %1140 = vmatprep.subr.bf16.mxu0 0
        %1141 = vmatpush1.bf16.msra.mxu0 0
        %1142 = vmatprep.subr.bf16.mxu0 0
        %1143 = vmatpush1.bf16.msra.mxu0 0
        %1144 = vmatprep.subr.bf16.mxu0 0
        %1145 = vmatpush1.bf16.msra.mxu0 0
        %1146 = vmatprep.mubr.bf16.mxu0 0
        %1147 = vmatmul.mubr.bf16.gmra.mrb[0].mxu0 %v1034
        %v1148 = vpop.f32.mrb[0].mxu0
        %v1149 = vadd.f32 0.0, %v1148
        %v1150 = vpop.f32.mrb[0].mxu0
        %v1151 = vpop.f32.mrb[0].mxu0
        %v1152 = vadd.f32 0.0, %v1151
        %v1153 = vpop.f32.mrb[0].mxu0
        %1154 = vmatprep.mubr.bf16.mxu0 0
        %1155 = vmatmul.mubr.bf16.gmra.mrb[0].mxu0 %v1035
        %v1156 = vpop.f32.mrb[0].mxu0
        %v1157 = vadd.f32 0.0, %v1156
        %v1158 = vpop.f32.mrb[0].mxu0
        %v1159 = vpop.f32.mrb[0].mxu0
        %v1160 = vadd.f32 0.0, %v1159
        %v1161 = vpop.f32.mrb[0].mxu0
        %1162 = vmatprep.mubr.bf16.mxu0 0
        %1163 = vmatmul.mubr.bf16.gmra.mrb[0].mxu0 %v1036
        %v1164 = vpop.f32.mrb[0].mxu0
        %v1165 = vadd.f32 0.0, %v1164
        %v1166 = vpop.f32.mrb[0].mxu0
        %v1167 = vpop.f32.mrb[0].mxu0
        %v1168 = vadd.f32 0.0, %v1167
        %v1169 = vpop.f32.mrb[0].mxu0
        %1170 = vmatprep.mubr.bf16.mxu0 0
        %1171 = vmatmul.mubr.bf16.gmra.mrb[0].mxu0 %v1037
        %v1172 = vpop.f32.mrb[0].mxu0
        %v1173 = vadd.f32 0.0, %v1172
        %v1174 = vpop.f32.mrb[0].mxu0
        %v1175 = vpop.f32.mrb[0].mxu0
        %v1176 = vadd.f32 0.0, %v1175
        %v1177 = vpop.f32.mrb[0].mxu0
        %1178 = vmatprep.mubr.bf16.mxu0 0
        %1179 = vmatmul.mubr.bf16.gmra.mrb[0].mxu0 %v1038
        %v1180 = vpop.f32.mrb[0].mxu0
        %v1181 = vadd.f32 0.0, %v1180
        %v1182 = vpop.f32.mrb[0].mxu0
        %v1183 = vpop.f32.mrb[0].mxu0
        %v1184 = vadd.f32 0.0, %v1183
        %v1185 = vpop.f32.mrb[0].mxu0
        %1186 = vmatprep.mubr.bf16.mxu0 0
        %1187 = vmatmul.mubr.bf16.gmra.mrb[0].mxu0 %v1039
        %v1188 = vpop.f32.mrb[0].mxu0
        %v1189 = vadd.f32 0.0, %v1188
        %v1190 = vpop.f32.mrb[0].mxu0
        %v1191 = vpop.f32.mrb[0].mxu0
        %v1192 = vadd.f32 0.0, %v1191
        %v1193 = vpop.f32.mrb[0].mxu0
        %1194 = vmatprep.mubr.bf16.mxu0 0
        %1195 = vmatmul.mubr.bf16.gmra.mrb[0].mxu0 %v1040
        %v1196 = vpop.f32.mrb[0].mxu0
        %v1197 = vadd.f32 0.0, %v1196
        %v1198 = vpop.f32.mrb[0].mxu0
        %v1199 = vpop.f32.mrb[0].mxu0
        %v1200 = vadd.f32 0.0, %v1199
        %v1201 = vpop.f32.mrb[0].mxu0
        %1202 = vmatprep.mubr.bf16.mxu0 0
        %1203 = vmatmul.mubr.bf16.gmra.mrb[0].mxu0 %v1041
        %v1204 = vpop.f32.mrb[0].mxu0
        %v1205 = vadd.f32 0.0, %v1204
        %v1206 = vpop.f32.mrb[0].mxu0
        %v1207 = vpop.f32.mrb[0].mxu0
        %v1208 = vadd.f32 0.0, %v1207
        %v1209 = vpop.f32.mrb[0].mxu0
        %1210 = vmatprep.mubr.bf16.mxu0 0
        %1211 = vmatmul.mubr.bf16.gmra.mrb[0].mxu0 %v1042
        %v1212 = vpop.f32.mrb[0].mxu0
        %v1213 = vadd.f32 0.0, %v1212
        %v1214 = vpop.f32.mrb[0].mxu0
        %v1215 = vpop.f32.mrb[0].mxu0
        %v1216 = vadd.f32 0.0, %v1215
        %v1217 = vpop.f32.mrb[0].mxu0
        %1218 = vmatprep.mubr.bf16.mxu0 0
        %1219 = vmatmul.mubr.bf16.gmra.mrb[0].mxu0 %v1043
        %v1220 = vpop.f32.mrb[0].mxu0
        %v1221 = vadd.f32 0.0, %v1220
        %v1222 = vpop.f32.mrb[0].mxu0
        %v1223 = vpop.f32.mrb[0].mxu0
        %v1224 = vadd.f32 0.0, %v1223
        %v1225 = vpop.f32.mrb[0].mxu0
        %1226 = vmatprep.mubr.bf16.mxu0 0
        %1227 = vmatmul.mubr.bf16.gmra.mrb[0].mxu0 %v1044
        %v1228 = vpop.f32.mrb[0].mxu0
        %v1229 = vadd.f32 0.0, %v1228
        %v1230 = vpop.f32.mrb[0].mxu0
        %v1231 = vpop.f32.mrb[0].mxu0
        %v1232 = vadd.f32 0.0, %v1231
        %v1233 = vpop.f32.mrb[0].mxu0
        %1234 = vmatprep.mubr.bf16.mxu0 0
        %1235 = vmatmul.mubr.bf16.gmra.mrb[0].mxu0 %v1045
        %v1236 = vpop.f32.mrb[0].mxu0
        %v1237 = vadd.f32 0.0, %v1236
        %v1238 = vpop.f32.mrb[0].mxu0
        %v1239 = vpop.f32.mrb[0].mxu0
        %v1240 = vadd.f32 0.0, %v1239
        %v1241 = vpop.f32.mrb[0].mxu0
        %1242 = vmatprep.mubr.bf16.mxu0 0
        %1243 = vmatmul.mubr.bf16.gmra.mrb[0].mxu0 %v1046
        %v1244 = vpop.f32.mrb[0].mxu0
        %v1245 = vadd.f32 0.0, %v1244
        %v1246 = vpop.f32.mrb[0].mxu0
        %v1247 = vpop.f32.mrb[0].mxu0
        %v1248 = vadd.f32 0.0, %v1247
        %v1249 = vpop.f32.mrb[0].mxu0
        %1250 = vmatprep.mubr.bf16.mxu0 0
        %1251 = vmatmul.mubr.bf16.gmra.mrb[0].mxu0 %v1047
        %v1252 = vpop.f32.mrb[0].mxu0
        %v1253 = vadd.f32 0.0, %v1252
        %v1254 = vpop.f32.mrb[0].mxu0
        %v1255 = vpop.f32.mrb[0].mxu0
        %v1256 = vadd.f32 0.0, %v1255
        %v1257 = vpop.f32.mrb[0].mxu0
        %1258 = vmatprep.mubr.bf16.mxu0 0
        %1259 = vmatmul.mubr.bf16.gmra.mrb[0].mxu0 %v1048
        %v1260 = vpop.f32.mrb[0].mxu0
        %v1261 = vadd.f32 0.0, %v1260
        %v1262 = vpop.f32.mrb[0].mxu0
        %v1263 = vpop.f32.mrb[0].mxu0
        %v1264 = vadd.f32 0.0, %v1263
        %v1265 = vpop.f32.mrb[0].mxu0
        %1266 = vmatprep.mubr.bf16.mxu0 0
        %1267 = vmatmul.mubr.bf16.gmra.mrb[0].mxu0 %v1049
        %v1268 = vpop.f32.mrb[0].mxu0
        %v1269 = vadd.f32 0.0, %v1268
        %v1270 = vpop.f32.mrb[0].mxu0
        %v1271 = vpop.f32.mrb[0].mxu0
        %v1272 = vadd.f32 0.0, %v1271
        %v1273 = vpop.f32.mrb[0].mxu0
        %1274 = vdwg.mxu0
        %v1275 = vadd.f32 %v922, %v1149
        %v1276 = vadd.f32 %v923, %v1152
        %v1277 = vadd.f32 %v924, %v1157
        %v1278 = vadd.f32 %v925, %v1160
        %v1279 = vadd.f32 %v926, %v1165
        %v1280 = vadd.f32 %v927, %v1168
        %v1281 = vadd.f32 %v928, %v1173
        %v1282 = vadd.f32 %v929, %v1176
        %v1283 = vadd.f32 %v930, %v1181
        %v1284 = vadd.f32 %v931, %v1184
        %v1285 = vadd.f32 %v932, %v1189
        %v1286 = vadd.f32 %v933, %v1192
        %v1287 = vadd.f32 %v934, %v1197
        %v1288 = vadd.f32 %v935, %v1200
        %v1289 = vadd.f32 %v936, %v1205
        %v1290 = vadd.f32 %v937, %v1208
        %v1291 = vadd.f32 %v938, %v1213
        %v1292 = vadd.f32 %v939, %v1216
        %v1293 = vadd.f32 %v940, %v1221
        %v1294 = vadd.f32 %v941, %v1224
        %v1295 = vadd.f32 %v942, %v1229
        %v1296 = vadd.f32 %v943, %v1232
        %v1297 = vadd.f32 %v944, %v1237
        %v1298 = vadd.f32 %v945, %v1240
        %v1299 = vadd.f32 %v946, %v1245
        %v1300 = vadd.f32 %v947, %v1248
        %v1301 = vadd.f32 %v948, %v1253
        %v1302 = vadd.f32 %v949, %v1256
        %v1303 = vadd.f32 %v950, %v1261
        %v1304 = vadd.f32 %v951, %v1264
        %v1305 = vadd.f32 %v952, %v1269
        %v1306 = vadd.f32 %v953, %v1272
        %1307 = vst [vmem:[#allocation3] sm:$0xff] %v1275
        %1308 = vst [vmem:[#allocation3 + $0x8] sm:$0xff] %v1276
        %1309 = vst [vmem:[#allocation3 + $0x10] sm:$0xff] %v1277
        %1310 = vst [vmem:[#allocation3 + $0x18] sm:$0xff] %v1278
        %1311 = vst [vmem:[#allocation3 + $0x20] sm:$0xff] %v1279
        %1312 = vst [vmem:[#allocation3 + $0x28] sm:$0xff] %v1280
        %1313 = vst [vmem:[#allocation3 + $0x30] sm:$0xff] %v1281
        %1314 = vst [vmem:[#allocation3 + $0x38] sm:$0xff] %v1282
        %1315 = vst [vmem:[#allocation3 + $0x40] sm:$0xff] %v1283
        %1316 = vst [vmem:[#allocation3 + $0x48] sm:$0xff] %v1284
        %1317 = vst [vmem:[#allocation3 + $0x50] sm:$0xff] %v1285
        %1318 = vst [vmem:[#allocation3 + $0x58] sm:$0xff] %v1286
        %1319 = vst [vmem:[#allocation3 + $0x60] sm:$0xff] %v1287
        %1320 = vst [vmem:[#allocation3 + $0x68] sm:$0xff] %v1288
        %1321 = vst [vmem:[#allocation3 + $0x70] sm:$0xff] %v1289
        %1322 = vst [vmem:[#allocation3 + $0x78] sm:$0xff] %v1290
        %1323 = vst [vmem:[#allocation3 + $0x80] sm:$0xff] %v1291
        %1324 = vst [vmem:[#allocation3 + $0x88] sm:$0xff] %v1292
        %1325 = vst [vmem:[#allocation3 + $0x90] sm:$0xff] %v1293
        %1326 = vst [vmem:[#allocation3 + $0x98] sm:$0xff] %v1294
        %1327 = vst [vmem:[#allocation3 + $0xa0] sm:$0xff] %v1295
        %1328 = vst [vmem:[#allocation3 + $0xa8] sm:$0xff] %v1296
        %1329 = vst [vmem:[#allocation3 + $0xb0] sm:$0xff] %v1297
        %1330 = vst [vmem:[#allocation3 + $0xb8] sm:$0xff] %v1298
        %1331 = vst [vmem:[#allocation3 + $0xc0] sm:$0xff] %v1299
        %1332 = vst [vmem:[#allocation3 + $0xc8] sm:$0xff] %v1300
        %1333 = vst [vmem:[#allocation3 + $0xd0] sm:$0xff] %v1301
        %1334 = vst [vmem:[#allocation3 + $0xd8] sm:$0xff] %v1302
        %1335 = vst [vmem:[#allocation3 + $0xe0] sm:$0xff] %v1303
        %1336 = vst [vmem:[#allocation3 + $0xe8] sm:$0xff] %v1304
        %1337 = vst [vmem:[#allocation3 + $0xf0] sm:$0xff] %v1305
        %1338 = vst [vmem:[#allocation3 + $0xf8] sm:$0xff] %v1306
        %v1339 = vld [vmem:[#allocation2] sm:$0xf]
        %v1340 = vld [vmem:[#allocation2 + $0x4] sm:$0xf]
        %v1341 = vld [vmem:[#allocation2 + $0x8] sm:$0x1]
        %v1342 = vld [vmem:[#allocation2 + $0xc] sm:$0xf]
        %v1343 = vld [vmem:[#allocation2 + $0x10] sm:$0xf]
        %v1344 = vld [vmem:[#allocation2 + $0x14] sm:$0x1]
        %v1345 = vld [vmem:[#allocation2 + $0x18] sm:$0xf]
        %v1346 = vld [vmem:[#allocation2 + $0x1c] sm:$0xf]
        %v1347 = vld [vmem:[#allocation2 + $0x20] sm:$0x1]
        %v1348 = vld [vmem:[#allocation2 + $0x24] sm:$0xf]
        %v1349 = vld [vmem:[#allocation2 + $0x28] sm:$0xf]
        %v1350 = vld [vmem:[#allocation2 + $0x2c] sm:$0x1]
        %v1351 = vld [vmem:[#allocation2 + $0x30] sm:$0xf]
        %v1352 = vld [vmem:[#allocation2 + $0x34] sm:$0xf]
        %v1353 = vld [vmem:[#allocation2 + $0x38] sm:$0x1]
        %v1354 = vld [vmem:[#allocation2 + $0x3c] sm:$0xf]
        %v1355 = vld [vmem:[#allocation2 + $0x40] sm:$0xf]
        %v1356 = vld [vmem:[#allocation2 + $0x44] sm:$0x1]
        %v1357 = vld [vmem:[#allocation2 + $0x48] sm:$0xf]
        %v1358 = vld [vmem:[#allocation2 + $0x4c] sm:$0xf]
        %v1359 = vld [vmem:[#allocation2 + $0x50] sm:$0x1]
        %v1360 = vld [vmem:[#allocation2 + $0x54] sm:$0xf]
        %v1361 = vld [vmem:[#allocation2 + $0x58] sm:$0xf]
        %v1362 = vld [vmem:[#allocation2 + $0x5c] sm:$0x1]
        %v1363 = vld [vmem:[#allocation2 + $0x60] sm:$0xf]
        %v1364 = vld [vmem:[#allocation2 + $0x64] sm:$0xf]
        %v1365 = vld [vmem:[#allocation2 + $0x68] sm:$0x1]
        %v1366 = vld [vmem:[#allocation2 + $0x6c] sm:$0xf]
        %v1367 = vld [vmem:[#allocation2 + $0x70] sm:$0xf]
        %v1368 = vld [vmem:[#allocation2 + $0x74] sm:$0x1]
        %v1369 = vld [vmem:[#allocation2 + $0x78] sm:$0xf]
        %v1370 = vld [vmem:[#allocation2 + $0x7c] sm:$0xf]
        %v1371 = vld [vmem:[#allocation2 + $0x80] sm:$0x1]
        %v1372 = vld [vmem:[#allocation2 + $0x84] sm:$0xf]
        %v1373 = vld [vmem:[#allocation2 + $0x88] sm:$0xf]
        %v1374 = vld [vmem:[#allocation2 + $0x8c] sm:$0x1]
        %v1375 = vld [vmem:[#allocation2 + $0x90] sm:$0xf]
        %v1376 = vld [vmem:[#allocation2 + $0x94] sm:$0xf]
        %v1377 = vld [vmem:[#allocation2 + $0x98] sm:$0x1]
        %v1378 = vld [vmem:[#allocation2 + $0x9c] sm:$0xf]
        %v1379 = vld [vmem:[#allocation2 + $0xa0] sm:$0xf]
        %v1380 = vld [vmem:[#allocation2 + $0xa4] sm:$0x1]
        %v1381 = vld [vmem:[#allocation2 + $0xa8] sm:$0xf]
        %v1382 = vld [vmem:[#allocation2 + $0xac] sm:$0xf]
        %v1383 = vld [vmem:[#allocation2 + $0xb0] sm:$0x1]
        %v1384 = vld [vmem:[#allocation2 + $0xb4] sm:$0xf]
        %v1385 = vld [vmem:[#allocation2 + $0xb8] sm:$0xf]
        %v1386 = vld [vmem:[#allocation2 + $0xbc] sm:$0x1]
        %vm1387 = vsmask.f32 3328
        %vm1388 = vsmask.f32 7440
        %vm1389 = vmor %vm1387, %vm1388
        %v1391 = vshrl.u32 %v1339, 16
        %v1393 = vrot.slane %v1391, 4
        %v1394 = vshll.u32 %v1339, 16
        %v1396 = vrot.slane %v1394, 5
        %v1397 = vor.u32 %v1393, %v1396
        %v1398 = vrot.slane %v1397, 4
        %v1400 = vshll.u32 %v1340, 16
        %v1402 = vrot.slane %v1400, 5
        %v1403 = vsel %vm1389, %v1398, %v1402
        %v1404 = vshrl.u32 %v1340, 16
        %v1406 = vrot.slane %v1404, 4
        %v1407 = vor.u32 %v1406, %v1402
        %v1408 = vrot.slane %v1407, 4
        %v1410 = vshll.u32 %v1341, 16
        %v1412 = vrot.slane %v1410, 5
        %v1413 = vsel %vm1389, %v1408, %v1412
        %v1415 = vshrl.u32 %v1342, 16
        %v1417 = vrot.slane %v1415, 4
        %v1418 = vshll.u32 %v1342, 16
        %v1420 = vrot.slane %v1418, 5
        %v1421 = vor.u32 %v1417, %v1420
        %v1422 = vrot.slane %v1421, 4
        %v1424 = vshll.u32 %v1343, 16
        %v1426 = vrot.slane %v1424, 5
        %v1427 = vsel %vm1389, %v1422, %v1426
        %v1428 = vshrl.u32 %v1343, 16
        %v1430 = vrot.slane %v1428, 4
        %v1431 = vor.u32 %v1430, %v1426
        %v1432 = vrot.slane %v1431, 4
        %v1434 = vshll.u32 %v1344, 16
        %v1436 = vrot.slane %v1434, 5
        %v1437 = vsel %vm1389, %v1432, %v1436
        %v1439 = vshrl.u32 %v1345, 16
        %v1441 = vrot.slane %v1439, 4
        %v1442 = vshll.u32 %v1345, 16
        %v1444 = vrot.slane %v1442, 5
        %v1445 = vor.u32 %v1441, %v1444
        %v1446 = vrot.slane %v1445, 4
        %v1448 = vshll.u32 %v1346, 16
        %v1450 = vrot.slane %v1448, 5
        %v1451 = vsel %vm1389, %v1446, %v1450
        %v1452 = vshrl.u32 %v1346, 16
        %v1454 = vrot.slane %v1452, 4
        %v1455 = vor.u32 %v1454, %v1450
        %v1456 = vrot.slane %v1455, 4
        %v1458 = vshll.u32 %v1347, 16
        %v1460 = vrot.slane %v1458, 5
        %v1461 = vsel %vm1389, %v1456, %v1460
        %v1463 = vshrl.u32 %v1348, 16
        %v1465 = vrot.slane %v1463, 4
        %v1466 = vshll.u32 %v1348, 16
        %v1468 = vrot.slane %v1466, 5
        %v1469 = vor.u32 %v1465, %v1468
        %v1470 = vrot.slane %v1469, 4
        %v1472 = vshll.u32 %v1349, 16
        %v1474 = vrot.slane %v1472, 5
        %v1475 = vsel %vm1389, %v1470, %v1474
        %v1476 = vshrl.u32 %v1349, 16
        %v1478 = vrot.slane %v1476, 4
        %v1479 = vor.u32 %v1478, %v1474
        %v1480 = vrot.slane %v1479, 4
        %v1482 = vshll.u32 %v1350, 16
        %v1484 = vrot.slane %v1482, 5
        %v1485 = vsel %vm1389, %v1480, %v1484
        %v1487 = vshrl.u32 %v1351, 16
        %v1489 = vrot.slane %v1487, 4
        %v1490 = vshll.u32 %v1351, 16
        %v1492 = vrot.slane %v1490, 5
        %v1493 = vor.u32 %v1489, %v1492
        %v1494 = vrot.slane %v1493, 4
        %v1496 = vshll.u32 %v1352, 16
        %v1498 = vrot.slane %v1496, 5
        %v1499 = vsel %vm1389, %v1494, %v1498
        %v1500 = vshrl.u32 %v1352, 16
        %v1502 = vrot.slane %v1500, 4
        %v1503 = vor.u32 %v1502, %v1498
        %v1504 = vrot.slane %v1503, 4
        %v1506 = vshll.u32 %v1353, 16
        %v1508 = vrot.slane %v1506, 5
        %v1509 = vsel %vm1389, %v1504, %v1508
        %v1511 = vshrl.u32 %v1354, 16
        %v1513 = vrot.slane %v1511, 4
        %v1514 = vshll.u32 %v1354, 16
        %v1516 = vrot.slane %v1514, 5
        %v1517 = vor.u32 %v1513, %v1516
        %v1518 = vrot.slane %v1517, 4
        %v1520 = vshll.u32 %v1355, 16
        %v1522 = vrot.slane %v1520, 5
        %v1523 = vsel %vm1389, %v1518, %v1522
        %v1524 = vshrl.u32 %v1355, 16
        %v1526 = vrot.slane %v1524, 4
        %v1527 = vor.u32 %v1526, %v1522
        %v1528 = vrot.slane %v1527, 4
        %v1530 = vshll.u32 %v1356, 16
        %v1532 = vrot.slane %v1530, 5
        %v1533 = vsel %vm1389, %v1528, %v1532
        %v1535 = vshrl.u32 %v1357, 16
        %v1537 = vrot.slane %v1535, 4
        %v1538 = vshll.u32 %v1357, 16
        %v1540 = vrot.slane %v1538, 5
        %v1541 = vor.u32 %v1537, %v1540
        %v1542 = vrot.slane %v1541, 4
        %v1544 = vshll.u32 %v1358, 16
        %v1546 = vrot.slane %v1544, 5
        %v1547 = vsel %vm1389, %v1542, %v1546
        %v1548 = vshrl.u32 %v1358, 16
        %v1550 = vrot.slane %v1548, 4
        %v1551 = vor.u32 %v1550, %v1546
        %v1552 = vrot.slane %v1551, 4
        %v1554 = vshll.u32 %v1359, 16
        %v1556 = vrot.slane %v1554, 5
        %v1557 = vsel %vm1389, %v1552, %v1556
        %v1559 = vshrl.u32 %v1360, 16
        %v1561 = vrot.slane %v1559, 4
        %v1562 = vshll.u32 %v1360, 16
        %v1564 = vrot.slane %v1562, 5
        %v1565 = vor.u32 %v1561, %v1564
        %v1566 = vrot.slane %v1565, 4
        %v1568 = vshll.u32 %v1361, 16
        %v1570 = vrot.slane %v1568, 5
        %v1571 = vsel %vm1389, %v1566, %v1570
        %v1572 = vshrl.u32 %v1361, 16
        %v1574 = vrot.slane %v1572, 4
        %v1575 = vor.u32 %v1574, %v1570
        %v1576 = vrot.slane %v1575, 4
        %v1578 = vshll.u32 %v1362, 16
        %v1580 = vrot.slane %v1578, 5
        %v1581 = vsel %vm1389, %v1576, %v1580
        %v1583 = vshrl.u32 %v1363, 16
        %v1585 = vrot.slane %v1583, 4
        %v1586 = vshll.u32 %v1363, 16
        %v1588 = vrot.slane %v1586, 5
        %v1589 = vor.u32 %v1585, %v1588
        %v1590 = vrot.slane %v1589, 4
        %v1592 = vshll.u32 %v1364, 16
        %v1594 = vrot.slane %v1592, 5
        %v1595 = vsel %vm1389, %v1590, %v1594
        %v1596 = vshrl.u32 %v1364, 16
        %v1598 = vrot.slane %v1596, 4
        %v1599 = vor.u32 %v1598, %v1594
        %v1600 = vrot.slane %v1599, 4
        %v1602 = vshll.u32 %v1365, 16
        %v1604 = vrot.slane %v1602, 5
        %v1605 = vsel %vm1389, %v1600, %v1604
        %v1607 = vshrl.u32 %v1366, 16
        %v1609 = vrot.slane %v1607, 4
        %v1610 = vshll.u32 %v1366, 16
        %v1612 = vrot.slane %v1610, 5
        %v1613 = vor.u32 %v1609, %v1612
        %v1614 = vrot.slane %v1613, 4
        %v1616 = vshll.u32 %v1367, 16
        %v1618 = vrot.slane %v1616, 5
        %v1619 = vsel %vm1389, %v1614, %v1618
        %v1620 = vshrl.u32 %v1367, 16
        %v1622 = vrot.slane %v1620, 4
        %v1623 = vor.u32 %v1622, %v1618
        %v1624 = vrot.slane %v1623, 4
        %v1626 = vshll.u32 %v1368, 16
        %v1628 = vrot.slane %v1626, 5
        %v1629 = vsel %vm1389, %v1624, %v1628
        %v1631 = vshrl.u32 %v1369, 16
        %v1633 = vrot.slane %v1631, 4
        %v1634 = vshll.u32 %v1369, 16
        %v1636 = vrot.slane %v1634, 5
        %v1637 = vor.u32 %v1633, %v1636
        %v1638 = vrot.slane %v1637, 4
        %v1640 = vshll.u32 %v1370, 16
        %v1642 = vrot.slane %v1640, 5
        %v1643 = vsel %vm1389, %v1638, %v1642
        %v1644 = vshrl.u32 %v1370, 16
        %v1646 = vrot.slane %v1644, 4
        %v1647 = vor.u32 %v1646, %v1642
        %v1648 = vrot.slane %v1647, 4
        %v1650 = vshll.u32 %v1371, 16
        %v1652 = vrot.slane %v1650, 5
        %v1653 = vsel %vm1389, %v1648, %v1652
        %v1655 = vshrl.u32 %v1372, 16
        %v1657 = vrot.slane %v1655, 4
        %v1658 = vshll.u32 %v1372, 16
        %v1660 = vrot.slane %v1658, 5
        %v1661 = vor.u32 %v1657, %v1660
        %v1662 = vrot.slane %v1661, 4
        %v1664 = vshll.u32 %v1373, 16
        %v1666 = vrot.slane %v1664, 5
        %v1667 = vsel %vm1389, %v1662, %v1666
        %v1668 = vshrl.u32 %v1373, 16
        %v1670 = vrot.slane %v1668, 4
        %v1671 = vor.u32 %v1670, %v1666
        %v1672 = vrot.slane %v1671, 4
        %v1674 = vshll.u32 %v1374, 16
        %v1676 = vrot.slane %v1674, 5
        %v1677 = vsel %vm1389, %v1672, %v1676
        %v1679 = vshrl.u32 %v1375, 16
        %v1681 = vrot.slane %v1679, 4
        %v1682 = vshll.u32 %v1375, 16
        %v1684 = vrot.slane %v1682, 5
        %v1685 = vor.u32 %v1681, %v1684
        %v1686 = vrot.slane %v1685, 4
        %v1688 = vshll.u32 %v1376, 16
        %v1690 = vrot.slane %v1688, 5
        %v1691 = vsel %vm1389, %v1686, %v1690
        %v1692 = vshrl.u32 %v1376, 16
        %v1694 = vrot.slane %v1692, 4
        %v1695 = vor.u32 %v1694, %v1690
        %v1696 = vrot.slane %v1695, 4
        %v1698 = vshll.u32 %v1377, 16
        %v1700 = vrot.slane %v1698, 5
        %v1701 = vsel %vm1389, %v1696, %v1700
        %v1703 = vshrl.u32 %v1378, 16
        %v1705 = vrot.slane %v1703, 4
        %v1706 = vshll.u32 %v1378, 16
        %v1708 = vrot.slane %v1706, 5
        %v1709 = vor.u32 %v1705, %v1708
        %v1710 = vrot.slane %v1709, 4
        %v1712 = vshll.u32 %v1379, 16
        %v1714 = vrot.slane %v1712, 5
        %v1715 = vsel %vm1389, %v1710, %v1714
        %v1716 = vshrl.u32 %v1379, 16
        %v1718 = vrot.slane %v1716, 4
        %v1719 = vor.u32 %v1718, %v1714
        %v1720 = vrot.slane %v1719, 4
        %v1722 = vshll.u32 %v1380, 16
        %v1724 = vrot.slane %v1722, 5
        %v1725 = vsel %vm1389, %v1720, %v1724
        %v1727 = vshrl.u32 %v1381, 16
        %v1729 = vrot.slane %v1727, 4
        %v1730 = vshll.u32 %v1381, 16
        %v1732 = vrot.slane %v1730, 5
        %v1733 = vor.u32 %v1729, %v1732
        %v1734 = vrot.slane %v1733, 4
        %v1736 = vshll.u32 %v1382, 16
        %v1738 = vrot.slane %v1736, 5
        %v1739 = vsel %vm1389, %v1734, %v1738
        %v1740 = vshrl.u32 %v1382, 16
        %v1742 = vrot.slane %v1740, 4
        %v1743 = vor.u32 %v1742, %v1738
        %v1744 = vrot.slane %v1743, 4
        %v1746 = vshll.u32 %v1383, 16
        %v1748 = vrot.slane %v1746, 5
        %v1749 = vsel %vm1389, %v1744, %v1748
        %v1751 = vshrl.u32 %v1384, 16
        %v1753 = vrot.slane %v1751, 4
        %v1754 = vshll.u32 %v1384, 16
        %v1756 = vrot.slane %v1754, 5
        %v1757 = vor.u32 %v1753, %v1756
        %v1758 = vrot.slane %v1757, 4
        %v1760 = vshll.u32 %v1385, 16
        %v1762 = vrot.slane %v1760, 5
        %v1763 = vsel %vm1389, %v1758, %v1762
        %v1764 = vshrl.u32 %v1385, 16
        %v1766 = vrot.slane %v1764, 4
        %v1767 = vor.u32 %v1766, %v1762
        %v1768 = vrot.slane %v1767, 4
        %v1770 = vshll.u32 %v1386, 16
        %v1772 = vrot.slane %v1770, 5
        %v1773 = vsel %vm1389, %v1768, %v1772
        %v1774 = vld [vmem:[#allocation3] sm:$0xff]
        %v1775 = vld [vmem:[#allocation3 + $0x8] sm:$0xff]
        %v1776 = vld [vmem:[#allocation3 + $0x10] sm:$0xff]
        %v1777 = vld [vmem:[#allocation3 + $0x18] sm:$0xff]
        %v1778 = vld [vmem:[#allocation3 + $0x20] sm:$0xff]
        %v1779 = vld [vmem:[#allocation3 + $0x28] sm:$0xff]
        %v1780 = vld [vmem:[#allocation3 + $0x30] sm:$0xff]
        %v1781 = vld [vmem:[#allocation3 + $0x38] sm:$0xff]
        %v1782 = vld [vmem:[#allocation3 + $0x40] sm:$0xff]
        %v1783 = vld [vmem:[#allocation3 + $0x48] sm:$0xff]
        %v1784 = vld [vmem:[#allocation3 + $0x50] sm:$0xff]
        %v1785 = vld [vmem:[#allocation3 + $0x58] sm:$0xff]
        %v1786 = vld [vmem:[#allocation3 + $0x60] sm:$0xff]
        %v1787 = vld [vmem:[#allocation3 + $0x68] sm:$0xff]
        %v1788 = vld [vmem:[#allocation3 + $0x70] sm:$0xff]
        %v1789 = vld [vmem:[#allocation3 + $0x78] sm:$0xff]
        %v1790 = vld [vmem:[#allocation3 + $0x80] sm:$0xff]
        %v1791 = vld [vmem:[#allocation3 + $0x88] sm:$0xff]
        %v1792 = vld [vmem:[#allocation3 + $0x90] sm:$0xff]
        %v1793 = vld [vmem:[#allocation3 + $0x98] sm:$0xff]
        %v1794 = vld [vmem:[#allocation3 + $0xa0] sm:$0xff]
        %v1795 = vld [vmem:[#allocation3 + $0xa8] sm:$0xff]
        %v1796 = vld [vmem:[#allocation3 + $0xb0] sm:$0xff]
        %v1797 = vld [vmem:[#allocation3 + $0xb8] sm:$0xff]
        %v1798 = vld [vmem:[#allocation3 + $0xc0] sm:$0xff]
        %v1799 = vld [vmem:[#allocation3 + $0xc8] sm:$0xff]
        %v1800 = vld [vmem:[#allocation3 + $0xd0] sm:$0xff]
        %v1801 = vld [vmem:[#allocation3 + $0xd8] sm:$0xff]
        %v1802 = vld [vmem:[#allocation3 + $0xe0] sm:$0xff]
        %v1803 = vld [vmem:[#allocation3 + $0xe8] sm:$0xff]
        %v1804 = vld [vmem:[#allocation3 + $0xf0] sm:$0xff]
        %v1805 = vld [vmem:[#allocation3 + $0xf8] sm:$0xff]
        %s1806 = scalar_lea.vmem %s207, 64 [#allocation4]
        %v1807 = vld [vmem:[%s1806] sm:$0xf]
        %v1808 = vld [vmem:[%s1806 + $0x4] sm:$0xf]
        %v1809 = vld [vmem:[%s1806 + $0x8] sm:$0xf]
        %v1810 = vld [vmem:[%s1806 + $0xc] sm:$0xf]
        %v1811 = vld [vmem:[%s1806 + $0x10] sm:$0xf]
        %v1812 = vld [vmem:[%s1806 + $0x14] sm:$0xf]
        %v1813 = vld [vmem:[%s1806 + $0x18] sm:$0xf]
        %v1814 = vld [vmem:[%s1806 + $0x1c] sm:$0xf]
        %v1815 = vld [vmem:[%s1806 + $0x20] sm:$0xf]
        %v1816 = vld [vmem:[%s1806 + $0x24] sm:$0xf]
        %v1817 = vld [vmem:[%s1806 + $0x28] sm:$0xf]
        %v1818 = vld [vmem:[%s1806 + $0x2c] sm:$0xf]
        %v1819 = vld [vmem:[%s1806 + $0x30] sm:$0xf]
        %v1820 = vld [vmem:[%s1806 + $0x34] sm:$0xf]
        %v1821 = vld [vmem:[%s1806 + $0x38] sm:$0xf]
        %v1822 = vld [vmem:[%s1806 + $0x3c] sm:$0xf]
        %v1823 = vunpack.c.l.b16 %v1403
        %v1824 = vunpack.c.l.b16 %v1413
        %v1825 = vunpack.c.l.b16 %v1427
        %v1826 = vunpack.c.l.b16 %v1437
        %v1827 = vunpack.c.l.b16 %v1451
        %v1828 = vunpack.c.l.b16 %v1461
        %v1829 = vunpack.c.l.b16 %v1475
        %v1830 = vunpack.c.l.b16 %v1485
        %v1831 = vunpack.c.l.b16 %v1499
        %v1832 = vunpack.c.l.b16 %v1509
        %v1833 = vunpack.c.l.b16 %v1523
        %v1834 = vunpack.c.l.b16 %v1533
        %v1835 = vunpack.c.l.b16 %v1547
        %v1836 = vunpack.c.l.b16 %v1557
        %v1837 = vunpack.c.l.b16 %v1571
        %v1838 = vunpack.c.l.b16 %v1581
        %v1839 = vunpack.c.l.b16 %v1595
        %v1840 = vunpack.c.l.b16 %v1605
        %v1841 = vunpack.c.l.b16 %v1619
        %v1842 = vunpack.c.l.b16 %v1629
        %v1843 = vunpack.c.l.b16 %v1643
        %v1844 = vunpack.c.l.b16 %v1653
        %v1845 = vunpack.c.l.b16 %v1667
        %v1846 = vunpack.c.l.b16 %v1677
        %v1847 = vunpack.c.l.b16 %v1691
        %v1848 = vunpack.c.l.b16 %v1701
        %v1849 = vunpack.c.l.b16 %v1715
        %v1850 = vunpack.c.l.b16 %v1725
        %v1851 = vunpack.c.l.b16 %v1739
        %v1852 = vunpack.c.l.b16 %v1749
        %v1853 = vunpack.c.l.b16 %v1763
        %v1854 = vunpack.c.l.b16 %v1773
        %v1855 = vpack.c.b16 %v1824, %v1823
        %v1856 = vpack.c.b16 %v1826, %v1825
        %v1857 = vpack.c.b16 %v1828, %v1827
        %v1858 = vpack.c.b16 %v1830, %v1829
        %v1859 = vpack.c.b16 %v1832, %v1831
        %v1860 = vpack.c.b16 %v1834, %v1833
        %v1861 = vpack.c.b16 %v1836, %v1835
        %v1862 = vpack.c.b16 %v1838, %v1837
        %v1863 = vpack.c.b16 %v1840, %v1839
        %v1864 = vpack.c.b16 %v1842, %v1841
        %v1865 = vpack.c.b16 %v1844, %v1843
        %v1866 = vpack.c.b16 %v1846, %v1845
        %v1867 = vpack.c.b16 %v1848, %v1847
        %v1868 = vpack.c.b16 %v1850, %v1849
        %v1869 = vpack.c.b16 %v1852, %v1851
        %v1870 = vpack.c.b16 %v1854, %v1853
        %v1903 = vunpack.c.l.b16 %v1807
        %v1904 = vunpack.c.l.b16 %v1808
        %v1905 = vunpack.c.l.b16 %v1809
        %v1906 = vunpack.c.l.b16 %v1810
        %v1907 = vunpack.c.l.b16 %v1811
        %v1908 = vunpack.c.l.b16 %v1812
        %v1909 = vunpack.c.l.b16 %v1813
        %v1910 = vunpack.c.l.b16 %v1814
        %v1911 = vunpack.c.l.b16 %v1815
        %v1912 = vunpack.c.l.b16 %v1816
        %v1913 = vunpack.c.l.b16 %v1817
        %v1914 = vunpack.c.l.b16 %v1818
        %v1915 = vunpack.c.l.b16 %v1819
        %v1916 = vunpack.c.l.b16 %v1820
        %v1917 = vunpack.c.l.b16 %v1821
        %v1918 = vunpack.c.l.b16 %v1822
        %v1919 = vpack.c.b16 %v1904, %v1903
        %v1920 = vpack.c.b16 %v1906, %v1905
        %v1921 = vpack.c.b16 %v1908, %v1907
        %v1922 = vpack.c.b16 %v1910, %v1909
        %v1923 = vpack.c.b16 %v1912, %v1911
        %v1924 = vpack.c.b16 %v1914, %v1913
        %v1925 = vpack.c.b16 %v1916, %v1915
        %v1926 = vpack.c.b16 %v1918, %v1917
        %1935 = vmatprep.subr.bf16.mxu0 0
        %1936 = vmatpush1.bf16.msra.mxu0 %v1919
        %1937 = vmatprep.subr.bf16.mxu0 0
        %1938 = vmatpush1.bf16.msra.mxu0 %v1920
        %1939 = vmatprep.subr.bf16.mxu0 0
        %1940 = vmatpush1.bf16.msra.mxu0 %v1921
        %1941 = vmatprep.subr.bf16.mxu0 0
        %1942 = vmatpush1.bf16.msra.mxu0 %v1922
        %1943 = vmatprep.subr.bf16.mxu0 0
        %1944 = vmatpush1.bf16.msra.mxu0 %v1923
        %1945 = vmatprep.subr.bf16.mxu0 0
        %1946 = vmatpush1.bf16.msra.mxu0 %v1924
        %1947 = vmatprep.subr.bf16.mxu0 0
        %1948 = vmatpush1.bf16.msra.mxu0 %v1925
        %1949 = vmatprep.subr.bf16.mxu0 0
        %1950 = vmatpush1.bf16.msra.mxu0 %v1926
        %1951 = vmatprep.subr.bf16.mxu0 0
        %1952 = vmatpush1.bf16.msra.mxu0 0
        %1953 = vmatprep.subr.bf16.mxu0 0
        %1954 = vmatpush1.bf16.msra.mxu0 0
        %1955 = vmatprep.subr.bf16.mxu0 0
        %1956 = vmatpush1.bf16.msra.mxu0 0
        %1957 = vmatprep.subr.bf16.mxu0 0
        %1958 = vmatpush1.bf16.msra.mxu0 0
        %1959 = vmatprep.subr.bf16.mxu0 0
        %1960 = vmatpush1.bf16.msra.mxu0 0
        %1961 = vmatprep.subr.bf16.mxu0 0
        %1962 = vmatpush1.bf16.msra.mxu0 0
        %1963 = vmatprep.subr.bf16.mxu0 0
        %1964 = vmatpush1.bf16.msra.mxu0 0
        %1965 = vmatprep.subr.bf16.mxu0 0
        %1966 = vmatpush1.bf16.msra.mxu0 0
        %1967 = vmatprep.mubr.bf16.mxu0 0
        %1968 = vmatmul.mubr.bf16.gmra.mrb[0].mxu0 %v1855
        %v1969 = vpop.f32.mrb[0].mxu0
        %v1970 = vadd.f32 0.0, %v1969
        %v1971 = vpop.f32.mrb[0].mxu0
        %v1972 = vpop.f32.mrb[0].mxu0
        %v1973 = vadd.f32 0.0, %v1972
        %v1974 = vpop.f32.mrb[0].mxu0
        %1975 = vmatprep.mubr.bf16.mxu0 0
        %1976 = vmatmul.mubr.bf16.gmra.mrb[0].mxu0 %v1856
        %v1977 = vpop.f32.mrb[0].mxu0
        %v1978 = vadd.f32 0.0, %v1977
        %v1979 = vpop.f32.mrb[0].mxu0
        %v1980 = vpop.f32.mrb[0].mxu0
        %v1981 = vadd.f32 0.0, %v1980
        %v1982 = vpop.f32.mrb[0].mxu0
        %1983 = vmatprep.mubr.bf16.mxu0 0
        %1984 = vmatmul.mubr.bf16.gmra.mrb[0].mxu0 %v1857
        %v1985 = vpop.f32.mrb[0].mxu0
        %v1986 = vadd.f32 0.0, %v1985
        %v1987 = vpop.f32.mrb[0].mxu0
        %v1988 = vpop.f32.mrb[0].mxu0
        %v1989 = vadd.f32 0.0, %v1988
        %v1990 = vpop.f32.mrb[0].mxu0
        %1991 = vmatprep.mubr.bf16.mxu0 0
        %1992 = vmatmul.mubr.bf16.gmra.mrb[0].mxu0 %v1858
        %v1993 = vpop.f32.mrb[0].mxu0
        %v1994 = vadd.f32 0.0, %v1993
        %v1995 = vpop.f32.mrb[0].mxu0
        %v1996 = vpop.f32.mrb[0].mxu0
        %v1997 = vadd.f32 0.0, %v1996
        %v1998 = vpop.f32.mrb[0].mxu0
        %1999 = vmatprep.mubr.bf16.mxu0 0
        %2000 = vmatmul.mubr.bf16.gmra.mrb[0].mxu0 %v1859
        %v2001 = vpop.f32.mrb[0].mxu0
        %v2002 = vadd.f32 0.0, %v2001
        %v2003 = vpop.f32.mrb[0].mxu0
        %v2004 = vpop.f32.mrb[0].mxu0
        %v2005 = vadd.f32 0.0, %v2004
        %v2006 = vpop.f32.mrb[0].mxu0
        %2007 = vmatprep.mubr.bf16.mxu0 0
        %2008 = vmatmul.mubr.bf16.gmra.mrb[0].mxu0 %v1860
        %v2009 = vpop.f32.mrb[0].mxu0
        %v2010 = vadd.f32 0.0, %v2009
        %v2011 = vpop.f32.mrb[0].mxu0
        %v2012 = vpop.f32.mrb[0].mxu0
        %v2013 = vadd.f32 0.0, %v2012
        %v2014 = vpop.f32.mrb[0].mxu0
        %2015 = vmatprep.mubr.bf16.mxu0 0
        %2016 = vmatmul.mubr.bf16.gmra.mrb[0].mxu0 %v1861
        %v2017 = vpop.f32.mrb[0].mxu0
        %v2018 = vadd.f32 0.0, %v2017
        %v2019 = vpop.f32.mrb[0].mxu0
        %v2020 = vpop.f32.mrb[0].mxu0
        %v2021 = vadd.f32 0.0, %v2020
        %v2022 = vpop.f32.mrb[0].mxu0
        %2023 = vmatprep.mubr.bf16.mxu0 0
        %2024 = vmatmul.mubr.bf16.gmra.mrb[0].mxu0 %v1862
        %v2025 = vpop.f32.mrb[0].mxu0
        %v2026 = vadd.f32 0.0, %v2025
        %v2027 = vpop.f32.mrb[0].mxu0
        %v2028 = vpop.f32.mrb[0].mxu0
        %v2029 = vadd.f32 0.0, %v2028
        %v2030 = vpop.f32.mrb[0].mxu0
        %2031 = vmatprep.mubr.bf16.mxu0 0
        %2032 = vmatmul.mubr.bf16.gmra.mrb[0].mxu0 %v1863
        %v2033 = vpop.f32.mrb[0].mxu0
        %v2034 = vadd.f32 0.0, %v2033
        %v2035 = vpop.f32.mrb[0].mxu0
        %v2036 = vpop.f32.mrb[0].mxu0
        %v2037 = vadd.f32 0.0, %v2036
        %v2038 = vpop.f32.mrb[0].mxu0
        %2039 = vmatprep.mubr.bf16.mxu0 0
        %2040 = vmatmul.mubr.bf16.gmra.mrb[0].mxu0 %v1864
        %v2041 = vpop.f32.mrb[0].mxu0
        %v2042 = vadd.f32 0.0, %v2041
        %v2043 = vpop.f32.mrb[0].mxu0
        %v2044 = vpop.f32.mrb[0].mxu0
        %v2045 = vadd.f32 0.0, %v2044
        %v2046 = vpop.f32.mrb[0].mxu0
        %2047 = vmatprep.mubr.bf16.mxu0 0
        %2048 = vmatmul.mubr.bf16.gmra.mrb[0].mxu0 %v1865
        %v2049 = vpop.f32.mrb[0].mxu0
        %v2050 = vadd.f32 0.0, %v2049
        %v2051 = vpop.f32.mrb[0].mxu0
        %v2052 = vpop.f32.mrb[0].mxu0
        %v2053 = vadd.f32 0.0, %v2052
        %v2054 = vpop.f32.mrb[0].mxu0
        %2055 = vmatprep.mubr.bf16.mxu0 0
        %2056 = vmatmul.mubr.bf16.gmra.mrb[0].mxu0 %v1866
        %v2057 = vpop.f32.mrb[0].mxu0
        %v2058 = vadd.f32 0.0, %v2057
        %v2059 = vpop.f32.mrb[0].mxu0
        %v2060 = vpop.f32.mrb[0].mxu0
        %v2061 = vadd.f32 0.0, %v2060
        %v2062 = vpop.f32.mrb[0].mxu0
        %2063 = vmatprep.mubr.bf16.mxu0 0
        %2064 = vmatmul.mubr.bf16.gmra.mrb[0].mxu0 %v1867
        %v2065 = vpop.f32.mrb[0].mxu0
        %v2066 = vadd.f32 0.0, %v2065
        %v2067 = vpop.f32.mrb[0].mxu0
        %v2068 = vpop.f32.mrb[0].mxu0
        %v2069 = vadd.f32 0.0, %v2068
        %v2070 = vpop.f32.mrb[0].mxu0
        %2071 = vmatprep.mubr.bf16.mxu0 0
        %2072 = vmatmul.mubr.bf16.gmra.mrb[0].mxu0 %v1868
        %v2073 = vpop.f32.mrb[0].mxu0
        %v2074 = vadd.f32 0.0, %v2073
        %v2075 = vpop.f32.mrb[0].mxu0
        %v2076 = vpop.f32.mrb[0].mxu0
        %v2077 = vadd.f32 0.0, %v2076
        %v2078 = vpop.f32.mrb[0].mxu0
        %2079 = vmatprep.mubr.bf16.mxu0 0
        %2080 = vmatmul.mubr.bf16.gmra.mrb[0].mxu0 %v1869
        %v2081 = vpop.f32.mrb[0].mxu0
        %v2082 = vadd.f32 0.0, %v2081
        %v2083 = vpop.f32.mrb[0].mxu0
        %v2084 = vpop.f32.mrb[0].mxu0
        %v2085 = vadd.f32 0.0, %v2084
        %v2086 = vpop.f32.mrb[0].mxu0
        %2087 = vmatprep.mubr.bf16.mxu0 0
        %2088 = vmatmul.mubr.bf16.gmra.mrb[0].mxu0 %v1870
        %v2089 = vpop.f32.mrb[0].mxu0
        %v2090 = vadd.f32 0.0, %v2089
        %v2091 = vpop.f32.mrb[0].mxu0
        %v2092 = vpop.f32.mrb[0].mxu0
        %v2093 = vadd.f32 0.0, %v2092
        %v2094 = vpop.f32.mrb[0].mxu0
        %2095 = vdwg.mxu0
        %v2096 = vadd.f32 %v1774, %v1970
        %v2097 = vadd.f32 %v1775, %v1973
        %v2098 = vadd.f32 %v1776, %v1978
        %v2099 = vadd.f32 %v1777, %v1981
        %v2100 = vadd.f32 %v1778, %v1986
        %v2101 = vadd.f32 %v1779, %v1989
        %v2102 = vadd.f32 %v1780, %v1994
        %v2103 = vadd.f32 %v1781, %v1997
        %v2104 = vadd.f32 %v1782, %v2002
        %v2105 = vadd.f32 %v1783, %v2005
        %v2106 = vadd.f32 %v1784, %v2010
        %v2107 = vadd.f32 %v1785, %v2013
        %v2108 = vadd.f32 %v1786, %v2018
        %v2109 = vadd.f32 %v1787, %v2021
        %v2110 = vadd.f32 %v1788, %v2026
        %v2111 = vadd.f32 %v1789, %v2029
        %v2112 = vadd.f32 %v1790, %v2034
        %v2113 = vadd.f32 %v1791, %v2037
        %v2114 = vadd.f32 %v1792, %v2042
        %v2115 = vadd.f32 %v1793, %v2045
        %v2116 = vadd.f32 %v1794, %v2050
        %v2117 = vadd.f32 %v1795, %v2053
        %v2118 = vadd.f32 %v1796, %v2058
        %v2119 = vadd.f32 %v1797, %v2061
        %v2120 = vadd.f32 %v1798, %v2066
        %v2121 = vadd.f32 %v1799, %v2069
        %v2122 = vadd.f32 %v1800, %v2074
        %v2123 = vadd.f32 %v1801, %v2077
        %v2124 = vadd.f32 %v1802, %v2082
        %v2125 = vadd.f32 %v1803, %v2085
        %v2126 = vadd.f32 %v1804, %v2090
        %v2127 = vadd.f32 %v1805, %v2093
        %2128 = vst [vmem:[#allocation3] sm:$0xff] %v2096
        %2129 = vst [vmem:[#allocation3 + $0x8] sm:$0xff] %v2097
        %2130 = vst [vmem:[#allocation3 + $0x10] sm:$0xff] %v2098
        %2131 = vst [vmem:[#allocation3 + $0x18] sm:$0xff] %v2099
        %2132 = vst [vmem:[#allocation3 + $0x20] sm:$0xff] %v2100
        %2133 = vst [vmem:[#allocation3 + $0x28] sm:$0xff] %v2101
        %2134 = vst [vmem:[#allocation3 + $0x30] sm:$0xff] %v2102
        %2135 = vst [vmem:[#allocation3 + $0x38] sm:$0xff] %v2103
        %2136 = vst [vmem:[#allocation3 + $0x40] sm:$0xff] %v2104
        %2137 = vst [vmem:[#allocation3 + $0x48] sm:$0xff] %v2105
        %2138 = vst [vmem:[#allocation3 + $0x50] sm:$0xff] %v2106
        %2139 = vst [vmem:[#allocation3 + $0x58] sm:$0xff] %v2107
        %2140 = vst [vmem:[#allocation3 + $0x60] sm:$0xff] %v2108
        %2141 = vst [vmem:[#allocation3 + $0x68] sm:$0xff] %v2109
        %2142 = vst [vmem:[#allocation3 + $0x70] sm:$0xff] %v2110
        %2143 = vst [vmem:[#allocation3 + $0x78] sm:$0xff] %v2111
        %2144 = vst [vmem:[#allocation3 + $0x80] sm:$0xff] %v2112
        %2145 = vst [vmem:[#allocation3 + $0x88] sm:$0xff] %v2113
        %2146 = vst [vmem:[#allocation3 + $0x90] sm:$0xff] %v2114
        %2147 = vst [vmem:[#allocation3 + $0x98] sm:$0xff] %v2115
        %2148 = vst [vmem:[#allocation3 + $0xa0] sm:$0xff] %v2116
        %2149 = vst [vmem:[#allocation3 + $0xa8] sm:$0xff] %v2117
        %2150 = vst [vmem:[#allocation3 + $0xb0] sm:$0xff] %v2118
        %2151 = vst [vmem:[#allocation3 + $0xb8] sm:$0xff] %v2119
        %2152 = vst [vmem:[#allocation3 + $0xc0] sm:$0xff] %v2120
        %2153 = vst [vmem:[#allocation3 + $0xc8] sm:$0xff] %v2121
        %2154 = vst [vmem:[#allocation3 + $0xd0] sm:$0xff] %v2122
        %2155 = vst [vmem:[#allocation3 + $0xd8] sm:$0xff] %v2123
        %2156 = vst [vmem:[#allocation3 + $0xe0] sm:$0xff] %v2124
        %2157 = vst [vmem:[#allocation3 + $0xe8] sm:$0xff] %v2125
        %2158 = vst [vmem:[#allocation3 + $0xf0] sm:$0xff] %v2126
        %2159 = vst [vmem:[#allocation3 + $0xf8] sm:$0xff] %v2127
        %v2160 = vld [vmem:[#allocation2] sm:$0xe]
        %v2161 = vld [vmem:[#allocation2 + $0x4] sm:$0xf]
        %v2162 = vld [vmem:[#allocation2 + $0x8] sm:$0x1]
        %v2163 = vld [vmem:[#allocation2 + $0xc] sm:$0xe]
        %v2164 = vld [vmem:[#allocation2 + $0x10] sm:$0xf]
        %v2165 = vld [vmem:[#allocation2 + $0x14] sm:$0x1]
        %v2166 = vld [vmem:[#allocation2 + $0x18] sm:$0xe]
        %v2167 = vld [vmem:[#allocation2 + $0x1c] sm:$0xf]
        %v2168 = vld [vmem:[#allocation2 + $0x20] sm:$0x1]
        %v2169 = vld [vmem:[#allocation2 + $0x24] sm:$0xe]
        %v2170 = vld [vmem:[#allocation2 + $0x28] sm:$0xf]
        %v2171 = vld [vmem:[#allocation2 + $0x2c] sm:$0x1]
        %v2172 = vld [vmem:[#allocation2 + $0x30] sm:$0xe]
        %v2173 = vld [vmem:[#allocation2 + $0x34] sm:$0xf]
        %v2174 = vld [vmem:[#allocation2 + $0x38] sm:$0x1]
        %v2175 = vld [vmem:[#allocation2 + $0x3c] sm:$0xe]
        %v2176 = vld [vmem:[#allocation2 + $0x40] sm:$0xf]
        %v2177 = vld [vmem:[#allocation2 + $0x44] sm:$0x1]
        %v2178 = vld [vmem:[#allocation2 + $0x48] sm:$0xe]
        %v2179 = vld [vmem:[#allocation2 + $0x4c] sm:$0xf]
        %v2180 = vld [vmem:[#allocation2 + $0x50] sm:$0x1]
        %v2181 = vld [vmem:[#allocation2 + $0x54] sm:$0xe]
        %v2182 = vld [vmem:[#allocation2 + $0x58] sm:$0xf]
        %v2183 = vld [vmem:[#allocation2 + $0x5c] sm:$0x1]
        %v2184 = vld [vmem:[#allocation2 + $0x60] sm:$0xe]
        %v2185 = vld [vmem:[#allocation2 + $0x64] sm:$0xf]
        %v2186 = vld [vmem:[#allocation2 + $0x68] sm:$0x1]
        %v2187 = vld [vmem:[#allocation2 + $0x6c] sm:$0xe]
        %v2188 = vld [vmem:[#allocation2 + $0x70] sm:$0xf]
        %v2189 = vld [vmem:[#allocation2 + $0x74] sm:$0x1]
        %v2190 = vld [vmem:[#allocation2 + $0x78] sm:$0xe]
        %v2191 = vld [vmem:[#allocation2 + $0x7c] sm:$0xf]
        %v2192 = vld [vmem:[#allocation2 + $0x80] sm:$0x1]
        %v2193 = vld [vmem:[#allocation2 + $0x84] sm:$0xe]
        %v2194 = vld [vmem:[#allocation2 + $0x88] sm:$0xf]
        %v2195 = vld [vmem:[#allocation2 + $0x8c] sm:$0x1]
        %v2196 = vld [vmem:[#allocation2 + $0x90] sm:$0xe]
        %v2197 = vld [vmem:[#allocation2 + $0x94] sm:$0xf]
        %v2198 = vld [vmem:[#allocation2 + $0x98] sm:$0x1]
        %v2199 = vld [vmem:[#allocation2 + $0x9c] sm:$0xe]
        %v2200 = vld [vmem:[#allocation2 + $0xa0] sm:$0xf]
        %v2201 = vld [vmem:[#allocation2 + $0xa4] sm:$0x1]
        %v2202 = vld [vmem:[#allocation2 + $0xa8] sm:$0xe]
        %v2203 = vld [vmem:[#allocation2 + $0xac] sm:$0xf]
        %v2204 = vld [vmem:[#allocation2 + $0xb0] sm:$0x1]
        %v2205 = vld [vmem:[#allocation2 + $0xb4] sm:$0xe]
        %v2206 = vld [vmem:[#allocation2 + $0xb8] sm:$0xf]
        %v2207 = vld [vmem:[#allocation2 + $0xbc] sm:$0x1]
        %vm2256 = vcmask 1042432
        %vm2257 = vcmask 1046532
        %vm2258 = vmor %vm2256, %vm2257
        %v2259 = vrot.slane %v2160, 5
        %v2260 = vrot.slane %v2259, 4
        %v2261 = vrot.slane %v2161, 5
        %v2262 = vsel %vm2258, %v2260, %v2261
        %v2263 = vrot.slane %v2261, 4
        %v2264 = vrot.slane %v2162, 5
        %v2265 = vsel %vm2258, %v2263, %v2264
        %v2266 = vrot.slane %v2163, 5
        %v2267 = vrot.slane %v2266, 4
        %v2268 = vrot.slane %v2164, 5
        %v2269 = vsel %vm2258, %v2267, %v2268
        %v2270 = vrot.slane %v2268, 4
        %v2271 = vrot.slane %v2165, 5
        %v2272 = vsel %vm2258, %v2270, %v2271
        %v2273 = vrot.slane %v2166, 5
        %v2274 = vrot.slane %v2273, 4
        %v2275 = vrot.slane %v2167, 5
        %v2276 = vsel %vm2258, %v2274, %v2275
        %v2277 = vrot.slane %v2275, 4
        %v2278 = vrot.slane %v2168, 5
        %v2279 = vsel %vm2258, %v2277, %v2278
        %v2280 = vrot.slane %v2169, 5
        %v2281 = vrot.slane %v2280, 4
        %v2282 = vrot.slane %v2170, 5
        %v2283 = vsel %vm2258, %v2281, %v2282
        %v2284 = vrot.slane %v2282, 4
        %v2285 = vrot.slane %v2171, 5
        %v2286 = vsel %vm2258, %v2284, %v2285
        %v2287 = vrot.slane %v2172, 5
        %v2288 = vrot.slane %v2287, 4
        %v2289 = vrot.slane %v2173, 5
        %v2290 = vsel %vm2258, %v2288, %v2289
        %v2291 = vrot.slane %v2289, 4
        %v2292 = vrot.slane %v2174, 5
        %v2293 = vsel %vm2258, %v2291, %v2292
        %v2294 = vrot.slane %v2175, 5
        %v2295 = vrot.slane %v2294, 4
        %v2296 = vrot.slane %v2176, 5
        %v2297 = vsel %vm2258, %v2295, %v2296
        %v2298 = vrot.slane %v2296, 4
        %v2299 = vrot.slane %v2177, 5
        %v2300 = vsel %vm2258, %v2298, %v2299
        %v2301 = vrot.slane %v2178, 5
        %v2302 = vrot.slane %v2301, 4
        %v2303 = vrot.slane %v2179, 5
        %v2304 = vsel %vm2258, %v2302, %v2303
        %v2305 = vrot.slane %v2303, 4
        %v2306 = vrot.slane %v2180, 5
        %v2307 = vsel %vm2258, %v2305, %v2306
        %v2308 = vrot.slane %v2181, 5
        %v2309 = vrot.slane %v2308, 4
        %v2310 = vrot.slane %v2182, 5
        %v2311 = vsel %vm2258, %v2309, %v2310
        %v2312 = vrot.slane %v2310, 4
        %v2313 = vrot.slane %v2183, 5
        %v2314 = vsel %vm2258, %v2312, %v2313
        %v2315 = vrot.slane %v2184, 5
        %v2316 = vrot.slane %v2315, 4
        %v2317 = vrot.slane %v2185, 5
        %v2318 = vsel %vm2258, %v2316, %v2317
        %v2319 = vrot.slane %v2317, 4
        %v2320 = vrot.slane %v2186, 5
        %v2321 = vsel %vm2258, %v2319, %v2320
        %v2322 = vrot.slane %v2187, 5
        %v2323 = vrot.slane %v2322, 4
        %v2324 = vrot.slane %v2188, 5
        %v2325 = vsel %vm2258, %v2323, %v2324
        %v2326 = vrot.slane %v2324, 4
        %v2327 = vrot.slane %v2189, 5
        %v2328 = vsel %vm2258, %v2326, %v2327
        %v2329 = vrot.slane %v2190, 5
        %v2330 = vrot.slane %v2329, 4
        %v2331 = vrot.slane %v2191, 5
        %v2332 = vsel %vm2258, %v2330, %v2331
        %v2333 = vrot.slane %v2331, 4
        %v2334 = vrot.slane %v2192, 5
        %v2335 = vsel %vm2258, %v2333, %v2334
        %v2336 = vrot.slane %v2193, 5
        %v2337 = vrot.slane %v2336, 4
        %v2338 = vrot.slane %v2194, 5
        %v2339 = vsel %vm2258, %v2337, %v2338
        %v2340 = vrot.slane %v2338, 4
        %v2341 = vrot.slane %v2195, 5
        %v2342 = vsel %vm2258, %v2340, %v2341
        %v2343 = vrot.slane %v2196, 5
        %v2344 = vrot.slane %v2343, 4
        %v2345 = vrot.slane %v2197, 5
        %v2346 = vsel %vm2258, %v2344, %v2345
        %v2347 = vrot.slane %v2345, 4
        %v2348 = vrot.slane %v2198, 5
        %v2349 = vsel %vm2258, %v2347, %v2348
        %v2350 = vrot.slane %v2199, 5
        %v2351 = vrot.slane %v2350, 4
        %v2352 = vrot.slane %v2200, 5
        %v2353 = vsel %vm2258, %v2351, %v2352
        %v2354 = vrot.slane %v2352, 4
        %v2355 = vrot.slane %v2201, 5
        %v2356 = vsel %vm2258, %v2354, %v2355
        %v2357 = vrot.slane %v2202, 5
        %v2358 = vrot.slane %v2357, 4
        %v2359 = vrot.slane %v2203, 5
        %v2360 = vsel %vm2258, %v2358, %v2359
        %v2361 = vrot.slane %v2359, 4
        %v2362 = vrot.slane %v2204, 5
        %v2363 = vsel %vm2258, %v2361, %v2362
        %v2364 = vrot.slane %v2205, 5
        %v2365 = vrot.slane %v2364, 4
        %v2366 = vrot.slane %v2206, 5
        %v2367 = vsel %vm2258, %v2365, %v2366
        %v2368 = vrot.slane %v2366, 4
        %v2369 = vrot.slane %v2207, 5
        %v2370 = vsel %vm2258, %v2368, %v2369
        %v2371 = vld [vmem:[#allocation3] sm:$0xff]
        %v2372 = vld [vmem:[#allocation3 + $0x8] sm:$0xff]
        %v2373 = vld [vmem:[#allocation3 + $0x10] sm:$0xff]
        %v2374 = vld [vmem:[#allocation3 + $0x18] sm:$0xff]
        %v2375 = vld [vmem:[#allocation3 + $0x20] sm:$0xff]
        %v2376 = vld [vmem:[#allocation3 + $0x28] sm:$0xff]
        %v2377 = vld [vmem:[#allocation3 + $0x30] sm:$0xff]
        %v2378 = vld [vmem:[#allocation3 + $0x38] sm:$0xff]
        %v2379 = vld [vmem:[#allocation3 + $0x40] sm:$0xff]
        %v2380 = vld [vmem:[#allocation3 + $0x48] sm:$0xff]
        %v2381 = vld [vmem:[#allocation3 + $0x50] sm:$0xff]
        %v2382 = vld [vmem:[#allocation3 + $0x58] sm:$0xff]
        %v2383 = vld [vmem:[#allocation3 + $0x60] sm:$0xff]
        %v2384 = vld [vmem:[#allocation3 + $0x68] sm:$0xff]
        %v2385 = vld [vmem:[#allocation3 + $0x70] sm:$0xff]
        %v2386 = vld [vmem:[#allocation3 + $0x78] sm:$0xff]
        %v2387 = vld [vmem:[#allocation3 + $0x80] sm:$0xff]
        %v2388 = vld [vmem:[#allocation3 + $0x88] sm:$0xff]
        %v2389 = vld [vmem:[#allocation3 + $0x90] sm:$0xff]
        %v2390 = vld [vmem:[#allocation3 + $0x98] sm:$0xff]
        %v2391 = vld [vmem:[#allocation3 + $0xa0] sm:$0xff]
        %v2392 = vld [vmem:[#allocation3 + $0xa8] sm:$0xff]
        %v2393 = vld [vmem:[#allocation3 + $0xb0] sm:$0xff]
        %v2394 = vld [vmem:[#allocation3 + $0xb8] sm:$0xff]
        %v2395 = vld [vmem:[#allocation3 + $0xc0] sm:$0xff]
        %v2396 = vld [vmem:[#allocation3 + $0xc8] sm:$0xff]
        %v2397 = vld [vmem:[#allocation3 + $0xd0] sm:$0xff]
        %v2398 = vld [vmem:[#allocation3 + $0xd8] sm:$0xff]
        %v2399 = vld [vmem:[#allocation3 + $0xe0] sm:$0xff]
        %v2400 = vld [vmem:[#allocation3 + $0xe8] sm:$0xff]
        %v2401 = vld [vmem:[#allocation3 + $0xf0] sm:$0xff]
        %v2402 = vld [vmem:[#allocation3 + $0xf8] sm:$0xff]
        %s2403 = scalar_lea.vmem %s207, 128 [#allocation4]
        %v2404 = vld [vmem:[%s2403] sm:$0xf]
        %v2405 = vld [vmem:[%s2403 + $0x4] sm:$0xf]
        %v2406 = vld [vmem:[%s2403 + $0x8] sm:$0xf]
        %v2407 = vld [vmem:[%s2403 + $0xc] sm:$0xf]
        %v2408 = vld [vmem:[%s2403 + $0x10] sm:$0xf]
        %v2409 = vld [vmem:[%s2403 + $0x14] sm:$0xf]
        %v2410 = vld [vmem:[%s2403 + $0x18] sm:$0xf]
        %v2411 = vld [vmem:[%s2403 + $0x1c] sm:$0xf]
        %v2412 = vld [vmem:[%s2403 + $0x20] sm:$0xf]
        %v2413 = vld [vmem:[%s2403 + $0x24] sm:$0xf]
        %v2414 = vld [vmem:[%s2403 + $0x28] sm:$0xf]
        %v2415 = vld [vmem:[%s2403 + $0x2c] sm:$0xf]
        %v2416 = vld [vmem:[%s2403 + $0x30] sm:$0xf]
        %v2417 = vld [vmem:[%s2403 + $0x34] sm:$0xf]
        %v2418 = vld [vmem:[%s2403 + $0x38] sm:$0xf]
        %v2419 = vld [vmem:[%s2403 + $0x3c] sm:$0xf]
        %v2420 = vunpack.c.l.b16 %v2262
        %v2421 = vunpack.c.l.b16 %v2265
        %v2422 = vunpack.c.l.b16 %v2269
        %v2423 = vunpack.c.l.b16 %v2272
        %v2424 = vunpack.c.l.b16 %v2276
        %v2425 = vunpack.c.l.b16 %v2279
        %v2426 = vunpack.c.l.b16 %v2283
        %v2427 = vunpack.c.l.b16 %v2286
        %v2428 = vunpack.c.l.b16 %v2290
        %v2429 = vunpack.c.l.b16 %v2293
        %v2430 = vunpack.c.l.b16 %v2297
        %v2431 = vunpack.c.l.b16 %v2300
        %v2432 = vunpack.c.l.b16 %v2304
        %v2433 = vunpack.c.l.b16 %v2307
        %v2434 = vunpack.c.l.b16 %v2311
        %v2435 = vunpack.c.l.b16 %v2314
        %v2436 = vunpack.c.l.b16 %v2318
        %v2437 = vunpack.c.l.b16 %v2321
        %v2438 = vunpack.c.l.b16 %v2325
        %v2439 = vunpack.c.l.b16 %v2328
        %v2440 = vunpack.c.l.b16 %v2332
        %v2441 = vunpack.c.l.b16 %v2335
        %v2442 = vunpack.c.l.b16 %v2339
        %v2443 = vunpack.c.l.b16 %v2342
        %v2444 = vunpack.c.l.b16 %v2346
        %v2445 = vunpack.c.l.b16 %v2349
        %v2446 = vunpack.c.l.b16 %v2353
        %v2447 = vunpack.c.l.b16 %v2356
        %v2448 = vunpack.c.l.b16 %v2360
        %v2449 = vunpack.c.l.b16 %v2363
        %v2450 = vunpack.c.l.b16 %v2367
        %v2451 = vunpack.c.l.b16 %v2370
        %v2452 = vpack.c.b16 %v2421, %v2420
        %v2453 = vpack.c.b16 %v2423, %v2422
        %v2454 = vpack.c.b16 %v2425, %v2424
        %v2455 = vpack.c.b16 %v2427, %v2426
        %v2456 = vpack.c.b16 %v2429, %v2428
        %v2457 = vpack.c.b16 %v2431, %v2430
        %v2458 = vpack.c.b16 %v2433, %v2432
        %v2459 = vpack.c.b16 %v2435, %v2434
        %v2460 = vpack.c.b16 %v2437, %v2436
        %v2461 = vpack.c.b16 %v2439, %v2438
        %v2462 = vpack.c.b16 %v2441, %v2440
        %v2463 = vpack.c.b16 %v2443, %v2442
        %v2464 = vpack.c.b16 %v2445, %v2444
        %v2465 = vpack.c.b16 %v2447, %v2446
        %v2466 = vpack.c.b16 %v2449, %v2448
        %v2467 = vpack.c.b16 %v2451, %v2450
        %v2500 = vunpack.c.l.b16 %v2404
        %v2501 = vunpack.c.l.b16 %v2405
        %v2502 = vunpack.c.l.b16 %v2406
        %v2503 = vunpack.c.l.b16 %v2407
        %v2504 = vunpack.c.l.b16 %v2408
        %v2505 = vunpack.c.l.b16 %v2409
        %v2506 = vunpack.c.l.b16 %v2410
        %v2507 = vunpack.c.l.b16 %v2411
        %v2508 = vunpack.c.l.b16 %v2412
        %v2509 = vunpack.c.l.b16 %v2413
        %v2510 = vunpack.c.l.b16 %v2414
        %v2511 = vunpack.c.l.b16 %v2415
        %v2512 = vunpack.c.l.b16 %v2416
        %v2513 = vunpack.c.l.b16 %v2417
        %v2514 = vunpack.c.l.b16 %v2418
        %v2515 = vunpack.c.l.b16 %v2419
        %v2516 = vpack.c.b16 %v2501, %v2500
        %v2517 = vpack.c.b16 %v2503, %v2502
        %v2518 = vpack.c.b16 %v2505, %v2504
        %v2519 = vpack.c.b16 %v2507, %v2506
        %v2520 = vpack.c.b16 %v2509, %v2508
        %v2521 = vpack.c.b16 %v2511, %v2510
        %v2522 = vpack.c.b16 %v2513, %v2512
        %v2523 = vpack.c.b16 %v2515, %v2514
        %2532 = vmatprep.subr.bf16.mxu0 0
        %2533 = vmatpush1.bf16.msra.mxu0 %v2516
        %2534 = vmatprep.subr.bf16.mxu0 0
        %2535 = vmatpush1.bf16.msra.mxu0 %v2517
        %2536 = vmatprep.subr.bf16.mxu0 0
        %2537 = vmatpush1.bf16.msra.mxu0 %v2518
        %2538 = vmatprep.subr.bf16.mxu0 0
        %2539 = vmatpush1.bf16.msra.mxu0 %v2519
        %2540 = vmatprep.subr.bf16.mxu0 0
        %2541 = vmatpush1.bf16.msra.mxu0 %v2520
        %2542 = vmatprep.subr.bf16.mxu0 0
        %2543 = vmatpush1.bf16.msra.mxu0 %v2521
        %2544 = vmatprep.subr.bf16.mxu0 0
        %2545 = vmatpush1.bf16.msra.mxu0 %v2522
        %2546 = vmatprep.subr.bf16.mxu0 0
        %2547 = vmatpush1.bf16.msra.mxu0 %v2523
        %2548 = vmatprep.subr.bf16.mxu0 0
        %2549 = vmatpush1.bf16.msra.mxu0 0
        %2550 = vmatprep.subr.bf16.mxu0 0
        %2551 = vmatpush1.bf16.msra.mxu0 0
        %2552 = vmatprep.subr.bf16.mxu0 0
        %2553 = vmatpush1.bf16.msra.mxu0 0
        %2554 = vmatprep.subr.bf16.mxu0 0
        %2555 = vmatpush1.bf16.msra.mxu0 0
        %2556 = vmatprep.subr.bf16.mxu0 0
        %2557 = vmatpush1.bf16.msra.mxu0 0
        %2558 = vmatprep.subr.bf16.mxu0 0
        %2559 = vmatpush1.bf16.msra.mxu0 0
        %2560 = vmatprep.subr.bf16.mxu0 0
        %2561 = vmatpush1.bf16.msra.mxu0 0
        %2562 = vmatprep.subr.bf16.mxu0 0
        %2563 = vmatpush1.bf16.msra.mxu0 0
        %2564 = vmatprep.mubr.bf16.mxu0 0
        %2565 = vmatmul.mubr.bf16.gmra.mrb[0].mxu0 %v2452
        %v2566 = vpop.f32.mrb[0].mxu0
        %v2567 = vadd.f32 0.0, %v2566
        %v2568 = vpop.f32.mrb[0].mxu0
        %v2569 = vpop.f32.mrb[0].mxu0
        %v2570 = vadd.f32 0.0, %v2569
        %v2571 = vpop.f32.mrb[0].mxu0
        %2572 = vmatprep.mubr.bf16.mxu0 0
        %2573 = vmatmul.mubr.bf16.gmra.mrb[0].mxu0 %v2453
        %v2574 = vpop.f32.mrb[0].mxu0
        %v2575 = vadd.f32 0.0, %v2574
        %v2576 = vpop.f32.mrb[0].mxu0
        %v2577 = vpop.f32.mrb[0].mxu0
        %v2578 = vadd.f32 0.0, %v2577
        %v2579 = vpop.f32.mrb[0].mxu0
        %2580 = vmatprep.mubr.bf16.mxu0 0
        %2581 = vmatmul.mubr.bf16.gmra.mrb[0].mxu0 %v2454
        %v2582 = vpop.f32.mrb[0].mxu0
        %v2583 = vadd.f32 0.0, %v2582
        %v2584 = vpop.f32.mrb[0].mxu0
        %v2585 = vpop.f32.mrb[0].mxu0
        %v2586 = vadd.f32 0.0, %v2585
        %v2587 = vpop.f32.mrb[0].mxu0
        %2588 = vmatprep.mubr.bf16.mxu0 0
        %2589 = vmatmul.mubr.bf16.gmra.mrb[0].mxu0 %v2455
        %v2590 = vpop.f32.mrb[0].mxu0
        %v2591 = vadd.f32 0.0, %v2590
        %v2592 = vpop.f32.mrb[0].mxu0
        %v2593 = vpop.f32.mrb[0].mxu0
        %v2594 = vadd.f32 0.0, %v2593
        %v2595 = vpop.f32.mrb[0].mxu0
        %2596 = vmatprep.mubr.bf16.mxu0 0
        %2597 = vmatmul.mubr.bf16.gmra.mrb[0].mxu0 %v2456
        %v2598 = vpop.f32.mrb[0].mxu0
        %v2599 = vadd.f32 0.0, %v2598
        %v2600 = vpop.f32.mrb[0].mxu0
        %v2601 = vpop.f32.mrb[0].mxu0
        %v2602 = vadd.f32 0.0, %v2601
        %v2603 = vpop.f32.mrb[0].mxu0
        %2604 = vmatprep.mubr.bf16.mxu0 0
        %2605 = vmatmul.mubr.bf16.gmra.mrb[0].mxu0 %v2457
        %v2606 = vpop.f32.mrb[0].mxu0
        %v2607 = vadd.f32 0.0, %v2606
        %v2608 = vpop.f32.mrb[0].mxu0
        %v2609 = vpop.f32.mrb[0].mxu0
        %v2610 = vadd.f32 0.0, %v2609
        %v2611 = vpop.f32.mrb[0].mxu0
        %2612 = vmatprep.mubr.bf16.mxu0 0
        %2613 = vmatmul.mubr.bf16.gmra.mrb[0].mxu0 %v2458
        %v2614 = vpop.f32.mrb[0].mxu0
        %v2615 = vadd.f32 0.0, %v2614
        %v2616 = vpop.f32.mrb[0].mxu0
        %v2617 = vpop.f32.mrb[0].mxu0
        %v2618 = vadd.f32 0.0, %v2617
        %v2619 = vpop.f32.mrb[0].mxu0
        %2620 = vmatprep.mubr.bf16.mxu0 0
        %2621 = vmatmul.mubr.bf16.gmra.mrb[0].mxu0 %v2459
        %v2622 = vpop.f32.mrb[0].mxu0
        %v2623 = vadd.f32 0.0, %v2622
        %v2624 = vpop.f32.mrb[0].mxu0
        %v2625 = vpop.f32.mrb[0].mxu0
        %v2626 = vadd.f32 0.0, %v2625
        %v2627 = vpop.f32.mrb[0].mxu0
        %2628 = vmatprep.mubr.bf16.mxu0 0
        %2629 = vmatmul.mubr.bf16.gmra.mrb[0].mxu0 %v2460
        %v2630 = vpop.f32.mrb[0].mxu0
        %v2631 = vadd.f32 0.0, %v2630
        %v2632 = vpop.f32.mrb[0].mxu0
        %v2633 = vpop.f32.mrb[0].mxu0
        %v2634 = vadd.f32 0.0, %v2633
        %v2635 = vpop.f32.mrb[0].mxu0
        %2636 = vmatprep.mubr.bf16.mxu0 0
        %2637 = vmatmul.mubr.bf16.gmra.mrb[0].mxu0 %v2461
        %v2638 = vpop.f32.mrb[0].mxu0
        %v2639 = vadd.f32 0.0, %v2638
        %v2640 = vpop.f32.mrb[0].mxu0
        %v2641 = vpop.f32.mrb[0].mxu0
        %v2642 = vadd.f32 0.0, %v2641
        %v2643 = vpop.f32.mrb[0].mxu0
        %2644 = vmatprep.mubr.bf16.mxu0 0
        %2645 = vmatmul.mubr.bf16.gmra.mrb[0].mxu0 %v2462
        %v2646 = vpop.f32.mrb[0].mxu0
        %v2647 = vadd.f32 0.0, %v2646
        %v2648 = vpop.f32.mrb[0].mxu0
        %v2649 = vpop.f32.mrb[0].mxu0
        %v2650 = vadd.f32 0.0, %v2649
        %v2651 = vpop.f32.mrb[0].mxu0
        %2652 = vmatprep.mubr.bf16.mxu0 0
        %2653 = vmatmul.mubr.bf16.gmra.mrb[0].mxu0 %v2463
        %v2654 = vpop.f32.mrb[0].mxu0
        %v2655 = vadd.f32 0.0, %v2654
        %v2656 = vpop.f32.mrb[0].mxu0
        %v2657 = vpop.f32.mrb[0].mxu0
        %v2658 = vadd.f32 0.0, %v2657
        %v2659 = vpop.f32.mrb[0].mxu0
        %2660 = vmatprep.mubr.bf16.mxu0 0
        %2661 = vmatmul.mubr.bf16.gmra.mrb[0].mxu0 %v2464
        %v2662 = vpop.f32.mrb[0].mxu0
        %v2663 = vadd.f32 0.0, %v2662
        %v2664 = vpop.f32.mrb[0].mxu0
        %v2665 = vpop.f32.mrb[0].mxu0
        %v2666 = vadd.f32 0.0, %v2665
        %v2667 = vpop.f32.mrb[0].mxu0
        %2668 = vmatprep.mubr.bf16.mxu0 0
        %2669 = vmatmul.mubr.bf16.gmra.mrb[0].mxu0 %v2465
        %v2670 = vpop.f32.mrb[0].mxu0
        %v2671 = vadd.f32 0.0, %v2670
        %v2672 = vpop.f32.mrb[0].mxu0
        %v2673 = vpop.f32.mrb[0].mxu0
        %v2674 = vadd.f32 0.0, %v2673
        %v2675 = vpop.f32.mrb[0].mxu0
        %2676 = vmatprep.mubr.bf16.mxu0 0
        %2677 = vmatmul.mubr.bf16.gmra.mrb[0].mxu0 %v2466
        %v2678 = vpop.f32.mrb[0].mxu0
        %v2679 = vadd.f32 0.0, %v2678
        %v2680 = vpop.f32.mrb[0].mxu0
        %v2681 = vpop.f32.mrb[0].mxu0
        %v2682 = vadd.f32 0.0, %v2681
        %v2683 = vpop.f32.mrb[0].mxu0
        %2684 = vmatprep.mubr.bf16.mxu0 0
        %2685 = vmatmul.mubr.bf16.gmra.mrb[0].mxu0 %v2467
        %v2686 = vpop.f32.mrb[0].mxu0
        %v2687 = vadd.f32 0.0, %v2686
        %v2688 = vpop.f32.mrb[0].mxu0
        %v2689 = vpop.f32.mrb[0].mxu0
        %v2690 = vadd.f32 0.0, %v2689
        %v2691 = vpop.f32.mrb[0].mxu0
        %2692 = vdwg.mxu0
        %v2693 = vadd.f32 %v2371, %v2567
        %v2694 = vadd.f32 %v2372, %v2570
        %v2695 = vadd.f32 %v2373, %v2575
        %v2696 = vadd.f32 %v2374, %v2578
        %v2697 = vadd.f32 %v2375, %v2583
        %v2698 = vadd.f32 %v2376, %v2586
        %v2699 = vadd.f32 %v2377, %v2591
        %v2700 = vadd.f32 %v2378, %v2594
        %v2701 = vadd.f32 %v2379, %v2599
        %v2702 = vadd.f32 %v2380, %v2602
        %v2703 = vadd.f32 %v2381, %v2607
        %v2704 = vadd.f32 %v2382, %v2610
        %v2705 = vadd.f32 %v2383, %v2615
        %v2706 = vadd.f32 %v2384, %v2618
        %v2707 = vadd.f32 %v2385, %v2623
        %v2708 = vadd.f32 %v2386, %v2626
        %v2709 = vadd.f32 %v2387, %v2631
        %v2710 = vadd.f32 %v2388, %v2634
        %v2711 = vadd.f32 %v2389, %v2639
        %v2712 = vadd.f32 %v2390, %v2642
        %v2713 = vadd.f32 %v2391, %v2647
        %v2714 = vadd.f32 %v2392, %v2650
        %v2715 = vadd.f32 %v2393, %v2655
        %v2716 = vadd.f32 %v2394, %v2658
        %v2717 = vadd.f32 %v2395, %v2663
        %v2718 = vadd.f32 %v2396, %v2666
        %v2719 = vadd.f32 %v2397, %v2671
        %v2720 = vadd.f32 %v2398, %v2674
        %v2721 = vadd.f32 %v2399, %v2679
        %v2722 = vadd.f32 %v2400, %v2682
        %v2723 = vadd.f32 %v2401, %v2687
        %v2724 = vadd.f32 %v2402, %v2690
        %2725 = vst [vmem:[#allocation3] sm:$0xff] %v2693
        %2726 = vst [vmem:[#allocation3 + $0x8] sm:$0xff] %v2694
        %2727 = vst [vmem:[#allocation3 + $0x10] sm:$0xff] %v2695
        %2728 = vst [vmem:[#allocation3 + $0x18] sm:$0xff] %v2696
        %2729 = vst [vmem:[#allocation3 + $0x20] sm:$0xff] %v2697
        %2730 = vst [vmem:[#allocation3 + $0x28] sm:$0xff] %v2698
        %2731 = vst [vmem:[#allocation3 + $0x30] sm:$0xff] %v2699
        %2732 = vst [vmem:[#allocation3 + $0x38] sm:$0xff] %v2700
        %2733 = vst [vmem:[#allocation3 + $0x40] sm:$0xff] %v2701
        %2734 = vst [vmem:[#allocation3 + $0x48] sm:$0xff] %v2702
        %2735 = vst [vmem:[#allocation3 + $0x50] sm:$0xff] %v2703
        %2736 = vst [vmem:[#allocation3 + $0x58] sm:$0xff] %v2704
        %2737 = vst [vmem:[#allocation3 + $0x60] sm:$0xff] %v2705
        %2738 = vst [vmem:[#allocation3 + $0x68] sm:$0xff] %v2706
        %2739 = vst [vmem:[#allocation3 + $0x70] sm:$0xff] %v2707
        %2740 = vst [vmem:[#allocation3 + $0x78] sm:$0xff] %v2708
        %2741 = vst [vmem:[#allocation3 + $0x80] sm:$0xff] %v2709
        %2742 = vst [vmem:[#allocation3 + $0x88] sm:$0xff] %v2710
        %2743 = vst [vmem:[#allocation3 + $0x90] sm:$0xff] %v2711
        %2744 = vst [vmem:[#allocation3 + $0x98] sm:$0xff] %v2712
        %2745 = vst [vmem:[#allocation3 + $0xa0] sm:$0xff] %v2713
        %2746 = vst [vmem:[#allocation3 + $0xa8] sm:$0xff] %v2714
        %2747 = vst [vmem:[#allocation3 + $0xb0] sm:$0xff] %v2715
        %2748 = vst [vmem:[#allocation3 + $0xb8] sm:$0xff] %v2716
        %2749 = vst [vmem:[#allocation3 + $0xc0] sm:$0xff] %v2717
        %2750 = vst [vmem:[#allocation3 + $0xc8] sm:$0xff] %v2718
        %2751 = vst [vmem:[#allocation3 + $0xd0] sm:$0xff] %v2719
        %2752 = vst [vmem:[#allocation3 + $0xd8] sm:$0xff] %v2720
        %2753 = vst [vmem:[#allocation3 + $0xe0] sm:$0xff] %v2721
        %2754 = vst [vmem:[#allocation3 + $0xe8] sm:$0xff] %v2722
        %2755 = vst [vmem:[#allocation3 + $0xf0] sm:$0xff] %v2723
        %2756 = vst [vmem:[#allocation3 + $0xf8] sm:$0xff] %v2724
        %s2757 = scalar_lea.vmem [#allocation2], 12
        %v2758 = vld [vmem:[%s2757] sm:$0xf]
        %v2759 = vld [vmem:[%s2757 + $0x4] sm:$0xf]
        %v2760 = vld [vmem:[%s2757 + $0xc] sm:$0xf]
        %v2761 = vld [vmem:[%s2757 + $0x10] sm:$0xf]
        %v2762 = vld [vmem:[%s2757 + $0x18] sm:$0xf]
        %v2763 = vld [vmem:[%s2757 + $0x1c] sm:$0xf]
        %v2764 = vld [vmem:[%s2757 + $0x24] sm:$0xf]
        %v2765 = vld [vmem:[%s2757 + $0x28] sm:$0xf]
        %v2766 = vld [vmem:[%s2757 + $0x30] sm:$0xf]
        %v2767 = vld [vmem:[%s2757 + $0x34] sm:$0xf]
        %v2768 = vld [vmem:[%s2757 + $0x3c] sm:$0xf]
        %v2769 = vld [vmem:[%s2757 + $0x40] sm:$0xf]
        %v2770 = vld [vmem:[%s2757 + $0x48] sm:$0xf]
        %v2771 = vld [vmem:[%s2757 + $0x4c] sm:$0xf]
        %v2772 = vld [vmem:[%s2757 + $0x54] sm:$0xf]
        %v2773 = vld [vmem:[%s2757 + $0x58] sm:$0xf]
        %v2774 = vld [vmem:[%s2757 + $0x60] sm:$0xf]
        %v2775 = vld [vmem:[%s2757 + $0x64] sm:$0xf]
        %v2776 = vld [vmem:[%s2757 + $0x6c] sm:$0xf]
        %v2777 = vld [vmem:[%s2757 + $0x70] sm:$0xf]
        %v2778 = vld [vmem:[%s2757 + $0x78] sm:$0xf]
        %v2779 = vld [vmem:[%s2757 + $0x7c] sm:$0xf]
        %v2780 = vld [vmem:[%s2757 + $0x84] sm:$0xf]
        %v2781 = vld [vmem:[%s2757 + $0x88] sm:$0xf]
        %v2782 = vld [vmem:[%s2757 + $0x90] sm:$0xf]
        %v2783 = vld [vmem:[%s2757 + $0x94] sm:$0xf]
        %v2784 = vld [vmem:[%s2757 + $0x9c] sm:$0xf]
        %v2785 = vld [vmem:[%s2757 + $0xa0] sm:$0xf]
        %v2786 = vld [vmem:[%s2757 + $0xa8] sm:$0xf]
        %v2787 = vld [vmem:[%s2757 + $0xac] sm:$0xf]
        %v2788 = vld [vmem:[%s2757 + $0xb4] sm:$0xf]
        %v2789 = vld [vmem:[%s2757 + $0xb8] sm:$0xf]
        %v2790 = vld [vmem:[#allocation3] sm:$0xff]
        %v2791 = vld [vmem:[#allocation3 + $0x8] sm:$0xff]
        %v2792 = vld [vmem:[#allocation3 + $0x10] sm:$0xff]
        %v2793 = vld [vmem:[#allocation3 + $0x18] sm:$0xff]
        %v2794 = vld [vmem:[#allocation3 + $0x20] sm:$0xff]
        %v2795 = vld [vmem:[#allocation3 + $0x28] sm:$0xff]
        %v2796 = vld [vmem:[#allocation3 + $0x30] sm:$0xff]
        %v2797 = vld [vmem:[#allocation3 + $0x38] sm:$0xff]
        %v2798 = vld [vmem:[#allocation3 + $0x40] sm:$0xff]
        %v2799 = vld [vmem:[#allocation3 + $0x48] sm:$0xff]
        %v2800 = vld [vmem:[#allocation3 + $0x50] sm:$0xff]
        %v2801 = vld [vmem:[#allocation3 + $0x58] sm:$0xff]
        %v2802 = vld [vmem:[#allocation3 + $0x60] sm:$0xff]
        %v2803 = vld [vmem:[#allocation3 + $0x68] sm:$0xff]
        %v2804 = vld [vmem:[#allocation3 + $0x70] sm:$0xff]
        %v2805 = vld [vmem:[#allocation3 + $0x78] sm:$0xff]
        %v2806 = vld [vmem:[#allocation3 + $0x80] sm:$0xff]
        %v2807 = vld [vmem:[#allocation3 + $0x88] sm:$0xff]
        %v2808 = vld [vmem:[#allocation3 + $0x90] sm:$0xff]
        %v2809 = vld [vmem:[#allocation3 + $0x98] sm:$0xff]
        %v2810 = vld [vmem:[#allocation3 + $0xa0] sm:$0xff]
        %v2811 = vld [vmem:[#allocation3 + $0xa8] sm:$0xff]
        %v2812 = vld [vmem:[#allocation3 + $0xb0] sm:$0xff]
        %v2813 = vld [vmem:[#allocation3 + $0xb8] sm:$0xff]
        %v2814 = vld [vmem:[#allocation3 + $0xc0] sm:$0xff]
        %v2815 = vld [vmem:[#allocation3 + $0xc8] sm:$0xff]
        %v2816 = vld [vmem:[#allocation3 + $0xd0] sm:$0xff]
        %v2817 = vld [vmem:[#allocation3 + $0xd8] sm:$0xff]
        %v2818 = vld [vmem:[#allocation3 + $0xe0] sm:$0xff]
        %v2819 = vld [vmem:[#allocation3 + $0xe8] sm:$0xff]
        %v2820 = vld [vmem:[#allocation3 + $0xf0] sm:$0xff]
        %v2821 = vld [vmem:[#allocation3 + $0xf8] sm:$0xff]
        %s2822 = scalar_lea.vmem %s207, 192 [#allocation4]
        %v2823 = vld [vmem:[%s2822] sm:$0xf]
        %v2824 = vld [vmem:[%s2822 + $0x4] sm:$0xf]
        %v2825 = vld [vmem:[%s2822 + $0x8] sm:$0xf]
        %v2826 = vld [vmem:[%s2822 + $0xc] sm:$0xf]
        %v2827 = vld [vmem:[%s2822 + $0x10] sm:$0xf]
        %v2828 = vld [vmem:[%s2822 + $0x14] sm:$0xf]
        %v2829 = vld [vmem:[%s2822 + $0x18] sm:$0xf]
        %v2830 = vld [vmem:[%s2822 + $0x1c] sm:$0xf]
        %v2831 = vld [vmem:[%s2822 + $0x20] sm:$0xf]
        %v2832 = vld [vmem:[%s2822 + $0x24] sm:$0xf]
        %v2833 = vld [vmem:[%s2822 + $0x28] sm:$0xf]
        %v2834 = vld [vmem:[%s2822 + $0x2c] sm:$0xf]
        %v2835 = vld [vmem:[%s2822 + $0x30] sm:$0xf]
        %v2836 = vld [vmem:[%s2822 + $0x34] sm:$0xf]
        %v2837 = vld [vmem:[%s2822 + $0x38] sm:$0xf]
        %v2838 = vld [vmem:[%s2822 + $0x3c] sm:$0xf]
        %v2871 = vunpack.c.l.b16 %v2758
        %v2872 = vunpack.c.l.b16 %v2759
        %v2873 = vunpack.c.l.b16 %v2760
        %v2874 = vunpack.c.l.b16 %v2761
        %v2875 = vunpack.c.l.b16 %v2762
        %v2876 = vunpack.c.l.b16 %v2763
        %v2877 = vunpack.c.l.b16 %v2764
        %v2878 = vunpack.c.l.b16 %v2765
        %v2879 = vunpack.c.l.b16 %v2766
        %v2880 = vunpack.c.l.b16 %v2767
        %v2881 = vunpack.c.l.b16 %v2768
        %v2882 = vunpack.c.l.b16 %v2769
        %v2883 = vunpack.c.l.b16 %v2770
        %v2884 = vunpack.c.l.b16 %v2771
        %v2885 = vunpack.c.l.b16 %v2772
        %v2886 = vunpack.c.l.b16 %v2773
        %v2887 = vunpack.c.l.b16 %v2774
        %v2888 = vunpack.c.l.b16 %v2775
        %v2889 = vunpack.c.l.b16 %v2776
        %v2890 = vunpack.c.l.b16 %v2777
        %v2891 = vunpack.c.l.b16 %v2778
        %v2892 = vunpack.c.l.b16 %v2779
        %v2893 = vunpack.c.l.b16 %v2780
        %v2894 = vunpack.c.l.b16 %v2781
        %v2895 = vunpack.c.l.b16 %v2782
        %v2896 = vunpack.c.l.b16 %v2783
        %v2897 = vunpack.c.l.b16 %v2784
        %v2898 = vunpack.c.l.b16 %v2785
        %v2899 = vunpack.c.l.b16 %v2786
        %v2900 = vunpack.c.l.b16 %v2787
        %v2901 = vunpack.c.l.b16 %v2788
        %v2902 = vunpack.c.l.b16 %v2789
        %v2903 = vpack.c.b16 %v2872, %v2871
        %v2904 = vpack.c.b16 %v2874, %v2873
        %v2905 = vpack.c.b16 %v2876, %v2875
        %v2906 = vpack.c.b16 %v2878, %v2877
        %v2907 = vpack.c.b16 %v2880, %v2879
        %v2908 = vpack.c.b16 %v2882, %v2881
        %v2909 = vpack.c.b16 %v2884, %v2883
        %v2910 = vpack.c.b16 %v2886, %v2885
        %v2911 = vpack.c.b16 %v2888, %v2887
        %v2912 = vpack.c.b16 %v2890, %v2889
        %v2913 = vpack.c.b16 %v2892, %v2891
        %v2914 = vpack.c.b16 %v2894, %v2893
        %v2915 = vpack.c.b16 %v2896, %v2895
        %v2916 = vpack.c.b16 %v2898, %v2897
        %v2917 = vpack.c.b16 %v2900, %v2899
        %v2918 = vpack.c.b16 %v2902, %v2901
        %v2951 = vunpack.c.l.b16 %v2823
        %v2952 = vunpack.c.l.b16 %v2824
        %v2953 = vunpack.c.l.b16 %v2825
        %v2954 = vunpack.c.l.b16 %v2826
        %v2955 = vunpack.c.l.b16 %v2827
        %v2956 = vunpack.c.l.b16 %v2828
        %v2957 = vunpack.c.l.b16 %v2829
        %v2958 = vunpack.c.l.b16 %v2830
        %v2959 = vunpack.c.l.b16 %v2831
        %v2960 = vunpack.c.l.b16 %v2832
        %v2961 = vunpack.c.l.b16 %v2833
        %v2962 = vunpack.c.l.b16 %v2834
        %v2963 = vunpack.c.l.b16 %v2835
        %v2964 = vunpack.c.l.b16 %v2836
        %v2965 = vunpack.c.l.b16 %v2837
        %v2966 = vunpack.c.l.b16 %v2838
        %v2967 = vpack.c.b16 %v2952, %v2951
        %v2968 = vpack.c.b16 %v2954, %v2953
        %v2969 = vpack.c.b16 %v2956, %v2955
        %v2970 = vpack.c.b16 %v2958, %v2957
        %v2971 = vpack.c.b16 %v2960, %v2959
        %v2972 = vpack.c.b16 %v2962, %v2961
        %v2973 = vpack.c.b16 %v2964, %v2963
        %v2974 = vpack.c.b16 %v2966, %v2965
        %2983 = vmatprep.subr.bf16.mxu0 0
        %2984 = vmatpush1.bf16.msra.mxu0 %v2967
        %2985 = vmatprep.subr.bf16.mxu0 0
        %2986 = vmatpush1.bf16.msra.mxu0 %v2968
        %2987 = vmatprep.subr.bf16.mxu0 0
        %2988 = vmatpush1.bf16.msra.mxu0 %v2969
        %2989 = vmatprep.subr.bf16.mxu0 0
        %2990 = vmatpush1.bf16.msra.mxu0 %v2970
        %2991 = vmatprep.subr.bf16.mxu0 0
        %2992 = vmatpush1.bf16.msra.mxu0 %v2971
        %2993 = vmatprep.subr.bf16.mxu0 0
        %2994 = vmatpush1.bf16.msra.mxu0 %v2972
        %2995 = vmatprep.subr.bf16.mxu0 0
        %2996 = vmatpush1.bf16.msra.mxu0 %v2973
        %2997 = vmatprep.subr.bf16.mxu0 0
        %2998 = vmatpush1.bf16.msra.mxu0 %v2974
        %2999 = vmatprep.subr.bf16.mxu0 0
        %3000 = vmatpush1.bf16.msra.mxu0 0
        %3001 = vmatprep.subr.bf16.mxu0 0
        %3002 = vmatpush1.bf16.msra.mxu0 0
        %3003 = vmatprep.subr.bf16.mxu0 0
        %3004 = vmatpush1.bf16.msra.mxu0 0
        %3005 = vmatprep.subr.bf16.mxu0 0
        %3006 = vmatpush1.bf16.msra.mxu0 0
        %3007 = vmatprep.subr.bf16.mxu0 0
        %3008 = vmatpush1.bf16.msra.mxu0 0
        %3009 = vmatprep.subr.bf16.mxu0 0
        %3010 = vmatpush1.bf16.msra.mxu0 0
        %3011 = vmatprep.subr.bf16.mxu0 0
        %3012 = vmatpush1.bf16.msra.mxu0 0
        %3013 = vmatprep.subr.bf16.mxu0 0
        %3014 = vmatpush1.bf16.msra.mxu0 0
        %3015 = vmatprep.mubr.bf16.mxu0 0
        %3016 = vmatmul.mubr.bf16.gmra.mrb[0].mxu0 %v2903
        %v3017 = vpop.f32.mrb[0].mxu0
        %v3018 = vadd.f32 0.0, %v3017
        %v3019 = vpop.f32.mrb[0].mxu0
        %v3020 = vpop.f32.mrb[0].mxu0
        %v3021 = vadd.f32 0.0, %v3020
        %v3022 = vpop.f32.mrb[0].mxu0
        %3023 = vmatprep.mubr.bf16.mxu0 0
        %3024 = vmatmul.mubr.bf16.gmra.mrb[0].mxu0 %v2904
        %v3025 = vpop.f32.mrb[0].mxu0
        %v3026 = vadd.f32 0.0, %v3025
        %v3027 = vpop.f32.mrb[0].mxu0
        %v3028 = vpop.f32.mrb[0].mxu0
        %v3029 = vadd.f32 0.0, %v3028
        %v3030 = vpop.f32.mrb[0].mxu0
        %3031 = vmatprep.mubr.bf16.mxu0 0
        %3032 = vmatmul.mubr.bf16.gmra.mrb[0].mxu0 %v2905
        %v3033 = vpop.f32.mrb[0].mxu0
        %v3034 = vadd.f32 0.0, %v3033
        %v3035 = vpop.f32.mrb[0].mxu0
        %v3036 = vpop.f32.mrb[0].mxu0
        %v3037 = vadd.f32 0.0, %v3036
        %v3038 = vpop.f32.mrb[0].mxu0
        %3039 = vmatprep.mubr.bf16.mxu0 0
        %3040 = vmatmul.mubr.bf16.gmra.mrb[0].mxu0 %v2906
        %v3041 = vpop.f32.mrb[0].mxu0
        %v3042 = vadd.f32 0.0, %v3041
        %v3043 = vpop.f32.mrb[0].mxu0
        %v3044 = vpop.f32.mrb[0].mxu0
        %v3045 = vadd.f32 0.0, %v3044
        %v3046 = vpop.f32.mrb[0].mxu0
        %3047 = vmatprep.mubr.bf16.mxu0 0
        %3048 = vmatmul.mubr.bf16.gmra.mrb[0].mxu0 %v2907
        %v3049 = vpop.f32.mrb[0].mxu0
        %v3050 = vadd.f32 0.0, %v3049
        %v3051 = vpop.f32.mrb[0].mxu0
        %v3052 = vpop.f32.mrb[0].mxu0
        %v3053 = vadd.f32 0.0, %v3052
        %v3054 = vpop.f32.mrb[0].mxu0
        %3055 = vmatprep.mubr.bf16.mxu0 0
        %3056 = vmatmul.mubr.bf16.gmra.mrb[0].mxu0 %v2908
        %v3057 = vpop.f32.mrb[0].mxu0
        %v3058 = vadd.f32 0.0, %v3057
        %v3059 = vpop.f32.mrb[0].mxu0
        %v3060 = vpop.f32.mrb[0].mxu0
        %v3061 = vadd.f32 0.0, %v3060
        %v3062 = vpop.f32.mrb[0].mxu0
        %3063 = vmatprep.mubr.bf16.mxu0 0
        %3064 = vmatmul.mubr.bf16.gmra.mrb[0].mxu0 %v2909
        %v3065 = vpop.f32.mrb[0].mxu0
        %v3066 = vadd.f32 0.0, %v3065
        %v3067 = vpop.f32.mrb[0].mxu0
        %v3068 = vpop.f32.mrb[0].mxu0
        %v3069 = vadd.f32 0.0, %v3068
        %v3070 = vpop.f32.mrb[0].mxu0
        %3071 = vmatprep.mubr.bf16.mxu0 0
        %3072 = vmatmul.mubr.bf16.gmra.mrb[0].mxu0 %v2910
        %v3073 = vpop.f32.mrb[0].mxu0
        %v3074 = vadd.f32 0.0, %v3073
        %v3075 = vpop.f32.mrb[0].mxu0
        %v3076 = vpop.f32.mrb[0].mxu0
        %v3077 = vadd.f32 0.0, %v3076
        %v3078 = vpop.f32.mrb[0].mxu0
        %3079 = vmatprep.mubr.bf16.mxu0 0
        %3080 = vmatmul.mubr.bf16.gmra.mrb[0].mxu0 %v2911
        %v3081 = vpop.f32.mrb[0].mxu0
        %v3082 = vadd.f32 0.0, %v3081
        %v3083 = vpop.f32.mrb[0].mxu0
        %v3084 = vpop.f32.mrb[0].mxu0
        %v3085 = vadd.f32 0.0, %v3084
        %v3086 = vpop.f32.mrb[0].mxu0
        %3087 = vmatprep.mubr.bf16.mxu0 0
        %3088 = vmatmul.mubr.bf16.gmra.mrb[0].mxu0 %v2912
        %v3089 = vpop.f32.mrb[0].mxu0
        %v3090 = vadd.f32 0.0, %v3089
        %v3091 = vpop.f32.mrb[0].mxu0
        %v3092 = vpop.f32.mrb[0].mxu0
        %v3093 = vadd.f32 0.0, %v3092
        %v3094 = vpop.f32.mrb[0].mxu0
        %3095 = vmatprep.mubr.bf16.mxu0 0
        %3096 = vmatmul.mubr.bf16.gmra.mrb[0].mxu0 %v2913
        %v3097 = vpop.f32.mrb[0].mxu0
        %v3098 = vadd.f32 0.0, %v3097
        %v3099 = vpop.f32.mrb[0].mxu0
        %v3100 = vpop.f32.mrb[0].mxu0
        %v3101 = vadd.f32 0.0, %v3100
        %v3102 = vpop.f32.mrb[0].mxu0
        %3103 = vmatprep.mubr.bf16.mxu0 0
        %3104 = vmatmul.mubr.bf16.gmra.mrb[0].mxu0 %v2914
        %v3105 = vpop.f32.mrb[0].mxu0
        %v3106 = vadd.f32 0.0, %v3105
        %v3107 = vpop.f32.mrb[0].mxu0
        %v3108 = vpop.f32.mrb[0].mxu0
        %v3109 = vadd.f32 0.0, %v3108
        %v3110 = vpop.f32.mrb[0].mxu0
        %3111 = vmatprep.mubr.bf16.mxu0 0
        %3112 = vmatmul.mubr.bf16.gmra.mrb[0].mxu0 %v2915
        %v3113 = vpop.f32.mrb[0].mxu0
        %v3114 = vadd.f32 0.0, %v3113
        %v3115 = vpop.f32.mrb[0].mxu0
        %v3116 = vpop.f32.mrb[0].mxu0
        %v3117 = vadd.f32 0.0, %v3116
        %v3118 = vpop.f32.mrb[0].mxu0
        %3119 = vmatprep.mubr.bf16.mxu0 0
        %3120 = vmatmul.mubr.bf16.gmra.mrb[0].mxu0 %v2916
        %v3121 = vpop.f32.mrb[0].mxu0
        %v3122 = vadd.f32 0.0, %v3121
        %v3123 = vpop.f32.mrb[0].mxu0
        %v3124 = vpop.f32.mrb[0].mxu0
        %v3125 = vadd.f32 0.0, %v3124
        %v3126 = vpop.f32.mrb[0].mxu0
        %3127 = vmatprep.mubr.bf16.mxu0 0
        %3128 = vmatmul.mubr.bf16.gmra.mrb[0].mxu0 %v2917
        %v3129 = vpop.f32.mrb[0].mxu0
        %v3130 = vadd.f32 0.0, %v3129
        %v3131 = vpop.f32.mrb[0].mxu0
        %v3132 = vpop.f32.mrb[0].mxu0
        %v3133 = vadd.f32 0.0, %v3132
        %v3134 = vpop.f32.mrb[0].mxu0
        %3135 = vmatprep.mubr.bf16.mxu0 0
        %3136 = vmatmul.mubr.bf16.gmra.mrb[0].mxu0 %v2918
        %v3137 = vpop.f32.mrb[0].mxu0
        %v3138 = vadd.f32 0.0, %v3137
        %v3139 = vpop.f32.mrb[0].mxu0
        %v3140 = vpop.f32.mrb[0].mxu0
        %v3141 = vadd.f32 0.0, %v3140
        %v3142 = vpop.f32.mrb[0].mxu0
        %3143 = vdwg.mxu0
        %v3144 = vadd.f32 %v2790, %v3018
        %v3145 = vadd.f32 %v2791, %v3021
        %v3146 = vadd.f32 %v2792, %v3026
        %v3147 = vadd.f32 %v2793, %v3029
        %v3148 = vadd.f32 %v2794, %v3034
        %v3149 = vadd.f32 %v2795, %v3037
        %v3150 = vadd.f32 %v2796, %v3042
        %v3151 = vadd.f32 %v2797, %v3045
        %v3152 = vadd.f32 %v2798, %v3050
        %v3153 = vadd.f32 %v2799, %v3053
        %v3154 = vadd.f32 %v2800, %v3058
        %v3155 = vadd.f32 %v2801, %v3061
        %v3156 = vadd.f32 %v2802, %v3066
        %v3157 = vadd.f32 %v2803, %v3069
        %v3158 = vadd.f32 %v2804, %v3074
        %v3159 = vadd.f32 %v2805, %v3077
        %v3160 = vadd.f32 %v2806, %v3082
        %v3161 = vadd.f32 %v2807, %v3085
        %v3162 = vadd.f32 %v2808, %v3090
        %v3163 = vadd.f32 %v2809, %v3093
        %v3164 = vadd.f32 %v2810, %v3098
        %v3165 = vadd.f32 %v2811, %v3101
        %v3166 = vadd.f32 %v2812, %v3106
        %v3167 = vadd.f32 %v2813, %v3109
        %v3168 = vadd.f32 %v2814, %v3114
        %v3169 = vadd.f32 %v2815, %v3117
        %v3170 = vadd.f32 %v2816, %v3122
        %v3171 = vadd.f32 %v2817, %v3125
        %v3172 = vadd.f32 %v2818, %v3130
        %v3173 = vadd.f32 %v2819, %v3133
        %v3174 = vadd.f32 %v2820, %v3138
        %v3175 = vadd.f32 %v2821, %v3141
        %3176 = vst [vmem:[#allocation3] sm:$0xff] %v3144
        %3177 = vst [vmem:[#allocation3 + $0x8] sm:$0xff] %v3145
        %3178 = vst [vmem:[#allocation3 + $0x10] sm:$0xff] %v3146
        %3179 = vst [vmem:[#allocation3 + $0x18] sm:$0xff] %v3147
        %3180 = vst [vmem:[#allocation3 + $0x20] sm:$0xff] %v3148
        %3181 = vst [vmem:[#allocation3 + $0x28] sm:$0xff] %v3149
        %3182 = vst [vmem:[#allocation3 + $0x30] sm:$0xff] %v3150
        %3183 = vst [vmem:[#allocation3 + $0x38] sm:$0xff] %v3151
        %3184 = vst [vmem:[#allocation3 + $0x40] sm:$0xff] %v3152
        %3185 = vst [vmem:[#allocation3 + $0x48] sm:$0xff] %v3153
        %3186 = vst [vmem:[#allocation3 + $0x50] sm:$0xff] %v3154
        %3187 = vst [vmem:[#allocation3 + $0x58] sm:$0xff] %v3155
        %3188 = vst [vmem:[#allocation3 + $0x60] sm:$0xff] %v3156
        %3189 = vst [vmem:[#allocation3 + $0x68] sm:$0xff] %v3157
        %3190 = vst [vmem:[#allocation3 + $0x70] sm:$0xff] %v3158
        %3191 = vst [vmem:[#allocation3 + $0x78] sm:$0xff] %v3159
        %3192 = vst [vmem:[#allocation3 + $0x80] sm:$0xff] %v3160
        %3193 = vst [vmem:[#allocation3 + $0x88] sm:$0xff] %v3161
        %3194 = vst [vmem:[#allocation3 + $0x90] sm:$0xff] %v3162
        %3195 = vst [vmem:[#allocation3 + $0x98] sm:$0xff] %v3163
        %3196 = vst [vmem:[#allocation3 + $0xa0] sm:$0xff] %v3164
        %3197 = vst [vmem:[#allocation3 + $0xa8] sm:$0xff] %v3165
        %3198 = vst [vmem:[#allocation3 + $0xb0] sm:$0xff] %v3166
        %3199 = vst [vmem:[#allocation3 + $0xb8] sm:$0xff] %v3167
        %3200 = vst [vmem:[#allocation3 + $0xc0] sm:$0xff] %v3168
        %3201 = vst [vmem:[#allocation3 + $0xc8] sm:$0xff] %v3169
        %3202 = vst [vmem:[#allocation3 + $0xd0] sm:$0xff] %v3170
        %3203 = vst [vmem:[#allocation3 + $0xd8] sm:$0xff] %v3171
        %3204 = vst [vmem:[#allocation3 + $0xe0] sm:$0xff] %v3172
        %3205 = vst [vmem:[#allocation3 + $0xe8] sm:$0xff] %v3173
        %3206 = vst [vmem:[#allocation3 + $0xf0] sm:$0xff] %v3174
        %3207 = vst [vmem:[#allocation3 + $0xf8] sm:$0xff] %v3175
        %v3208 = vld [vmem:[%s2757] sm:$0xf]
        %v3209 = vld [vmem:[%s2757 + $0x4] sm:$0xf]
        %v3210 = vld [vmem:[%s2757 + $0x8] sm:$0x1]
        %v3211 = vld [vmem:[%s2757 + $0xc] sm:$0xf]
        %v3212 = vld [vmem:[%s2757 + $0x10] sm:$0xf]
        %v3213 = vld [vmem:[%s2757 + $0x14] sm:$0x1]
        %v3214 = vld [vmem:[%s2757 + $0x18] sm:$0xf]
        %v3215 = vld [vmem:[%s2757 + $0x1c] sm:$0xf]
        %v3216 = vld [vmem:[%s2757 + $0x20] sm:$0x1]
        %v3217 = vld [vmem:[%s2757 + $0x24] sm:$0xf]
        %v3218 = vld [vmem:[%s2757 + $0x28] sm:$0xf]
        %v3219 = vld [vmem:[%s2757 + $0x2c] sm:$0x1]
        %v3220 = vld [vmem:[%s2757 + $0x30] sm:$0xf]
        %v3221 = vld [vmem:[%s2757 + $0x34] sm:$0xf]
        %v3222 = vld [vmem:[%s2757 + $0x38] sm:$0x1]
        %v3223 = vld [vmem:[%s2757 + $0x3c] sm:$0xf]
        %v3224 = vld [vmem:[%s2757 + $0x40] sm:$0xf]
        %v3225 = vld [vmem:[%s2757 + $0x44] sm:$0x1]
        %v3226 = vld [vmem:[%s2757 + $0x48] sm:$0xf]
        %v3227 = vld [vmem:[%s2757 + $0x4c] sm:$0xf]
        %v3228 = vld [vmem:[%s2757 + $0x50] sm:$0x1]
        %v3229 = vld [vmem:[%s2757 + $0x54] sm:$0xf]
        %v3230 = vld [vmem:[%s2757 + $0x58] sm:$0xf]
        %v3231 = vld [vmem:[%s2757 + $0x5c] sm:$0x1]
        %v3232 = vld [vmem:[%s2757 + $0x60] sm:$0xf]
        %v3233 = vld [vmem:[%s2757 + $0x64] sm:$0xf]
        %v3234 = vld [vmem:[%s2757 + $0x68] sm:$0x1]
        %v3235 = vld [vmem:[%s2757 + $0x6c] sm:$0xf]
        %v3236 = vld [vmem:[%s2757 + $0x70] sm:$0xf]
        %v3237 = vld [vmem:[%s2757 + $0x74] sm:$0x1]
        %v3238 = vld [vmem:[%s2757 + $0x78] sm:$0xf]
        %v3239 = vld [vmem:[%s2757 + $0x7c] sm:$0xf]
        %v3240 = vld [vmem:[%s2757 + $0x80] sm:$0x1]
        %v3241 = vld [vmem:[%s2757 + $0x84] sm:$0xf]
        %v3242 = vld [vmem:[%s2757 + $0x88] sm:$0xf]
        %v3243 = vld [vmem:[%s2757 + $0x8c] sm:$0x1]
        %v3244 = vld [vmem:[%s2757 + $0x90] sm:$0xf]
        %v3245 = vld [vmem:[%s2757 + $0x94] sm:$0xf]
        %v3246 = vld [vmem:[%s2757 + $0x98] sm:$0x1]
        %v3247 = vld [vmem:[%s2757 + $0x9c] sm:$0xf]
        %v3248 = vld [vmem:[%s2757 + $0xa0] sm:$0xf]
        %v3249 = vld [vmem:[%s2757 + $0xa4] sm:$0x1]
        %v3250 = vld [vmem:[%s2757 + $0xa8] sm:$0xf]
        %v3251 = vld [vmem:[%s2757 + $0xac] sm:$0xf]
        %v3252 = vld [vmem:[%s2757 + $0xb0] sm:$0x1]
        %v3253 = vld [vmem:[%s2757 + $0xb4] sm:$0xf]
        %v3254 = vld [vmem:[%s2757 + $0xb8] sm:$0xf]
        %v3255 = vld [vmem:[%s2757 + $0xbc] sm:$0x1]
        %v3257 = vshrl.u32 %v3208, 16
        %v3259 = vrot.slane %v3257, 4
        %v3260 = vshll.u32 %v3208, 16
        %v3262 = vrot.slane %v3260, 5
        %v3263 = vor.u32 %v3259, %v3262
        %v3264 = vrot.slane %v3263, 4
        %v3266 = vshll.u32 %v3209, 16
        %v3268 = vrot.slane %v3266, 5
        %v3269 = vsel %vm1389, %v3264, %v3268
        %v3270 = vshrl.u32 %v3209, 16
        %v3272 = vrot.slane %v3270, 4
        %v3273 = vor.u32 %v3272, %v3268
        %v3274 = vrot.slane %v3273, 4
        %v3276 = vshll.u32 %v3210, 16
        %v3278 = vrot.slane %v3276, 5
        %v3279 = vsel %vm1389, %v3274, %v3278
        %v3281 = vshrl.u32 %v3211, 16
        %v3283 = vrot.slane %v3281, 4
        %v3284 = vshll.u32 %v3211, 16
        %v3286 = vrot.slane %v3284, 5
        %v3287 = vor.u32 %v3283, %v3286
        %v3288 = vrot.slane %v3287, 4
        %v3290 = vshll.u32 %v3212, 16
        %v3292 = vrot.slane %v3290, 5
        %v3293 = vsel %vm1389, %v3288, %v3292
        %v3294 = vshrl.u32 %v3212, 16
        %v3296 = vrot.slane %v3294, 4
        %v3297 = vor.u32 %v3296, %v3292
        %v3298 = vrot.slane %v3297, 4
        %v3300 = vshll.u32 %v3213, 16
        %v3302 = vrot.slane %v3300, 5
        %v3303 = vsel %vm1389, %v3298, %v3302
        %v3305 = vshrl.u32 %v3214, 16
        %v3307 = vrot.slane %v3305, 4
        %v3308 = vshll.u32 %v3214, 16
        %v3310 = vrot.slane %v3308, 5
        %v3311 = vor.u32 %v3307, %v3310
        %v3312 = vrot.slane %v3311, 4
        %v3314 = vshll.u32 %v3215, 16
        %v3316 = vrot.slane %v3314, 5
        %v3317 = vsel %vm1389, %v3312, %v3316
        %v3318 = vshrl.u32 %v3215, 16
        %v3320 = vrot.slane %v3318, 4
        %v3321 = vor.u32 %v3320, %v3316
        %v3322 = vrot.slane %v3321, 4
        %v3324 = vshll.u32 %v3216, 16
        %v3326 = vrot.slane %v3324, 5
        %v3327 = vsel %vm1389, %v3322, %v3326
        %v3329 = vshrl.u32 %v3217, 16
        %v3331 = vrot.slane %v3329, 4
        %v3332 = vshll.u32 %v3217, 16
        %v3334 = vrot.slane %v3332, 5
        %v3335 = vor.u32 %v3331, %v3334
        %v3336 = vrot.slane %v3335, 4
        %v3338 = vshll.u32 %v3218, 16
        %v3340 = vrot.slane %v3338, 5
        %v3341 = vsel %vm1389, %v3336, %v3340
        %v3342 = vshrl.u32 %v3218, 16
        %v3344 = vrot.slane %v3342, 4
        %v3345 = vor.u32 %v3344, %v3340
        %v3346 = vrot.slane %v3345, 4
        %v3348 = vshll.u32 %v3219, 16
        %v3350 = vrot.slane %v3348, 5
        %v3351 = vsel %vm1389, %v3346, %v3350
        %v3353 = vshrl.u32 %v3220, 16
        %v3355 = vrot.slane %v3353, 4
        %v3356 = vshll.u32 %v3220, 16
        %v3358 = vrot.slane %v3356, 5
        %v3359 = vor.u32 %v3355, %v3358
        %v3360 = vrot.slane %v3359, 4
        %v3362 = vshll.u32 %v3221, 16
        %v3364 = vrot.slane %v3362, 5
        %v3365 = vsel %vm1389, %v3360, %v3364
        %v3366 = vshrl.u32 %v3221, 16
        %v3368 = vrot.slane %v3366, 4
        %v3369 = vor.u32 %v3368, %v3364
        %v3370 = vrot.slane %v3369, 4
        %v3372 = vshll.u32 %v3222, 16
        %v3374 = vrot.slane %v3372, 5
        %v3375 = vsel %vm1389, %v3370, %v3374
        %v3377 = vshrl.u32 %v3223, 16
        %v3379 = vrot.slane %v3377, 4
        %v3380 = vshll.u32 %v3223, 16
        %v3382 = vrot.slane %v3380, 5
        %v3383 = vor.u32 %v3379, %v3382
        %v3384 = vrot.slane %v3383, 4
        %v3386 = vshll.u32 %v3224, 16
        %v3388 = vrot.slane %v3386, 5
        %v3389 = vsel %vm1389, %v3384, %v3388
        %v3390 = vshrl.u32 %v3224, 16
        %v3392 = vrot.slane %v3390, 4
        %v3393 = vor.u32 %v3392, %v3388
        %v3394 = vrot.slane %v3393, 4
        %v3396 = vshll.u32 %v3225, 16
        %v3398 = vrot.slane %v3396, 5
        %v3399 = vsel %vm1389, %v3394, %v3398
        %v3401 = vshrl.u32 %v3226, 16
        %v3403 = vrot.slane %v3401, 4
        %v3404 = vshll.u32 %v3226, 16
        %v3406 = vrot.slane %v3404, 5
        %v3407 = vor.u32 %v3403, %v3406
        %v3408 = vrot.slane %v3407, 4
        %v3410 = vshll.u32 %v3227, 16
        %v3412 = vrot.slane %v3410, 5
        %v3413 = vsel %vm1389, %v3408, %v3412
        %v3414 = vshrl.u32 %v3227, 16
        %v3416 = vrot.slane %v3414, 4
        %v3417 = vor.u32 %v3416, %v3412
        %v3418 = vrot.slane %v3417, 4
        %v3420 = vshll.u32 %v3228, 16
        %v3422 = vrot.slane %v3420, 5
        %v3423 = vsel %vm1389, %v3418, %v3422
        %v3425 = vshrl.u32 %v3229, 16
        %v3427 = vrot.slane %v3425, 4
        %v3428 = vshll.u32 %v3229, 16
        %v3430 = vrot.slane %v3428, 5
        %v3431 = vor.u32 %v3427, %v3430
        %v3432 = vrot.slane %v3431, 4
        %v3434 = vshll.u32 %v3230, 16
        %v3436 = vrot.slane %v3434, 5
        %v3437 = vsel %vm1389, %v3432, %v3436
        %v3438 = vshrl.u32 %v3230, 16
        %v3440 = vrot.slane %v3438, 4
        %v3441 = vor.u32 %v3440, %v3436
        %v3442 = vrot.slane %v3441, 4
        %v3444 = vshll.u32 %v3231, 16
        %v3446 = vrot.slane %v3444, 5
        %v3447 = vsel %vm1389, %v3442, %v3446
        %v3449 = vshrl.u32 %v3232, 16
        %v3451 = vrot.slane %v3449, 4
        %v3452 = vshll.u32 %v3232, 16
        %v3454 = vrot.slane %v3452, 5
        %v3455 = vor.u32 %v3451, %v3454
        %v3456 = vrot.slane %v3455, 4
        %v3458 = vshll.u32 %v3233, 16
        %v3460 = vrot.slane %v3458, 5
        %v3461 = vsel %vm1389, %v3456, %v3460
        %v3462 = vshrl.u32 %v3233, 16
        %v3464 = vrot.slane %v3462, 4
        %v3465 = vor.u32 %v3464, %v3460
        %v3466 = vrot.slane %v3465, 4
        %v3468 = vshll.u32 %v3234, 16
        %v3470 = vrot.slane %v3468, 5
        %v3471 = vsel %vm1389, %v3466, %v3470
        %v3473 = vshrl.u32 %v3235, 16
        %v3475 = vrot.slane %v3473, 4
        %v3476 = vshll.u32 %v3235, 16
        %v3478 = vrot.slane %v3476, 5
        %v3479 = vor.u32 %v3475, %v3478
        %v3480 = vrot.slane %v3479, 4
        %v3482 = vshll.u32 %v3236, 16
        %v3484 = vrot.slane %v3482, 5
        %v3485 = vsel %vm1389, %v3480, %v3484
        %v3486 = vshrl.u32 %v3236, 16
        %v3488 = vrot.slane %v3486, 4
        %v3489 = vor.u32 %v3488, %v3484
        %v3490 = vrot.slane %v3489, 4
        %v3492 = vshll.u32 %v3237, 16
        %v3494 = vrot.slane %v3492, 5
        %v3495 = vsel %vm1389, %v3490, %v3494
        %v3497 = vshrl.u32 %v3238, 16
        %v3499 = vrot.slane %v3497, 4
        %v3500 = vshll.u32 %v3238, 16
        %v3502 = vrot.slane %v3500, 5
        %v3503 = vor.u32 %v3499, %v3502
        %v3504 = vrot.slane %v3503, 4
        %v3506 = vshll.u32 %v3239, 16
        %v3508 = vrot.slane %v3506, 5
        %v3509 = vsel %vm1389, %v3504, %v3508
        %v3510 = vshrl.u32 %v3239, 16
        %v3512 = vrot.slane %v3510, 4
        %v3513 = vor.u32 %v3512, %v3508
        %v3514 = vrot.slane %v3513, 4
        %v3516 = vshll.u32 %v3240, 16
        %v3518 = vrot.slane %v3516, 5
        %v3519 = vsel %vm1389, %v3514, %v3518
        %v3521 = vshrl.u32 %v3241, 16
        %v3523 = vrot.slane %v3521, 4
        %v3524 = vshll.u32 %v3241, 16
        %v3526 = vrot.slane %v3524, 5
        %v3527 = vor.u32 %v3523, %v3526
        %v3528 = vrot.slane %v3527, 4
        %v3530 = vshll.u32 %v3242, 16
        %v3532 = vrot.slane %v3530, 5
        %v3533 = vsel %vm1389, %v3528, %v3532
        %v3534 = vshrl.u32 %v3242, 16
        %v3536 = vrot.slane %v3534, 4
        %v3537 = vor.u32 %v3536, %v3532
        %v3538 = vrot.slane %v3537, 4
        %v3540 = vshll.u32 %v3243, 16
        %v3542 = vrot.slane %v3540, 5
        %v3543 = vsel %vm1389, %v3538, %v3542
        %v3545 = vshrl.u32 %v3244, 16
        %v3547 = vrot.slane %v3545, 4
        %v3548 = vshll.u32 %v3244, 16
        %v3550 = vrot.slane %v3548, 5
        %v3551 = vor.u32 %v3547, %v3550
        %v3552 = vrot.slane %v3551, 4
        %v3554 = vshll.u32 %v3245, 16
        %v3556 = vrot.slane %v3554, 5
        %v3557 = vsel %vm1389, %v3552, %v3556
        %v3558 = vshrl.u32 %v3245, 16
        %v3560 = vrot.slane %v3558, 4
        %v3561 = vor.u32 %v3560, %v3556
        %v3562 = vrot.slane %v3561, 4
        %v3564 = vshll.u32 %v3246, 16
        %v3566 = vrot.slane %v3564, 5
        %v3567 = vsel %vm1389, %v3562, %v3566
        %v3569 = vshrl.u32 %v3247, 16
        %v3571 = vrot.slane %v3569, 4
        %v3572 = vshll.u32 %v3247, 16
        %v3574 = vrot.slane %v3572, 5
        %v3575 = vor.u32 %v3571, %v3574
        %v3576 = vrot.slane %v3575, 4
        %v3578 = vshll.u32 %v3248, 16
        %v3580 = vrot.slane %v3578, 5
        %v3581 = vsel %vm1389, %v3576, %v3580
        %v3582 = vshrl.u32 %v3248, 16
        %v3584 = vrot.slane %v3582, 4
        %v3585 = vor.u32 %v3584, %v3580
        %v3586 = vrot.slane %v3585, 4
        %v3588 = vshll.u32 %v3249, 16
        %v3590 = vrot.slane %v3588, 5
        %v3591 = vsel %vm1389, %v3586, %v3590
        %v3593 = vshrl.u32 %v3250, 16
        %v3595 = vrot.slane %v3593, 4
        %v3596 = vshll.u32 %v3250, 16
        %v3598 = vrot.slane %v3596, 5
        %v3599 = vor.u32 %v3595, %v3598
        %v3600 = vrot.slane %v3599, 4
        %v3602 = vshll.u32 %v3251, 16
        %v3604 = vrot.slane %v3602, 5
        %v3605 = vsel %vm1389, %v3600, %v3604
        %v3606 = vshrl.u32 %v3251, 16
        %v3608 = vrot.slane %v3606, 4
        %v3609 = vor.u32 %v3608, %v3604
        %v3610 = vrot.slane %v3609, 4
        %v3612 = vshll.u32 %v3252, 16
        %v3614 = vrot.slane %v3612, 5
        %v3615 = vsel %vm1389, %v3610, %v3614
        %v3617 = vshrl.u32 %v3253, 16
        %v3619 = vrot.slane %v3617, 4
        %v3620 = vshll.u32 %v3253, 16
        %v3622 = vrot.slane %v3620, 5
        %v3623 = vor.u32 %v3619, %v3622
        %v3624 = vrot.slane %v3623, 4
        %v3626 = vshll.u32 %v3254, 16
        %v3628 = vrot.slane %v3626, 5
        %v3629 = vsel %vm1389, %v3624, %v3628
        %v3630 = vshrl.u32 %v3254, 16
        %v3632 = vrot.slane %v3630, 4
        %v3633 = vor.u32 %v3632, %v3628
        %v3634 = vrot.slane %v3633, 4
        %v3636 = vshll.u32 %v3255, 16
        %v3638 = vrot.slane %v3636, 5
        %v3639 = vsel %vm1389, %v3634, %v3638
        %v3640 = vld [vmem:[#allocation3] sm:$0xff]
        %v3641 = vld [vmem:[#allocation3 + $0x8] sm:$0xff]
        %v3642 = vld [vmem:[#allocation3 + $0x10] sm:$0xff]
        %v3643 = vld [vmem:[#allocation3 + $0x18] sm:$0xff]
        %v3644 = vld [vmem:[#allocation3 + $0x20] sm:$0xff]
        %v3645 = vld [vmem:[#allocation3 + $0x28] sm:$0xff]
        %v3646 = vld [vmem:[#allocation3 + $0x30] sm:$0xff]
        %v3647 = vld [vmem:[#allocation3 + $0x38] sm:$0xff]
        %v3648 = vld [vmem:[#allocation3 + $0x40] sm:$0xff]
        %v3649 = vld [vmem:[#allocation3 + $0x48] sm:$0xff]
        %v3650 = vld [vmem:[#allocation3 + $0x50] sm:$0xff]
        %v3651 = vld [vmem:[#allocation3 + $0x58] sm:$0xff]
        %v3652 = vld [vmem:[#allocation3 + $0x60] sm:$0xff]
        %v3653 = vld [vmem:[#allocation3 + $0x68] sm:$0xff]
        %v3654 = vld [vmem:[#allocation3 + $0x70] sm:$0xff]
        %v3655 = vld [vmem:[#allocation3 + $0x78] sm:$0xff]
        %v3656 = vld [vmem:[#allocation3 + $0x80] sm:$0xff]
        %v3657 = vld [vmem:[#allocation3 + $0x88] sm:$0xff]
        %v3658 = vld [vmem:[#allocation3 + $0x90] sm:$0xff]
        %v3659 = vld [vmem:[#allocation3 + $0x98] sm:$0xff]
        %v3660 = vld [vmem:[#allocation3 + $0xa0] sm:$0xff]
        %v3661 = vld [vmem:[#allocation3 + $0xa8] sm:$0xff]
        %v3662 = vld [vmem:[#allocation3 + $0xb0] sm:$0xff]
        %v3663 = vld [vmem:[#allocation3 + $0xb8] sm:$0xff]
        %v3664 = vld [vmem:[#allocation3 + $0xc0] sm:$0xff]
        %v3665 = vld [vmem:[#allocation3 + $0xc8] sm:$0xff]
        %v3666 = vld [vmem:[#allocation3 + $0xd0] sm:$0xff]
        %v3667 = vld [vmem:[#allocation3 + $0xd8] sm:$0xff]
        %v3668 = vld [vmem:[#allocation3 + $0xe0] sm:$0xff]
        %v3669 = vld [vmem:[#allocation3 + $0xe8] sm:$0xff]
        %v3670 = vld [vmem:[#allocation3 + $0xf0] sm:$0xff]
        %v3671 = vld [vmem:[#allocation3 + $0xf8] sm:$0xff]
        %s3672 = scalar_lea.vmem %s207, 256 [#allocation4]
        %v3673 = vld [vmem:[%s3672] sm:$0xf]
        %v3674 = vld [vmem:[%s3672 + $0x4] sm:$0xf]
        %v3675 = vld [vmem:[%s3672 + $0x8] sm:$0xf]
        %v3676 = vld [vmem:[%s3672 + $0xc] sm:$0xf]
        %v3677 = vld [vmem:[%s3672 + $0x10] sm:$0xf]
        %v3678 = vld [vmem:[%s3672 + $0x14] sm:$0xf]
        %v3679 = vld [vmem:[%s3672 + $0x18] sm:$0xf]
        %v3680 = vld [vmem:[%s3672 + $0x1c] sm:$0xf]
        %v3681 = vld [vmem:[%s3672 + $0x20] sm:$0xf]
        %v3682 = vld [vmem:[%s3672 + $0x24] sm:$0xf]
        %v3683 = vld [vmem:[%s3672 + $0x28] sm:$0xf]
        %v3684 = vld [vmem:[%s3672 + $0x2c] sm:$0xf]
        %v3685 = vld [vmem:[%s3672 + $0x30] sm:$0xf]
        %v3686 = vld [vmem:[%s3672 + $0x34] sm:$0xf]
        %v3687 = vld [vmem:[%s3672 + $0x38] sm:$0xf]
        %v3688 = vld [vmem:[%s3672 + $0x3c] sm:$0xf]
        %v3689 = vunpack.c.l.b16 %v3269
        %v3690 = vunpack.c.l.b16 %v3279
        %v3691 = vunpack.c.l.b16 %v3293
        %v3692 = vunpack.c.l.b16 %v3303
        %v3693 = vunpack.c.l.b16 %v3317
        %v3694 = vunpack.c.l.b16 %v3327
        %v3695 = vunpack.c.l.b16 %v3341
        %v3696 = vunpack.c.l.b16 %v3351
        %v3697 = vunpack.c.l.b16 %v3365
        %v3698 = vunpack.c.l.b16 %v3375
        %v3699 = vunpack.c.l.b16 %v3389
        %v3700 = vunpack.c.l.b16 %v3399
        %v3701 = vunpack.c.l.b16 %v3413
        %v3702 = vunpack.c.l.b16 %v3423
        %v3703 = vunpack.c.l.b16 %v3437
        %v3704 = vunpack.c.l.b16 %v3447
        %v3705 = vunpack.c.l.b16 %v3461
        %v3706 = vunpack.c.l.b16 %v3471
        %v3707 = vunpack.c.l.b16 %v3485
        %v3708 = vunpack.c.l.b16 %v3495
        %v3709 = vunpack.c.l.b16 %v3509
        %v3710 = vunpack.c.l.b16 %v3519
        %v3711 = vunpack.c.l.b16 %v3533
        %v3712 = vunpack.c.l.b16 %v3543
        %v3713 = vunpack.c.l.b16 %v3557
        %v3714 = vunpack.c.l.b16 %v3567
        %v3715 = vunpack.c.l.b16 %v3581
        %v3716 = vunpack.c.l.b16 %v3591
        %v3717 = vunpack.c.l.b16 %v3605
        %v3718 = vunpack.c.l.b16 %v3615
        %v3719 = vunpack.c.l.b16 %v3629
        %v3720 = vunpack.c.l.b16 %v3639
        %v3721 = vpack.c.b16 %v3690, %v3689
        %v3722 = vpack.c.b16 %v3692, %v3691
        %v3723 = vpack.c.b16 %v3694, %v3693
        %v3724 = vpack.c.b16 %v3696, %v3695
        %v3725 = vpack.c.b16 %v3698, %v3697
        %v3726 = vpack.c.b16 %v3700, %v3699
        %v3727 = vpack.c.b16 %v3702, %v3701
        %v3728 = vpack.c.b16 %v3704, %v3703
        %v3729 = vpack.c.b16 %v3706, %v3705
        %v3730 = vpack.c.b16 %v3708, %v3707
        %v3731 = vpack.c.b16 %v3710, %v3709
        %v3732 = vpack.c.b16 %v3712, %v3711
        %v3733 = vpack.c.b16 %v3714, %v3713
        %v3734 = vpack.c.b16 %v3716, %v3715
        %v3735 = vpack.c.b16 %v3718, %v3717
        %v3736 = vpack.c.b16 %v3720, %v3719
        %v3769 = vunpack.c.l.b16 %v3673
        %v3770 = vunpack.c.l.b16 %v3674
        %v3771 = vunpack.c.l.b16 %v3675
        %v3772 = vunpack.c.l.b16 %v3676
        %v3773 = vunpack.c.l.b16 %v3677
        %v3774 = vunpack.c.l.b16 %v3678
        %v3775 = vunpack.c.l.b16 %v3679
        %v3776 = vunpack.c.l.b16 %v3680
        %v3777 = vunpack.c.l.b16 %v3681
        %v3778 = vunpack.c.l.b16 %v3682
        %v3779 = vunpack.c.l.b16 %v3683
        %v3780 = vunpack.c.l.b16 %v3684
        %v3781 = vunpack.c.l.b16 %v3685
        %v3782 = vunpack.c.l.b16 %v3686
        %v3783 = vunpack.c.l.b16 %v3687
        %v3784 = vunpack.c.l.b16 %v3688
        %v3785 = vpack.c.b16 %v3770, %v3769
        %v3786 = vpack.c.b16 %v3772, %v3771
        %v3787 = vpack.c.b16 %v3774, %v3773
        %v3788 = vpack.c.b16 %v3776, %v3775
        %v3789 = vpack.c.b16 %v3778, %v3777
        %v3790 = vpack.c.b16 %v3780, %v3779
        %v3791 = vpack.c.b16 %v3782, %v3781
        %v3792 = vpack.c.b16 %v3784, %v3783
        %3801 = vmatprep.subr.bf16.mxu0 0
        %3802 = vmatpush1.bf16.msra.mxu0 %v3785
        %3803 = vmatprep.subr.bf16.mxu0 0
        %3804 = vmatpush1.bf16.msra.mxu0 %v3786
        %3805 = vmatprep.subr.bf16.mxu0 0
        %3806 = vmatpush1.bf16.msra.mxu0 %v3787
        %3807 = vmatprep.subr.bf16.mxu0 0
        %3808 = vmatpush1.bf16.msra.mxu0 %v3788
        %3809 = vmatprep.subr.bf16.mxu0 0
        %3810 = vmatpush1.bf16.msra.mxu0 %v3789
        %3811 = vmatprep.subr.bf16.mxu0 0
        %3812 = vmatpush1.bf16.msra.mxu0 %v3790
        %3813 = vmatprep.subr.bf16.mxu0 0
        %3814 = vmatpush1.bf16.msra.mxu0 %v3791
        %3815 = vmatprep.subr.bf16.mxu0 0
        %3816 = vmatpush1.bf16.msra.mxu0 %v3792
        %3817 = vmatprep.subr.bf16.mxu0 0
        %3818 = vmatpush1.bf16.msra.mxu0 0
        %3819 = vmatprep.subr.bf16.mxu0 0
        %3820 = vmatpush1.bf16.msra.mxu0 0
        %3821 = vmatprep.subr.bf16.mxu0 0
        %3822 = vmatpush1.bf16.msra.mxu0 0
        %3823 = vmatprep.subr.bf16.mxu0 0
        %3824 = vmatpush1.bf16.msra.mxu0 0
        %3825 = vmatprep.subr.bf16.mxu0 0
        %3826 = vmatpush1.bf16.msra.mxu0 0
        %3827 = vmatprep.subr.bf16.mxu0 0
        %3828 = vmatpush1.bf16.msra.mxu0 0
        %3829 = vmatprep.subr.bf16.mxu0 0
        %3830 = vmatpush1.bf16.msra.mxu0 0
        %3831 = vmatprep.subr.bf16.mxu0 0
        %3832 = vmatpush1.bf16.msra.mxu0 0
        %3833 = vmatprep.mubr.bf16.mxu0 0
        %3834 = vmatmul.mubr.bf16.gmra.mrb[0].mxu0 %v3721
        %v3835 = vpop.f32.mrb[0].mxu0
        %v3836 = vadd.f32 0.0, %v3835
        %v3837 = vpop.f32.mrb[0].mxu0
        %v3838 = vpop.f32.mrb[0].mxu0
        %v3839 = vadd.f32 0.0, %v3838
        %v3840 = vpop.f32.mrb[0].mxu0
        %3841 = vmatprep.mubr.bf16.mxu0 0
        %3842 = vmatmul.mubr.bf16.gmra.mrb[0].mxu0 %v3722
        %v3843 = vpop.f32.mrb[0].mxu0
        %v3844 = vadd.f32 0.0, %v3843
        %v3845 = vpop.f32.mrb[0].mxu0
        %v3846 = vpop.f32.mrb[0].mxu0
        %v3847 = vadd.f32 0.0, %v3846
        %v3848 = vpop.f32.mrb[0].mxu0
        %3849 = vmatprep.mubr.bf16.mxu0 0
        %3850 = vmatmul.mubr.bf16.gmra.mrb[0].mxu0 %v3723
        %v3851 = vpop.f32.mrb[0].mxu0
        %v3852 = vadd.f32 0.0, %v3851
        %v3853 = vpop.f32.mrb[0].mxu0
        %v3854 = vpop.f32.mrb[0].mxu0
        %v3855 = vadd.f32 0.0, %v3854
        %v3856 = vpop.f32.mrb[0].mxu0
        %3857 = vmatprep.mubr.bf16.mxu0 0
        %3858 = vmatmul.mubr.bf16.gmra.mrb[0].mxu0 %v3724
        %v3859 = vpop.f32.mrb[0].mxu0
        %v3860 = vadd.f32 0.0, %v3859
        %v3861 = vpop.f32.mrb[0].mxu0
        %v3862 = vpop.f32.mrb[0].mxu0
        %v3863 = vadd.f32 0.0, %v3862
        %v3864 = vpop.f32.mrb[0].mxu0
        %3865 = vmatprep.mubr.bf16.mxu0 0
        %3866 = vmatmul.mubr.bf16.gmra.mrb[0].mxu0 %v3725
        %v3867 = vpop.f32.mrb[0].mxu0
        %v3868 = vadd.f32 0.0, %v3867
        %v3869 = vpop.f32.mrb[0].mxu0
        %v3870 = vpop.f32.mrb[0].mxu0
        %v3871 = vadd.f32 0.0, %v3870
        %v3872 = vpop.f32.mrb[0].mxu0
        %3873 = vmatprep.mubr.bf16.mxu0 0
        %3874 = vmatmul.mubr.bf16.gmra.mrb[0].mxu0 %v3726
        %v3875 = vpop.f32.mrb[0].mxu0
        %v3876 = vadd.f32 0.0, %v3875
        %v3877 = vpop.f32.mrb[0].mxu0
        %v3878 = vpop.f32.mrb[0].mxu0
        %v3879 = vadd.f32 0.0, %v3878
        %v3880 = vpop.f32.mrb[0].mxu0
        %3881 = vmatprep.mubr.bf16.mxu0 0
        %3882 = vmatmul.mubr.bf16.gmra.mrb[0].mxu0 %v3727
        %v3883 = vpop.f32.mrb[0].mxu0
        %v3884 = vadd.f32 0.0, %v3883
        %v3885 = vpop.f32.mrb[0].mxu0
        %v3886 = vpop.f32.mrb[0].mxu0
        %v3887 = vadd.f32 0.0, %v3886
        %v3888 = vpop.f32.mrb[0].mxu0
        %3889 = vmatprep.mubr.bf16.mxu0 0
        %3890 = vmatmul.mubr.bf16.gmra.mrb[0].mxu0 %v3728
        %v3891 = vpop.f32.mrb[0].mxu0
        %v3892 = vadd.f32 0.0, %v3891
        %v3893 = vpop.f32.mrb[0].mxu0
        %v3894 = vpop.f32.mrb[0].mxu0
        %v3895 = vadd.f32 0.0, %v3894
        %v3896 = vpop.f32.mrb[0].mxu0
        %3897 = vmatprep.mubr.bf16.mxu0 0
        %3898 = vmatmul.mubr.bf16.gmra.mrb[0].mxu0 %v3729
        %v3899 = vpop.f32.mrb[0].mxu0
        %v3900 = vadd.f32 0.0, %v3899
        %v3901 = vpop.f32.mrb[0].mxu0
        %v3902 = vpop.f32.mrb[0].mxu0
        %v3903 = vadd.f32 0.0, %v3902
        %v3904 = vpop.f32.mrb[0].mxu0
        %3905 = vmatprep.mubr.bf16.mxu0 0
        %3906 = vmatmul.mubr.bf16.gmra.mrb[0].mxu0 %v3730
        %v3907 = vpop.f32.mrb[0].mxu0
        %v3908 = vadd.f32 0.0, %v3907
        %v3909 = vpop.f32.mrb[0].mxu0
        %v3910 = vpop.f32.mrb[0].mxu0
        %v3911 = vadd.f32 0.0, %v3910
        %v3912 = vpop.f32.mrb[0].mxu0
        %3913 = vmatprep.mubr.bf16.mxu0 0
        %3914 = vmatmul.mubr.bf16.gmra.mrb[0].mxu0 %v3731
        %v3915 = vpop.f32.mrb[0].mxu0
        %v3916 = vadd.f32 0.0, %v3915
        %v3917 = vpop.f32.mrb[0].mxu0
        %v3918 = vpop.f32.mrb[0].mxu0
        %v3919 = vadd.f32 0.0, %v3918
        %v3920 = vpop.f32.mrb[0].mxu0
        %3921 = vmatprep.mubr.bf16.mxu0 0
        %3922 = vmatmul.mubr.bf16.gmra.mrb[0].mxu0 %v3732
        %v3923 = vpop.f32.mrb[0].mxu0
        %v3924 = vadd.f32 0.0, %v3923
        %v3925 = vpop.f32.mrb[0].mxu0
        %v3926 = vpop.f32.mrb[0].mxu0
        %v3927 = vadd.f32 0.0, %v3926
        %v3928 = vpop.f32.mrb[0].mxu0
        %3929 = vmatprep.mubr.bf16.mxu0 0
        %3930 = vmatmul.mubr.bf16.gmra.mrb[0].mxu0 %v3733
        %v3931 = vpop.f32.mrb[0].mxu0
        %v3932 = vadd.f32 0.0, %v3931
        %v3933 = vpop.f32.mrb[0].mxu0
        %v3934 = vpop.f32.mrb[0].mxu0
        %v3935 = vadd.f32 0.0, %v3934
        %v3936 = vpop.f32.mrb[0].mxu0
        %3937 = vmatprep.mubr.bf16.mxu0 0
        %3938 = vmatmul.mubr.bf16.gmra.mrb[0].mxu0 %v3734
        %v3939 = vpop.f32.mrb[0].mxu0
        %v3940 = vadd.f32 0.0, %v3939
        %v3941 = vpop.f32.mrb[0].mxu0
        %v3942 = vpop.f32.mrb[0].mxu0
        %v3943 = vadd.f32 0.0, %v3942
        %v3944 = vpop.f32.mrb[0].mxu0
        %3945 = vmatprep.mubr.bf16.mxu0 0
        %3946 = vmatmul.mubr.bf16.gmra.mrb[0].mxu0 %v3735
        %v3947 = vpop.f32.mrb[0].mxu0
        %v3948 = vadd.f32 0.0, %v3947
        %v3949 = vpop.f32.mrb[0].mxu0
        %v3950 = vpop.f32.mrb[0].mxu0
        %v3951 = vadd.f32 0.0, %v3950
        %v3952 = vpop.f32.mrb[0].mxu0
        %3953 = vmatprep.mubr.bf16.mxu0 0
        %3954 = vmatmul.mubr.bf16.gmra.mrb[0].mxu0 %v3736
        %v3955 = vpop.f32.mrb[0].mxu0
        %v3956 = vadd.f32 0.0, %v3955
        %v3957 = vpop.f32.mrb[0].mxu0
        %v3958 = vpop.f32.mrb[0].mxu0
        %v3959 = vadd.f32 0.0, %v3958
        %v3960 = vpop.f32.mrb[0].mxu0
        %3961 = vdwg.mxu0
        %v3962 = vadd.f32 %v3640, %v3836
        %v3963 = vadd.f32 %v3641, %v3839
        %v3964 = vadd.f32 %v3642, %v3844
        %v3965 = vadd.f32 %v3643, %v3847
        %v3966 = vadd.f32 %v3644, %v3852
        %v3967 = vadd.f32 %v3645, %v3855
        %v3968 = vadd.f32 %v3646, %v3860
        %v3969 = vadd.f32 %v3647, %v3863
        %v3970 = vadd.f32 %v3648, %v3868
        %v3971 = vadd.f32 %v3649, %v3871
        %v3972 = vadd.f32 %v3650, %v3876
        %v3973 = vadd.f32 %v3651, %v3879
        %v3974 = vadd.f32 %v3652, %v3884
        %v3975 = vadd.f32 %v3653, %v3887
        %v3976 = vadd.f32 %v3654, %v3892
        %v3977 = vadd.f32 %v3655, %v3895
        %v3978 = vadd.f32 %v3656, %v3900
        %v3979 = vadd.f32 %v3657, %v3903
        %v3980 = vadd.f32 %v3658, %v3908
        %v3981 = vadd.f32 %v3659, %v3911
        %v3982 = vadd.f32 %v3660, %v3916
        %v3983 = vadd.f32 %v3661, %v3919
        %v3984 = vadd.f32 %v3662, %v3924
        %v3985 = vadd.f32 %v3663, %v3927
        %v3986 = vadd.f32 %v3664, %v3932
        %v3987 = vadd.f32 %v3665, %v3935
        %v3988 = vadd.f32 %v3666, %v3940
        %v3989 = vadd.f32 %v3667, %v3943
        %v3990 = vadd.f32 %v3668, %v3948
        %v3991 = vadd.f32 %v3669, %v3951
        %v3992 = vadd.f32 %v3670, %v3956
        %v3993 = vadd.f32 %v3671, %v3959
        %3994 = vst [vmem:[#allocation3] sm:$0xff] %v3962
        %3995 = vst [vmem:[#allocation3 + $0x8] sm:$0xff] %v3963
        %3996 = vst [vmem:[#allocation3 + $0x10] sm:$0xff] %v3964
        %3997 = vst [vmem:[#allocation3 + $0x18] sm:$0xff] %v3965
        %3998 = vst [vmem:[#allocation3 + $0x20] sm:$0xff] %v3966
        %3999 = vst [vmem:[#allocation3 + $0x28] sm:$0xff] %v3967
        %4000 = vst [vmem:[#allocation3 + $0x30] sm:$0xff] %v3968
        %4001 = vst [vmem:[#allocation3 + $0x38] sm:$0xff] %v3969
        %4002 = vst [vmem:[#allocation3 + $0x40] sm:$0xff] %v3970
        %4003 = vst [vmem:[#allocation3 + $0x48] sm:$0xff] %v3971
        %4004 = vst [vmem:[#allocation3 + $0x50] sm:$0xff] %v3972
        %4005 = vst [vmem:[#allocation3 + $0x58] sm:$0xff] %v3973
        %4006 = vst [vmem:[#allocation3 + $0x60] sm:$0xff] %v3974
        %4007 = vst [vmem:[#allocation3 + $0x68] sm:$0xff] %v3975
        %4008 = vst [vmem:[#allocation3 + $0x70] sm:$0xff] %v3976
        %4009 = vst [vmem:[#allocation3 + $0x78] sm:$0xff] %v3977
        %4010 = vst [vmem:[#allocation3 + $0x80] sm:$0xff] %v3978
        %4011 = vst [vmem:[#allocation3 + $0x88] sm:$0xff] %v3979
        %4012 = vst [vmem:[#allocation3 + $0x90] sm:$0xff] %v3980
        %4013 = vst [vmem:[#allocation3 + $0x98] sm:$0xff] %v3981
        %4014 = vst [vmem:[#allocation3 + $0xa0] sm:$0xff] %v3982
        %4015 = vst [vmem:[#allocation3 + $0xa8] sm:$0xff] %v3983
        %4016 = vst [vmem:[#allocation3 + $0xb0] sm:$0xff] %v3984
        %4017 = vst [vmem:[#allocation3 + $0xb8] sm:$0xff] %v3985
        %4018 = vst [vmem:[#allocation3 + $0xc0] sm:$0xff] %v3986
        %4019 = vst [vmem:[#allocation3 + $0xc8] sm:$0xff] %v3987
        %4020 = vst [vmem:[#allocation3 + $0xd0] sm:$0xff] %v3988
        %4021 = vst [vmem:[#allocation3 + $0xd8] sm:$0xff] %v3989
        %4022 = vst [vmem:[#allocation3 + $0xe0] sm:$0xff] %v3990
        %4023 = vst [vmem:[#allocation3 + $0xe8] sm:$0xff] %v3991
        %4024 = vst [vmem:[#allocation3 + $0xf0] sm:$0xff] %v3992
        %4025 = vst [vmem:[#allocation3 + $0xf8] sm:$0xff] %v3993
        %v4026 = vld [vmem:[%s2757] sm:$0xe]
        %v4027 = vld [vmem:[%s2757 + $0x4] sm:$0xf]
        %v4028 = vld [vmem:[%s2757 + $0x8] sm:$0x1]
        %v4029 = vld [vmem:[%s2757 + $0xc] sm:$0xe]
        %v4030 = vld [vmem:[%s2757 + $0x10] sm:$0xf]
        %v4031 = vld [vmem:[%s2757 + $0x14] sm:$0x1]
        %v4032 = vld [vmem:[%s2757 + $0x18] sm:$0xe]
        %v4033 = vld [vmem:[%s2757 + $0x1c] sm:$0xf]
        %v4034 = vld [vmem:[%s2757 + $0x20] sm:$0x1]
        %v4035 = vld [vmem:[%s2757 + $0x24] sm:$0xe]
        %v4036 = vld [vmem:[%s2757 + $0x28] sm:$0xf]
        %v4037 = vld [vmem:[%s2757 + $0x2c] sm:$0x1]
        %v4038 = vld [vmem:[%s2757 + $0x30] sm:$0xe]
        %v4039 = vld [vmem:[%s2757 + $0x34] sm:$0xf]
        %v4040 = vld [vmem:[%s2757 + $0x38] sm:$0x1]
        %v4041 = vld [vmem:[%s2757 + $0x3c] sm:$0xe]
        %v4042 = vld [vmem:[%s2757 + $0x40] sm:$0xf]
        %v4043 = vld [vmem:[%s2757 + $0x44] sm:$0x1]
        %v4044 = vld [vmem:[%s2757 + $0x48] sm:$0xe]
        %v4045 = vld [vmem:[%s2757 + $0x4c] sm:$0xf]
        %v4046 = vld [vmem:[%s2757 + $0x50] sm:$0x1]
        %v4047 = vld [vmem:[%s2757 + $0x54] sm:$0xe]
        %v4048 = vld [vmem:[%s2757 + $0x58] sm:$0xf]
        %v4049 = vld [vmem:[%s2757 + $0x5c] sm:$0x1]
        %v4050 = vld [vmem:[%s2757 + $0x60] sm:$0xe]
        %v4051 = vld [vmem:[%s2757 + $0x64] sm:$0xf]
        %v4052 = vld [vmem:[%s2757 + $0x68] sm:$0x1]
        %v4053 = vld [vmem:[%s2757 + $0x6c] sm:$0xe]
        %v4054 = vld [vmem:[%s2757 + $0x70] sm:$0xf]
        %v4055 = vld [vmem:[%s2757 + $0x74] sm:$0x1]
        %v4056 = vld [vmem:[%s2757 + $0x78] sm:$0xe]
        %v4057 = vld [vmem:[%s2757 + $0x7c] sm:$0xf]
        %v4058 = vld [vmem:[%s2757 + $0x80] sm:$0x1]
        %v4059 = vld [vmem:[%s2757 + $0x84] sm:$0xe]
        %v4060 = vld [vmem:[%s2757 + $0x88] sm:$0xf]
        %v4061 = vld [vmem:[%s2757 + $0x8c] sm:$0x1]
        %v4062 = vld [vmem:[%s2757 + $0x90] sm:$0xe]
        %v4063 = vld [vmem:[%s2757 + $0x94] sm:$0xf]
        %v4064 = vld [vmem:[%s2757 + $0x98] sm:$0x1]
        %v4065 = vld [vmem:[%s2757 + $0x9c] sm:$0xe]
        %v4066 = vld [vmem:[%s2757 + $0xa0] sm:$0xf]
        %v4067 = vld [vmem:[%s2757 + $0xa4] sm:$0x1]
        %v4068 = vld [vmem:[%s2757 + $0xa8] sm:$0xe]
        %v4069 = vld [vmem:[%s2757 + $0xac] sm:$0xf]
        %v4070 = vld [vmem:[%s2757 + $0xb0] sm:$0x1]
        %v4071 = vld [vmem:[%s2757 + $0xb4] sm:$0xe]
        %v4072 = vld [vmem:[%s2757 + $0xb8] sm:$0xf]
        %v4073 = vld [vmem:[%s2757 + $0xbc] sm:$0x1]
        %v4122 = vrot.slane %v4026, 5
        %v4123 = vrot.slane %v4122, 4
        %v4124 = vrot.slane %v4027, 5
        %v4125 = vsel %vm2258, %v4123, %v4124
        %v4126 = vrot.slane %v4124, 4
        %v4127 = vrot.slane %v4028, 5
        %v4128 = vsel %vm2258, %v4126, %v4127
        %v4129 = vrot.slane %v4029, 5
        %v4130 = vrot.slane %v4129, 4
        %v4131 = vrot.slane %v4030, 5
        %v4132 = vsel %vm2258, %v4130, %v4131
        %v4133 = vrot.slane %v4131, 4
        %v4134 = vrot.slane %v4031, 5
        %v4135 = vsel %vm2258, %v4133, %v4134
        %v4136 = vrot.slane %v4032, 5
        %v4137 = vrot.slane %v4136, 4
        %v4138 = vrot.slane %v4033, 5
        %v4139 = vsel %vm2258, %v4137, %v4138
        %v4140 = vrot.slane %v4138, 4
        %v4141 = vrot.slane %v4034, 5
        %v4142 = vsel %vm2258, %v4140, %v4141
        %v4143 = vrot.slane %v4035, 5
        %v4144 = vrot.slane %v4143, 4
        %v4145 = vrot.slane %v4036, 5
        %v4146 = vsel %vm2258, %v4144, %v4145
        %v4147 = vrot.slane %v4145, 4
        %v4148 = vrot.slane %v4037, 5
        %v4149 = vsel %vm2258, %v4147, %v4148
        %v4150 = vrot.slane %v4038, 5
        %v4151 = vrot.slane %v4150, 4
        %v4152 = vrot.slane %v4039, 5
        %v4153 = vsel %vm2258, %v4151, %v4152
        %v4154 = vrot.slane %v4152, 4
        %v4155 = vrot.slane %v4040, 5
        %v4156 = vsel %vm2258, %v4154, %v4155
        %v4157 = vrot.slane %v4041, 5
        %v4158 = vrot.slane %v4157, 4
        %v4159 = vrot.slane %v4042, 5
        %v4160 = vsel %vm2258, %v4158, %v4159
        %v4161 = vrot.slane %v4159, 4
        %v4162 = vrot.slane %v4043, 5
        %v4163 = vsel %vm2258, %v4161, %v4162
        %v4164 = vrot.slane %v4044, 5
        %v4165 = vrot.slane %v4164, 4
        %v4166 = vrot.slane %v4045, 5
        %v4167 = vsel %vm2258, %v4165, %v4166
        %v4168 = vrot.slane %v4166, 4
        %v4169 = vrot.slane %v4046, 5
        %v4170 = vsel %vm2258, %v4168, %v4169
        %v4171 = vrot.slane %v4047, 5
        %v4172 = vrot.slane %v4171, 4
        %v4173 = vrot.slane %v4048, 5
        %v4174 = vsel %vm2258, %v4172, %v4173
        %v4175 = vrot.slane %v4173, 4
        %v4176 = vrot.slane %v4049, 5
        %v4177 = vsel %vm2258, %v4175, %v4176
        %v4178 = vrot.slane %v4050, 5
        %v4179 = vrot.slane %v4178, 4
        %v4180 = vrot.slane %v4051, 5
        %v4181 = vsel %vm2258, %v4179, %v4180
        %v4182 = vrot.slane %v4180, 4
        %v4183 = vrot.slane %v4052, 5
        %v4184 = vsel %vm2258, %v4182, %v4183
        %v4185 = vrot.slane %v4053, 5
        %v4186 = vrot.slane %v4185, 4
        %v4187 = vrot.slane %v4054, 5
        %v4188 = vsel %vm2258, %v4186, %v4187
        %v4189 = vrot.slane %v4187, 4
        %v4190 = vrot.slane %v4055, 5
        %v4191 = vsel %vm2258, %v4189, %v4190
        %v4192 = vrot.slane %v4056, 5
        %v4193 = vrot.slane %v4192, 4
        %v4194 = vrot.slane %v4057, 5
        %v4195 = vsel %vm2258, %v4193, %v4194
        %v4196 = vrot.slane %v4194, 4
        %v4197 = vrot.slane %v4058, 5
        %v4198 = vsel %vm2258, %v4196, %v4197
        %v4199 = vrot.slane %v4059, 5
        %v4200 = vrot.slane %v4199, 4
        %v4201 = vrot.slane %v4060, 5
        %v4202 = vsel %vm2258, %v4200, %v4201
        %v4203 = vrot.slane %v4201, 4
        %v4204 = vrot.slane %v4061, 5
        %v4205 = vsel %vm2258, %v4203, %v4204
        %v4206 = vrot.slane %v4062, 5
        %v4207 = vrot.slane %v4206, 4
        %v4208 = vrot.slane %v4063, 5
        %v4209 = vsel %vm2258, %v4207, %v4208
        %v4210 = vrot.slane %v4208, 4
        %v4211 = vrot.slane %v4064, 5
        %v4212 = vsel %vm2258, %v4210, %v4211
        %v4213 = vrot.slane %v4065, 5
        %v4214 = vrot.slane %v4213, 4
        %v4215 = vrot.slane %v4066, 5
        %v4216 = vsel %vm2258, %v4214, %v4215
        %v4217 = vrot.slane %v4215, 4
        %v4218 = vrot.slane %v4067, 5
        %v4219 = vsel %vm2258, %v4217, %v4218
        %v4220 = vrot.slane %v4068, 5
        %v4221 = vrot.slane %v4220, 4
        %v4222 = vrot.slane %v4069, 5
        %v4223 = vsel %vm2258, %v4221, %v4222
        %v4224 = vrot.slane %v4222, 4
        %v4225 = vrot.slane %v4070, 5
        %v4226 = vsel %vm2258, %v4224, %v4225
        %v4227 = vrot.slane %v4071, 5
        %v4228 = vrot.slane %v4227, 4
        %v4229 = vrot.slane %v4072, 5
        %v4230 = vsel %vm2258, %v4228, %v4229
        %v4231 = vrot.slane %v4229, 4
        %v4232 = vrot.slane %v4073, 5
        %v4233 = vsel %vm2258, %v4231, %v4232
        %v4234 = vld [vmem:[#allocation3] sm:$0xff]
        %v4235 = vld [vmem:[#allocation3 + $0x8] sm:$0xff]
        %v4236 = vld [vmem:[#allocation3 + $0x10] sm:$0xff]
        %v4237 = vld [vmem:[#allocation3 + $0x18] sm:$0xff]
        %v4238 = vld [vmem:[#allocation3 + $0x20] sm:$0xff]
        %v4239 = vld [vmem:[#allocation3 + $0x28] sm:$0xff]
        %v4240 = vld [vmem:[#allocation3 + $0x30] sm:$0xff]
        %v4241 = vld [vmem:[#allocation3 + $0x38] sm:$0xff]
        %v4242 = vld [vmem:[#allocation3 + $0x40] sm:$0xff]
        %v4243 = vld [vmem:[#allocation3 + $0x48] sm:$0xff]
        %v4244 = vld [vmem:[#allocation3 + $0x50] sm:$0xff]
        %v4245 = vld [vmem:[#allocation3 + $0x58] sm:$0xff]
        %v4246 = vld [vmem:[#allocation3 + $0x60] sm:$0xff]
        %v4247 = vld [vmem:[#allocation3 + $0x68] sm:$0xff]
        %v4248 = vld [vmem:[#allocation3 + $0x70] sm:$0xff]
        %v4249 = vld [vmem:[#allocation3 + $0x78] sm:$0xff]
        %v4250 = vld [vmem:[#allocation3 + $0x80] sm:$0xff]
        %v4251 = vld [vmem:[#allocation3 + $0x88] sm:$0xff]
        %v4252 = vld [vmem:[#allocation3 + $0x90] sm:$0xff]
        %v4253 = vld [vmem:[#allocation3 + $0x98] sm:$0xff]
        %v4254 = vld [vmem:[#allocation3 + $0xa0] sm:$0xff]
        %v4255 = vld [vmem:[#allocation3 + $0xa8] sm:$0xff]
        %v4256 = vld [vmem:[#allocation3 + $0xb0] sm:$0xff]
        %v4257 = vld [vmem:[#allocation3 + $0xb8] sm:$0xff]
        %v4258 = vld [vmem:[#allocation3 + $0xc0] sm:$0xff]
        %v4259 = vld [vmem:[#allocation3 + $0xc8] sm:$0xff]
        %v4260 = vld [vmem:[#allocation3 + $0xd0] sm:$0xff]
        %v4261 = vld [vmem:[#allocation3 + $0xd8] sm:$0xff]
        %v4262 = vld [vmem:[#allocation3 + $0xe0] sm:$0xff]
        %v4263 = vld [vmem:[#allocation3 + $0xe8] sm:$0xff]
        %v4264 = vld [vmem:[#allocation3 + $0xf0] sm:$0xff]
        %v4265 = vld [vmem:[#allocation3 + $0xf8] sm:$0xff]
        %s4266 = scalar_lea.vmem %s207, 320 [#allocation4]
        %v4267 = vld [vmem:[%s4266] sm:$0xf]
        %v4268 = vld [vmem:[%s4266 + $0x4] sm:$0xf]
        %v4269 = vld [vmem:[%s4266 + $0x8] sm:$0xf]
        %v4270 = vld [vmem:[%s4266 + $0xc] sm:$0xf]
        %v4271 = vld [vmem:[%s4266 + $0x10] sm:$0xf]
        %v4272 = vld [vmem:[%s4266 + $0x14] sm:$0xf]
        %v4273 = vld [vmem:[%s4266 + $0x18] sm:$0xf]
        %v4274 = vld [vmem:[%s4266 + $0x1c] sm:$0xf]
        %v4275 = vld [vmem:[%s4266 + $0x20] sm:$0xf]
        %v4276 = vld [vmem:[%s4266 + $0x24] sm:$0xf]
        %v4277 = vld [vmem:[%s4266 + $0x28] sm:$0xf]
        %v4278 = vld [vmem:[%s4266 + $0x2c] sm:$0xf]
        %v4279 = vld [vmem:[%s4266 + $0x30] sm:$0xf]
        %v4280 = vld [vmem:[%s4266 + $0x34] sm:$0xf]
        %v4281 = vld [vmem:[%s4266 + $0x38] sm:$0xf]
        %v4282 = vld [vmem:[%s4266 + $0x3c] sm:$0xf]
        %v4283 = vunpack.c.l.b16 %v4125
        %v4284 = vunpack.c.l.b16 %v4128
        %v4285 = vunpack.c.l.b16 %v4132
        %v4286 = vunpack.c.l.b16 %v4135
        %v4287 = vunpack.c.l.b16 %v4139
        %v4288 = vunpack.c.l.b16 %v4142
        %v4289 = vunpack.c.l.b16 %v4146
        %v4290 = vunpack.c.l.b16 %v4149
        %v4291 = vunpack.c.l.b16 %v4153
        %v4292 = vunpack.c.l.b16 %v4156
        %v4293 = vunpack.c.l.b16 %v4160
        %v4294 = vunpack.c.l.b16 %v4163
        %v4295 = vunpack.c.l.b16 %v4167
        %v4296 = vunpack.c.l.b16 %v4170
        %v4297 = vunpack.c.l.b16 %v4174
        %v4298 = vunpack.c.l.b16 %v4177
        %v4299 = vunpack.c.l.b16 %v4181
        %v4300 = vunpack.c.l.b16 %v4184
        %v4301 = vunpack.c.l.b16 %v4188
        %v4302 = vunpack.c.l.b16 %v4191
        %v4303 = vunpack.c.l.b16 %v4195
        %v4304 = vunpack.c.l.b16 %v4198
        %v4305 = vunpack.c.l.b16 %v4202
        %v4306 = vunpack.c.l.b16 %v4205
        %v4307 = vunpack.c.l.b16 %v4209
        %v4308 = vunpack.c.l.b16 %v4212
        %v4309 = vunpack.c.l.b16 %v4216
        %v4310 = vunpack.c.l.b16 %v4219
        %v4311 = vunpack.c.l.b16 %v4223
        %v4312 = vunpack.c.l.b16 %v4226
        %v4313 = vunpack.c.l.b16 %v4230
        %v4314 = vunpack.c.l.b16 %v4233
        %v4315 = vpack.c.b16 %v4284, %v4283
        %v4316 = vpack.c.b16 %v4286, %v4285
        %v4317 = vpack.c.b16 %v4288, %v4287
        %v4318 = vpack.c.b16 %v4290, %v4289
        %v4319 = vpack.c.b16 %v4292, %v4291
        %v4320 = vpack.c.b16 %v4294, %v4293
        %v4321 = vpack.c.b16 %v4296, %v4295
        %v4322 = vpack.c.b16 %v4298, %v4297
        %v4323 = vpack.c.b16 %v4300, %v4299
        %v4324 = vpack.c.b16 %v4302, %v4301
        %v4325 = vpack.c.b16 %v4304, %v4303
        %v4326 = vpack.c.b16 %v4306, %v4305
        %v4327 = vpack.c.b16 %v4308, %v4307
        %v4328 = vpack.c.b16 %v4310, %v4309
        %v4329 = vpack.c.b16 %v4312, %v4311
        %v4330 = vpack.c.b16 %v4314, %v4313
        %v4363 = vunpack.c.l.b16 %v4267
        %v4364 = vunpack.c.l.b16 %v4268
        %v4365 = vunpack.c.l.b16 %v4269
        %v4366 = vunpack.c.l.b16 %v4270
        %v4367 = vunpack.c.l.b16 %v4271
        %v4368 = vunpack.c.l.b16 %v4272
        %v4369 = vunpack.c.l.b16 %v4273
        %v4370 = vunpack.c.l.b16 %v4274
        %v4371 = vunpack.c.l.b16 %v4275
        %v4372 = vunpack.c.l.b16 %v4276
        %v4373 = vunpack.c.l.b16 %v4277
        %v4374 = vunpack.c.l.b16 %v4278
        %v4375 = vunpack.c.l.b16 %v4279
        %v4376 = vunpack.c.l.b16 %v4280
        %v4377 = vunpack.c.l.b16 %v4281
        %v4378 = vunpack.c.l.b16 %v4282
        %v4379 = vpack.c.b16 %v4364, %v4363
        %v4380 = vpack.c.b16 %v4366, %v4365
        %v4381 = vpack.c.b16 %v4368, %v4367
        %v4382 = vpack.c.b16 %v4370, %v4369
        %v4383 = vpack.c.b16 %v4372, %v4371
        %v4384 = vpack.c.b16 %v4374, %v4373
        %v4385 = vpack.c.b16 %v4376, %v4375
        %v4386 = vpack.c.b16 %v4378, %v4377
        %4395 = vmatprep.subr.bf16.mxu0 0
        %4396 = vmatpush1.bf16.msra.mxu0 %v4379
        %4397 = vmatprep.subr.bf16.mxu0 0
        %4398 = vmatpush1.bf16.msra.mxu0 %v4380
        %4399 = vmatprep.subr.bf16.mxu0 0
        %4400 = vmatpush1.bf16.msra.mxu0 %v4381
        %4401 = vmatprep.subr.bf16.mxu0 0
        %4402 = vmatpush1.bf16.msra.mxu0 %v4382
        %4403 = vmatprep.subr.bf16.mxu0 0
        %4404 = vmatpush1.bf16.msra.mxu0 %v4383
        %4405 = vmatprep.subr.bf16.mxu0 0
        %4406 = vmatpush1.bf16.msra.mxu0 %v4384
        %4407 = vmatprep.subr.bf16.mxu0 0
        %4408 = vmatpush1.bf16.msra.mxu0 %v4385
        %4409 = vmatprep.subr.bf16.mxu0 0
        %4410 = vmatpush1.bf16.msra.mxu0 %v4386
        %4411 = vmatprep.subr.bf16.mxu0 0
        %4412 = vmatpush1.bf16.msra.mxu0 0
        %4413 = vmatprep.subr.bf16.mxu0 0
        %4414 = vmatpush1.bf16.msra.mxu0 0
        %4415 = vmatprep.subr.bf16.mxu0 0
        %4416 = vmatpush1.bf16.msra.mxu0 0
        %4417 = vmatprep.subr.bf16.mxu0 0
        %4418 = vmatpush1.bf16.msra.mxu0 0
        %4419 = vmatprep.subr.bf16.mxu0 0
        %4420 = vmatpush1.bf16.msra.mxu0 0
        %4421 = vmatprep.subr.bf16.mxu0 0
        %4422 = vmatpush1.bf16.msra.mxu0 0
        %4423 = vmatprep.subr.bf16.mxu0 0
        %4424 = vmatpush1.bf16.msra.mxu0 0
        %4425 = vmatprep.subr.bf16.mxu0 0
        %4426 = vmatpush1.bf16.msra.mxu0 0
        %4427 = vmatprep.mubr.bf16.mxu0 0
        %4428 = vmatmul.mubr.bf16.gmra.mrb[0].mxu0 %v4315
        %v4429 = vpop.f32.mrb[0].mxu0
        %v4430 = vadd.f32 0.0, %v4429
        %v4431 = vpop.f32.mrb[0].mxu0
        %v4432 = vpop.f32.mrb[0].mxu0
        %v4433 = vadd.f32 0.0, %v4432
        %v4434 = vpop.f32.mrb[0].mxu0
        %4435 = vmatprep.mubr.bf16.mxu0 0
        %4436 = vmatmul.mubr.bf16.gmra.mrb[0].mxu0 %v4316
        %v4437 = vpop.f32.mrb[0].mxu0
        %v4438 = vadd.f32 0.0, %v4437
        %v4439 = vpop.f32.mrb[0].mxu0
        %v4440 = vpop.f32.mrb[0].mxu0
        %v4441 = vadd.f32 0.0, %v4440
        %v4442 = vpop.f32.mrb[0].mxu0
        %4443 = vmatprep.mubr.bf16.mxu0 0
        %4444 = vmatmul.mubr.bf16.gmra.mrb[0].mxu0 %v4317
        %v4445 = vpop.f32.mrb[0].mxu0
        %v4446 = vadd.f32 0.0, %v4445
        %v4447 = vpop.f32.mrb[0].mxu0
        %v4448 = vpop.f32.mrb[0].mxu0
        %v4449 = vadd.f32 0.0, %v4448
        %v4450 = vpop.f32.mrb[0].mxu0
        %4451 = vmatprep.mubr.bf16.mxu0 0
        %4452 = vmatmul.mubr.bf16.gmra.mrb[0].mxu0 %v4318
        %v4453 = vpop.f32.mrb[0].mxu0
        %v4454 = vadd.f32 0.0, %v4453
        %v4455 = vpop.f32.mrb[0].mxu0
        %v4456 = vpop.f32.mrb[0].mxu0
        %v4457 = vadd.f32 0.0, %v4456
        %v4458 = vpop.f32.mrb[0].mxu0
        %4459 = vmatprep.mubr.bf16.mxu0 0
        %4460 = vmatmul.mubr.bf16.gmra.mrb[0].mxu0 %v4319
        %v4461 = vpop.f32.mrb[0].mxu0
        %v4462 = vadd.f32 0.0, %v4461
        %v4463 = vpop.f32.mrb[0].mxu0
        %v4464 = vpop.f32.mrb[0].mxu0
        %v4465 = vadd.f32 0.0, %v4464
        %v4466 = vpop.f32.mrb[0].mxu0
        %4467 = vmatprep.mubr.bf16.mxu0 0
        %4468 = vmatmul.mubr.bf16.gmra.mrb[0].mxu0 %v4320
        %v4469 = vpop.f32.mrb[0].mxu0
        %v4470 = vadd.f32 0.0, %v4469
        %v4471 = vpop.f32.mrb[0].mxu0
        %v4472 = vpop.f32.mrb[0].mxu0
        %v4473 = vadd.f32 0.0, %v4472
        %v4474 = vpop.f32.mrb[0].mxu0
        %4475 = vmatprep.mubr.bf16.mxu0 0
        %4476 = vmatmul.mubr.bf16.gmra.mrb[0].mxu0 %v4321
        %v4477 = vpop.f32.mrb[0].mxu0
        %v4478 = vadd.f32 0.0, %v4477
        %v4479 = vpop.f32.mrb[0].mxu0
        %v4480 = vpop.f32.mrb[0].mxu0
        %v4481 = vadd.f32 0.0, %v4480
        %v4482 = vpop.f32.mrb[0].mxu0
        %4483 = vmatprep.mubr.bf16.mxu0 0
        %4484 = vmatmul.mubr.bf16.gmra.mrb[0].mxu0 %v4322
        %v4485 = vpop.f32.mrb[0].mxu0
        %v4486 = vadd.f32 0.0, %v4485
        %v4487 = vpop.f32.mrb[0].mxu0
        %v4488 = vpop.f32.mrb[0].mxu0
        %v4489 = vadd.f32 0.0, %v4488
        %v4490 = vpop.f32.mrb[0].mxu0
        %4491 = vmatprep.mubr.bf16.mxu0 0
        %4492 = vmatmul.mubr.bf16.gmra.mrb[0].mxu0 %v4323
        %v4493 = vpop.f32.mrb[0].mxu0
        %v4494 = vadd.f32 0.0, %v4493
        %v4495 = vpop.f32.mrb[0].mxu0
        %v4496 = vpop.f32.mrb[0].mxu0
        %v4497 = vadd.f32 0.0, %v4496
        %v4498 = vpop.f32.mrb[0].mxu0
        %4499 = vmatprep.mubr.bf16.mxu0 0
        %4500 = vmatmul.mubr.bf16.gmra.mrb[0].mxu0 %v4324
        %v4501 = vpop.f32.mrb[0].mxu0
        %v4502 = vadd.f32 0.0, %v4501
        %v4503 = vpop.f32.mrb[0].mxu0
        %v4504 = vpop.f32.mrb[0].mxu0
        %v4505 = vadd.f32 0.0, %v4504
        %v4506 = vpop.f32.mrb[0].mxu0
        %4507 = vmatprep.mubr.bf16.mxu0 0
        %4508 = vmatmul.mubr.bf16.gmra.mrb[0].mxu0 %v4325
        %v4509 = vpop.f32.mrb[0].mxu0
        %v4510 = vadd.f32 0.0, %v4509
        %v4511 = vpop.f32.mrb[0].mxu0
        %v4512 = vpop.f32.mrb[0].mxu0
        %v4513 = vadd.f32 0.0, %v4512
        %v4514 = vpop.f32.mrb[0].mxu0
        %4515 = vmatprep.mubr.bf16.mxu0 0
        %4516 = vmatmul.mubr.bf16.gmra.mrb[0].mxu0 %v4326
        %v4517 = vpop.f32.mrb[0].mxu0
        %v4518 = vadd.f32 0.0, %v4517
        %v4519 = vpop.f32.mrb[0].mxu0
        %v4520 = vpop.f32.mrb[0].mxu0
        %v4521 = vadd.f32 0.0, %v4520
        %v4522 = vpop.f32.mrb[0].mxu0
        %4523 = vmatprep.mubr.bf16.mxu0 0
        %4524 = vmatmul.mubr.bf16.gmra.mrb[0].mxu0 %v4327
        %v4525 = vpop.f32.mrb[0].mxu0
        %v4526 = vadd.f32 0.0, %v4525
        %v4527 = vpop.f32.mrb[0].mxu0
        %v4528 = vpop.f32.mrb[0].mxu0
        %v4529 = vadd.f32 0.0, %v4528
        %v4530 = vpop.f32.mrb[0].mxu0
        %4531 = vmatprep.mubr.bf16.mxu0 0
        %4532 = vmatmul.mubr.bf16.gmra.mrb[0].mxu0 %v4328
        %v4533 = vpop.f32.mrb[0].mxu0
        %v4534 = vadd.f32 0.0, %v4533
        %v4535 = vpop.f32.mrb[0].mxu0
        %v4536 = vpop.f32.mrb[0].mxu0
        %v4537 = vadd.f32 0.0, %v4536
        %v4538 = vpop.f32.mrb[0].mxu0
        %4539 = vmatprep.mubr.bf16.mxu0 0
        %4540 = vmatmul.mubr.bf16.gmra.mrb[0].mxu0 %v4329
        %v4541 = vpop.f32.mrb[0].mxu0
        %v4542 = vadd.f32 0.0, %v4541
        %v4543 = vpop.f32.mrb[0].mxu0
        %v4544 = vpop.f32.mrb[0].mxu0
        %v4545 = vadd.f32 0.0, %v4544
        %v4546 = vpop.f32.mrb[0].mxu0
        %4547 = vmatprep.mubr.bf16.mxu0 0
        %4548 = vmatmul.mubr.bf16.gmra.mrb[0].mxu0 %v4330
        %v4549 = vpop.f32.mrb[0].mxu0
        %v4550 = vadd.f32 0.0, %v4549
        %v4551 = vpop.f32.mrb[0].mxu0
        %v4552 = vpop.f32.mrb[0].mxu0
        %v4553 = vadd.f32 0.0, %v4552
        %v4554 = vpop.f32.mrb[0].mxu0
        %4555 = vdwg.mxu0
        %v4556 = vadd.f32 %v4234, %v4430
        %v4557 = vadd.f32 %v4235, %v4433
        %v4558 = vadd.f32 %v4236, %v4438
        %v4559 = vadd.f32 %v4237, %v4441
        %v4560 = vadd.f32 %v4238, %v4446
        %v4561 = vadd.f32 %v4239, %v4449
        %v4562 = vadd.f32 %v4240, %v4454
        %v4563 = vadd.f32 %v4241, %v4457
        %v4564 = vadd.f32 %v4242, %v4462
        %v4565 = vadd.f32 %v4243, %v4465
        %v4566 = vadd.f32 %v4244, %v4470
        %v4567 = vadd.f32 %v4245, %v4473
        %v4568 = vadd.f32 %v4246, %v4478
        %v4569 = vadd.f32 %v4247, %v4481
        %v4570 = vadd.f32 %v4248, %v4486
        %v4571 = vadd.f32 %v4249, %v4489
        %v4572 = vadd.f32 %v4250, %v4494
        %v4573 = vadd.f32 %v4251, %v4497
        %v4574 = vadd.f32 %v4252, %v4502
        %v4575 = vadd.f32 %v4253, %v4505
        %v4576 = vadd.f32 %v4254, %v4510
        %v4577 = vadd.f32 %v4255, %v4513
        %v4578 = vadd.f32 %v4256, %v4518
        %v4579 = vadd.f32 %v4257, %v4521
        %v4580 = vadd.f32 %v4258, %v4526
        %v4581 = vadd.f32 %v4259, %v4529
        %v4582 = vadd.f32 %v4260, %v4534
        %v4583 = vadd.f32 %v4261, %v4537
        %v4584 = vadd.f32 %v4262, %v4542
        %v4585 = vadd.f32 %v4263, %v4545
        %v4586 = vadd.f32 %v4264, %v4550
        %v4587 = vadd.f32 %v4265, %v4553
        %4588 = vst [vmem:[#allocation3] sm:$0xff] %v4556
        %4589 = vst [vmem:[#allocation3 + $0x8] sm:$0xff] %v4557
        %4590 = vst [vmem:[#allocation3 + $0x10] sm:$0xff] %v4558
        %4591 = vst [vmem:[#allocation3 + $0x18] sm:$0xff] %v4559
        %4592 = vst [vmem:[#allocation3 + $0x20] sm:$0xff] %v4560
        %4593 = vst [vmem:[#allocation3 + $0x28] sm:$0xff] %v4561
        %4594 = vst [vmem:[#allocation3 + $0x30] sm:$0xff] %v4562
        %4595 = vst [vmem:[#allocation3 + $0x38] sm:$0xff] %v4563
        %4596 = vst [vmem:[#allocation3 + $0x40] sm:$0xff] %v4564
        %4597 = vst [vmem:[#allocation3 + $0x48] sm:$0xff] %v4565
        %4598 = vst [vmem:[#allocation3 + $0x50] sm:$0xff] %v4566
        %4599 = vst [vmem:[#allocation3 + $0x58] sm:$0xff] %v4567
        %4600 = vst [vmem:[#allocation3 + $0x60] sm:$0xff] %v4568
        %4601 = vst [vmem:[#allocation3 + $0x68] sm:$0xff] %v4569
        %4602 = vst [vmem:[#allocation3 + $0x70] sm:$0xff] %v4570
        %4603 = vst [vmem:[#allocation3 + $0x78] sm:$0xff] %v4571
        %4604 = vst [vmem:[#allocation3 + $0x80] sm:$0xff] %v4572
        %4605 = vst [vmem:[#allocation3 + $0x88] sm:$0xff] %v4573
        %4606 = vst [vmem:[#allocation3 + $0x90] sm:$0xff] %v4574
        %4607 = vst [vmem:[#allocation3 + $0x98] sm:$0xff] %v4575
        %4608 = vst [vmem:[#allocation3 + $0xa0] sm:$0xff] %v4576
        %4609 = vst [vmem:[#allocation3 + $0xa8] sm:$0xff] %v4577
        %4610 = vst [vmem:[#allocation3 + $0xb0] sm:$0xff] %v4578
        %4611 = vst [vmem:[#allocation3 + $0xb8] sm:$0xff] %v4579
        %4612 = vst [vmem:[#allocation3 + $0xc0] sm:$0xff] %v4580
        %4613 = vst [vmem:[#allocation3 + $0xc8] sm:$0xff] %v4581
        %4614 = vst [vmem:[#allocation3 + $0xd0] sm:$0xff] %v4582
        %4615 = vst [vmem:[#allocation3 + $0xd8] sm:$0xff] %v4583
        %4616 = vst [vmem:[#allocation3 + $0xe0] sm:$0xff] %v4584
        %4617 = vst [vmem:[#allocation3 + $0xe8] sm:$0xff] %v4585
        %4618 = vst [vmem:[#allocation3 + $0xf0] sm:$0xff] %v4586
        %4619 = vst [vmem:[#allocation3 + $0xf8] sm:$0xff] %v4587
        %s4620 = scalar_lea.vmem [#allocation2], 24
        %v4621 = vld [vmem:[%s4620] sm:$0xf]
        %v4622 = vld [vmem:[%s4620 + $0x4] sm:$0xf]
        %v4623 = vld [vmem:[%s4620 + $0xc] sm:$0xf]
        %v4624 = vld [vmem:[%s4620 + $0x10] sm:$0xf]
        %v4625 = vld [vmem:[%s4620 + $0x18] sm:$0xf]
        %v4626 = vld [vmem:[%s4620 + $0x1c] sm:$0xf]
        %v4627 = vld [vmem:[%s4620 + $0x24] sm:$0xf]
        %v4628 = vld [vmem:[%s4620 + $0x28] sm:$0xf]
        %v4629 = vld [vmem:[%s4620 + $0x30] sm:$0xf]
        %v4630 = vld [vmem:[%s4620 + $0x34] sm:$0xf]
        %v4631 = vld [vmem:[%s4620 + $0x3c] sm:$0xf]
        %v4632 = vld [vmem:[%s4620 + $0x40] sm:$0xf]
        %v4633 = vld [vmem:[%s4620 + $0x48] sm:$0xf]
        %v4634 = vld [vmem:[%s4620 + $0x4c] sm:$0xf]
        %v4635 = vld [vmem:[%s4620 + $0x54] sm:$0xf]
        %v4636 = vld [vmem:[%s4620 + $0x58] sm:$0xf]
        %v4637 = vld [vmem:[%s4620 + $0x60] sm:$0xf]
        %v4638 = vld [vmem:[%s4620 + $0x64] sm:$0xf]
        %v4639 = vld [vmem:[%s4620 + $0x6c] sm:$0xf]
        %v4640 = vld [vmem:[%s4620 + $0x70] sm:$0xf]
        %v4641 = vld [vmem:[%s4620 + $0x78] sm:$0xf]
        %v4642 = vld [vmem:[%s4620 + $0x7c] sm:$0xf]
        %v4643 = vld [vmem:[%s4620 + $0x84] sm:$0xf]
        %v4644 = vld [vmem:[%s4620 + $0x88] sm:$0xf]
        %v4645 = vld [vmem:[%s4620 + $0x90] sm:$0xf]
        %v4646 = vld [vmem:[%s4620 + $0x94] sm:$0xf]
        %v4647 = vld [vmem:[%s4620 + $0x9c] sm:$0xf]
        %v4648 = vld [vmem:[%s4620 + $0xa0] sm:$0xf]
        %v4649 = vld [vmem:[%s4620 + $0xa8] sm:$0xf]
        %v4650 = vld [vmem:[%s4620 + $0xac] sm:$0xf]
        %v4651 = vld [vmem:[%s4620 + $0xb4] sm:$0xf]
        %v4652 = vld [vmem:[%s4620 + $0xb8] sm:$0xf]
        %v4653 = vld [vmem:[#allocation3] sm:$0xff]
        %v4654 = vld [vmem:[#allocation3 + $0x8] sm:$0xff]
        %v4655 = vld [vmem:[#allocation3 + $0x10] sm:$0xff]
        %v4656 = vld [vmem:[#allocation3 + $0x18] sm:$0xff]
        %v4657 = vld [vmem:[#allocation3 + $0x20] sm:$0xff]
        %v4658 = vld [vmem:[#allocation3 + $0x28] sm:$0xff]
        %v4659 = vld [vmem:[#allocation3 + $0x30] sm:$0xff]
        %v4660 = vld [vmem:[#allocation3 + $0x38] sm:$0xff]
        %v4661 = vld [vmem:[#allocation3 + $0x40] sm:$0xff]
        %v4662 = vld [vmem:[#allocation3 + $0x48] sm:$0xff]
        %v4663 = vld [vmem:[#allocation3 + $0x50] sm:$0xff]
        %v4664 = vld [vmem:[#allocation3 + $0x58] sm:$0xff]
        %v4665 = vld [vmem:[#allocation3 + $0x60] sm:$0xff]
        %v4666 = vld [vmem:[#allocation3 + $0x68] sm:$0xff]
        %v4667 = vld [vmem:[#allocation3 + $0x70] sm:$0xff]
        %v4668 = vld [vmem:[#allocation3 + $0x78] sm:$0xff]
        %v4669 = vld [vmem:[#allocation3 + $0x80] sm:$0xff]
        %v4670 = vld [vmem:[#allocation3 + $0x88] sm:$0xff]
        %v4671 = vld [vmem:[#allocation3 + $0x90] sm:$0xff]
        %v4672 = vld [vmem:[#allocation3 + $0x98] sm:$0xff]
        %v4673 = vld [vmem:[#allocation3 + $0xa0] sm:$0xff]
        %v4674 = vld [vmem:[#allocation3 + $0xa8] sm:$0xff]
        %v4675 = vld [vmem:[#allocation3 + $0xb0] sm:$0xff]
        %v4676 = vld [vmem:[#allocation3 + $0xb8] sm:$0xff]
        %v4677 = vld [vmem:[#allocation3 + $0xc0] sm:$0xff]
        %v4678 = vld [vmem:[#allocation3 + $0xc8] sm:$0xff]
        %v4679 = vld [vmem:[#allocation3 + $0xd0] sm:$0xff]
        %v4680 = vld [vmem:[#allocation3 + $0xd8] sm:$0xff]
        %v4681 = vld [vmem:[#allocation3 + $0xe0] sm:$0xff]
        %v4682 = vld [vmem:[#allocation3 + $0xe8] sm:$0xff]
        %v4683 = vld [vmem:[#allocation3 + $0xf0] sm:$0xff]
        %v4684 = vld [vmem:[#allocation3 + $0xf8] sm:$0xff]
        %s4685 = scalar_lea.vmem %s207, 384 [#allocation4]
        %v4686 = vld [vmem:[%s4685] sm:$0xf]
        %v4687 = vld [vmem:[%s4685 + $0x4] sm:$0xf]
        %v4688 = vld [vmem:[%s4685 + $0x8] sm:$0xf]
        %v4689 = vld [vmem:[%s4685 + $0xc] sm:$0xf]
        %v4690 = vld [vmem:[%s4685 + $0x10] sm:$0xf]
        %v4691 = vld [vmem:[%s4685 + $0x14] sm:$0xf]
        %v4692 = vld [vmem:[%s4685 + $0x18] sm:$0xf]
        %v4693 = vld [vmem:[%s4685 + $0x1c] sm:$0xf]
        %v4694 = vld [vmem:[%s4685 + $0x20] sm:$0xf]
        %v4695 = vld [vmem:[%s4685 + $0x24] sm:$0xf]
        %v4696 = vld [vmem:[%s4685 + $0x28] sm:$0xf]
        %v4697 = vld [vmem:[%s4685 + $0x2c] sm:$0xf]
        %v4698 = vld [vmem:[%s4685 + $0x30] sm:$0xf]
        %v4699 = vld [vmem:[%s4685 + $0x34] sm:$0xf]
        %v4700 = vld [vmem:[%s4685 + $0x38] sm:$0xf]
        %v4701 = vld [vmem:[%s4685 + $0x3c] sm:$0xf]
        %v4734 = vunpack.c.l.b16 %v4621
        %v4735 = vunpack.c.l.b16 %v4622
        %v4736 = vunpack.c.l.b16 %v4623
        %v4737 = vunpack.c.l.b16 %v4624
        %v4738 = vunpack.c.l.b16 %v4625
        %v4739 = vunpack.c.l.b16 %v4626
        %v4740 = vunpack.c.l.b16 %v4627
        %v4741 = vunpack.c.l.b16 %v4628
        %v4742 = vunpack.c.l.b16 %v4629
        %v4743 = vunpack.c.l.b16 %v4630
        %v4744 = vunpack.c.l.b16 %v4631
        %v4745 = vunpack.c.l.b16 %v4632
        %v4746 = vunpack.c.l.b16 %v4633
        %v4747 = vunpack.c.l.b16 %v4634
        %v4748 = vunpack.c.l.b16 %v4635
        %v4749 = vunpack.c.l.b16 %v4636
        %v4750 = vunpack.c.l.b16 %v4637
        %v4751 = vunpack.c.l.b16 %v4638
        %v4752 = vunpack.c.l.b16 %v4639
        %v4753 = vunpack.c.l.b16 %v4640
        %v4754 = vunpack.c.l.b16 %v4641
        %v4755 = vunpack.c.l.b16 %v4642
        %v4756 = vunpack.c.l.b16 %v4643
        %v4757 = vunpack.c.l.b16 %v4644
        %v4758 = vunpack.c.l.b16 %v4645
        %v4759 = vunpack.c.l.b16 %v4646
        %v4760 = vunpack.c.l.b16 %v4647
        %v4761 = vunpack.c.l.b16 %v4648
        %v4762 = vunpack.c.l.b16 %v4649
        %v4763 = vunpack.c.l.b16 %v4650
        %v4764 = vunpack.c.l.b16 %v4651
        %v4765 = vunpack.c.l.b16 %v4652
        %v4766 = vpack.c.b16 %v4735, %v4734
        %v4767 = vpack.c.b16 %v4737, %v4736
        %v4768 = vpack.c.b16 %v4739, %v4738
        %v4769 = vpack.c.b16 %v4741, %v4740
        %v4770 = vpack.c.b16 %v4743, %v4742
        %v4771 = vpack.c.b16 %v4745, %v4744
        %v4772 = vpack.c.b16 %v4747, %v4746
        %v4773 = vpack.c.b16 %v4749, %v4748
        %v4774 = vpack.c.b16 %v4751, %v4750
        %v4775 = vpack.c.b16 %v4753, %v4752
        %v4776 = vpack.c.b16 %v4755, %v4754
        %v4777 = vpack.c.b16 %v4757, %v4756
        %v4778 = vpack.c.b16 %v4759, %v4758
        %v4779 = vpack.c.b16 %v4761, %v4760
        %v4780 = vpack.c.b16 %v4763, %v4762
        %v4781 = vpack.c.b16 %v4765, %v4764
        %v4814 = vunpack.c.l.b16 %v4686
        %v4815 = vunpack.c.l.b16 %v4687
        %v4816 = vunpack.c.l.b16 %v4688
        %v4817 = vunpack.c.l.b16 %v4689
        %v4818 = vunpack.c.l.b16 %v4690
        %v4819 = vunpack.c.l.b16 %v4691
        %v4820 = vunpack.c.l.b16 %v4692
        %v4821 = vunpack.c.l.b16 %v4693
        %v4822 = vunpack.c.l.b16 %v4694
        %v4823 = vunpack.c.l.b16 %v4695
        %v4824 = vunpack.c.l.b16 %v4696
        %v4825 = vunpack.c.l.b16 %v4697
        %v4826 = vunpack.c.l.b16 %v4698
        %v4827 = vunpack.c.l.b16 %v4699
        %v4828 = vunpack.c.l.b16 %v4700
        %v4829 = vunpack.c.l.b16 %v4701
        %v4830 = vpack.c.b16 %v4815, %v4814
        %v4831 = vpack.c.b16 %v4817, %v4816
        %v4832 = vpack.c.b16 %v4819, %v4818
        %v4833 = vpack.c.b16 %v4821, %v4820
        %v4834 = vpack.c.b16 %v4823, %v4822
        %v4835 = vpack.c.b16 %v4825, %v4824
        %v4836 = vpack.c.b16 %v4827, %v4826
        %v4837 = vpack.c.b16 %v4829, %v4828
        %4846 = vmatprep.subr.bf16.mxu0 0
        %4847 = vmatpush1.bf16.msra.mxu0 %v4830
        %4848 = vmatprep.subr.bf16.mxu0 0
        %4849 = vmatpush1.bf16.msra.mxu0 %v4831
        %4850 = vmatprep.subr.bf16.mxu0 0
        %4851 = vmatpush1.bf16.msra.mxu0 %v4832
        %4852 = vmatprep.subr.bf16.mxu0 0
        %4853 = vmatpush1.bf16.msra.mxu0 %v4833
        %4854 = vmatprep.subr.bf16.mxu0 0
        %4855 = vmatpush1.bf16.msra.mxu0 %v4834
        %4856 = vmatprep.subr.bf16.mxu0 0
        %4857 = vmatpush1.bf16.msra.mxu0 %v4835
        %4858 = vmatprep.subr.bf16.mxu0 0
        %4859 = vmatpush1.bf16.msra.mxu0 %v4836
        %4860 = vmatprep.subr.bf16.mxu0 0
        %4861 = vmatpush1.bf16.msra.mxu0 %v4837
        %4862 = vmatprep.subr.bf16.mxu0 0
        %4863 = vmatpush1.bf16.msra.mxu0 0
        %4864 = vmatprep.subr.bf16.mxu0 0
        %4865 = vmatpush1.bf16.msra.mxu0 0
        %4866 = vmatprep.subr.bf16.mxu0 0
        %4867 = vmatpush1.bf16.msra.mxu0 0
        %4868 = vmatprep.subr.bf16.mxu0 0
        %4869 = vmatpush1.bf16.msra.mxu0 0
        %4870 = vmatprep.subr.bf16.mxu0 0
        %4871 = vmatpush1.bf16.msra.mxu0 0
        %4872 = vmatprep.subr.bf16.mxu0 0
        %4873 = vmatpush1.bf16.msra.mxu0 0
        %4874 = vmatprep.subr.bf16.mxu0 0
        %4875 = vmatpush1.bf16.msra.mxu0 0
        %4876 = vmatprep.subr.bf16.mxu0 0
        %4877 = vmatpush1.bf16.msra.mxu0 0
        %4878 = vmatprep.mubr.bf16.mxu0 0
        %4879 = vmatmul.mubr.bf16.gmra.mrb[0].mxu0 %v4766
        %v4880 = vpop.f32.mrb[0].mxu0
        %v4881 = vadd.f32 0.0, %v4880
        %v4882 = vpop.f32.mrb[0].mxu0
        %v4883 = vpop.f32.mrb[0].mxu0
        %v4884 = vadd.f32 0.0, %v4883
        %v4885 = vpop.f32.mrb[0].mxu0
        %4886 = vmatprep.mubr.bf16.mxu0 0
        %4887 = vmatmul.mubr.bf16.gmra.mrb[0].mxu0 %v4767
        %v4888 = vpop.f32.mrb[0].mxu0
        %v4889 = vadd.f32 0.0, %v4888
        %v4890 = vpop.f32.mrb[0].mxu0
        %v4891 = vpop.f32.mrb[0].mxu0
        %v4892 = vadd.f32 0.0, %v4891
        %v4893 = vpop.f32.mrb[0].mxu0
        %4894 = vmatprep.mubr.bf16.mxu0 0
        %4895 = vmatmul.mubr.bf16.gmra.mrb[0].mxu0 %v4768
        %v4896 = vpop.f32.mrb[0].mxu0
        %v4897 = vadd.f32 0.0, %v4896
        %v4898 = vpop.f32.mrb[0].mxu0
        %v4899 = vpop.f32.mrb[0].mxu0
        %v4900 = vadd.f32 0.0, %v4899
        %v4901 = vpop.f32.mrb[0].mxu0
        %4902 = vmatprep.mubr.bf16.mxu0 0
        %4903 = vmatmul.mubr.bf16.gmra.mrb[0].mxu0 %v4769
        %v4904 = vpop.f32.mrb[0].mxu0
        %v4905 = vadd.f32 0.0, %v4904
        %v4906 = vpop.f32.mrb[0].mxu0
        %v4907 = vpop.f32.mrb[0].mxu0
        %v4908 = vadd.f32 0.0, %v4907
        %v4909 = vpop.f32.mrb[0].mxu0
        %4910 = vmatprep.mubr.bf16.mxu0 0
        %4911 = vmatmul.mubr.bf16.gmra.mrb[0].mxu0 %v4770
        %v4912 = vpop.f32.mrb[0].mxu0
        %v4913 = vadd.f32 0.0, %v4912
        %v4914 = vpop.f32.mrb[0].mxu0
        %v4915 = vpop.f32.mrb[0].mxu0
        %v4916 = vadd.f32 0.0, %v4915
        %v4917 = vpop.f32.mrb[0].mxu0
        %4918 = vmatprep.mubr.bf16.mxu0 0
        %4919 = vmatmul.mubr.bf16.gmra.mrb[0].mxu0 %v4771
        %v4920 = vpop.f32.mrb[0].mxu0
        %v4921 = vadd.f32 0.0, %v4920
        %v4922 = vpop.f32.mrb[0].mxu0
        %v4923 = vpop.f32.mrb[0].mxu0
        %v4924 = vadd.f32 0.0, %v4923
        %v4925 = vpop.f32.mrb[0].mxu0
        %4926 = vmatprep.mubr.bf16.mxu0 0
        %4927 = vmatmul.mubr.bf16.gmra.mrb[0].mxu0 %v4772
        %v4928 = vpop.f32.mrb[0].mxu0
        %v4929 = vadd.f32 0.0, %v4928
        %v4930 = vpop.f32.mrb[0].mxu0
        %v4931 = vpop.f32.mrb[0].mxu0
        %v4932 = vadd.f32 0.0, %v4931
        %v4933 = vpop.f32.mrb[0].mxu0
        %4934 = vmatprep.mubr.bf16.mxu0 0
        %4935 = vmatmul.mubr.bf16.gmra.mrb[0].mxu0 %v4773
        %v4936 = vpop.f32.mrb[0].mxu0
        %v4937 = vadd.f32 0.0, %v4936
        %v4938 = vpop.f32.mrb[0].mxu0
        %v4939 = vpop.f32.mrb[0].mxu0
        %v4940 = vadd.f32 0.0, %v4939
        %v4941 = vpop.f32.mrb[0].mxu0
        %4942 = vmatprep.mubr.bf16.mxu0 0
        %4943 = vmatmul.mubr.bf16.gmra.mrb[0].mxu0 %v4774
        %v4944 = vpop.f32.mrb[0].mxu0
        %v4945 = vadd.f32 0.0, %v4944
        %v4946 = vpop.f32.mrb[0].mxu0
        %v4947 = vpop.f32.mrb[0].mxu0
        %v4948 = vadd.f32 0.0, %v4947
        %v4949 = vpop.f32.mrb[0].mxu0
        %4950 = vmatprep.mubr.bf16.mxu0 0
        %4951 = vmatmul.mubr.bf16.gmra.mrb[0].mxu0 %v4775
        %v4952 = vpop.f32.mrb[0].mxu0
        %v4953 = vadd.f32 0.0, %v4952
        %v4954 = vpop.f32.mrb[0].mxu0
        %v4955 = vpop.f32.mrb[0].mxu0
        %v4956 = vadd.f32 0.0, %v4955
        %v4957 = vpop.f32.mrb[0].mxu0
        %4958 = vmatprep.mubr.bf16.mxu0 0
        %4959 = vmatmul.mubr.bf16.gmra.mrb[0].mxu0 %v4776
        %v4960 = vpop.f32.mrb[0].mxu0
        %v4961 = vadd.f32 0.0, %v4960
        %v4962 = vpop.f32.mrb[0].mxu0
        %v4963 = vpop.f32.mrb[0].mxu0
        %v4964 = vadd.f32 0.0, %v4963
        %v4965 = vpop.f32.mrb[0].mxu0
        %4966 = vmatprep.mubr.bf16.mxu0 0
        %4967 = vmatmul.mubr.bf16.gmra.mrb[0].mxu0 %v4777
        %v4968 = vpop.f32.mrb[0].mxu0
        %v4969 = vadd.f32 0.0, %v4968
        %v4970 = vpop.f32.mrb[0].mxu0
        %v4971 = vpop.f32.mrb[0].mxu0
        %v4972 = vadd.f32 0.0, %v4971
        %v4973 = vpop.f32.mrb[0].mxu0
        %4974 = vmatprep.mubr.bf16.mxu0 0
        %4975 = vmatmul.mubr.bf16.gmra.mrb[0].mxu0 %v4778
        %v4976 = vpop.f32.mrb[0].mxu0
        %v4977 = vadd.f32 0.0, %v4976
        %v4978 = vpop.f32.mrb[0].mxu0
        %v4979 = vpop.f32.mrb[0].mxu0
        %v4980 = vadd.f32 0.0, %v4979
        %v4981 = vpop.f32.mrb[0].mxu0
        %4982 = vmatprep.mubr.bf16.mxu0 0
        %4983 = vmatmul.mubr.bf16.gmra.mrb[0].mxu0 %v4779
        %v4984 = vpop.f32.mrb[0].mxu0
        %v4985 = vadd.f32 0.0, %v4984
        %v4986 = vpop.f32.mrb[0].mxu0
        %v4987 = vpop.f32.mrb[0].mxu0
        %v4988 = vadd.f32 0.0, %v4987
        %v4989 = vpop.f32.mrb[0].mxu0
        %4990 = vmatprep.mubr.bf16.mxu0 0
        %4991 = vmatmul.mubr.bf16.gmra.mrb[0].mxu0 %v4780
        %v4992 = vpop.f32.mrb[0].mxu0
        %v4993 = vadd.f32 0.0, %v4992
        %v4994 = vpop.f32.mrb[0].mxu0
        %v4995 = vpop.f32.mrb[0].mxu0
        %v4996 = vadd.f32 0.0, %v4995
        %v4997 = vpop.f32.mrb[0].mxu0
        %4998 = vmatprep.mubr.bf16.mxu0 0
        %4999 = vmatmul.mubr.bf16.gmra.mrb[0].mxu0 %v4781
        %v5000 = vpop.f32.mrb[0].mxu0
        %v5001 = vadd.f32 0.0, %v5000
        %v5002 = vpop.f32.mrb[0].mxu0
        %v5003 = vpop.f32.mrb[0].mxu0
        %v5004 = vadd.f32 0.0, %v5003
        %v5005 = vpop.f32.mrb[0].mxu0
        %5006 = vdwg.mxu0
        %v5007 = vadd.f32 %v4653, %v4881
        %v5008 = vadd.f32 %v4654, %v4884
        %v5009 = vadd.f32 %v4655, %v4889
        %v5010 = vadd.f32 %v4656, %v4892
        %v5011 = vadd.f32 %v4657, %v4897
        %v5012 = vadd.f32 %v4658, %v4900
        %v5013 = vadd.f32 %v4659, %v4905
        %v5014 = vadd.f32 %v4660, %v4908
        %v5015 = vadd.f32 %v4661, %v4913
        %v5016 = vadd.f32 %v4662, %v4916
        %v5017 = vadd.f32 %v4663, %v4921
        %v5018 = vadd.f32 %v4664, %v4924
        %v5019 = vadd.f32 %v4665, %v4929
        %v5020 = vadd.f32 %v4666, %v4932
        %v5021 = vadd.f32 %v4667, %v4937
        %v5022 = vadd.f32 %v4668, %v4940
        %v5023 = vadd.f32 %v4669, %v4945
        %v5024 = vadd.f32 %v4670, %v4948
        %v5025 = vadd.f32 %v4671, %v4953
        %v5026 = vadd.f32 %v4672, %v4956
        %v5027 = vadd.f32 %v4673, %v4961
        %v5028 = vadd.f32 %v4674, %v4964
        %v5029 = vadd.f32 %v4675, %v4969
        %v5030 = vadd.f32 %v4676, %v4972
        %v5031 = vadd.f32 %v4677, %v4977
        %v5032 = vadd.f32 %v4678, %v4980
        %v5033 = vadd.f32 %v4679, %v4985
        %v5034 = vadd.f32 %v4680, %v4988
        %v5035 = vadd.f32 %v4681, %v4993
        %v5036 = vadd.f32 %v4682, %v4996
        %v5037 = vadd.f32 %v4683, %v5001
        %v5038 = vadd.f32 %v4684, %v5004
        %5039 = vst [vmem:[#allocation3] sm:$0xff] %v5007
        %5040 = vst [vmem:[#allocation3 + $0x8] sm:$0xff] %v5008
        %5041 = vst [vmem:[#allocation3 + $0x10] sm:$0xff] %v5009
        %5042 = vst [vmem:[#allocation3 + $0x18] sm:$0xff] %v5010
        %5043 = vst [vmem:[#allocation3 + $0x20] sm:$0xff] %v5011
        %5044 = vst [vmem:[#allocation3 + $0x28] sm:$0xff] %v5012
        %5045 = vst [vmem:[#allocation3 + $0x30] sm:$0xff] %v5013
        %5046 = vst [vmem:[#allocation3 + $0x38] sm:$0xff] %v5014
        %5047 = vst [vmem:[#allocation3 + $0x40] sm:$0xff] %v5015
        %5048 = vst [vmem:[#allocation3 + $0x48] sm:$0xff] %v5016
        %5049 = vst [vmem:[#allocation3 + $0x50] sm:$0xff] %v5017
        %5050 = vst [vmem:[#allocation3 + $0x58] sm:$0xff] %v5018
        %5051 = vst [vmem:[#allocation3 + $0x60] sm:$0xff] %v5019
        %5052 = vst [vmem:[#allocation3 + $0x68] sm:$0xff] %v5020
        %5053 = vst [vmem:[#allocation3 + $0x70] sm:$0xff] %v5021
        %5054 = vst [vmem:[#allocation3 + $0x78] sm:$0xff] %v5022
        %5055 = vst [vmem:[#allocation3 + $0x80] sm:$0xff] %v5023
        %5056 = vst [vmem:[#allocation3 + $0x88] sm:$0xff] %v5024
        %5057 = vst [vmem:[#allocation3 + $0x90] sm:$0xff] %v5025
        %5058 = vst [vmem:[#allocation3 + $0x98] sm:$0xff] %v5026
        %5059 = vst [vmem:[#allocation3 + $0xa0] sm:$0xff] %v5027
        %5060 = vst [vmem:[#allocation3 + $0xa8] sm:$0xff] %v5028
        %5061 = vst [vmem:[#allocation3 + $0xb0] sm:$0xff] %v5029
        %5062 = vst [vmem:[#allocation3 + $0xb8] sm:$0xff] %v5030
        %5063 = vst [vmem:[#allocation3 + $0xc0] sm:$0xff] %v5031
        %5064 = vst [vmem:[#allocation3 + $0xc8] sm:$0xff] %v5032
        %5065 = vst [vmem:[#allocation3 + $0xd0] sm:$0xff] %v5033
        %5066 = vst [vmem:[#allocation3 + $0xd8] sm:$0xff] %v5034
        %5067 = vst [vmem:[#allocation3 + $0xe0] sm:$0xff] %v5035
        %5068 = vst [vmem:[#allocation3 + $0xe8] sm:$0xff] %v5036
        %5069 = vst [vmem:[#allocation3 + $0xf0] sm:$0xff] %v5037
        %5070 = vst [vmem:[#allocation3 + $0xf8] sm:$0xff] %v5038
        %v5071 = vld [vmem:[%s4620] sm:$0xf]
        %v5072 = vld [vmem:[%s4620 + $0x4] sm:$0xf]
        %v5073 = vld [vmem:[%s4620 + $0x8] sm:$0x1]
        %v5074 = vld [vmem:[%s4620 + $0xc] sm:$0xf]
        %v5075 = vld [vmem:[%s4620 + $0x10] sm:$0xf]
        %v5076 = vld [vmem:[%s4620 + $0x14] sm:$0x1]
        %v5077 = vld [vmem:[%s4620 + $0x18] sm:$0xf]
        %v5078 = vld [vmem:[%s4620 + $0x1c] sm:$0xf]
        %v5079 = vld [vmem:[%s4620 + $0x20] sm:$0x1]
        %v5080 = vld [vmem:[%s4620 + $0x24] sm:$0xf]
        %v5081 = vld [vmem:[%s4620 + $0x28] sm:$0xf]
        %v5082 = vld [vmem:[%s4620 + $0x2c] sm:$0x1]
        %v5083 = vld [vmem:[%s4620 + $0x30] sm:$0xf]
        %v5084 = vld [vmem:[%s4620 + $0x34] sm:$0xf]
        %v5085 = vld [vmem:[%s4620 + $0x38] sm:$0x1]
        %v5086 = vld [vmem:[%s4620 + $0x3c] sm:$0xf]
        %v5087 = vld [vmem:[%s4620 + $0x40] sm:$0xf]
        %v5088 = vld [vmem:[%s4620 + $0x44] sm:$0x1]
        %v5089 = vld [vmem:[%s4620 + $0x48] sm:$0xf]
        %v5090 = vld [vmem:[%s4620 + $0x4c] sm:$0xf]
        %v5091 = vld [vmem:[%s4620 + $0x50] sm:$0x1]
        %v5092 = vld [vmem:[%s4620 + $0x54] sm:$0xf]
        %v5093 = vld [vmem:[%s4620 + $0x58] sm:$0xf]
        %v5094 = vld [vmem:[%s4620 + $0x5c] sm:$0x1]
        %v5095 = vld [vmem:[%s4620 + $0x60] sm:$0xf]
        %v5096 = vld [vmem:[%s4620 + $0x64] sm:$0xf]
        %v5097 = vld [vmem:[%s4620 + $0x68] sm:$0x1]
        %v5098 = vld [vmem:[%s4620 + $0x6c] sm:$0xf]
        %v5099 = vld [vmem:[%s4620 + $0x70] sm:$0xf]
        %v5100 = vld [vmem:[%s4620 + $0x74] sm:$0x1]
        %v5101 = vld [vmem:[%s4620 + $0x78] sm:$0xf]
        %v5102 = vld [vmem:[%s4620 + $0x7c] sm:$0xf]
        %v5103 = vld [vmem:[%s4620 + $0x80] sm:$0x1]
        %v5104 = vld [vmem:[%s4620 + $0x84] sm:$0xf]
        %v5105 = vld [vmem:[%s4620 + $0x88] sm:$0xf]
        %v5106 = vld [vmem:[%s4620 + $0x8c] sm:$0x1]
        %v5107 = vld [vmem:[%s4620 + $0x90] sm:$0xf]
        %v5108 = vld [vmem:[%s4620 + $0x94] sm:$0xf]
        %v5109 = vld [vmem:[%s4620 + $0x98] sm:$0x1]
        %v5110 = vld [vmem:[%s4620 + $0x9c] sm:$0xf]
        %v5111 = vld [vmem:[%s4620 + $0xa0] sm:$0xf]
        %v5112 = vld [vmem:[%s4620 + $0xa4] sm:$0x1]
        %v5113 = vld [vmem:[%s4620 + $0xa8] sm:$0xf]
        %v5114 = vld [vmem:[%s4620 + $0xac] sm:$0xf]
        %v5115 = vld [vmem:[%s4620 + $0xb0] sm:$0x1]
        %v5116 = vld [vmem:[%s4620 + $0xb4] sm:$0xf]
        %v5117 = vld [vmem:[%s4620 + $0xb8] sm:$0xf]
        %v5118 = vld [vmem:[%s4620 + $0xbc] sm:$0x1]
        %v5120 = vshrl.u32 %v5071, 16
        %v5122 = vrot.slane %v5120, 4
        %v5123 = vshll.u32 %v5071, 16
        %v5125 = vrot.slane %v5123, 5
        %v5126 = vor.u32 %v5122, %v5125
        %v5127 = vrot.slane %v5126, 4
        %v5129 = vshll.u32 %v5072, 16
        %v5131 = vrot.slane %v5129, 5
        %v5132 = vsel %vm1389, %v5127, %v5131
        %v5133 = vshrl.u32 %v5072, 16
        %v5135 = vrot.slane %v5133, 4
        %v5136 = vor.u32 %v5135, %v5131
        %v5137 = vrot.slane %v5136, 4
        %v5139 = vshll.u32 %v5073, 16
        %v5141 = vrot.slane %v5139, 5
        %v5142 = vsel %vm1389, %v5137, %v5141
        %v5144 = vshrl.u32 %v5074, 16
        %v5146 = vrot.slane %v5144, 4
        %v5147 = vshll.u32 %v5074, 16
        %v5149 = vrot.slane %v5147, 5
        %v5150 = vor.u32 %v5146, %v5149
        %v5151 = vrot.slane %v5150, 4
        %v5153 = vshll.u32 %v5075, 16
        %v5155 = vrot.slane %v5153, 5
        %v5156 = vsel %vm1389, %v5151, %v5155
        %v5157 = vshrl.u32 %v5075, 16
        %v5159 = vrot.slane %v5157, 4
        %v5160 = vor.u32 %v5159, %v5155
        %v5161 = vrot.slane %v5160, 4
        %v5163 = vshll.u32 %v5076, 16
        %v5165 = vrot.slane %v5163, 5
        %v5166 = vsel %vm1389, %v5161, %v5165
        %v5168 = vshrl.u32 %v5077, 16
        %v5170 = vrot.slane %v5168, 4
        %v5171 = vshll.u32 %v5077, 16
        %v5173 = vrot.slane %v5171, 5
        %v5174 = vor.u32 %v5170, %v5173
        %v5175 = vrot.slane %v5174, 4
        %v5177 = vshll.u32 %v5078, 16
        %v5179 = vrot.slane %v5177, 5
        %v5180 = vsel %vm1389, %v5175, %v5179
        %v5181 = vshrl.u32 %v5078, 16
        %v5183 = vrot.slane %v5181, 4
        %v5184 = vor.u32 %v5183, %v5179
        %v5185 = vrot.slane %v5184, 4
        %v5187 = vshll.u32 %v5079, 16
        %v5189 = vrot.slane %v5187, 5
        %v5190 = vsel %vm1389, %v5185, %v5189
        %v5192 = vshrl.u32 %v5080, 16
        %v5194 = vrot.slane %v5192, 4
        %v5195 = vshll.u32 %v5080, 16
        %v5197 = vrot.slane %v5195, 5
        %v5198 = vor.u32 %v5194, %v5197
        %v5199 = vrot.slane %v5198, 4
        %v5201 = vshll.u32 %v5081, 16
        %v5203 = vrot.slane %v5201, 5
        %v5204 = vsel %vm1389, %v5199, %v5203
        %v5205 = vshrl.u32 %v5081, 16
        %v5207 = vrot.slane %v5205, 4
        %v5208 = vor.u32 %v5207, %v5203
        %v5209 = vrot.slane %v5208, 4
        %v5211 = vshll.u32 %v5082, 16
        %v5213 = vrot.slane %v5211, 5
        %v5214 = vsel %vm1389, %v5209, %v5213
        %v5216 = vshrl.u32 %v5083, 16
        %v5218 = vrot.slane %v5216, 4
        %v5219 = vshll.u32 %v5083, 16
        %v5221 = vrot.slane %v5219, 5
        %v5222 = vor.u32 %v5218, %v5221
        %v5223 = vrot.slane %v5222, 4
        %v5225 = vshll.u32 %v5084, 16
        %v5227 = vrot.slane %v5225, 5
        %v5228 = vsel %vm1389, %v5223, %v5227
        %v5229 = vshrl.u32 %v5084, 16
        %v5231 = vrot.slane %v5229, 4
        %v5232 = vor.u32 %v5231, %v5227
        %v5233 = vrot.slane %v5232, 4
        %v5235 = vshll.u32 %v5085, 16
        %v5237 = vrot.slane %v5235, 5
        %v5238 = vsel %vm1389, %v5233, %v5237
        %v5240 = vshrl.u32 %v5086, 16
        %v5242 = vrot.slane %v5240, 4
        %v5243 = vshll.u32 %v5086, 16
        %v5245 = vrot.slane %v5243, 5
        %v5246 = vor.u32 %v5242, %v5245
        %v5247 = vrot.slane %v5246, 4
        %v5249 = vshll.u32 %v5087, 16
        %v5251 = vrot.slane %v5249, 5
        %v5252 = vsel %vm1389, %v5247, %v5251
        %v5253 = vshrl.u32 %v5087, 16
        %v5255 = vrot.slane %v5253, 4
        %v5256 = vor.u32 %v5255, %v5251
        %v5257 = vrot.slane %v5256, 4
        %v5259 = vshll.u32 %v5088, 16
        %v5261 = vrot.slane %v5259, 5
        %v5262 = vsel %vm1389, %v5257, %v5261
        %v5264 = vshrl.u32 %v5089, 16
        %v5266 = vrot.slane %v5264, 4
        %v5267 = vshll.u32 %v5089, 16
        %v5269 = vrot.slane %v5267, 5
        %v5270 = vor.u32 %v5266, %v5269
        %v5271 = vrot.slane %v5270, 4
        %v5273 = vshll.u32 %v5090, 16
        %v5275 = vrot.slane %v5273, 5
        %v5276 = vsel %vm1389, %v5271, %v5275
        %v5277 = vshrl.u32 %v5090, 16
        %v5279 = vrot.slane %v5277, 4
        %v5280 = vor.u32 %v5279, %v5275
        %v5281 = vrot.slane %v5280, 4
        %v5283 = vshll.u32 %v5091, 16
        %v5285 = vrot.slane %v5283, 5
        %v5286 = vsel %vm1389, %v5281, %v5285
        %v5288 = vshrl.u32 %v5092, 16
        %v5290 = vrot.slane %v5288, 4
        %v5291 = vshll.u32 %v5092, 16
        %v5293 = vrot.slane %v5291, 5
        %v5294 = vor.u32 %v5290, %v5293
        %v5295 = vrot.slane %v5294, 4
        %v5297 = vshll.u32 %v5093, 16
        %v5299 = vrot.slane %v5297, 5
        %v5300 = vsel %vm1389, %v5295, %v5299
        %v5301 = vshrl.u32 %v5093, 16
        %v5303 = vrot.slane %v5301, 4
        %v5304 = vor.u32 %v5303, %v5299
        %v5305 = vrot.slane %v5304, 4
        %v5307 = vshll.u32 %v5094, 16
        %v5309 = vrot.slane %v5307, 5
        %v5310 = vsel %vm1389, %v5305, %v5309
        %v5312 = vshrl.u32 %v5095, 16
        %v5314 = vrot.slane %v5312, 4
        %v5315 = vshll.u32 %v5095, 16
        %v5317 = vrot.slane %v5315, 5
        %v5318 = vor.u32 %v5314, %v5317
        %v5319 = vrot.slane %v5318, 4
        %v5321 = vshll.u32 %v5096, 16
        %v5323 = vrot.slane %v5321, 5
        %v5324 = vsel %vm1389, %v5319, %v5323
        %v5325 = vshrl.u32 %v5096, 16
        %v5327 = vrot.slane %v5325, 4
        %v5328 = vor.u32 %v5327, %v5323
        %v5329 = vrot.slane %v5328, 4
        %v5331 = vshll.u32 %v5097, 16
        %v5333 = vrot.slane %v5331, 5
        %v5334 = vsel %vm1389, %v5329, %v5333
        %v5336 = vshrl.u32 %v5098, 16
        %v5338 = vrot.slane %v5336, 4
        %v5339 = vshll.u32 %v5098, 16
        %v5341 = vrot.slane %v5339, 5
        %v5342 = vor.u32 %v5338, %v5341
        %v5343 = vrot.slane %v5342, 4
        %v5345 = vshll.u32 %v5099, 16
        %v5347 = vrot.slane %v5345, 5
        %v5348 = vsel %vm1389, %v5343, %v5347
        %v5349 = vshrl.u32 %v5099, 16
        %v5351 = vrot.slane %v5349, 4
        %v5352 = vor.u32 %v5351, %v5347
        %v5353 = vrot.slane %v5352, 4
        %v5355 = vshll.u32 %v5100, 16
        %v5357 = vrot.slane %v5355, 5
        %v5358 = vsel %vm1389, %v5353, %v5357
        %v5360 = vshrl.u32 %v5101, 16
        %v5362 = vrot.slane %v5360, 4
        %v5363 = vshll.u32 %v5101, 16
        %v5365 = vrot.slane %v5363, 5
        %v5366 = vor.u32 %v5362, %v5365
        %v5367 = vrot.slane %v5366, 4
        %v5369 = vshll.u32 %v5102, 16
        %v5371 = vrot.slane %v5369, 5
        %v5372 = vsel %vm1389, %v5367, %v5371
        %v5373 = vshrl.u32 %v5102, 16
        %v5375 = vrot.slane %v5373, 4
        %v5376 = vor.u32 %v5375, %v5371
        %v5377 = vrot.slane %v5376, 4
        %v5379 = vshll.u32 %v5103, 16
        %v5381 = vrot.slane %v5379, 5
        %v5382 = vsel %vm1389, %v5377, %v5381
        %v5384 = vshrl.u32 %v5104, 16
        %v5386 = vrot.slane %v5384, 4
        %v5387 = vshll.u32 %v5104, 16
        %v5389 = vrot.slane %v5387, 5
        %v5390 = vor.u32 %v5386, %v5389
        %v5391 = vrot.slane %v5390, 4
        %v5393 = vshll.u32 %v5105, 16
        %v5395 = vrot.slane %v5393, 5
        %v5396 = vsel %vm1389, %v5391, %v5395
        %v5397 = vshrl.u32 %v5105, 16
        %v5399 = vrot.slane %v5397, 4
        %v5400 = vor.u32 %v5399, %v5395
        %v5401 = vrot.slane %v5400, 4
        %v5403 = vshll.u32 %v5106, 16
        %v5405 = vrot.slane %v5403, 5
        %v5406 = vsel %vm1389, %v5401, %v5405
        %v5408 = vshrl.u32 %v5107, 16
        %v5410 = vrot.slane %v5408, 4
        %v5411 = vshll.u32 %v5107, 16
        %v5413 = vrot.slane %v5411, 5
        %v5414 = vor.u32 %v5410, %v5413
        %v5415 = vrot.slane %v5414, 4
        %v5417 = vshll.u32 %v5108, 16
        %v5419 = vrot.slane %v5417, 5
        %v5420 = vsel %vm1389, %v5415, %v5419
        %v5421 = vshrl.u32 %v5108, 16
        %v5423 = vrot.slane %v5421, 4
        %v5424 = vor.u32 %v5423, %v5419
        %v5425 = vrot.slane %v5424, 4
        %v5427 = vshll.u32 %v5109, 16
        %v5429 = vrot.slane %v5427, 5
        %v5430 = vsel %vm1389, %v5425, %v5429
        %v5432 = vshrl.u32 %v5110, 16
        %v5434 = vrot.slane %v5432, 4
        %v5435 = vshll.u32 %v5110, 16
        %v5437 = vrot.slane %v5435, 5
        %v5438 = vor.u32 %v5434, %v5437
        %v5439 = vrot.slane %v5438, 4
        %v5441 = vshll.u32 %v5111, 16
        %v5443 = vrot.slane %v5441, 5
        %v5444 = vsel %vm1389, %v5439, %v5443
        %v5445 = vshrl.u32 %v5111, 16
        %v5447 = vrot.slane %v5445, 4
        %v5448 = vor.u32 %v5447, %v5443
        %v5449 = vrot.slane %v5448, 4
        %v5451 = vshll.u32 %v5112, 16
        %v5453 = vrot.slane %v5451, 5
        %v5454 = vsel %vm1389, %v5449, %v5453
        %v5456 = vshrl.u32 %v5113, 16
        %v5458 = vrot.slane %v5456, 4
        %v5459 = vshll.u32 %v5113, 16
        %v5461 = vrot.slane %v5459, 5
        %v5462 = vor.u32 %v5458, %v5461
        %v5463 = vrot.slane %v5462, 4
        %v5465 = vshll.u32 %v5114, 16
        %v5467 = vrot.slane %v5465, 5
        %v5468 = vsel %vm1389, %v5463, %v5467
        %v5469 = vshrl.u32 %v5114, 16
        %v5471 = vrot.slane %v5469, 4
        %v5472 = vor.u32 %v5471, %v5467
        %v5473 = vrot.slane %v5472, 4
        %v5475 = vshll.u32 %v5115, 16
        %v5477 = vrot.slane %v5475, 5
        %v5478 = vsel %vm1389, %v5473, %v5477
        %v5480 = vshrl.u32 %v5116, 16
        %v5482 = vrot.slane %v5480, 4
        %v5483 = vshll.u32 %v5116, 16
        %v5485 = vrot.slane %v5483, 5
        %v5486 = vor.u32 %v5482, %v5485
        %v5487 = vrot.slane %v5486, 4
        %v5489 = vshll.u32 %v5117, 16
        %v5491 = vrot.slane %v5489, 5
        %v5492 = vsel %vm1389, %v5487, %v5491
        %v5493 = vshrl.u32 %v5117, 16
        %v5495 = vrot.slane %v5493, 4
        %v5496 = vor.u32 %v5495, %v5491
        %v5497 = vrot.slane %v5496, 4
        %v5499 = vshll.u32 %v5118, 16
        %v5501 = vrot.slane %v5499, 5
        %v5502 = vsel %vm1389, %v5497, %v5501
        %v5503 = vld [vmem:[#allocation3] sm:$0xff]
        %v5504 = vld [vmem:[#allocation3 + $0x8] sm:$0xff]
        %v5505 = vld [vmem:[#allocation3 + $0x10] sm:$0xff]
        %v5506 = vld [vmem:[#allocation3 + $0x18] sm:$0xff]
        %v5507 = vld [vmem:[#allocation3 + $0x20] sm:$0xff]
        %v5508 = vld [vmem:[#allocation3 + $0x28] sm:$0xff]
        %v5509 = vld [vmem:[#allocation3 + $0x30] sm:$0xff]
        %v5510 = vld [vmem:[#allocation3 + $0x38] sm:$0xff]
        %v5511 = vld [vmem:[#allocation3 + $0x40] sm:$0xff]
        %v5512 = vld [vmem:[#allocation3 + $0x48] sm:$0xff]
        %v5513 = vld [vmem:[#allocation3 + $0x50] sm:$0xff]
        %v5514 = vld [vmem:[#allocation3 + $0x58] sm:$0xff]
        %v5515 = vld [vmem:[#allocation3 + $0x60] sm:$0xff]
        %v5516 = vld [vmem:[#allocation3 + $0x68] sm:$0xff]
        %v5517 = vld [vmem:[#allocation3 + $0x70] sm:$0xff]
        %v5518 = vld [vmem:[#allocation3 + $0x78] sm:$0xff]
        %v5519 = vld [vmem:[#allocation3 + $0x80] sm:$0xff]
        %v5520 = vld [vmem:[#allocation3 + $0x88] sm:$0xff]
        %v5521 = vld [vmem:[#allocation3 + $0x90] sm:$0xff]
        %v5522 = vld [vmem:[#allocation3 + $0x98] sm:$0xff]
        %v5523 = vld [vmem:[#allocation3 + $0xa0] sm:$0xff]
        %v5524 = vld [vmem:[#allocation3 + $0xa8] sm:$0xff]
        %v5525 = vld [vmem:[#allocation3 + $0xb0] sm:$0xff]
        %v5526 = vld [vmem:[#allocation3 + $0xb8] sm:$0xff]
        %v5527 = vld [vmem:[#allocation3 + $0xc0] sm:$0xff]
        %v5528 = vld [vmem:[#allocation3 + $0xc8] sm:$0xff]
        %v5529 = vld [vmem:[#allocation3 + $0xd0] sm:$0xff]
        %v5530 = vld [vmem:[#allocation3 + $0xd8] sm:$0xff]
        %v5531 = vld [vmem:[#allocation3 + $0xe0] sm:$0xff]
        %v5532 = vld [vmem:[#allocation3 + $0xe8] sm:$0xff]
        %v5533 = vld [vmem:[#allocation3 + $0xf0] sm:$0xff]
        %v5534 = vld [vmem:[#allocation3 + $0xf8] sm:$0xff]
        %s5535 = scalar_lea.vmem %s207, 448 [#allocation4]
        %v5536 = vld [vmem:[%s5535] sm:$0xf]
        %v5537 = vld [vmem:[%s5535 + $0x4] sm:$0xf]
        %v5538 = vld [vmem:[%s5535 + $0x8] sm:$0xf]
        %v5539 = vld [vmem:[%s5535 + $0xc] sm:$0xf]
        %v5540 = vld [vmem:[%s5535 + $0x10] sm:$0xf]
        %v5541 = vld [vmem:[%s5535 + $0x14] sm:$0xf]
        %v5542 = vld [vmem:[%s5535 + $0x18] sm:$0xf]
        %v5543 = vld [vmem:[%s5535 + $0x1c] sm:$0xf]
        %v5544 = vld [vmem:[%s5535 + $0x20] sm:$0xf]
        %v5545 = vld [vmem:[%s5535 + $0x24] sm:$0xf]
        %v5546 = vld [vmem:[%s5535 + $0x28] sm:$0xf]
        %v5547 = vld [vmem:[%s5535 + $0x2c] sm:$0xf]
        %v5548 = vld [vmem:[%s5535 + $0x30] sm:$0xf]
        %v5549 = vld [vmem:[%s5535 + $0x34] sm:$0xf]
        %v5550 = vld [vmem:[%s5535 + $0x38] sm:$0xf]
        %v5551 = vld [vmem:[%s5535 + $0x3c] sm:$0xf]
        %v5552 = vunpack.c.l.b16 %v5132
        %v5553 = vunpack.c.l.b16 %v5142
        %v5554 = vunpack.c.l.b16 %v5156
        %v5555 = vunpack.c.l.b16 %v5166
        %v5556 = vunpack.c.l.b16 %v5180
        %v5557 = vunpack.c.l.b16 %v5190
        %v5558 = vunpack.c.l.b16 %v5204
        %v5559 = vunpack.c.l.b16 %v5214
        %v5560 = vunpack.c.l.b16 %v5228
        %v5561 = vunpack.c.l.b16 %v5238
        %v5562 = vunpack.c.l.b16 %v5252
        %v5563 = vunpack.c.l.b16 %v5262
        %v5564 = vunpack.c.l.b16 %v5276
        %v5565 = vunpack.c.l.b16 %v5286
        %v5566 = vunpack.c.l.b16 %v5300
        %v5567 = vunpack.c.l.b16 %v5310
        %v5568 = vunpack.c.l.b16 %v5324
        %v5569 = vunpack.c.l.b16 %v5334
        %v5570 = vunpack.c.l.b16 %v5348
        %v5571 = vunpack.c.l.b16 %v5358
        %v5572 = vunpack.c.l.b16 %v5372
        %v5573 = vunpack.c.l.b16 %v5382
        %v5574 = vunpack.c.l.b16 %v5396
        %v5575 = vunpack.c.l.b16 %v5406
        %v5576 = vunpack.c.l.b16 %v5420
        %v5577 = vunpack.c.l.b16 %v5430
        %v5578 = vunpack.c.l.b16 %v5444
        %v5579 = vunpack.c.l.b16 %v5454
        %v5580 = vunpack.c.l.b16 %v5468
        %v5581 = vunpack.c.l.b16 %v5478
        %v5582 = vunpack.c.l.b16 %v5492
        %v5583 = vunpack.c.l.b16 %v5502
        %v5584 = vpack.c.b16 %v5553, %v5552
        %v5585 = vpack.c.b16 %v5555, %v5554
        %v5586 = vpack.c.b16 %v5557, %v5556
        %v5587 = vpack.c.b16 %v5559, %v5558
        %v5588 = vpack.c.b16 %v5561, %v5560
        %v5589 = vpack.c.b16 %v5563, %v5562
        %v5590 = vpack.c.b16 %v5565, %v5564
        %v5591 = vpack.c.b16 %v5567, %v5566
        %v5592 = vpack.c.b16 %v5569, %v5568
        %v5593 = vpack.c.b16 %v5571, %v5570
        %v5594 = vpack.c.b16 %v5573, %v5572
        %v5595 = vpack.c.b16 %v5575, %v5574
        %v5596 = vpack.c.b16 %v5577, %v5576
        %v5597 = vpack.c.b16 %v5579, %v5578
        %v5598 = vpack.c.b16 %v5581, %v5580
        %v5599 = vpack.c.b16 %v5583, %v5582
        %v5632 = vunpack.c.l.b16 %v5536
        %v5633 = vunpack.c.l.b16 %v5537
        %v5634 = vunpack.c.l.b16 %v5538
        %v5635 = vunpack.c.l.b16 %v5539
        %v5636 = vunpack.c.l.b16 %v5540
        %v5637 = vunpack.c.l.b16 %v5541
        %v5638 = vunpack.c.l.b16 %v5542
        %v5639 = vunpack.c.l.b16 %v5543
        %v5640 = vunpack.c.l.b16 %v5544
        %v5641 = vunpack.c.l.b16 %v5545
        %v5642 = vunpack.c.l.b16 %v5546
        %v5643 = vunpack.c.l.b16 %v5547
        %v5644 = vunpack.c.l.b16 %v5548
        %v5645 = vunpack.c.l.b16 %v5549
        %v5646 = vunpack.c.l.b16 %v5550
        %v5647 = vunpack.c.l.b16 %v5551
        %v5648 = vpack.c.b16 %v5633, %v5632
        %v5649 = vpack.c.b16 %v5635, %v5634
        %v5650 = vpack.c.b16 %v5637, %v5636
        %v5651 = vpack.c.b16 %v5639, %v5638
        %v5652 = vpack.c.b16 %v5641, %v5640
        %v5653 = vpack.c.b16 %v5643, %v5642
        %v5654 = vpack.c.b16 %v5645, %v5644
        %v5655 = vpack.c.b16 %v5647, %v5646
        %5664 = vmatprep.subr.bf16.mxu0 0
        %5665 = vmatpush1.bf16.msra.mxu0 %v5648
        %5666 = vmatprep.subr.bf16.mxu0 0
        %5667 = vmatpush1.bf16.msra.mxu0 %v5649
        %5668 = vmatprep.subr.bf16.mxu0 0
        %5669 = vmatpush1.bf16.msra.mxu0 %v5650
        %5670 = vmatprep.subr.bf16.mxu0 0
        %5671 = vmatpush1.bf16.msra.mxu0 %v5651
        %5672 = vmatprep.subr.bf16.mxu0 0
        %5673 = vmatpush1.bf16.msra.mxu0 %v5652
        %5674 = vmatprep.subr.bf16.mxu0 0
        %5675 = vmatpush1.bf16.msra.mxu0 %v5653
        %5676 = vmatprep.subr.bf16.mxu0 0
        %5677 = vmatpush1.bf16.msra.mxu0 %v5654
        %5678 = vmatprep.subr.bf16.mxu0 0
        %5679 = vmatpush1.bf16.msra.mxu0 %v5655
        %5680 = vmatprep.subr.bf16.mxu0 0
        %5681 = vmatpush1.bf16.msra.mxu0 0
        %5682 = vmatprep.subr.bf16.mxu0 0
        %5683 = vmatpush1.bf16.msra.mxu0 0
        %5684 = vmatprep.subr.bf16.mxu0 0
        %5685 = vmatpush1.bf16.msra.mxu0 0
        %5686 = vmatprep.subr.bf16.mxu0 0
        %5687 = vmatpush1.bf16.msra.mxu0 0
        %5688 = vmatprep.subr.bf16.mxu0 0
        %5689 = vmatpush1.bf16.msra.mxu0 0
        %5690 = vmatprep.subr.bf16.mxu0 0
        %5691 = vmatpush1.bf16.msra.mxu0 0
        %5692 = vmatprep.subr.bf16.mxu0 0
        %5693 = vmatpush1.bf16.msra.mxu0 0
        %5694 = vmatprep.subr.bf16.mxu0 0
        %5695 = vmatpush1.bf16.msra.mxu0 0
        %5696 = vmatprep.mubr.bf16.mxu0 0
        %5697 = vmatmul.mubr.bf16.gmra.mrb[0].mxu0 %v5584
        %v5698 = vpop.f32.mrb[0].mxu0
        %v5699 = vadd.f32 0.0, %v5698
        %v5700 = vpop.f32.mrb[0].mxu0
        %v5701 = vpop.f32.mrb[0].mxu0
        %v5702 = vadd.f32 0.0, %v5701
        %v5703 = vpop.f32.mrb[0].mxu0
        %5704 = vmatprep.mubr.bf16.mxu0 0
        %5705 = vmatmul.mubr.bf16.gmra.mrb[0].mxu0 %v5585
        %v5706 = vpop.f32.mrb[0].mxu0
        %v5707 = vadd.f32 0.0, %v5706
        %v5708 = vpop.f32.mrb[0].mxu0
        %v5709 = vpop.f32.mrb[0].mxu0
        %v5710 = vadd.f32 0.0, %v5709
        %v5711 = vpop.f32.mrb[0].mxu0
        %5712 = vmatprep.mubr.bf16.mxu0 0
        %5713 = vmatmul.mubr.bf16.gmra.mrb[0].mxu0 %v5586
        %v5714 = vpop.f32.mrb[0].mxu0
        %v5715 = vadd.f32 0.0, %v5714
        %v5716 = vpop.f32.mrb[0].mxu0
        %v5717 = vpop.f32.mrb[0].mxu0
        %v5718 = vadd.f32 0.0, %v5717
        %v5719 = vpop.f32.mrb[0].mxu0
        %5720 = vmatprep.mubr.bf16.mxu0 0
        %5721 = vmatmul.mubr.bf16.gmra.mrb[0].mxu0 %v5587
        %v5722 = vpop.f32.mrb[0].mxu0
        %v5723 = vadd.f32 0.0, %v5722
        %v5724 = vpop.f32.mrb[0].mxu0
        %v5725 = vpop.f32.mrb[0].mxu0
        %v5726 = vadd.f32 0.0, %v5725
        %v5727 = vpop.f32.mrb[0].mxu0
        %5728 = vmatprep.mubr.bf16.mxu0 0
        %5729 = vmatmul.mubr.bf16.gmra.mrb[0].mxu0 %v5588
        %v5730 = vpop.f32.mrb[0].mxu0
        %v5731 = vadd.f32 0.0, %v5730
        %v5732 = vpop.f32.mrb[0].mxu0
        %v5733 = vpop.f32.mrb[0].mxu0
        %v5734 = vadd.f32 0.0, %v5733
        %v5735 = vpop.f32.mrb[0].mxu0
        %5736 = vmatprep.mubr.bf16.mxu0 0
        %5737 = vmatmul.mubr.bf16.gmra.mrb[0].mxu0 %v5589
        %v5738 = vpop.f32.mrb[0].mxu0
        %v5739 = vadd.f32 0.0, %v5738
        %v5740 = vpop.f32.mrb[0].mxu0
        %v5741 = vpop.f32.mrb[0].mxu0
        %v5742 = vadd.f32 0.0, %v5741
        %v5743 = vpop.f32.mrb[0].mxu0
        %5744 = vmatprep.mubr.bf16.mxu0 0
        %5745 = vmatmul.mubr.bf16.gmra.mrb[0].mxu0 %v5590
        %v5746 = vpop.f32.mrb[0].mxu0
        %v5747 = vadd.f32 0.0, %v5746
        %v5748 = vpop.f32.mrb[0].mxu0
        %v5749 = vpop.f32.mrb[0].mxu0
        %v5750 = vadd.f32 0.0, %v5749
        %v5751 = vpop.f32.mrb[0].mxu0
        %5752 = vmatprep.mubr.bf16.mxu0 0
        %5753 = vmatmul.mubr.bf16.gmra.mrb[0].mxu0 %v5591
        %v5754 = vpop.f32.mrb[0].mxu0
        %v5755 = vadd.f32 0.0, %v5754
        %v5756 = vpop.f32.mrb[0].mxu0
        %v5757 = vpop.f32.mrb[0].mxu0
        %v5758 = vadd.f32 0.0, %v5757
        %v5759 = vpop.f32.mrb[0].mxu0
        %5760 = vmatprep.mubr.bf16.mxu0 0
        %5761 = vmatmul.mubr.bf16.gmra.mrb[0].mxu0 %v5592
        %v5762 = vpop.f32.mrb[0].mxu0
        %v5763 = vadd.f32 0.0, %v5762
        %v5764 = vpop.f32.mrb[0].mxu0
        %v5765 = vpop.f32.mrb[0].mxu0
        %v5766 = vadd.f32 0.0, %v5765
        %v5767 = vpop.f32.mrb[0].mxu0
        %5768 = vmatprep.mubr.bf16.mxu0 0
        %5769 = vmatmul.mubr.bf16.gmra.mrb[0].mxu0 %v5593
        %v5770 = vpop.f32.mrb[0].mxu0
        %v5771 = vadd.f32 0.0, %v5770
        %v5772 = vpop.f32.mrb[0].mxu0
        %v5773 = vpop.f32.mrb[0].mxu0
        %v5774 = vadd.f32 0.0, %v5773
        %v5775 = vpop.f32.mrb[0].mxu0
        %5776 = vmatprep.mubr.bf16.mxu0 0
        %5777 = vmatmul.mubr.bf16.gmra.mrb[0].mxu0 %v5594
        %v5778 = vpop.f32.mrb[0].mxu0
        %v5779 = vadd.f32 0.0, %v5778
        %v5780 = vpop.f32.mrb[0].mxu0
        %v5781 = vpop.f32.mrb[0].mxu0
        %v5782 = vadd.f32 0.0, %v5781
        %v5783 = vpop.f32.mrb[0].mxu0
        %5784 = vmatprep.mubr.bf16.mxu0 0
        %5785 = vmatmul.mubr.bf16.gmra.mrb[0].mxu0 %v5595
        %v5786 = vpop.f32.mrb[0].mxu0
        %v5787 = vadd.f32 0.0, %v5786
        %v5788 = vpop.f32.mrb[0].mxu0
        %v5789 = vpop.f32.mrb[0].mxu0
        %v5790 = vadd.f32 0.0, %v5789
        %v5791 = vpop.f32.mrb[0].mxu0
        %5792 = vmatprep.mubr.bf16.mxu0 0
        %5793 = vmatmul.mubr.bf16.gmra.mrb[0].mxu0 %v5596
        %v5794 = vpop.f32.mrb[0].mxu0
        %v5795 = vadd.f32 0.0, %v5794
        %v5796 = vpop.f32.mrb[0].mxu0
        %v5797 = vpop.f32.mrb[0].mxu0
        %v5798 = vadd.f32 0.0, %v5797
        %v5799 = vpop.f32.mrb[0].mxu0
        %5800 = vmatprep.mubr.bf16.mxu0 0
        %5801 = vmatmul.mubr.bf16.gmra.mrb[0].mxu0 %v5597
        %v5802 = vpop.f32.mrb[0].mxu0
        %v5803 = vadd.f32 0.0, %v5802
        %v5804 = vpop.f32.mrb[0].mxu0
        %v5805 = vpop.f32.mrb[0].mxu0
        %v5806 = vadd.f32 0.0, %v5805
        %v5807 = vpop.f32.mrb[0].mxu0
        %5808 = vmatprep.mubr.bf16.mxu0 0
        %5809 = vmatmul.mubr.bf16.gmra.mrb[0].mxu0 %v5598
        %v5810 = vpop.f32.mrb[0].mxu0
        %v5811 = vadd.f32 0.0, %v5810
        %v5812 = vpop.f32.mrb[0].mxu0
        %v5813 = vpop.f32.mrb[0].mxu0
        %v5814 = vadd.f32 0.0, %v5813
        %v5815 = vpop.f32.mrb[0].mxu0
        %5816 = vmatprep.mubr.bf16.mxu0 0
        %5817 = vmatmul.mubr.bf16.gmra.mrb[0].mxu0 %v5599
        %v5818 = vpop.f32.mrb[0].mxu0
        %v5819 = vadd.f32 0.0, %v5818
        %v5820 = vpop.f32.mrb[0].mxu0
        %v5821 = vpop.f32.mrb[0].mxu0
        %v5822 = vadd.f32 0.0, %v5821
        %v5823 = vpop.f32.mrb[0].mxu0
        %5824 = vdwg.mxu0
        %v5825 = vadd.f32 %v5503, %v5699
        %v5826 = vadd.f32 %v5504, %v5702
        %v5827 = vadd.f32 %v5505, %v5707
        %v5828 = vadd.f32 %v5506, %v5710
        %v5829 = vadd.f32 %v5507, %v5715
        %v5830 = vadd.f32 %v5508, %v5718
        %v5831 = vadd.f32 %v5509, %v5723
        %v5832 = vadd.f32 %v5510, %v5726
        %v5833 = vadd.f32 %v5511, %v5731
        %v5834 = vadd.f32 %v5512, %v5734
        %v5835 = vadd.f32 %v5513, %v5739
        %v5836 = vadd.f32 %v5514, %v5742
        %v5837 = vadd.f32 %v5515, %v5747
        %v5838 = vadd.f32 %v5516, %v5750
        %v5839 = vadd.f32 %v5517, %v5755
        %v5840 = vadd.f32 %v5518, %v5758
        %v5841 = vadd.f32 %v5519, %v5763
        %v5842 = vadd.f32 %v5520, %v5766
        %v5843 = vadd.f32 %v5521, %v5771
        %v5844 = vadd.f32 %v5522, %v5774
        %v5845 = vadd.f32 %v5523, %v5779
        %v5846 = vadd.f32 %v5524, %v5782
        %v5847 = vadd.f32 %v5525, %v5787
        %v5848 = vadd.f32 %v5526, %v5790
        %v5849 = vadd.f32 %v5527, %v5795
        %v5850 = vadd.f32 %v5528, %v5798
        %v5851 = vadd.f32 %v5529, %v5803
        %v5852 = vadd.f32 %v5530, %v5806
        %v5853 = vadd.f32 %v5531, %v5811
        %v5854 = vadd.f32 %v5532, %v5814
        %v5855 = vadd.f32 %v5533, %v5819
        %v5856 = vadd.f32 %v5534, %v5822
        %5857 = vst [vmem:[#allocation3] sm:$0xff] %v5825
        %5858 = vst [vmem:[#allocation3 + $0x8] sm:$0xff] %v5826
        %5859 = vst [vmem:[#allocation3 + $0x10] sm:$0xff] %v5827
        %5860 = vst [vmem:[#allocation3 + $0x18] sm:$0xff] %v5828
        %5861 = vst [vmem:[#allocation3 + $0x20] sm:$0xff] %v5829
        %5862 = vst [vmem:[#allocation3 + $0x28] sm:$0xff] %v5830
        %5863 = vst [vmem:[#allocation3 + $0x30] sm:$0xff] %v5831
        %5864 = vst [vmem:[#allocation3 + $0x38] sm:$0xff] %v5832
        %5865 = vst [vmem:[#allocation3 + $0x40] sm:$0xff] %v5833
        %5866 = vst [vmem:[#allocation3 + $0x48] sm:$0xff] %v5834
        %5867 = vst [vmem:[#allocation3 + $0x50] sm:$0xff] %v5835
        %5868 = vst [vmem:[#allocation3 + $0x58] sm:$0xff] %v5836
        %5869 = vst [vmem:[#allocation3 + $0x60] sm:$0xff] %v5837
        %5870 = vst [vmem:[#allocation3 + $0x68] sm:$0xff] %v5838
        %5871 = vst [vmem:[#allocation3 + $0x70] sm:$0xff] %v5839
        %5872 = vst [vmem:[#allocation3 + $0x78] sm:$0xff] %v5840
        %5873 = vst [vmem:[#allocation3 + $0x80] sm:$0xff] %v5841
        %5874 = vst [vmem:[#allocation3 + $0x88] sm:$0xff] %v5842
        %5875 = vst [vmem:[#allocation3 + $0x90] sm:$0xff] %v5843
        %5876 = vst [vmem:[#allocation3 + $0x98] sm:$0xff] %v5844
        %5877 = vst [vmem:[#allocation3 + $0xa0] sm:$0xff] %v5845
        %5878 = vst [vmem:[#allocation3 + $0xa8] sm:$0xff] %v5846
        %5879 = vst [vmem:[#allocation3 + $0xb0] sm:$0xff] %v5847
        %5880 = vst [vmem:[#allocation3 + $0xb8] sm:$0xff] %v5848
        %5881 = vst [vmem:[#allocation3 + $0xc0] sm:$0xff] %v5849
        %5882 = vst [vmem:[#allocation3 + $0xc8] sm:$0xff] %v5850
        %5883 = vst [vmem:[#allocation3 + $0xd0] sm:$0xff] %v5851
        %5884 = vst [vmem:[#allocation3 + $0xd8] sm:$0xff] %v5852
        %5885 = vst [vmem:[#allocation3 + $0xe0] sm:$0xff] %v5853
        %5886 = vst [vmem:[#allocation3 + $0xe8] sm:$0xff] %v5854
        %5887 = vst [vmem:[#allocation3 + $0xf0] sm:$0xff] %v5855
        %5888 = vst [vmem:[#allocation3 + $0xf8] sm:$0xff] %v5856
        %v5889 = vld [vmem:[%s4620] sm:$0xe]
        %v5890 = vld [vmem:[%s4620 + $0x4] sm:$0xf]
        %v5891 = vld [vmem:[%s4620 + $0x8] sm:$0x1]
        %v5892 = vld [vmem:[%s4620 + $0xc] sm:$0xe]
        %v5893 = vld [vmem:[%s4620 + $0x10] sm:$0xf]
        %v5894 = vld [vmem:[%s4620 + $0x14] sm:$0x1]
        %v5895 = vld [vmem:[%s4620 + $0x18] sm:$0xe]
        %v5896 = vld [vmem:[%s4620 + $0x1c] sm:$0xf]
        %v5897 = vld [vmem:[%s4620 + $0x20] sm:$0x1]
        %v5898 = vld [vmem:[%s4620 + $0x24] sm:$0xe]
        %v5899 = vld [vmem:[%s4620 + $0x28] sm:$0xf]
        %v5900 = vld [vmem:[%s4620 + $0x2c] sm:$0x1]
        %v5901 = vld [vmem:[%s4620 + $0x30] sm:$0xe]
        %v5902 = vld [vmem:[%s4620 + $0x34] sm:$0xf]
        %v5903 = vld [vmem:[%s4620 + $0x38] sm:$0x1]
        %v5904 = vld [vmem:[%s4620 + $0x3c] sm:$0xe]
        %v5905 = vld [vmem:[%s4620 + $0x40] sm:$0xf]
        %v5906 = vld [vmem:[%s4620 + $0x44] sm:$0x1]
        %v5907 = vld [vmem:[%s4620 + $0x48] sm:$0xe]
        %v5908 = vld [vmem:[%s4620 + $0x4c] sm:$0xf]
        %v5909 = vld [vmem:[%s4620 + $0x50] sm:$0x1]
        %v5910 = vld [vmem:[%s4620 + $0x54] sm:$0xe]
        %v5911 = vld [vmem:[%s4620 + $0x58] sm:$0xf]
        %v5912 = vld [vmem:[%s4620 + $0x5c] sm:$0x1]
        %v5913 = vld [vmem:[%s4620 + $0x60] sm:$0xe]
        %v5914 = vld [vmem:[%s4620 + $0x64] sm:$0xf]
        %v5915 = vld [vmem:[%s4620 + $0x68] sm:$0x1]
        %v5916 = vld [vmem:[%s4620 + $0x6c] sm:$0xe]
        %v5917 = vld [vmem:[%s4620 + $0x70] sm:$0xf]
        %v5918 = vld [vmem:[%s4620 + $0x74] sm:$0x1]
        %v5919 = vld [vmem:[%s4620 + $0x78] sm:$0xe]
        %v5920 = vld [vmem:[%s4620 + $0x7c] sm:$0xf]
        %v5921 = vld [vmem:[%s4620 + $0x80] sm:$0x1]
        %v5922 = vld [vmem:[%s4620 + $0x84] sm:$0xe]
        %v5923 = vld [vmem:[%s4620 + $0x88] sm:$0xf]
        %v5924 = vld [vmem:[%s4620 + $0x8c] sm:$0x1]
        %v5925 = vld [vmem:[%s4620 + $0x90] sm:$0xe]
        %v5926 = vld [vmem:[%s4620 + $0x94] sm:$0xf]
        %v5927 = vld [vmem:[%s4620 + $0x98] sm:$0x1]
        %v5928 = vld [vmem:[%s4620 + $0x9c] sm:$0xe]
        %v5929 = vld [vmem:[%s4620 + $0xa0] sm:$0xf]
        %v5930 = vld [vmem:[%s4620 + $0xa4] sm:$0x1]
        %v5931 = vld [vmem:[%s4620 + $0xa8] sm:$0xe]
        %v5932 = vld [vmem:[%s4620 + $0xac] sm:$0xf]
        %v5933 = vld [vmem:[%s4620 + $0xb0] sm:$0x1]
        %v5934 = vld [vmem:[%s4620 + $0xb4] sm:$0xe]
        %v5935 = vld [vmem:[%s4620 + $0xb8] sm:$0xf]
        %v5936 = vld [vmem:[%s4620 + $0xbc] sm:$0x1]
        %v5985 = vrot.slane %v5889, 5
        %v5986 = vrot.slane %v5985, 4
        %v5987 = vrot.slane %v5890, 5
        %v5988 = vsel %vm2258, %v5986, %v5987
        %v5989 = vrot.slane %v5987, 4
        %v5990 = vrot.slane %v5891, 5
        %v5991 = vsel %vm2258, %v5989, %v5990
        %v5992 = vrot.slane %v5892, 5
        %v5993 = vrot.slane %v5992, 4
        %v5994 = vrot.slane %v5893, 5
        %v5995 = vsel %vm2258, %v5993, %v5994
        %v5996 = vrot.slane %v5994, 4
        %v5997 = vrot.slane %v5894, 5
        %v5998 = vsel %vm2258, %v5996, %v5997
        %v5999 = vrot.slane %v5895, 5
        %v6000 = vrot.slane %v5999, 4
        %v6001 = vrot.slane %v5896, 5
        %v6002 = vsel %vm2258, %v6000, %v6001
        %v6003 = vrot.slane %v6001, 4
        %v6004 = vrot.slane %v5897, 5
        %v6005 = vsel %vm2258, %v6003, %v6004
        %v6006 = vrot.slane %v5898, 5
        %v6007 = vrot.slane %v6006, 4
        %v6008 = vrot.slane %v5899, 5
        %v6009 = vsel %vm2258, %v6007, %v6008
        %v6010 = vrot.slane %v6008, 4
        %v6011 = vrot.slane %v5900, 5
        %v6012 = vsel %vm2258, %v6010, %v6011
        %v6013 = vrot.slane %v5901, 5
        %v6014 = vrot.slane %v6013, 4
        %v6015 = vrot.slane %v5902, 5
        %v6016 = vsel %vm2258, %v6014, %v6015
        %v6017 = vrot.slane %v6015, 4
        %v6018 = vrot.slane %v5903, 5
        %v6019 = vsel %vm2258, %v6017, %v6018
        %v6020 = vrot.slane %v5904, 5
        %v6021 = vrot.slane %v6020, 4
        %v6022 = vrot.slane %v5905, 5
        %v6023 = vsel %vm2258, %v6021, %v6022
        %v6024 = vrot.slane %v6022, 4
        %v6025 = vrot.slane %v5906, 5
        %v6026 = vsel %vm2258, %v6024, %v6025
        %v6027 = vrot.slane %v5907, 5
        %v6028 = vrot.slane %v6027, 4
        %v6029 = vrot.slane %v5908, 5
        %v6030 = vsel %vm2258, %v6028, %v6029
        %v6031 = vrot.slane %v6029, 4
        %v6032 = vrot.slane %v5909, 5
        %v6033 = vsel %vm2258, %v6031, %v6032
        %v6034 = vrot.slane %v5910, 5
        %v6035 = vrot.slane %v6034, 4
        %v6036 = vrot.slane %v5911, 5
        %v6037 = vsel %vm2258, %v6035, %v6036
        %v6038 = vrot.slane %v6036, 4
        %v6039 = vrot.slane %v5912, 5
        %v6040 = vsel %vm2258, %v6038, %v6039
        %v6041 = vrot.slane %v5913, 5
        %v6042 = vrot.slane %v6041, 4
        %v6043 = vrot.slane %v5914, 5
        %v6044 = vsel %vm2258, %v6042, %v6043
        %v6045 = vrot.slane %v6043, 4
        %v6046 = vrot.slane %v5915, 5
        %v6047 = vsel %vm2258, %v6045, %v6046
        %v6048 = vrot.slane %v5916, 5
        %v6049 = vrot.slane %v6048, 4
        %v6050 = vrot.slane %v5917, 5
        %v6051 = vsel %vm2258, %v6049, %v6050
        %v6052 = vrot.slane %v6050, 4
        %v6053 = vrot.slane %v5918, 5
        %v6054 = vsel %vm2258, %v6052, %v6053
        %v6055 = vrot.slane %v5919, 5
        %v6056 = vrot.slane %v6055, 4
        %v6057 = vrot.slane %v5920, 5
        %v6058 = vsel %vm2258, %v6056, %v6057
        %v6059 = vrot.slane %v6057, 4
        %v6060 = vrot.slane %v5921, 5
        %v6061 = vsel %vm2258, %v6059, %v6060
        %v6062 = vrot.slane %v5922, 5
        %v6063 = vrot.slane %v6062, 4
        %v6064 = vrot.slane %v5923, 5
        %v6065 = vsel %vm2258, %v6063, %v6064
        %v6066 = vrot.slane %v6064, 4
        %v6067 = vrot.slane %v5924, 5
        %v6068 = vsel %vm2258, %v6066, %v6067
        %v6069 = vrot.slane %v5925, 5
        %v6070 = vrot.slane %v6069, 4
        %v6071 = vrot.slane %v5926, 5
        %v6072 = vsel %vm2258, %v6070, %v6071
        %v6073 = vrot.slane %v6071, 4
        %v6074 = vrot.slane %v5927, 5
        %v6075 = vsel %vm2258, %v6073, %v6074
        %v6076 = vrot.slane %v5928, 5
        %v6077 = vrot.slane %v6076, 4
        %v6078 = vrot.slane %v5929, 5
        %v6079 = vsel %vm2258, %v6077, %v6078
        %v6080 = vrot.slane %v6078, 4
        %v6081 = vrot.slane %v5930, 5
        %v6082 = vsel %vm2258, %v6080, %v6081
        %v6083 = vrot.slane %v5931, 5
        %v6084 = vrot.slane %v6083, 4
        %v6085 = vrot.slane %v5932, 5
        %v6086 = vsel %vm2258, %v6084, %v6085
        %v6087 = vrot.slane %v6085, 4
        %v6088 = vrot.slane %v5933, 5
        %v6089 = vsel %vm2258, %v6087, %v6088
        %v6090 = vrot.slane %v5934, 5
        %v6091 = vrot.slane %v6090, 4
        %v6092 = vrot.slane %v5935, 5
        %v6093 = vsel %vm2258, %v6091, %v6092
        %v6094 = vrot.slane %v6092, 4
        %v6095 = vrot.slane %v5936, 5
        %v6096 = vsel %vm2258, %v6094, %v6095
        %v6097 = vld [vmem:[#allocation3] sm:$0xff]
        %v6098 = vld [vmem:[#allocation3 + $0x8] sm:$0xff]
        %v6099 = vld [vmem:[#allocation3 + $0x10] sm:$0xff]
        %v6100 = vld [vmem:[#allocation3 + $0x18] sm:$0xff]
        %v6101 = vld [vmem:[#allocation3 + $0x20] sm:$0xff]
        %v6102 = vld [vmem:[#allocation3 + $0x28] sm:$0xff]
        %v6103 = vld [vmem:[#allocation3 + $0x30] sm:$0xff]
        %v6104 = vld [vmem:[#allocation3 + $0x38] sm:$0xff]
        %v6105 = vld [vmem:[#allocation3 + $0x40] sm:$0xff]
        %v6106 = vld [vmem:[#allocation3 + $0x48] sm:$0xff]
        %v6107 = vld [vmem:[#allocation3 + $0x50] sm:$0xff]
        %v6108 = vld [vmem:[#allocation3 + $0x58] sm:$0xff]
        %v6109 = vld [vmem:[#allocation3 + $0x60] sm:$0xff]
        %v6110 = vld [vmem:[#allocation3 + $0x68] sm:$0xff]
        %v6111 = vld [vmem:[#allocation3 + $0x70] sm:$0xff]
        %v6112 = vld [vmem:[#allocation3 + $0x78] sm:$0xff]
        %v6113 = vld [vmem:[#allocation3 + $0x80] sm:$0xff]
        %v6114 = vld [vmem:[#allocation3 + $0x88] sm:$0xff]
        %v6115 = vld [vmem:[#allocation3 + $0x90] sm:$0xff]
        %v6116 = vld [vmem:[#allocation3 + $0x98] sm:$0xff]
        %v6117 = vld [vmem:[#allocation3 + $0xa0] sm:$0xff]
        %v6118 = vld [vmem:[#allocation3 + $0xa8] sm:$0xff]
        %v6119 = vld [vmem:[#allocation3 + $0xb0] sm:$0xff]
        %v6120 = vld [vmem:[#allocation3 + $0xb8] sm:$0xff]
        %v6121 = vld [vmem:[#allocation3 + $0xc0] sm:$0xff]
        %v6122 = vld [vmem:[#allocation3 + $0xc8] sm:$0xff]
        %v6123 = vld [vmem:[#allocation3 + $0xd0] sm:$0xff]
        %v6124 = vld [vmem:[#allocation3 + $0xd8] sm:$0xff]
        %v6125 = vld [vmem:[#allocation3 + $0xe0] sm:$0xff]
        %v6126 = vld [vmem:[#allocation3 + $0xe8] sm:$0xff]
        %v6127 = vld [vmem:[#allocation3 + $0xf0] sm:$0xff]
        %v6128 = vld [vmem:[#allocation3 + $0xf8] sm:$0xff]
        %s6129 = scalar_lea.vmem %s207, 512 [#allocation4]
        %v6130 = vld [vmem:[%s6129] sm:$0xf]
        %v6131 = vld [vmem:[%s6129 + $0x4] sm:$0xf]
        %v6132 = vld [vmem:[%s6129 + $0x8] sm:$0xf]
        %v6133 = vld [vmem:[%s6129 + $0xc] sm:$0xf]
        %v6134 = vld [vmem:[%s6129 + $0x10] sm:$0xf]
        %v6135 = vld [vmem:[%s6129 + $0x14] sm:$0xf]
        %v6136 = vld [vmem:[%s6129 + $0x18] sm:$0xf]
        %v6137 = vld [vmem:[%s6129 + $0x1c] sm:$0xf]
        %v6138 = vld [vmem:[%s6129 + $0x20] sm:$0xf]
        %v6139 = vld [vmem:[%s6129 + $0x24] sm:$0xf]
        %v6140 = vld [vmem:[%s6129 + $0x28] sm:$0xf]
        %v6141 = vld [vmem:[%s6129 + $0x2c] sm:$0xf]
        %v6142 = vld [vmem:[%s6129 + $0x30] sm:$0xf]
        %v6143 = vld [vmem:[%s6129 + $0x34] sm:$0xf]
        %v6144 = vld [vmem:[%s6129 + $0x38] sm:$0xf]
        %v6145 = vld [vmem:[%s6129 + $0x3c] sm:$0xf]
        %v6146 = vunpack.c.l.b16 %v5988
        %v6147 = vunpack.c.l.b16 %v5991
        %v6148 = vunpack.c.l.b16 %v5995
        %v6149 = vunpack.c.l.b16 %v5998
        %v6150 = vunpack.c.l.b16 %v6002
        %v6151 = vunpack.c.l.b16 %v6005
        %v6152 = vunpack.c.l.b16 %v6009
        %v6153 = vunpack.c.l.b16 %v6012
        %v6154 = vunpack.c.l.b16 %v6016
        %v6155 = vunpack.c.l.b16 %v6019
        %v6156 = vunpack.c.l.b16 %v6023
        %v6157 = vunpack.c.l.b16 %v6026
        %v6158 = vunpack.c.l.b16 %v6030
        %v6159 = vunpack.c.l.b16 %v6033
        %v6160 = vunpack.c.l.b16 %v6037
        %v6161 = vunpack.c.l.b16 %v6040
        %v6162 = vunpack.c.l.b16 %v6044
        %v6163 = vunpack.c.l.b16 %v6047
        %v6164 = vunpack.c.l.b16 %v6051
        %v6165 = vunpack.c.l.b16 %v6054
        %v6166 = vunpack.c.l.b16 %v6058
        %v6167 = vunpack.c.l.b16 %v6061
        %v6168 = vunpack.c.l.b16 %v6065
        %v6169 = vunpack.c.l.b16 %v6068
        %v6170 = vunpack.c.l.b16 %v6072
        %v6171 = vunpack.c.l.b16 %v6075
        %v6172 = vunpack.c.l.b16 %v6079
        %v6173 = vunpack.c.l.b16 %v6082
        %v6174 = vunpack.c.l.b16 %v6086
        %v6175 = vunpack.c.l.b16 %v6089
        %v6176 = vunpack.c.l.b16 %v6093
        %v6177 = vunpack.c.l.b16 %v6096
        %v6178 = vpack.c.b16 %v6147, %v6146
        %v6179 = vpack.c.b16 %v6149, %v6148
        %v6180 = vpack.c.b16 %v6151, %v6150
        %v6181 = vpack.c.b16 %v6153, %v6152
        %v6182 = vpack.c.b16 %v6155, %v6154
        %v6183 = vpack.c.b16 %v6157, %v6156
        %v6184 = vpack.c.b16 %v6159, %v6158
        %v6185 = vpack.c.b16 %v6161, %v6160
        %v6186 = vpack.c.b16 %v6163, %v6162
        %v6187 = vpack.c.b16 %v6165, %v6164
        %v6188 = vpack.c.b16 %v6167, %v6166
        %v6189 = vpack.c.b16 %v6169, %v6168
        %v6190 = vpack.c.b16 %v6171, %v6170
        %v6191 = vpack.c.b16 %v6173, %v6172
        %v6192 = vpack.c.b16 %v6175, %v6174
        %v6193 = vpack.c.b16 %v6177, %v6176
        %v6226 = vunpack.c.l.b16 %v6130
        %v6227 = vunpack.c.l.b16 %v6131
        %v6228 = vunpack.c.l.b16 %v6132
        %v6229 = vunpack.c.l.b16 %v6133
        %v6230 = vunpack.c.l.b16 %v6134
        %v6231 = vunpack.c.l.b16 %v6135
        %v6232 = vunpack.c.l.b16 %v6136
        %v6233 = vunpack.c.l.b16 %v6137
        %v6234 = vunpack.c.l.b16 %v6138
        %v6235 = vunpack.c.l.b16 %v6139
        %v6236 = vunpack.c.l.b16 %v6140
        %v6237 = vunpack.c.l.b16 %v6141
        %v6238 = vunpack.c.l.b16 %v6142
        %v6239 = vunpack.c.l.b16 %v6143
        %v6240 = vunpack.c.l.b16 %v6144
        %v6241 = vunpack.c.l.b16 %v6145
        %v6242 = vpack.c.b16 %v6227, %v6226
        %v6243 = vpack.c.b16 %v6229, %v6228
        %v6244 = vpack.c.b16 %v6231, %v6230
        %v6245 = vpack.c.b16 %v6233, %v6232
        %v6246 = vpack.c.b16 %v6235, %v6234
        %v6247 = vpack.c.b16 %v6237, %v6236
        %v6248 = vpack.c.b16 %v6239, %v6238
        %v6249 = vpack.c.b16 %v6241, %v6240
        %6258 = vmatprep.subr.bf16.mxu0 0
        %6259 = vmatpush1.bf16.msra.mxu0 %v6242
        %6260 = vmatprep.subr.bf16.mxu0 0
        %6261 = vmatpush1.bf16.msra.mxu0 %v6243
        %6262 = vmatprep.subr.bf16.mxu0 0
        %6263 = vmatpush1.bf16.msra.mxu0 %v6244
        %6264 = vmatprep.subr.bf16.mxu0 0
        %6265 = vmatpush1.bf16.msra.mxu0 %v6245
        %6266 = vmatprep.subr.bf16.mxu0 0
        %6267 = vmatpush1.bf16.msra.mxu0 %v6246
        %6268 = vmatprep.subr.bf16.mxu0 0
        %6269 = vmatpush1.bf16.msra.mxu0 %v6247
        %6270 = vmatprep.subr.bf16.mxu0 0
        %6271 = vmatpush1.bf16.msra.mxu0 %v6248
        %6272 = vmatprep.subr.bf16.mxu0 0
        %6273 = vmatpush1.bf16.msra.mxu0 %v6249
        %6274 = vmatprep.subr.bf16.mxu0 0
        %6275 = vmatpush1.bf16.msra.mxu0 0
        %6276 = vmatprep.subr.bf16.mxu0 0
        %6277 = vmatpush1.bf16.msra.mxu0 0
        %6278 = vmatprep.subr.bf16.mxu0 0
        %6279 = vmatpush1.bf16.msra.mxu0 0
        %6280 = vmatprep.subr.bf16.mxu0 0
        %6281 = vmatpush1.bf16.msra.mxu0 0
        %6282 = vmatprep.subr.bf16.mxu0 0
        %6283 = vmatpush1.bf16.msra.mxu0 0
        %6284 = vmatprep.subr.bf16.mxu0 0
        %6285 = vmatpush1.bf16.msra.mxu0 0
        %6286 = vmatprep.subr.bf16.mxu0 0
        %6287 = vmatpush1.bf16.msra.mxu0 0
        %6288 = vmatprep.subr.bf16.mxu0 0
        %6289 = vmatpush1.bf16.msra.mxu0 0
        %6290 = vmatprep.mubr.bf16.mxu0 0
        %6291 = vmatmul.mubr.bf16.gmra.mrb[0].mxu0 %v6178
        %v6292 = vpop.f32.mrb[0].mxu0
        %v6293 = vadd.f32 0.0, %v6292
        %v6294 = vpop.f32.mrb[0].mxu0
        %v6295 = vpop.f32.mrb[0].mxu0
        %v6296 = vadd.f32 0.0, %v6295
        %v6297 = vpop.f32.mrb[0].mxu0
        %6298 = vmatprep.mubr.bf16.mxu0 0
        %6299 = vmatmul.mubr.bf16.gmra.mrb[0].mxu0 %v6179
        %v6300 = vpop.f32.mrb[0].mxu0
        %v6301 = vadd.f32 0.0, %v6300
        %v6302 = vpop.f32.mrb[0].mxu0
        %v6303 = vpop.f32.mrb[0].mxu0
        %v6304 = vadd.f32 0.0, %v6303
        %v6305 = vpop.f32.mrb[0].mxu0
        %6306 = vmatprep.mubr.bf16.mxu0 0
        %6307 = vmatmul.mubr.bf16.gmra.mrb[0].mxu0 %v6180
        %v6308 = vpop.f32.mrb[0].mxu0
        %v6309 = vadd.f32 0.0, %v6308
        %v6310 = vpop.f32.mrb[0].mxu0
        %v6311 = vpop.f32.mrb[0].mxu0
        %v6312 = vadd.f32 0.0, %v6311
        %v6313 = vpop.f32.mrb[0].mxu0
        %6314 = vmatprep.mubr.bf16.mxu0 0
        %6315 = vmatmul.mubr.bf16.gmra.mrb[0].mxu0 %v6181
        %v6316 = vpop.f32.mrb[0].mxu0
        %v6317 = vadd.f32 0.0, %v6316
        %v6318 = vpop.f32.mrb[0].mxu0
        %v6319 = vpop.f32.mrb[0].mxu0
        %v6320 = vadd.f32 0.0, %v6319
        %v6321 = vpop.f32.mrb[0].mxu0
        %6322 = vmatprep.mubr.bf16.mxu0 0
        %6323 = vmatmul.mubr.bf16.gmra.mrb[0].mxu0 %v6182
        %v6324 = vpop.f32.mrb[0].mxu0
        %v6325 = vadd.f32 0.0, %v6324
        %v6326 = vpop.f32.mrb[0].mxu0
        %v6327 = vpop.f32.mrb[0].mxu0
        %v6328 = vadd.f32 0.0, %v6327
        %v6329 = vpop.f32.mrb[0].mxu0
        %6330 = vmatprep.mubr.bf16.mxu0 0
        %6331 = vmatmul.mubr.bf16.gmra.mrb[0].mxu0 %v6183
        %v6332 = vpop.f32.mrb[0].mxu0
        %v6333 = vadd.f32 0.0, %v6332
        %v6334 = vpop.f32.mrb[0].mxu0
        %v6335 = vpop.f32.mrb[0].mxu0
        %v6336 = vadd.f32 0.0, %v6335
        %v6337 = vpop.f32.mrb[0].mxu0
        %6338 = vmatprep.mubr.bf16.mxu0 0
        %6339 = vmatmul.mubr.bf16.gmra.mrb[0].mxu0 %v6184
        %v6340 = vpop.f32.mrb[0].mxu0
        %v6341 = vadd.f32 0.0, %v6340
        %v6342 = vpop.f32.mrb[0].mxu0
        %v6343 = vpop.f32.mrb[0].mxu0
        %v6344 = vadd.f32 0.0, %v6343
        %v6345 = vpop.f32.mrb[0].mxu0
        %6346 = vmatprep.mubr.bf16.mxu0 0
        %6347 = vmatmul.mubr.bf16.gmra.mrb[0].mxu0 %v6185
        %v6348 = vpop.f32.mrb[0].mxu0
        %v6349 = vadd.f32 0.0, %v6348
        %v6350 = vpop.f32.mrb[0].mxu0
        %v6351 = vpop.f32.mrb[0].mxu0
        %v6352 = vadd.f32 0.0, %v6351
        %v6353 = vpop.f32.mrb[0].mxu0
        %6354 = vmatprep.mubr.bf16.mxu0 0
        %6355 = vmatmul.mubr.bf16.gmra.mrb[0].mxu0 %v6186
        %v6356 = vpop.f32.mrb[0].mxu0
        %v6357 = vadd.f32 0.0, %v6356
        %v6358 = vpop.f32.mrb[0].mxu0
        %v6359 = vpop.f32.mrb[0].mxu0
        %v6360 = vadd.f32 0.0, %v6359
        %v6361 = vpop.f32.mrb[0].mxu0
        %6362 = vmatprep.mubr.bf16.mxu0 0
        %6363 = vmatmul.mubr.bf16.gmra.mrb[0].mxu0 %v6187
        %v6364 = vpop.f32.mrb[0].mxu0
        %v6365 = vadd.f32 0.0, %v6364
        %v6366 = vpop.f32.mrb[0].mxu0
        %v6367 = vpop.f32.mrb[0].mxu0
        %v6368 = vadd.f32 0.0, %v6367
        %v6369 = vpop.f32.mrb[0].mxu0
        %6370 = vmatprep.mubr.bf16.mxu0 0
        %6371 = vmatmul.mubr.bf16.gmra.mrb[0].mxu0 %v6188
        %v6372 = vpop.f32.mrb[0].mxu0
        %v6373 = vadd.f32 0.0, %v6372
        %v6374 = vpop.f32.mrb[0].mxu0
        %v6375 = vpop.f32.mrb[0].mxu0
        %v6376 = vadd.f32 0.0, %v6375
        %v6377 = vpop.f32.mrb[0].mxu0
        %6378 = vmatprep.mubr.bf16.mxu0 0
        %6379 = vmatmul.mubr.bf16.gmra.mrb[0].mxu0 %v6189
        %v6380 = vpop.f32.mrb[0].mxu0
        %v6381 = vadd.f32 0.0, %v6380
        %v6382 = vpop.f32.mrb[0].mxu0
        %v6383 = vpop.f32.mrb[0].mxu0
        %v6384 = vadd.f32 0.0, %v6383
        %v6385 = vpop.f32.mrb[0].mxu0
        %6386 = vmatprep.mubr.bf16.mxu0 0
        %6387 = vmatmul.mubr.bf16.gmra.mrb[0].mxu0 %v6190
        %v6388 = vpop.f32.mrb[0].mxu0
        %v6389 = vadd.f32 0.0, %v6388
        %v6390 = vpop.f32.mrb[0].mxu0
        %v6391 = vpop.f32.mrb[0].mxu0
        %v6392 = vadd.f32 0.0, %v6391
        %v6393 = vpop.f32.mrb[0].mxu0
        %6394 = vmatprep.mubr.bf16.mxu0 0
        %6395 = vmatmul.mubr.bf16.gmra.mrb[0].mxu0 %v6191
        %v6396 = vpop.f32.mrb[0].mxu0
        %v6397 = vadd.f32 0.0, %v6396
        %v6398 = vpop.f32.mrb[0].mxu0
        %v6399 = vpop.f32.mrb[0].mxu0
        %v6400 = vadd.f32 0.0, %v6399
        %v6401 = vpop.f32.mrb[0].mxu0
        %6402 = vmatprep.mubr.bf16.mxu0 0
        %6403 = vmatmul.mubr.bf16.gmra.mrb[0].mxu0 %v6192
        %v6404 = vpop.f32.mrb[0].mxu0
        %v6405 = vadd.f32 0.0, %v6404
        %v6406 = vpop.f32.mrb[0].mxu0
        %v6407 = vpop.f32.mrb[0].mxu0
        %v6408 = vadd.f32 0.0, %v6407
        %v6409 = vpop.f32.mrb[0].mxu0
        %6410 = vmatprep.mubr.bf16.mxu0 0
        %6411 = vmatmul.mubr.bf16.gmra.mrb[0].mxu0 %v6193
        %v6412 = vpop.f32.mrb[0].mxu0
        %v6413 = vadd.f32 0.0, %v6412
        %v6414 = vpop.f32.mrb[0].mxu0
        %v6415 = vpop.f32.mrb[0].mxu0
        %v6416 = vadd.f32 0.0, %v6415
        %v6417 = vpop.f32.mrb[0].mxu0
        %6418 = vdwg.mxu0
        %v6419 = vadd.f32 %v6097, %v6293
        %v6420 = vadd.f32 %v6098, %v6296
        %v6421 = vadd.f32 %v6099, %v6301
        %v6422 = vadd.f32 %v6100, %v6304
        %v6423 = vadd.f32 %v6101, %v6309
        %v6424 = vadd.f32 %v6102, %v6312
        %v6425 = vadd.f32 %v6103, %v6317
        %v6426 = vadd.f32 %v6104, %v6320
        %v6427 = vadd.f32 %v6105, %v6325
        %v6428 = vadd.f32 %v6106, %v6328
        %v6429 = vadd.f32 %v6107, %v6333
        %v6430 = vadd.f32 %v6108, %v6336
        %v6431 = vadd.f32 %v6109, %v6341
        %v6432 = vadd.f32 %v6110, %v6344
        %v6433 = vadd.f32 %v6111, %v6349
        %v6434 = vadd.f32 %v6112, %v6352
        %v6435 = vadd.f32 %v6113, %v6357
        %v6436 = vadd.f32 %v6114, %v6360
        %v6437 = vadd.f32 %v6115, %v6365
        %v6438 = vadd.f32 %v6116, %v6368
        %v6439 = vadd.f32 %v6117, %v6373
        %v6440 = vadd.f32 %v6118, %v6376
        %v6441 = vadd.f32 %v6119, %v6381
        %v6442 = vadd.f32 %v6120, %v6384
        %v6443 = vadd.f32 %v6121, %v6389
        %v6444 = vadd.f32 %v6122, %v6392
        %v6445 = vadd.f32 %v6123, %v6397
        %v6446 = vadd.f32 %v6124, %v6400
        %v6447 = vadd.f32 %v6125, %v6405
        %v6448 = vadd.f32 %v6126, %v6408
        %v6449 = vadd.f32 %v6127, %v6413
        %v6450 = vadd.f32 %v6128, %v6416
        %6451 = vst [vmem:[#allocation3] sm:$0xff] %v6419
        %6452 = vst [vmem:[#allocation3 + $0x8] sm:$0xff] %v6420
        %6453 = vst [vmem:[#allocation3 + $0x10] sm:$0xff] %v6421
        %6454 = vst [vmem:[#allocation3 + $0x18] sm:$0xff] %v6422
        %6455 = vst [vmem:[#allocation3 + $0x20] sm:$0xff] %v6423
        %6456 = vst [vmem:[#allocation3 + $0x28] sm:$0xff] %v6424
        %6457 = vst [vmem:[#allocation3 + $0x30] sm:$0xff] %v6425
        %6458 = vst [vmem:[#allocation3 + $0x38] sm:$0xff] %v6426
        %6459 = vst [vmem:[#allocation3 + $0x40] sm:$0xff] %v6427
        %6460 = vst [vmem:[#allocation3 + $0x48] sm:$0xff] %v6428
        %6461 = vst [vmem:[#allocation3 + $0x50] sm:$0xff] %v6429
        %6462 = vst [vmem:[#allocation3 + $0x58] sm:$0xff] %v6430
        %6463 = vst [vmem:[#allocation3 + $0x60] sm:$0xff] %v6431
        %6464 = vst [vmem:[#allocation3 + $0x68] sm:$0xff] %v6432
        %6465 = vst [vmem:[#allocation3 + $0x70] sm:$0xff] %v6433
        %6466 = vst [vmem:[#allocation3 + $0x78] sm:$0xff] %v6434
        %6467 = vst [vmem:[#allocation3 + $0x80] sm:$0xff] %v6435
        %6468 = vst [vmem:[#allocation3 + $0x88] sm:$0xff] %v6436
        %6469 = vst [vmem:[#allocation3 + $0x90] sm:$0xff] %v6437
        %6470 = vst [vmem:[#allocation3 + $0x98] sm:$0xff] %v6438
        %6471 = vst [vmem:[#allocation3 + $0xa0] sm:$0xff] %v6439
        %6472 = vst [vmem:[#allocation3 + $0xa8] sm:$0xff] %v6440
        %6473 = vst [vmem:[#allocation3 + $0xb0] sm:$0xff] %v6441
        %6474 = vst [vmem:[#allocation3 + $0xb8] sm:$0xff] %v6442
        %6475 = vst [vmem:[#allocation3 + $0xc0] sm:$0xff] %v6443
        %6476 = vst [vmem:[#allocation3 + $0xc8] sm:$0xff] %v6444
        %6477 = vst [vmem:[#allocation3 + $0xd0] sm:$0xff] %v6445
        %6478 = vst [vmem:[#allocation3 + $0xd8] sm:$0xff] %v6446
        %6479 = vst [vmem:[#allocation3 + $0xe0] sm:$0xff] %v6447
        %6480 = vst [vmem:[#allocation3 + $0xe8] sm:$0xff] %v6448
        %6481 = vst [vmem:[#allocation3 + $0xf0] sm:$0xff] %v6449
        %6482 = vst [vmem:[#allocation3 + $0xf8] sm:$0xff] %v6450
        %p6483 = scmp.lt.s32.totalorder %s25, 9
        // Predicated region
        $region45: #{_lambda_.1} parent=31 // pred_check
          %p6484 = pneg %p6483
        $region46: #{_lambda_.1} parent=31 // pred_check_branch
          %6486 = sbr.rel (%p6484) target = $region48
        $region47: #{_lambda_.1} parent=31 // pred_region
          %v6487 = vld [vmem:[#allocation3] sm:$0xff]
          %v6488 = vld [vmem:[#allocation3 + $0x8] sm:$0xff]
          %v6489 = vld [vmem:[#allocation3 + $0x10] sm:$0xff]
          %v6490 = vld [vmem:[#allocation3 + $0x18] sm:$0xff]
          %v6491 = vld [vmem:[#allocation3 + $0x20] sm:$0xff]
          %v6492 = vld [vmem:[#allocation3 + $0x28] sm:$0xff]
          %v6493 = vld [vmem:[#allocation3 + $0x30] sm:$0xff]
          %v6494 = vld [vmem:[#allocation3 + $0x38] sm:$0xff]
          %v6495 = vld [vmem:[#allocation3 + $0x40] sm:$0xff]
          %v6496 = vld [vmem:[#allocation3 + $0x48] sm:$0xff]
          %v6497 = vld [vmem:[#allocation3 + $0x50] sm:$0xff]
          %v6498 = vld [vmem:[#allocation3 + $0x58] sm:$0xff]
          %v6499 = vld [vmem:[#allocation3 + $0x60] sm:$0xff]
          %v6500 = vld [vmem:[#allocation3 + $0x68] sm:$0xff]
          %v6501 = vld [vmem:[#allocation3 + $0x70] sm:$0xff]
          %v6502 = vld [vmem:[#allocation3 + $0x78] sm:$0xff]
          %v6503 = vld [vmem:[#allocation3 + $0x80] sm:$0xff]
          %v6504 = vld [vmem:[#allocation3 + $0x88] sm:$0xff]
          %v6505 = vld [vmem:[#allocation3 + $0x90] sm:$0xff]
          %v6506 = vld [vmem:[#allocation3 + $0x98] sm:$0xff]
          %v6507 = vld [vmem:[#allocation3 + $0xa0] sm:$0xff]
          %v6508 = vld [vmem:[#allocation3 + $0xa8] sm:$0xff]
          %v6509 = vld [vmem:[#allocation3 + $0xb0] sm:$0xff]
          %v6510 = vld [vmem:[#allocation3 + $0xb8] sm:$0xff]
          %v6511 = vld [vmem:[#allocation3 + $0xc0] sm:$0xff]
          %v6512 = vld [vmem:[#allocation3 + $0xc8] sm:$0xff]
          %v6513 = vld [vmem:[#allocation3 + $0xd0] sm:$0xff]
          %v6514 = vld [vmem:[#allocation3 + $0xd8] sm:$0xff]
          %v6515 = vld [vmem:[#allocation3 + $0xe0] sm:$0xff]
          %v6516 = vld [vmem:[#allocation3 + $0xe8] sm:$0xff]
          %v6517 = vld [vmem:[#allocation3 + $0xf0] sm:$0xff]
          %v6518 = vld [vmem:[#allocation3 + $0xf8] sm:$0xff]
          %v6519 = vmax.f32 %v6487, 0.0
          %v6520 = vmax.f32 %v6488, 0.0
          %v6521 = vmax.f32 %v6489, 0.0
          %v6522 = vmax.f32 %v6490, 0.0
          %v6523 = vmax.f32 %v6491, 0.0
          %v6524 = vmax.f32 %v6492, 0.0
          %v6525 = vmax.f32 %v6493, 0.0
          %v6526 = vmax.f32 %v6494, 0.0
          %v6527 = vmax.f32 %v6495, 0.0
          %v6528 = vmax.f32 %v6496, 0.0
          %v6529 = vmax.f32 %v6497, 0.0
          %v6530 = vmax.f32 %v6498, 0.0
          %v6531 = vmax.f32 %v6499, 0.0
          %v6532 = vmax.f32 %v6500, 0.0
          %v6533 = vmax.f32 %v6501, 0.0
          %v6534 = vmax.f32 %v6502, 0.0
          %v6535 = vmax.f32 %v6503, 0.0
          %v6536 = vmax.f32 %v6504, 0.0
          %v6537 = vmax.f32 %v6505, 0.0
          %v6538 = vmax.f32 %v6506, 0.0
          %v6539 = vmax.f32 %v6507, 0.0
          %v6540 = vmax.f32 %v6508, 0.0
          %v6541 = vmax.f32 %v6509, 0.0
          %v6542 = vmax.f32 %v6510, 0.0
          %v6543 = vmax.f32 %v6511, 0.0
          %v6544 = vmax.f32 %v6512, 0.0
          %v6545 = vmax.f32 %v6513, 0.0
          %v6546 = vmax.f32 %v6514, 0.0
          %v6547 = vmax.f32 %v6515, 0.0
          %v6548 = vmax.f32 %v6516, 0.0
          %v6549 = vmax.f32 %v6517, 0.0
          %v6550 = vmax.f32 %v6518, 0.0
          %v6551 = vpack.c.bf16 %v6520, %v6519
          %v6552 = vpack.c.bf16 %v6522, %v6521
          %v6553 = vpack.c.bf16 %v6524, %v6523
          %v6554 = vpack.c.bf16 %v6526, %v6525
          %v6555 = vpack.c.bf16 %v6528, %v6527
          %v6556 = vpack.c.bf16 %v6530, %v6529
          %v6557 = vpack.c.bf16 %v6532, %v6531
          %v6558 = vpack.c.bf16 %v6534, %v6533
          %v6559 = vpack.c.bf16 %v6536, %v6535
          %v6560 = vpack.c.bf16 %v6538, %v6537
          %v6561 = vpack.c.bf16 %v6540, %v6539
          %v6562 = vpack.c.bf16 %v6542, %v6541
          %v6563 = vpack.c.bf16 %v6544, %v6543
          %v6564 = vpack.c.bf16 %v6546, %v6545
          %v6565 = vpack.c.bf16 %v6548, %v6547
          %v6566 = vpack.c.bf16 %v6550, %v6549
          %v6583 = vunpack.c.l.b16 %v6551
          %v6584 = vunpack.c.h.b16 %v6551
          %v6585 = vunpack.c.l.b16 %v6552
          %v6586 = vunpack.c.h.b16 %v6552
          %v6587 = vunpack.c.l.b16 %v6553
          %v6588 = vunpack.c.h.b16 %v6553
          %v6589 = vunpack.c.l.b16 %v6554
          %v6590 = vunpack.c.h.b16 %v6554
          %v6591 = vunpack.c.l.b16 %v6555
          %v6592 = vunpack.c.h.b16 %v6555
          %v6593 = vunpack.c.l.b16 %v6556
          %v6594 = vunpack.c.h.b16 %v6556
          %v6595 = vunpack.c.l.b16 %v6557
          %v6596 = vunpack.c.h.b16 %v6557
          %v6597 = vunpack.c.l.b16 %v6558
          %v6598 = vunpack.c.h.b16 %v6558
          %v6599 = vunpack.c.l.b16 %v6559
          %v6600 = vunpack.c.h.b16 %v6559
          %v6601 = vunpack.c.l.b16 %v6560
          %v6602 = vunpack.c.h.b16 %v6560
          %v6603 = vunpack.c.l.b16 %v6561
          %v6604 = vunpack.c.h.b16 %v6561
          %v6605 = vunpack.c.l.b16 %v6562
          %v6606 = vunpack.c.h.b16 %v6562
          %v6607 = vunpack.c.l.b16 %v6563
          %v6608 = vunpack.c.h.b16 %v6563
          %v6609 = vunpack.c.l.b16 %v6564
          %v6610 = vunpack.c.h.b16 %v6564
          %v6611 = vunpack.c.l.b16 %v6565
          %v6612 = vunpack.c.h.b16 %v6565
          %v6613 = vunpack.c.l.b16 %v6566
          %v6614 = vunpack.c.h.b16 %v6566
          %v6615 = vpack.c.b16 %v6583, %v6583
          %v6616 = vpack.c.b16 %v6584, %v6584
          %v6617 = vpack.c.b16 %v6585, %v6585
          %v6618 = vpack.c.b16 %v6586, %v6586
          %v6619 = vpack.c.b16 %v6587, %v6587
          %v6620 = vpack.c.b16 %v6588, %v6588
          %v6621 = vpack.c.b16 %v6589, %v6589
          %v6622 = vpack.c.b16 %v6590, %v6590
          %v6623 = vpack.c.b16 %v6591, %v6591
          %v6624 = vpack.c.b16 %v6592, %v6592
          %v6625 = vpack.c.b16 %v6593, %v6593
          %v6626 = vpack.c.b16 %v6594, %v6594
          %v6627 = vpack.c.b16 %v6595, %v6595
          %v6628 = vpack.c.b16 %v6596, %v6596
          %v6629 = vpack.c.b16 %v6597, %v6597
          %v6630 = vpack.c.b16 %v6598, %v6598
          %v6631 = vpack.c.b16 %v6599, %v6599
          %v6632 = vpack.c.b16 %v6600, %v6600
          %v6633 = vpack.c.b16 %v6601, %v6601
          %v6634 = vpack.c.b16 %v6602, %v6602
          %v6635 = vpack.c.b16 %v6603, %v6603
          %v6636 = vpack.c.b16 %v6604, %v6604
          %v6637 = vpack.c.b16 %v6605, %v6605
          %v6638 = vpack.c.b16 %v6606, %v6606
          %v6639 = vpack.c.b16 %v6607, %v6607
          %v6640 = vpack.c.b16 %v6608, %v6608
          %v6641 = vpack.c.b16 %v6609, %v6609
          %v6642 = vpack.c.b16 %v6610, %v6610
          %v6643 = vpack.c.b16 %v6611, %v6611
          %v6644 = vpack.c.b16 %v6612, %v6612
          %v6645 = vpack.c.b16 %v6613, %v6613
          %v6646 = vpack.c.b16 %v6614, %v6614
          %vm6647 = vsmask.f32 256
          %vm6648 = vsmask.f32 4368
          %vm6649 = vmor %vm6647, %vm6648
          %v6651 = vshrl.u32 %v6615, 16
          %v6653 = vrot.slane %v6651, 7
          %v6654 = vshll.u32 %v6615, 16
          %v6656 = vor.u32 %v6653, %v6654
          %v6657 = vrot.slane %v6653, 4
          %v6659 = vshrl.u32 %v6616, 16
          %v6661 = vrot.slane %v6659, 7
          %v6662 = vshll.u32 %v6616, 16
          %v6664 = vor.u32 %v6661, %v6662
          %v6665 = vsel %vm6649, %v6657, %v6664
          %v6666 = vrot.slane %v6661, 4
          %v6668 = vshrl.u32 %v6617, 16
          %v6670 = vrot.slane %v6668, 7
          %v6671 = vshll.u32 %v6617, 16
          %v6673 = vor.u32 %v6670, %v6671
          %v6674 = vrot.slane %v6670, 4
          %v6676 = vshrl.u32 %v6618, 16
          %v6678 = vrot.slane %v6676, 7
          %v6679 = vshll.u32 %v6618, 16
          %v6681 = vor.u32 %v6678, %v6679
          %v6682 = vsel %vm6649, %v6674, %v6681
          %v6683 = vrot.slane %v6678, 4
          %v6685 = vshrl.u32 %v6619, 16
          %v6687 = vrot.slane %v6685, 7
          %v6688 = vshll.u32 %v6619, 16
          %v6690 = vor.u32 %v6687, %v6688
          %v6691 = vrot.slane %v6687, 4
          %v6693 = vshrl.u32 %v6620, 16
          %v6695 = vrot.slane %v6693, 7
          %v6696 = vshll.u32 %v6620, 16
          %v6698 = vor.u32 %v6695, %v6696
          %v6699 = vsel %vm6649, %v6691, %v6698
          %v6700 = vrot.slane %v6695, 4
          %v6702 = vshrl.u32 %v6621, 16
          %v6704 = vrot.slane %v6702, 7
          %v6705 = vshll.u32 %v6621, 16
          %v6707 = vor.u32 %v6704, %v6705
          %v6708 = vrot.slane %v6704, 4
          %v6710 = vshrl.u32 %v6622, 16
          %v6712 = vrot.slane %v6710, 7
          %v6713 = vshll.u32 %v6622, 16
          %v6715 = vor.u32 %v6712, %v6713
          %v6716 = vsel %vm6649, %v6708, %v6715
          %v6717 = vrot.slane %v6712, 4
          %v6719 = vshrl.u32 %v6623, 16
          %v6721 = vrot.slane %v6719, 7
          %v6722 = vshll.u32 %v6623, 16
          %v6724 = vor.u32 %v6721, %v6722
          %v6725 = vrot.slane %v6721, 4
          %v6727 = vshrl.u32 %v6624, 16
          %v6729 = vrot.slane %v6727, 7
          %v6730 = vshll.u32 %v6624, 16
          %v6732 = vor.u32 %v6729, %v6730
          %v6733 = vsel %vm6649, %v6725, %v6732
          %v6734 = vrot.slane %v6729, 4
          %v6736 = vshrl.u32 %v6625, 16
          %v6738 = vrot.slane %v6736, 7
          %v6739 = vshll.u32 %v6625, 16
          %v6741 = vor.u32 %v6738, %v6739
          %v6742 = vrot.slane %v6738, 4
          %v6744 = vshrl.u32 %v6626, 16
          %v6746 = vrot.slane %v6744, 7
          %v6747 = vshll.u32 %v6626, 16
          %v6749 = vor.u32 %v6746, %v6747
          %v6750 = vsel %vm6649, %v6742, %v6749
          %v6751 = vrot.slane %v6746, 4
          %v6753 = vshrl.u32 %v6627, 16
          %v6755 = vrot.slane %v6753, 7
          %v6756 = vshll.u32 %v6627, 16
          %v6758 = vor.u32 %v6755, %v6756
          %v6759 = vrot.slane %v6755, 4
          %v6761 = vshrl.u32 %v6628, 16
          %v6763 = vrot.slane %v6761, 7
          %v6764 = vshll.u32 %v6628, 16
          %v6766 = vor.u32 %v6763, %v6764
          %v6767 = vsel %vm6649, %v6759, %v6766
          %v6768 = vrot.slane %v6763, 4
          %v6770 = vshrl.u32 %v6629, 16
          %v6772 = vrot.slane %v6770, 7
          %v6773 = vshll.u32 %v6629, 16
          %v6775 = vor.u32 %v6772, %v6773
          %v6776 = vrot.slane %v6772, 4
          %v6778 = vshrl.u32 %v6630, 16
          %v6780 = vrot.slane %v6778, 7
          %v6781 = vshll.u32 %v6630, 16
          %v6783 = vor.u32 %v6780, %v6781
          %v6784 = vsel %vm6649, %v6776, %v6783
          %v6785 = vrot.slane %v6780, 4
          %v6787 = vshrl.u32 %v6631, 16
          %v6789 = vrot.slane %v6787, 7
          %v6790 = vshll.u32 %v6631, 16
          %v6792 = vor.u32 %v6789, %v6790
          %v6793 = vrot.slane %v6789, 4
          %v6795 = vshrl.u32 %v6632, 16
          %v6797 = vrot.slane %v6795, 7
          %v6798 = vshll.u32 %v6632, 16
          %v6800 = vor.u32 %v6797, %v6798
          %v6801 = vsel %vm6649, %v6793, %v6800
          %v6802 = vrot.slane %v6797, 4
          %v6804 = vshrl.u32 %v6633, 16
          %v6806 = vrot.slane %v6804, 7
          %v6807 = vshll.u32 %v6633, 16
          %v6809 = vor.u32 %v6806, %v6807
          %v6810 = vrot.slane %v6806, 4
          %v6812 = vshrl.u32 %v6634, 16
          %v6814 = vrot.slane %v6812, 7
          %v6815 = vshll.u32 %v6634, 16
          %v6817 = vor.u32 %v6814, %v6815
          %v6818 = vsel %vm6649, %v6810, %v6817
          %v6819 = vrot.slane %v6814, 4
          %v6821 = vshrl.u32 %v6635, 16
          %v6823 = vrot.slane %v6821, 7
          %v6824 = vshll.u32 %v6635, 16
          %v6826 = vor.u32 %v6823, %v6824
          %v6827 = vrot.slane %v6823, 4
          %v6829 = vshrl.u32 %v6636, 16
          %v6831 = vrot.slane %v6829, 7
          %v6832 = vshll.u32 %v6636, 16
          %v6834 = vor.u32 %v6831, %v6832
          %v6835 = vsel %vm6649, %v6827, %v6834
          %v6836 = vrot.slane %v6831, 4
          %v6838 = vshrl.u32 %v6637, 16
          %v6840 = vrot.slane %v6838, 7
          %v6841 = vshll.u32 %v6637, 16
          %v6843 = vor.u32 %v6840, %v6841
          %v6844 = vrot.slane %v6840, 4
          %v6846 = vshrl.u32 %v6638, 16
          %v6848 = vrot.slane %v6846, 7
          %v6849 = vshll.u32 %v6638, 16
          %v6851 = vor.u32 %v6848, %v6849
          %v6852 = vsel %vm6649, %v6844, %v6851
          %v6853 = vrot.slane %v6848, 4
          %v6855 = vshrl.u32 %v6639, 16
          %v6857 = vrot.slane %v6855, 7
          %v6858 = vshll.u32 %v6639, 16
          %v6860 = vor.u32 %v6857, %v6858
          %v6861 = vrot.slane %v6857, 4
          %v6863 = vshrl.u32 %v6640, 16
          %v6865 = vrot.slane %v6863, 7
          %v6866 = vshll.u32 %v6640, 16
          %v6868 = vor.u32 %v6865, %v6866
          %v6869 = vsel %vm6649, %v6861, %v6868
          %v6870 = vrot.slane %v6865, 4
          %v6872 = vshrl.u32 %v6641, 16
          %v6874 = vrot.slane %v6872, 7
          %v6875 = vshll.u32 %v6641, 16
          %v6877 = vor.u32 %v6874, %v6875
          %v6878 = vrot.slane %v6874, 4
          %v6880 = vshrl.u32 %v6642, 16
          %v6882 = vrot.slane %v6880, 7
          %v6883 = vshll.u32 %v6642, 16
          %v6885 = vor.u32 %v6882, %v6883
          %v6886 = vsel %vm6649, %v6878, %v6885
          %v6887 = vrot.slane %v6882, 4
          %v6889 = vshrl.u32 %v6643, 16
          %v6891 = vrot.slane %v6889, 7
          %v6892 = vshll.u32 %v6643, 16
          %v6894 = vor.u32 %v6891, %v6892
          %v6895 = vrot.slane %v6891, 4
          %v6897 = vshrl.u32 %v6644, 16
          %v6899 = vrot.slane %v6897, 7
          %v6900 = vshll.u32 %v6644, 16
          %v6902 = vor.u32 %v6899, %v6900
          %v6903 = vsel %vm6649, %v6895, %v6902
          %v6904 = vrot.slane %v6899, 4
          %v6906 = vshrl.u32 %v6645, 16
          %v6908 = vrot.slane %v6906, 7
          %v6909 = vshll.u32 %v6645, 16
          %v6911 = vor.u32 %v6908, %v6909
          %v6912 = vrot.slane %v6908, 4
          %v6914 = vshrl.u32 %v6646, 16
          %v6916 = vrot.slane %v6914, 7
          %v6917 = vshll.u32 %v6646, 16
          %v6919 = vor.u32 %v6916, %v6917
          %v6920 = vsel %vm6649, %v6912, %v6919
          %v6921 = vrot.slane %v6916, 4
          %vm6970 = vcmask 1043456
          %vm6971 = vsmask.f32 7938
          %vm6972 = vmand %vm6970, %vm6971
          %v6973 = vld [vmem:[%s2757] sm:$0xf]
          %v6974 = vsel %vm6972, %v6656, %v6973
          %6975 = vst [vmem:[%s2757] sm:$0xf] %v6974
          %6976 = vst [vmem:[%s2757 + $0x4] sm:$0xf] %v6665
          %vm6977 = vcmask 1040384
          %vm6978 = vmand %vm6977, %vm6647
          %v6979 = vld [vmem:[%s2757 + $0x8] sm:$0x1]
          %v6980 = vsel %vm6978, %v6666, %v6979
          %6981 = vst [vmem:[%s2757 + $0x8] sm:$0x1] %v6980
          %v6982 = vld [vmem:[%s2757 + $0xc] sm:$0xf]
          %v6983 = vsel %vm6972, %v6673, %v6982
          %6984 = vst [vmem:[%s2757 + $0xc] sm:$0xf] %v6983
          %6985 = vst [vmem:[%s2757 + $0x10] sm:$0xf] %v6682
          %v6986 = vld [vmem:[%s2757 + $0x14] sm:$0x1]
          %v6987 = vsel %vm6978, %v6683, %v6986
          %6988 = vst [vmem:[%s2757 + $0x14] sm:$0x1] %v6987
          %v6989 = vld [vmem:[%s2757 + $0x18] sm:$0xf]
          %v6990 = vsel %vm6972, %v6690, %v6989
          %6991 = vst [vmem:[%s2757 + $0x18] sm:$0xf] %v6990
          %6992 = vst [vmem:[%s2757 + $0x1c] sm:$0xf] %v6699
          %v6993 = vld [vmem:[%s2757 + $0x20] sm:$0x1]
          %v6994 = vsel %vm6978, %v6700, %v6993
          %6995 = vst [vmem:[%s2757 + $0x20] sm:$0x1] %v6994
          %v6996 = vld [vmem:[%s2757 + $0x24] sm:$0xf]
          %v6997 = vsel %vm6972, %v6707, %v6996
          %6998 = vst [vmem:[%s2757 + $0x24] sm:$0xf] %v6997
          %6999 = vst [vmem:[%s2757 + $0x28] sm:$0xf] %v6716
          %v7000 = vld [vmem:[%s2757 + $0x2c] sm:$0x1]
          %v7001 = vsel %vm6978, %v6717, %v7000
          %7002 = vst [vmem:[%s2757 + $0x2c] sm:$0x1] %v7001
          %v7003 = vld [vmem:[%s2757 + $0x30] sm:$0xf]
          %v7004 = vsel %vm6972, %v6724, %v7003
          %7005 = vst [vmem:[%s2757 + $0x30] sm:$0xf] %v7004
          %7006 = vst [vmem:[%s2757 + $0x34] sm:$0xf] %v6733
          %v7007 = vld [vmem:[%s2757 + $0x38] sm:$0x1]
          %v7008 = vsel %vm6978, %v6734, %v7007
          %7009 = vst [vmem:[%s2757 + $0x38] sm:$0x1] %v7008
          %v7010 = vld [vmem:[%s2757 + $0x3c] sm:$0xf]
          %v7011 = vsel %vm6972, %v6741, %v7010
          %7012 = vst [vmem:[%s2757 + $0x3c] sm:$0xf] %v7011
          %7013 = vst [vmem:[%s2757 + $0x40] sm:$0xf] %v6750
          %v7014 = vld [vmem:[%s2757 + $0x44] sm:$0x1]
          %v7015 = vsel %vm6978, %v6751, %v7014
          %7016 = vst [vmem:[%s2757 + $0x44] sm:$0x1] %v7015
          %v7017 = vld [vmem:[%s2757 + $0x48] sm:$0xf]
          %v7018 = vsel %vm6972, %v6758, %v7017
          %7019 = vst [vmem:[%s2757 + $0x48] sm:$0xf] %v7018
          %7020 = vst [vmem:[%s2757 + $0x4c] sm:$0xf] %v6767
          %v7021 = vld [vmem:[%s2757 + $0x50] sm:$0x1]
          %v7022 = vsel %vm6978, %v6768, %v7021
          %7023 = vst [vmem:[%s2757 + $0x50] sm:$0x1] %v7022
          %v7024 = vld [vmem:[%s2757 + $0x54] sm:$0xf]
          %v7025 = vsel %vm6972, %v6775, %v7024
          %7026 = vst [vmem:[%s2757 + $0x54] sm:$0xf] %v7025
          %7027 = vst [vmem:[%s2757 + $0x58] sm:$0xf] %v6784
          %v7028 = vld [vmem:[%s2757 + $0x5c] sm:$0x1]
          %v7029 = vsel %vm6978, %v6785, %v7028
          %7030 = vst [vmem:[%s2757 + $0x5c] sm:$0x1] %v7029
          %v7031 = vld [vmem:[%s2757 + $0x60] sm:$0xf]
          %v7032 = vsel %vm6972, %v6792, %v7031
          %7033 = vst [vmem:[%s2757 + $0x60] sm:$0xf] %v7032
          %7034 = vst [vmem:[%s2757 + $0x64] sm:$0xf] %v6801
          %v7035 = vld [vmem:[%s2757 + $0x68] sm:$0x1]
          %v7036 = vsel %vm6978, %v6802, %v7035
          %7037 = vst [vmem:[%s2757 + $0x68] sm:$0x1] %v7036
          %v7038 = vld [vmem:[%s2757 + $0x6c] sm:$0xf]
          %v7039 = vsel %vm6972, %v6809, %v7038
          %7040 = vst [vmem:[%s2757 + $0x6c] sm:$0xf] %v7039
          %7041 = vst [vmem:[%s2757 + $0x70] sm:$0xf] %v6818
          %v7042 = vld [vmem:[%s2757 + $0x74] sm:$0x1]
          %v7043 = vsel %vm6978, %v6819, %v7042
          %7044 = vst [vmem:[%s2757 + $0x74] sm:$0x1] %v7043
          %v7045 = vld [vmem:[%s2757 + $0x78] sm:$0xf]
          %v7046 = vsel %vm6972, %v6826, %v7045
          %7047 = vst [vmem:[%s2757 + $0x78] sm:$0xf] %v7046
          %7048 = vst [vmem:[%s2757 + $0x7c] sm:$0xf] %v6835
          %v7049 = vld [vmem:[%s2757 + $0x80] sm:$0x1]
          %v7050 = vsel %vm6978, %v6836, %v7049
          %7051 = vst [vmem:[%s2757 + $0x80] sm:$0x1] %v7050
          %v7052 = vld [vmem:[%s2757 + $0x84] sm:$0xf]
          %v7053 = vsel %vm6972, %v6843, %v7052
          %7054 = vst [vmem:[%s2757 + $0x84] sm:$0xf] %v7053
          %7055 = vst [vmem:[%s2757 + $0x88] sm:$0xf] %v6852
          %v7056 = vld [vmem:[%s2757 + $0x8c] sm:$0x1]
          %v7057 = vsel %vm6978, %v6853, %v7056
          %7058 = vst [vmem:[%s2757 + $0x8c] sm:$0x1] %v7057
          %v7059 = vld [vmem:[%s2757 + $0x90] sm:$0xf]
          %v7060 = vsel %vm6972, %v6860, %v7059
          %7061 = vst [vmem:[%s2757 + $0x90] sm:$0xf] %v7060
          %7062 = vst [vmem:[%s2757 + $0x94] sm:$0xf] %v6869
          %v7063 = vld [vmem:[%s2757 + $0x98] sm:$0x1]
          %v7064 = vsel %vm6978, %v6870, %v7063
          %7065 = vst [vmem:[%s2757 + $0x98] sm:$0x1] %v7064
          %v7066 = vld [vmem:[%s2757 + $0x9c] sm:$0xf]
          %v7067 = vsel %vm6972, %v6877, %v7066
          %7068 = vst [vmem:[%s2757 + $0x9c] sm:$0xf] %v7067
          %7069 = vst [vmem:[%s2757 + $0xa0] sm:$0xf] %v6886
          %v7070 = vld [vmem:[%s2757 + $0xa4] sm:$0x1]
          %v7071 = vsel %vm6978, %v6887, %v7070
          %7072 = vst [vmem:[%s2757 + $0xa4] sm:$0x1] %v7071
          %v7073 = vld [vmem:[%s2757 + $0xa8] sm:$0xf]
          %v7074 = vsel %vm6972, %v6894, %v7073
          %7075 = vst [vmem:[%s2757 + $0xa8] sm:$0xf] %v7074
          %7076 = vst [vmem:[%s2757 + $0xac] sm:$0xf] %v6903
          %v7077 = vld [vmem:[%s2757 + $0xb0] sm:$0x1]
          %v7078 = vsel %vm6978, %v6904, %v7077
          %7079 = vst [vmem:[%s2757 + $0xb0] sm:$0x1] %v7078
          %v7080 = vld [vmem:[%s2757 + $0xb4] sm:$0xf]
          %v7081 = vsel %vm6972, %v6911, %v7080
          %7082 = vst [vmem:[%s2757 + $0xb4] sm:$0xf] %v7081
          %7083 = vst [vmem:[%s2757 + $0xb8] sm:$0xf] %v6920
          %v7084 = vld [vmem:[%s2757 + $0xbc] sm:$0x1]
          %v7085 = vsel %vm6978, %v6921, %v7084
          %7086 = vst [vmem:[%s2757 + $0xbc] sm:$0x1] %v7085
        $region48: #{_lambda_.1} parent=31 // pred_fallthru
          _
        %p7087 = scmp.eq.s32.totalorder %s25, 9
        // Predicated region
        $region49: #{_lambda_.1} parent=31 // pred_check
          %p7088 = pneg %p7087
        $region50: #{_lambda_.1} parent=31 // pred_check_branch
          %7090 = sbr.rel (%p7088) target = $region52
        $region51: #{_lambda_.1} parent=31 // pred_region
          %v7091 = vld [vmem:[#allocation3] sm:$0xff]
          %v7092 = vld [vmem:[#allocation3 + $0x8] sm:$0xff]
          %v7093 = vld [vmem:[#allocation3 + $0x10] sm:$0xff]
          %v7094 = vld [vmem:[#allocation3 + $0x18] sm:$0xff]
          %v7095 = vld [vmem:[#allocation3 + $0x20] sm:$0xff]
          %v7096 = vld [vmem:[#allocation3 + $0x28] sm:$0xff]
          %v7097 = vld [vmem:[#allocation3 + $0x30] sm:$0xff]
          %v7098 = vld [vmem:[#allocation3 + $0x38] sm:$0xff]
          %v7099 = vld [vmem:[#allocation3 + $0x40] sm:$0xff]
          %v7100 = vld [vmem:[#allocation3 + $0x48] sm:$0xff]
          %v7101 = vld [vmem:[#allocation3 + $0x50] sm:$0xff]
          %v7102 = vld [vmem:[#allocation3 + $0x58] sm:$0xff]
          %v7103 = vld [vmem:[#allocation3 + $0x60] sm:$0xff]
          %v7104 = vld [vmem:[#allocation3 + $0x68] sm:$0xff]
          %v7105 = vld [vmem:[#allocation3 + $0x70] sm:$0xff]
          %v7106 = vld [vmem:[#allocation3 + $0x78] sm:$0xff]
          %v7107 = vld [vmem:[#allocation3 + $0x80] sm:$0xff]
          %v7108 = vld [vmem:[#allocation3 + $0x88] sm:$0xff]
          %v7109 = vld [vmem:[#allocation3 + $0x90] sm:$0xff]
          %v7110 = vld [vmem:[#allocation3 + $0x98] sm:$0xff]
          %v7111 = vld [vmem:[#allocation3 + $0xa0] sm:$0xff]
          %v7112 = vld [vmem:[#allocation3 + $0xa8] sm:$0xff]
          %v7113 = vld [vmem:[#allocation3 + $0xb0] sm:$0xff]
          %v7114 = vld [vmem:[#allocation3 + $0xb8] sm:$0xff]
          %v7115 = vld [vmem:[#allocation3 + $0xc0] sm:$0xff]
          %v7116 = vld [vmem:[#allocation3 + $0xc8] sm:$0xff]
          %v7117 = vld [vmem:[#allocation3 + $0xd0] sm:$0xff]
          %v7118 = vld [vmem:[#allocation3 + $0xd8] sm:$0xff]
          %v7119 = vld [vmem:[#allocation3 + $0xe0] sm:$0xff]
          %v7120 = vld [vmem:[#allocation3 + $0xe8] sm:$0xff]
          %v7121 = vld [vmem:[#allocation3 + $0xf0] sm:$0xff]
          %v7122 = vld [vmem:[#allocation3 + $0xf8] sm:$0xff]
          %v7123 = vxor.u32 %v7091, 2147483648
          %v7124 = vxor.u32 %v7092, 2147483648
          %v7125 = vxor.u32 %v7093, 2147483648
          %v7126 = vxor.u32 %v7094, 2147483648
          %v7127 = vxor.u32 %v7095, 2147483648
          %v7128 = vxor.u32 %v7096, 2147483648
          %v7129 = vxor.u32 %v7097, 2147483648
          %v7130 = vxor.u32 %v7098, 2147483648
          %v7131 = vxor.u32 %v7099, 2147483648
          %v7132 = vxor.u32 %v7100, 2147483648
          %v7133 = vxor.u32 %v7101, 2147483648
          %v7134 = vxor.u32 %v7102, 2147483648
          %v7135 = vxor.u32 %v7103, 2147483648
          %v7136 = vxor.u32 %v7104, 2147483648
          %v7137 = vxor.u32 %v7105, 2147483648
          %v7138 = vxor.u32 %v7106, 2147483648
          %v7139 = vxor.u32 %v7107, 2147483648
          %v7140 = vxor.u32 %v7108, 2147483648
          %v7141 = vxor.u32 %v7109, 2147483648
          %v7142 = vxor.u32 %v7110, 2147483648
          %v7143 = vxor.u32 %v7111, 2147483648
          %v7144 = vxor.u32 %v7112, 2147483648
          %v7145 = vxor.u32 %v7113, 2147483648
          %v7146 = vxor.u32 %v7114, 2147483648
          %v7147 = vxor.u32 %v7115, 2147483648
          %v7148 = vxor.u32 %v7116, 2147483648
          %v7149 = vxor.u32 %v7117, 2147483648
          %v7150 = vxor.u32 %v7118, 2147483648
          %v7151 = vxor.u32 %v7119, 2147483648
          %v7152 = vxor.u32 %v7120, 2147483648
          %v7153 = vxor.u32 %v7121, 2147483648
          %v7154 = vxor.u32 %v7122, 2147483648
          %v7155 = vmul.f32 %v7123, 1.442695
          %v7156 = vpow.pop %v7155
          %v7157 = vmul.f32 %v7124, 1.442695
          %v7158 = vpow.pop %v7157
          %v7159 = vmul.f32 %v7125, 1.442695
          %v7160 = vpow.pop %v7159
          %v7161 = vmul.f32 %v7126, 1.442695
          %v7162 = vpow.pop %v7161
          %v7163 = vmul.f32 %v7127, 1.442695
          %v7164 = vpow.pop %v7163
          %v7165 = vmul.f32 %v7128, 1.442695
          %v7166 = vpow.pop %v7165
          %v7167 = vmul.f32 %v7129, 1.442695
          %v7168 = vpow.pop %v7167
          %v7169 = vmul.f32 %v7130, 1.442695
          %v7170 = vpow.pop %v7169
          %v7171 = vmul.f32 %v7131, 1.442695
          %v7172 = vpow.pop %v7171
          %v7173 = vmul.f32 %v7132, 1.442695
          %v7174 = vpow.pop %v7173
          %v7175 = vmul.f32 %v7133, 1.442695
          %v7176 = vpow.pop %v7175
          %v7177 = vmul.f32 %v7134, 1.442695
          %v7178 = vpow.pop %v7177
          %v7179 = vmul.f32 %v7135, 1.442695
          %v7180 = vpow.pop %v7179
          %v7181 = vmul.f32 %v7136, 1.442695
          %v7182 = vpow.pop %v7181
          %v7183 = vmul.f32 %v7137, 1.442695
          %v7184 = vpow.pop %v7183
          %v7185 = vmul.f32 %v7138, 1.442695
          %v7186 = vpow.pop %v7185
          %v7187 = vmul.f32 %v7139, 1.442695
          %v7188 = vpow.pop %v7187
          %v7189 = vmul.f32 %v7140, 1.442695
          %v7190 = vpow.pop %v7189
          %v7191 = vmul.f32 %v7141, 1.442695
          %v7192 = vpow.pop %v7191
          %v7193 = vmul.f32 %v7142, 1.442695
          %v7194 = vpow.pop %v7193
          %v7195 = vmul.f32 %v7143, 1.442695
          %v7196 = vpow.pop %v7195
          %v7197 = vmul.f32 %v7144, 1.442695
          %v7198 = vpow.pop %v7197
          %v7199 = vmul.f32 %v7145, 1.442695
          %v7200 = vpow.pop %v7199
          %v7201 = vmul.f32 %v7146, 1.442695
          %v7202 = vpow.pop %v7201
          %v7203 = vmul.f32 %v7147, 1.442695
          %v7204 = vpow.pop %v7203
          %v7205 = vmul.f32 %v7148, 1.442695
          %v7206 = vpow.pop %v7205
          %v7207 = vmul.f32 %v7149, 1.442695
          %v7208 = vpow.pop %v7207
          %v7209 = vmul.f32 %v7150, 1.442695
          %v7210 = vpow.pop %v7209
          %v7211 = vmul.f32 %v7151, 1.442695
          %v7212 = vpow.pop %v7211
          %v7213 = vmul.f32 %v7152, 1.442695
          %v7214 = vpow.pop %v7213
          %v7215 = vmul.f32 %v7153, 1.442695
          %v7216 = vpow.pop %v7215
          %v7217 = vmul.f32 %v7154, 1.442695
          %v7218 = vpow.pop %v7217
          %v7219 = vadd.f32 %v7156, 1.0
          %v7220 = vadd.f32 %v7158, 1.0
          %v7221 = vadd.f32 %v7160, 1.0
          %v7222 = vadd.f32 %v7162, 1.0
          %v7223 = vadd.f32 %v7164, 1.0
          %v7224 = vadd.f32 %v7166, 1.0
          %v7225 = vadd.f32 %v7168, 1.0
          %v7226 = vadd.f32 %v7170, 1.0
          %v7227 = vadd.f32 %v7172, 1.0
          %v7228 = vadd.f32 %v7174, 1.0
          %v7229 = vadd.f32 %v7176, 1.0
          %v7230 = vadd.f32 %v7178, 1.0
          %v7231 = vadd.f32 %v7180, 1.0
          %v7232 = vadd.f32 %v7182, 1.0
          %v7233 = vadd.f32 %v7184, 1.0
          %v7234 = vadd.f32 %v7186, 1.0
          %v7235 = vadd.f32 %v7188, 1.0
          %v7236 = vadd.f32 %v7190, 1.0
          %v7237 = vadd.f32 %v7192, 1.0
          %v7238 = vadd.f32 %v7194, 1.0
          %v7239 = vadd.f32 %v7196, 1.0
          %v7240 = vadd.f32 %v7198, 1.0
          %v7241 = vadd.f32 %v7200, 1.0
          %v7242 = vadd.f32 %v7202, 1.0
          %v7243 = vadd.f32 %v7204, 1.0
          %v7244 = vadd.f32 %v7206, 1.0
          %v7245 = vadd.f32 %v7208, 1.0
          %v7246 = vadd.f32 %v7210, 1.0
          %v7247 = vadd.f32 %v7212, 1.0
          %v7248 = vadd.f32 %v7214, 1.0
          %v7249 = vadd.f32 %v7216, 1.0
          %v7250 = vadd.f32 %v7218, 1.0
          %v7251 = vrcp.pop %v7219
          %v7252 = vmul.f32 1.0, %v7251
          %v7253 = vrcp.pop %v7220
          %v7254 = vmul.f32 1.0, %v7253
          %v7255 = vrcp.pop %v7221
          %v7256 = vmul.f32 1.0, %v7255
          %v7257 = vrcp.pop %v7222
          %v7258 = vmul.f32 1.0, %v7257
          %v7259 = vrcp.pop %v7223
          %v7260 = vmul.f32 1.0, %v7259
          %v7261 = vrcp.pop %v7224
          %v7262 = vmul.f32 1.0, %v7261
          %v7263 = vrcp.pop %v7225
          %v7264 = vmul.f32 1.0, %v7263
          %v7265 = vrcp.pop %v7226
          %v7266 = vmul.f32 1.0, %v7265
          %v7267 = vrcp.pop %v7227
          %v7268 = vmul.f32 1.0, %v7267
          %v7269 = vrcp.pop %v7228
          %v7270 = vmul.f32 1.0, %v7269
          %v7271 = vrcp.pop %v7229
          %v7272 = vmul.f32 1.0, %v7271
          %v7273 = vrcp.pop %v7230
          %v7274 = vmul.f32 1.0, %v7273
          %v7275 = vrcp.pop %v7231
          %v7276 = vmul.f32 1.0, %v7275
          %v7277 = vrcp.pop %v7232
          %v7278 = vmul.f32 1.0, %v7277
          %v7279 = vrcp.pop %v7233
          %v7280 = vmul.f32 1.0, %v7279
          %v7281 = vrcp.pop %v7234
          %v7282 = vmul.f32 1.0, %v7281
          %v7283 = vrcp.pop %v7235
          %v7284 = vmul.f32 1.0, %v7283
          %v7285 = vrcp.pop %v7236
          %v7286 = vmul.f32 1.0, %v7285
          %v7287 = vrcp.pop %v7237
          %v7288 = vmul.f32 1.0, %v7287
          %v7289 = vrcp.pop %v7238
          %v7290 = vmul.f32 1.0, %v7289
          %v7291 = vrcp.pop %v7239
          %v7292 = vmul.f32 1.0, %v7291
          %v7293 = vrcp.pop %v7240
          %v7294 = vmul.f32 1.0, %v7293
          %v7295 = vrcp.pop %v7241
          %v7296 = vmul.f32 1.0, %v7295
          %v7297 = vrcp.pop %v7242
          %v7298 = vmul.f32 1.0, %v7297
          %v7299 = vrcp.pop %v7243
          %v7300 = vmul.f32 1.0, %v7299
          %v7301 = vrcp.pop %v7244
          %v7302 = vmul.f32 1.0, %v7301
          %v7303 = vrcp.pop %v7245
          %v7304 = vmul.f32 1.0, %v7303
          %v7305 = vrcp.pop %v7246
          %v7306 = vmul.f32 1.0, %v7305
          %v7307 = vrcp.pop %v7247
          %v7308 = vmul.f32 1.0, %v7307
          %v7309 = vrcp.pop %v7248
          %v7310 = vmul.f32 1.0, %v7309
          %v7311 = vrcp.pop %v7249
          %v7312 = vmul.f32 1.0, %v7311
          %v7313 = vrcp.pop %v7250
          %v7314 = vmul.f32 1.0, %v7313
          %7315 = vst [vmem:[%s256] sm:$0xff] %v7252
          %7316 = vst [vmem:[%s256 + $0x8] sm:$0xff] %v7254
          %7317 = vst [vmem:[%s256 + $0x10] sm:$0xff] %v7256
          %7318 = vst [vmem:[%s256 + $0x18] sm:$0xff] %v7258
          %7319 = vst [vmem:[%s256 + $0x20] sm:$0xff] %v7260
          %7320 = vst [vmem:[%s256 + $0x28] sm:$0xff] %v7262
          %7321 = vst [vmem:[%s256 + $0x30] sm:$0xff] %v7264
          %7322 = vst [vmem:[%s256 + $0x38] sm:$0xff] %v7266
          %7323 = vst [vmem:[%s256 + $0x40] sm:$0xff] %v7268
          %7324 = vst [vmem:[%s256 + $0x48] sm:$0xff] %v7270
          %7325 = vst [vmem:[%s256 + $0x50] sm:$0xff] %v7272
          %7326 = vst [vmem:[%s256 + $0x58] sm:$0xff] %v7274
          %7327 = vst [vmem:[%s256 + $0x60] sm:$0xff] %v7276
          %7328 = vst [vmem:[%s256 + $0x68] sm:$0xff] %v7278
          %7329 = vst [vmem:[%s256 + $0x70] sm:$0xff] %v7280
          %7330 = vst [vmem:[%s256 + $0x78] sm:$0xff] %v7282
          %7331 = vst [vmem:[%s256 + $0x80] sm:$0xff] %v7284
          %7332 = vst [vmem:[%s256 + $0x88] sm:$0xff] %v7286
          %7333 = vst [vmem:[%s256 + $0x90] sm:$0xff] %v7288
          %7334 = vst [vmem:[%s256 + $0x98] sm:$0xff] %v7290
          %7335 = vst [vmem:[%s256 + $0xa0] sm:$0xff] %v7292
          %7336 = vst [vmem:[%s256 + $0xa8] sm:$0xff] %v7294
          %7337 = vst [vmem:[%s256 + $0xb0] sm:$0xff] %v7296
          %7338 = vst [vmem:[%s256 + $0xb8] sm:$0xff] %v7298
          %7339 = vst [vmem:[%s256 + $0xc0] sm:$0xff] %v7300
          %7340 = vst [vmem:[%s256 + $0xc8] sm:$0xff] %v7302
          %7341 = vst [vmem:[%s256 + $0xd0] sm:$0xff] %v7304
          %7342 = vst [vmem:[%s256 + $0xd8] sm:$0xff] %v7306
          %7343 = vst [vmem:[%s256 + $0xe0] sm:$0xff] %v7308
          %7344 = vst [vmem:[%s256 + $0xe8] sm:$0xff] %v7310
          %7345 = vst [vmem:[%s256 + $0xf0] sm:$0xff] %v7312
          %7346 = vst [vmem:[%s256 + $0xf8] sm:$0xff] %v7314
        $region52: #{_lambda_.1} parent=31 // pred_fallthru
          _
        %p7347 = scmp.lt.s32.totalorder %s24, 1
        %s7348 = scalar_select %p7347, %s24, 1
        %s7349 = smul.addr %s7348, 32
        %s7350 = smul.addr %s7349, 8
        %s7351 = scalar_lea.vmem %s3, %s7350
        // Predicated region
        $region53: #{_lambda_.1} parent=31 // pred_check
          %p7352 = pneg %p128
        $region54: #{_lambda_.1} parent=31 // pred_check_branch
          %7354 = sbr.rel (%p7352) target = $region56
        $region55: #{_lambda_.1} parent=31 // pred_region
          _
        $region56: #{_lambda_.1} parent=31 // pred_fallthru
          _
      $region32: #{_lambda_.1} parent=5 // pred_fallthru
        _
      %p7355 = scmp.le.s32.totalorder 2, %s15
      // Predicated region
      $region57: #{_lambda_.1} parent=5 // pred_check
        %p7356 = pneg %p7355
      $region58: #{_lambda_.1} parent=5 // pred_check_branch
        %7358 = sbr.rel (%p7356) target = $region60
      $region59: #{_lambda_.1} parent=5 // pred_region
        %s7359 = ssub.s32 %s15, 2
        // Predicated region
        $region61: #{_lambda_.1} parent=59 // pred_check
          %p7360 = pneg %p134
        $region62: #{_lambda_.1} parent=59 // pred_check_branch
          %7362 = sbr.rel (%p7360) target = $region64
        $region63: #{_lambda_.1} parent=59 // pred_region
          %p7363 = scmp.lt.s32.totalorder %s26, 1
          %s7364 = scalar_select %p7363, %s26, 1
          %s7365 = smul.addr %s7364, 32
          %s7366 = smul.addr %s7365, 8
          %s7367 = scalar_lea.vmem %s3, %s7366
        $region64: #{_lambda_.1} parent=59 // pred_fallthru
          _
      $region60: #{_lambda_.1} parent=5 // pred_fallthru
        _
    $region6: #{_lambda_.1} parent=1 // loop_footer
      %s19 = sadd.s32 1, %s15
    $region7: #{_lambda_.1} parent=1 // loop_footer_branch
      %14 = sbr.rel target = $region3
    $region8: #{_lambda_.1} parent=1 // loop_exit
      _
    %7368 = vsyncpa [#allocation5], 1
    %s7369 = scalar_lea.sflag [#allocation5], 1
    %7370 = vsyncpa %s7369, 1
    %7371 = vsyncpa [#allocation7], 1
    %s7372 = scalar_lea.sflag [#allocation7], 1
    %7373 = vsyncpa %s7372, 1

</llo_original>
